<compile_context>
chip_gen: v6e
topology: v6e:2x2x1
jax: 0.10.0
libtpu: 0.0.40
codegen_flags: <defaults>
</compile_context>

<pallas_src>
import numpy as np
import jax
import jax.numpy as jnp
from jax import lax
from jax.experimental import pallas as pl
from jax.experimental.pallas import tpu as pltpu

# ------------------------- model hyper-parameters (small) -------------------------
D_MODEL  = 32
D_FFN    = 64
N_HEADS  = 4
N_LEVELS = 2
N_POINTS = 2
D_HEAD   = D_MODEL // N_HEADS
LN_EPS   = 1e-5
LP  = N_LEVELS * N_POINTS           # points per head
HLP = N_HEADS * LP                  # total sampling points per query


def _tree_sum(terms):
    """Balanced-tree sum to shorten the serial accumulation dependency chain."""
    while len(terms) > 1:
        nxt = [terms[i] + terms[i + 1] for i in range(0, len(terms) - 1, 2)]
        if len(terms) % 2:
            nxt.append(terms[-1])
        terms = nxt
    return terms[0]


# =================================== kernel ===================================
def _encoder_layer_kernel(src_ref, pos_ref, ref_ref,
                          rc_ref, grp_ref, hmask_ref,                # constant tables
                          w_in_ref, b_in_ref, wout_ref, bout_ref,
                          g1_ref, be1_ref, w1_ref, b1_ref,
                          w2_ref, b2_ref, g2_ref, be2_ref,
                          out_ref):
    H, L, P, D = N_HEADS, N_LEVELS, N_POINTS, D_MODEL

    src = src_ref[...]                      # (Lq, D)
    pos = pos_ref[...]                      # (Lq, D)
    ref = ref_ref[...]                      # (Lq, 2L): [x_l0, y_l0, x_l1, y_l1, ...]

    # ------------- ONE fused MXU matmul: value / sampling coords / attention logits -------------
    # [src | pos | ref] @ W_fused + b_fused
    #   value  = src @ wv + bv
    #   x      = (src+pos) @ woff_x + boff_x + ref @ sel_x - 0.5   (== (rx + ox/W)*W - 0.5)
    #   y      = (src+pos) @ woff_y + boff_y + ref @ sel_y - 0.5
    #   logits = (src+pos) @ wattn + battn
    xin = jnp.concatenate([src, pos, ref], axis=1)                    # (Lq, 2D + 2L)
    proj = jnp.dot(xin, w_in_ref[...],
                   preferred_element_type=jnp.float32) + b_in_ref[...]
    value  = proj[:, :D]                                              # (Lq, D)
    x      = proj[:, D:D + HLP]                                       # (Lq, HLP)
    y      = proj[:, D + HLP:D + 2 * HLP]                             # (Lq, HLP)
    logits = proj[:, D + 2 * HLP:]                                    # (Lq, HLP)

    # ---------------- grouped softmax (per head over L*P), fully vectorized ----------------
    mx = jnp.max(logits, axis=-1, keepdims=True)        # row max (shift-invariant per group)
    e = jnp.exp(logits - mx)
    gsum = jnp.dot(e, grp_ref[...], preferred_element_type=jnp.float32)  # per-group sums broadcast
    aw = e * pl.reciprocal(gsum, approx=True)                            # (Lq, HLP)

    # ---------------- bilinear corner coords / weights for ALL H*L*P points at once ----------------
    x0 = jnp.floor(x)
    y0 = jnp.floor(y)
    lx = x - x0
    ly = y - y0
    x1 = x0 + 1.0
    y1 = y0 + 1.0

    a_ylo = aw * (1.0 - ly)      # attention weight folded into the row weights
    a_yhi = aw * ly
    c_xlo = 1.0 - lx
    c_xhi = lx

    rc = rc_ref[...]             # (2L, Lin) f32: [irow_l ; icol_l] per level, sentinel off-level

    # ---------------- per-head sampling matrices (row x col separable, one pass per point) ----------------
    head_S = []
    for h in range(H):
        terms = []
        for l in range(L):
            irow = rc[2 * l:2 * l + 1, :]              # (1, Lin)
            icol = rc[2 * l + 1:2 * l + 2, :]
            for p in range(P):
                j = (h * L + l) * P + p
                rw = jnp.where(irow == y0[:, j:j + 1], a_ylo[:, j:j + 1],
                               jnp.where(irow == y1[:, j:j + 1], a_yhi[:, j:j + 1], 0.0))
                cw = jnp.where(icol == x0[:, j:j + 1], c_xlo[:, j:j + 1],
                               jnp.where(icol == x1[:, j:j + 1], c_xhi[:, j:j + 1], 0.0))
                terms.append(rw * cw)                  # (Lq, Lin)
        head_S.append(_tree_sum(terms))
    S_cat = jnp.concatenate(head_S, axis=1)            # (Lq, H*Lin)

    # ---------------- all heads contracted in ONE MXU call via block-diagonal value ----------------
    hmask = hmask_ref[...]                             # (H, D) per-head column mask
    v_bd = jnp.concatenate([value * hmask[h:h + 1, :] for h in range(H)], axis=0)   # (H*Lin, D)
    msda = jnp.dot(S_cat, v_bd, preferred_element_type=jnp.float32)                 # (Lq, D)

    src2 = jnp.dot(msda, wout_ref[...], preferred_element_type=jnp.float32) + bout_ref[...]

    # ---------------- residual + LayerNorm1 (dropout = identity) ----------------
    xa = src + src2
    mu = jnp.mean(xa, axis=-1, keepdims=True)
    var = jnp.mean((xa - mu) ** 2, axis=-1, keepdims=True)
    xa = (xa - mu) * lax.rsqrt(var + LN_EPS) * g1_ref[...] + be1_ref[...]

    # ---------------- FFN: linear1 -> relu -> linear2 -> residual -> LayerNorm2 ----------------
    hdn = jnp.maximum(
        jnp.dot(xa, w1_ref[...], preferred_element_type=jnp.float32) + b1_ref[...], 0.0)
    xb = xa + jnp.dot(hdn, w2_ref[...], preferred_element_type=jnp.float32) + b2_ref[...]
    mu = jnp.mean(xb, axis=-1, keepdims=True)
    var = jnp.mean((xb - mu) ** 2, axis=-1, keepdims=True)
    xb = (xb - mu) * lax.rsqrt(var + LN_EPS) * g2_ref[...] + be2_ref[...]

    out_ref[...] = xb.astype(out_ref.dtype)


# =================================== wrapper ===================================
def deformable_encoder_layer(src, pos, reference_points, spatial_shapes,
                             level_start_index, params):
    N, Lq, D = src.shape
    ss = np.asarray(spatial_shapes).astype(np.int64)      # compile-time constants
    lsi = np.asarray(level_start_index).astype(np.int64)
    L = ss.shape[0]
    assert L == N_LEVELS and D == D_MODEL
    Lin = Lq                                               # encoder: Len_q == Len_in

    ref2d = reference_points.reshape(N, Lq, L * 2)

    # -------- host-precomputed constant tables (pure layout / index plumbing) --------
    lvl_of = (np.arange(HLP) // N_POINTS) % N_LEVELS

    # sel: placed in the fused weight so that ref @ sel lands on the x/y coordinate columns
    # with the per-level (W, H) scale already applied: contributes [rx*W_l | ry*H_l].
    sel = np.zeros((2 * L, 3 * HLP), np.float32)
    for j in range(HLP):
        l = int(lvl_of[j])
        sel[2 * l, j] = float(ss[l, 1])                    # W_l -> x column j
        sel[2 * l + 1, HLP + j] = float(ss[l, 0])          # H_l -> y column j

    SENT = -1048576.0
    rc = np.full((2 * L, Lin), SENT, np.float32)           # [irow_l ; icol_l] per level
    for l in range(L):
        Hl, Wl = int(ss[l, 0]), int(ss[l, 1])
        start = int(lsi[l])
        c = np.arange(start, start + Hl * Wl)
        rc[2 * l, c] = (c - start) // Wl
        rc[2 * l + 1, c] = (c - start) % Wl

    grp = (np.arange(HLP)[:, None] // LP ==
           np.arange(HLP)[None, :] // LP).astype(np.float32)          # (HLP, HLP) group-sum matrix

    hmask = np.zeros((N_HEADS, D_MODEL), np.float32)
    for h in range(N_HEADS):
        hmask[h, h * D_HEAD:(h + 1) * D_HEAD] = 1.0

    # -------- fully fused input-projection weights: rows = [src | pos | ref] --------
    # columns = [value (D) | x coords (HLP) | y coords (HLP) | attn logits (HLP)]
    perm = np.concatenate([np.arange(HLP) * 2, np.arange(HLP) * 2 + 1])   # x-block | y-block
    woff_p = params["woff"][:, perm]
    w_in = jnp.concatenate([
        jnp.concatenate([params["wv"], woff_p, params["wattn"]], axis=1),                        # src rows
        jnp.concatenate([jnp.zeros((D_MODEL, D_MODEL), jnp.float32), woff_p, params["wattn"]],
                        axis=1),                                                                  # pos rows
        jnp.concatenate([jnp.zeros((2 * L, D_MODEL), jnp.float32), jnp.asarray(sel)], axis=1),    # ref rows
    ], axis=0)                                                            # (2D + 2L, D + 3*HLP)
    # -0.5 coordinate shift folded into the offset bias columns.
    b_in = jnp.concatenate([params["bv"], params["boff"][:, perm] - 0.5, params["battn"]], axis=1)

    consts = [jnp.asarray(rc), jnp.asarray(grp), jnp.asarray(hmask)]
    weights = [w_in, b_in, params["wout"], params["bout"],
               params["g1"], params["be1"], params["w1"], params["b1"],
               params["w2"], params["b2"], params["g2"], params["be2"]]

    def batch_spec(arr):
        return pl.BlockSpec((None,) + arr.shape[1:], lambda b: (b, 0, 0))

    def const_spec(arr):
        nd = arr.ndim
        return pl.BlockSpec(arr.shape, lambda b, _nd=nd: (0,) * _nd)

    fn = pl.pallas_call(
        _encoder_layer_kernel,
        out_shape=jax.ShapeDtypeStruct((N, Lq, D), jnp.float32),
        grid=(N,),
        in_specs=[batch_spec(src), batch_spec(pos), batch_spec(ref2d)]
                 + [const_spec(a) for a in consts]
                 + [const_spec(w) for w in weights],
        out_specs=pl.BlockSpec((None, Lq, D), lambda b: (b, 0, 0)),
        compiler_params=pltpu.CompilerParams(dimension_semantics=("parallel",)),
    )
    return fn(src, pos, ref2d, *consts, *weights)


# =================================== params ===================================
def init_params(key):
    ks = jax.random.split(key, 10)

    def lin(k, din, dout, scale=0.05):
        kw, kb = jax.random.split(k)
        return (scale * jax.random.normal(kw, (din, dout), jnp.float32),
                scale * jax.random.normal(kb, (1, dout), jnp.float32))

    p = {}
    p["wv"],    p["bv"]    = lin(ks[0], D_MODEL, D_MODEL)
    p["woff"],  p["boff"]  = lin(ks[1], D_MODEL, N_HEADS * N_LEVELS * N_POINTS * 2)
    p["wattn"], p["battn"] = lin(ks[2], D_MODEL, N_HEADS * N_LEVELS * N_POINTS)
    p["wout"],  p["bout"]  = lin(ks[3], D_MODEL, D_MODEL)
    p["w1"],    p["b1"]    = lin(ks[4], D_MODEL, D_FFN)
    p["w2"],    p["b2"]    = lin(ks[5], D_FFN, D_MODEL)
    p["g1"]  = 1.0 + 0.05 * jax.random.normal(ks[6], (1, D_MODEL), jnp.float32)
    p["be1"] = 0.05 * jax.random.normal(ks[7], (1, D_MODEL), jnp.float32)
    p["g2"]  = 1.0 + 0.05 * jax.random.normal(ks[8], (1, D_MODEL), jnp.float32)
    p["be2"] = 0.05 * jax.random.normal(ks[9], (1, D_MODEL), jnp.float32)
    return p


# =================================== pure-JAX reference ===================================
def reference_layer(src, pos, reference_points, spatial_list, level_start_list, p):
    N, Lq, D = src.shape
    H, L, P, Dh = N_HEADS, N_LEVELS, N_POINTS, D_HEAD
    query = src + pos
    value = src @ p["wv"] + p["bv"]
    Lin = value.shape[1]
    value = value.reshape(N, Lin, H, Dh)
    offs = (query @ p["woff"] + p["boff"]).reshape(N, Lq, H, L, P, 2)
    attn = (query @ p["wattn"] + p["battn"]).reshape(N, Lq, H, L * P)
    attn = jax.nn.softmax(attn, axis=-1).reshape(N, Lq, H, L, P)

    out = jnp.zeros((N, Lq, H, Dh), jnp.float32)
    bidx = jnp.arange(N)[:, None, None, None]
    hidx = jnp.arange(H)[None, None, :, None]
    for l in range(L):
        Hl, Wl = int(spatial_list[l][0]), int(spatial_list[l][1])
        start = int(level_start_list[l])
        loc_x = reference_points[:, :, None, l, None, 0] + offs[:, :, :, l, :, 0] / Wl
        loc_y = reference_points[:, :, None, l, None, 1] + offs[:, :, :, l, :, 1] / Hl
        x = loc_x * Wl - 0.5
        y = loc_y * Hl - 0.5
        x0 = jnp.floor(x); y0 = jnp.floor(y)
        lx = x - x0;       ly = y - y0
        x0i = x0.astype(jnp.int32); y0i = y0.astype(jnp.int32)
        for dy in (0, 1):
            for dx in (0, 1):
                cx = x0i + dx
                cy = y0i + dy
                wgt = (lx if dx else 1.0 - lx) * (ly if dy else 1.0 - ly)
                valid = (cx >= 0) & (cx < Wl) & (cy >= 0) & (cy < Hl)
                idx = jnp.clip(start + cy * Wl + cx, 0, Lin - 1)       # (N,Lq,H,P)
                samp = value[bidx, idx, hidx]                          # (N,Lq,H,P,Dh)
                coef = attn[:, :, :, l, :] * wgt * jnp.where(valid, 1.0, 0.0)
                out = out + jnp.sum(coef[..., None] * samp, axis=3)

    msda = out.reshape(N, Lq, D)
    src2 = msda @ p["wout"] + p["bout"]

    def ln(x, g, b):
        mu = jnp.mean(x, axis=-1, keepdims=True)
        var = jnp.mean((x - mu) ** 2, axis=-1, keepdims=True)
        return (x - mu) / jnp.sqrt(var + LN_EPS) * g + b

    x = ln(src + src2, p["g1"], p["be1"])
    h = jnp.maximum(x @ p["w1"] + p["b1"], 0.0)
    x = ln(x + h @ p["w2"] + p["b2"], p["g2"], p["be2"])
    return x


# =================================== main ===================================
if __name__ == "__main__":
    key = jax.random.PRNGKey(0)
    k1, k2, k3, kp = jax.random.split(key, 4)

    spatial = [(8, 8), (4, 4)]                              # two feature levels
    spatial_shapes = jnp.array(spatial, dtype=jnp.int32)    # (L, 2) = (H, W)
    level_start = [0, spatial[0][0] * spatial[0][1]]        # [0, 64]
    level_start_index = jnp.array(level_start, dtype=jnp.int32)
    Lq = sum(h * w for h, w in spatial)                     # 80 (encoder: Len_q == Len_in)
    N = 2

    src = jax.random.normal(k1, (N, Lq, D_MODEL), jnp.float32)
    pos = jax.random.normal(k2, (N, Lq, D_MODEL), jnp.float32)
    reference_points = jax.random.uniform(k3, (N, Lq, N_LEVELS, 2), jnp.float32,
                                          minval=0.05, maxval=0.95)
    params = init_params(kp)

    out = deformable_encoder_layer(src, pos, reference_points, spatial_shapes,
                                   level_start_index, params)
    out = jax.block_until_ready(out)

    ref_out = reference_layer(src, pos, reference_points, spatial, level_start, params)
    assert bool(jnp.all(jnp.isfinite(out)))
    err = float(jnp.max(jnp.abs(out - ref_out)))
    assert err < 5e-2, f"max abs err = {err}"
    print("KERNEL_OK")
</pallas_src>

<mosaic_0001>
module attributes {stable_mosaic.version = 11 : i64} {
  func.func @_encoder_layer_kernel(%arg0: i32, %arg1: memref<1x80x32xf32, #tpu.memory_space<vmem>>, %arg2: memref<1x80x32xf32, #tpu.memory_space<vmem>>, %arg3: memref<1x80x4xf32, #tpu.memory_space<vmem>>, %arg4: memref<4x80xf32, #tpu.memory_space<vmem>>, %arg5: memref<16x16xf32, #tpu.memory_space<vmem>>, %arg6: memref<4x32xf32, #tpu.memory_space<vmem>>, %arg7: memref<68x80xf32, #tpu.memory_space<vmem>>, %arg8: memref<1x80xf32, #tpu.memory_space<vmem>>, %arg9: memref<32x32xf32, #tpu.memory_space<vmem>>, %arg10: memref<1x32xf32, #tpu.memory_space<vmem>>, %arg11: memref<1x32xf32, #tpu.memory_space<vmem>>, %arg12: memref<1x32xf32, #tpu.memory_space<vmem>>, %arg13: memref<32x64xf32, #tpu.memory_space<vmem>>, %arg14: memref<1x64xf32, #tpu.memory_space<vmem>>, %arg15: memref<64x32xf32, #tpu.memory_space<vmem>>, %arg16: memref<1x32xf32, #tpu.memory_space<vmem>>, %arg17: memref<1x32xf32, #tpu.memory_space<vmem>>, %arg18: memref<1x32xf32, #tpu.memory_space<vmem>>, %arg19: memref<1x80x32xf32, #tpu.memory_space<vmem>>) attributes {dimension_semantics = [#tpu.dimension_semantics<parallel>], iteration_bounds = array<i64: 2>, scalar_prefetch = 0 : i64, scratch_operands = 0 : i64, tpu.core_type = #tpu.core_type<tc>, window_params = [{transform_indices = @transform_0, window_bounds = array<i64: 1, 80, 32>}, {transform_indices = @transform_1, window_bounds = array<i64: 1, 80, 32>}, {transform_indices = @transform_2, window_bounds = array<i64: 1, 80, 4>}, {pipeline_mode = #tpu.pipeline_mode<synchronous>, transform_indices = @transform_3, window_bounds = array<i64: 4, 80>}, {pipeline_mode = #tpu.pipeline_mode<synchronous>, transform_indices = @transform_4, window_bounds = array<i64: 16, 16>}, {pipeline_mode = #tpu.pipeline_mode<synchronous>, transform_indices = @transform_5, window_bounds = array<i64: 4, 32>}, {pipeline_mode = #tpu.pipeline_mode<synchronous>, transform_indices = @transform_6, window_bounds = array<i64: 68, 80>}, {pipeline_mode = #tpu.pipeline_mode<synchronous>, transform_indices = @transform_7, window_bounds = array<i64: 1, 80>}, {pipeline_mode = #tpu.pipeline_mode<synchronous>, transform_indices = @transform_8, window_bounds = array<i64: 32, 32>}, {pipeline_mode = #tpu.pipeline_mode<synchronous>, transform_indices = @transform_9, window_bounds = array<i64: 1, 32>}, {pipeline_mode = #tpu.pipeline_mode<synchronous>, transform_indices = @transform_10, window_bounds = array<i64: 1, 32>}, {pipeline_mode = #tpu.pipeline_mode<synchronous>, transform_indices = @transform_11, window_bounds = array<i64: 1, 32>}, {pipeline_mode = #tpu.pipeline_mode<synchronous>, transform_indices = @transform_12, window_bounds = array<i64: 32, 64>}, {pipeline_mode = #tpu.pipeline_mode<synchronous>, transform_indices = @transform_13, window_bounds = array<i64: 1, 64>}, {pipeline_mode = #tpu.pipeline_mode<synchronous>, transform_indices = @transform_14, window_bounds = array<i64: 64, 32>}, {pipeline_mode = #tpu.pipeline_mode<synchronous>, transform_indices = @transform_15, window_bounds = array<i64: 1, 32>}, {pipeline_mode = #tpu.pipeline_mode<synchronous>, transform_indices = @transform_16, window_bounds = array<i64: 1, 32>}, {pipeline_mode = #tpu.pipeline_mode<synchronous>, transform_indices = @transform_17, window_bounds = array<i64: 1, 32>}, {transform_indices = @transform_18, window_bounds = array<i64: 1, 80, 32>}]} {
    %c0 = arith.constant 0 : index
    %c0_0 = arith.constant 0 : index
    %c0_1 = arith.constant 0 : index
    %0 = vector.load %arg1[%c0, %c0_0, %c0_1] : memref<1x80x32xf32, #tpu.memory_space<vmem>>, vector<1x80x32xf32>
    %1 = vector.shape_cast %0 : vector<1x80x32xf32> to vector<80x32xf32>
    %c0_2 = arith.constant 0 : index
    %c0_3 = arith.constant 0 : index
    %c0_4 = arith.constant 0 : index
    %2 = vector.load %arg2[%c0_2, %c0_3, %c0_4] : memref<1x80x32xf32, #tpu.memory_space<vmem>>, vector<1x80x32xf32>
    %3 = vector.shape_cast %2 : vector<1x80x32xf32> to vector<80x32xf32>
    %c0_5 = arith.constant 0 : index
    %c0_6 = arith.constant 0 : index
    %c0_7 = arith.constant 0 : index
    %4 = vector.load %arg3[%c0_5, %c0_6, %c0_7] : memref<1x80x4xf32, #tpu.memory_space<vmem>>, vector<1x80x4xf32>
    %5 = vector.shape_cast %4 : vector<1x80x4xf32> to vector<80x4xf32>
    %6 = tpu.concatenate %1, %3, %5 in 1 : vector<80x32xf32>, vector<80x32xf32>, vector<80x4xf32> -> vector<80x68xf32>
    %c0_8 = arith.constant 0 : index
    %c0_9 = arith.constant 0 : index
    %7 = vector.load %arg7[%c0_8, %c0_9] : memref<68x80xf32, #tpu.memory_space<vmem>>, vector<68x80xf32>
    %cst = arith.constant dense<0.000000e+00> : vector<80x80xf32>
    %8 = tpu.matmul %6, %7, %cst {dimension_numbers = #tpu.dot_dimension_numbers<[1], [0], [0], [1], [0, 0, 1, 1], [], []>} : vector<80x68xf32>, vector<68x80xf32>, vector<80x80xf32> -> vector<80x80xf32>
    %c0_10 = arith.constant 0 : index
    %c0_11 = arith.constant 0 : index
    %9 = vector.load %arg8[%c0_10, %c0_11] : memref<1x80xf32, #tpu.memory_space<vmem>>, vector<1x80xf32>
    %10 = vector.broadcast %9 : vector<1x80xf32> to vector<80x80xf32>
    %11 = arith.addf %8, %10 : vector<80x80xf32>
    %12 = vector.extract_strided_slice %11 {offsets = [0, 0], sizes = [80, 32], strides = [1, 1]} : vector<80x80xf32> to vector<80x32xf32>
    %13 = vector.extract_strided_slice %11 {offsets = [0, 32], sizes = [80, 16], strides = [1, 1]} : vector<80x80xf32> to vector<80x16xf32>
    %14 = vector.extract_strided_slice %11 {offsets = [0, 48], sizes = [80, 16], strides = [1, 1]} : vector<80x80xf32> to vector<80x16xf32>
    %15 = vector.extract_strided_slice %11 {offsets = [0, 64], sizes = [80, 16], strides = [1, 1]} : vector<80x80xf32> to vector<80x16xf32>
    %cst_12 = arith.constant dense<0xFF800000> : vector<80xf32>
    %16 = vector.multi_reduction <maximumf>, %15, %cst_12 [1] : vector<80x16xf32> to vector<80xf32>
    %17 = vector.shape_cast %16 : vector<80xf32> to vector<80x1xf32>
    %18 = vector.broadcast %17 : vector<80x1xf32> to vector<80x16xf32>
    %19 = arith.subf %15, %18 : vector<80x16xf32>
    %20 = math.exp %19 : vector<80x16xf32>
    %c0_13 = arith.constant 0 : index
    %c0_14 = arith.constant 0 : index
    %21 = vector.load %arg5[%c0_13, %c0_14] : memref<16x16xf32, #tpu.memory_space<vmem>>, vector<16x16xf32>
    %cst_15 = arith.constant dense<0.000000e+00> : vector<80x16xf32>
    %22 = tpu.matmul %20, %21, %cst_15 {dimension_numbers = #tpu.dot_dimension_numbers<[1], [0], [0], [1], [0, 0, 1, 1], [], []>} : vector<80x16xf32>, vector<16x16xf32>, vector<80x16xf32> -> vector<80x16xf32>
    %23 = tpu.reciprocal %22 {approx = true} : vector<80x16xf32> -> vector<80x16xf32>
    %24 = arith.mulf %20, %23 : vector<80x16xf32>
    %25 = math.floor %13 : vector<80x16xf32>
    %26 = math.floor %14 : vector<80x16xf32>
    %27 = arith.subf %13, %25 : vector<80x16xf32>
    %28 = arith.subf %14, %26 : vector<80x16xf32>
    %cst_16 = arith.constant 1.000000e+00 : f32
    %29 = vector.broadcast %cst_16 : f32 to vector<80x16xf32>
    %30 = arith.addf %25, %29 : vector<80x16xf32>
    %cst_17 = arith.constant 1.000000e+00 : f32
    %31 = vector.broadcast %cst_17 : f32 to vector<80x16xf32>
    %32 = arith.addf %26, %31 : vector<80x16xf32>
    %cst_18 = arith.constant 1.000000e+00 : f32
    %33 = vector.broadcast %cst_18 : f32 to vector<80x16xf32>
    %34 = arith.subf %33, %28 : vector<80x16xf32>
    %35 = arith.mulf %24, %34 : vector<80x16xf32>
    %36 = arith.mulf %24, %28 : vector<80x16xf32>
    %cst_19 = arith.constant 1.000000e+00 : f32
    %37 = vector.broadcast %cst_19 : f32 to vector<80x16xf32>
    %38 = arith.subf %37, %27 : vector<80x16xf32>
    %c0_20 = arith.constant 0 : index
    %c0_21 = arith.constant 0 : index
    %39 = vector.load %arg4[%c0_20, %c0_21] : memref<4x80xf32, #tpu.memory_space<vmem>>, vector<4x80xf32>
    %40 = vector.extract_strided_slice %39 {offsets = [0, 0], sizes = [1, 80], strides = [1, 1]} : vector<4x80xf32> to vector<1x80xf32>
    %41 = vector.extract_strided_slice %39 {offsets = [1, 0], sizes = [1, 80], strides = [1, 1]} : vector<4x80xf32> to vector<1x80xf32>
    %42 = vector.extract_strided_slice %26 {offsets = [0, 0], sizes = [80, 1], strides = [1, 1]} : vector<80x16xf32> to vector<80x1xf32>
    %43 = vector.broadcast %40 : vector<1x80xf32> to vector<80x80xf32>
    %44 = vector.broadcast %42 : vector<80x1xf32> to vector<80x80xf32>
    %45 = arith.cmpf oeq, %43, %44 : vector<80x80xf32>
    %46 = vector.extract_strided_slice %35 {offsets = [0, 0], sizes = [80, 1], strides = [1, 1]} : vector<80x16xf32> to vector<80x1xf32>
    %47 = vector.extract_strided_slice %32 {offsets = [0, 0], sizes = [80, 1], strides = [1, 1]} : vector<80x16xf32> to vector<80x1xf32>
    %48 = vector.broadcast %40 : vector<1x80xf32> to vector<80x80xf32>
    %49 = vector.broadcast %47 : vector<80x1xf32> to vector<80x80xf32>
    %50 = arith.cmpf oeq, %48, %49 : vector<80x80xf32>
    %51 = vector.extract_strided_slice %36 {offsets = [0, 0], sizes = [80, 1], strides = [1, 1]} : vector<80x16xf32> to vector<80x1xf32>
    %cst_22 = arith.constant 0.000000e+00 : f32
    %52 = vector.shape_cast %51 : vector<80x1xf32> to vector<80x1xf32>
    %53 = vector.broadcast %52 : vector<80x1xf32> to vector<80x80xf32>
    %54 = vector.broadcast %cst_22 : f32 to vector<80x80xf32>
    %55 = arith.select %50, %53, %54 : vector<80x80xi1>, vector<80x80xf32>
    %56 = vector.shape_cast %46 : vector<80x1xf32> to vector<80x1xf32>
    %57 = vector.broadcast %56 : vector<80x1xf32> to vector<80x80xf32>
    %58 = arith.select %45, %57, %55 : vector<80x80xi1>, vector<80x80xf32>
    %59 = vector.extract_strided_slice %25 {offsets = [0, 0], sizes = [80, 1], strides = [1, 1]} : vector<80x16xf32> to vector<80x1xf32>
    %60 = vector.broadcast %41 : vector<1x80xf32> to vector<80x80xf32>
    %61 = vector.broadcast %59 : vector<80x1xf32> to vector<80x80xf32>
    %62 = arith.cmpf oeq, %60, %61 : vector<80x80xf32>
    %63 = vector.extract_strided_slice %38 {offsets = [0, 0], sizes = [80, 1], strides = [1, 1]} : vector<80x16xf32> to vector<80x1xf32>
    %64 = vector.extract_strided_slice %30 {offsets = [0, 0], sizes = [80, 1], strides = [1, 1]} : vector<80x16xf32> to vector<80x1xf32>
    %65 = vector.broadcast %41 : vector<1x80xf32> to vector<80x80xf32>
    %66 = vector.broadcast %64 : vector<80x1xf32> to vector<80x80xf32>
    %67 = arith.cmpf oeq, %65, %66 : vector<80x80xf32>
    %68 = vector.extract_strided_slice %27 {offsets = [0, 0], sizes = [80, 1], strides = [1, 1]} : vector<80x16xf32> to vector<80x1xf32>
    %cst_23 = arith.constant 0.000000e+00 : f32
    %69 = vector.shape_cast %68 : vector<80x1xf32> to vector<80x1xf32>
    %70 = vector.broadcast %69 : vector<80x1xf32> to vector<80x80xf32>
    %71 = vector.broadcast %cst_23 : f32 to vector<80x80xf32>
    %72 = arith.select %67, %70, %71 : vector<80x80xi1>, vector<80x80xf32>
    %73 = vector.shape_cast %63 : vector<80x1xf32> to vector<80x1xf32>
    %74 = vector.broadcast %73 : vector<80x1xf32> to vector<80x80xf32>
    %75 = arith.select %62, %74, %72 : vector<80x80xi1>, vector<80x80xf32>
    %76 = arith.mulf %58, %75 : vector<80x80xf32>
    %77 = vector.extract_strided_slice %26 {offsets = [0, 1], sizes = [80, 1], strides = [1, 1]} : vector<80x16xf32> to vector<80x1xf32>
    %78 = vector.broadcast %40 : vector<1x80xf32> to vector<80x80xf32>
    %79 = vector.broadcast %77 : vector<80x1xf32> to vector<80x80xf32>
    %80 = arith.cmpf oeq, %78, %79 : vector<80x80xf32>
    %81 = vector.extract_strided_slice %35 {offsets = [0, 1], sizes = [80, 1], strides = [1, 1]} : vector<80x16xf32> to vector<80x1xf32>
    %82 = vector.extract_strided_slice %32 {offsets = [0, 1], sizes = [80, 1], strides = [1, 1]} : vector<80x16xf32> to vector<80x1xf32>
    %83 = vector.broadcast %40 : vector<1x80xf32> to vector<80x80xf32>
    %84 = vector.broadcast %82 : vector<80x1xf32> to vector<80x80xf32>
    %85 = arith.cmpf oeq, %83, %84 : vector<80x80xf32>
    %86 = vector.extract_strided_slice %36 {offsets = [0, 1], sizes = [80, 1], strides = [1, 1]} : vector<80x16xf32> to vector<80x1xf32>
    %cst_24 = arith.constant 0.000000e+00 : f32
    %87 = vector.shape_cast %86 : vector<80x1xf32> to vector<80x1xf32>
    %88 = vector.broadcast %87 : vector<80x1xf32> to vector<80x80xf32>
    %89 = vector.broadcast %cst_24 : f32 to vector<80x80xf32>
    %90 = arith.select %85, %88, %89 : vector<80x80xi1>, vector<80x80xf32>
    %91 = vector.shape_cast %81 : vector<80x1xf32> to vector<80x1xf32>
    %92 = vector.broadcast %91 : vector<80x1xf32> to vector<80x80xf32>
    %93 = arith.select %80, %92, %90 : vector<80x80xi1>, vector<80x80xf32>
    %94 = vector.extract_strided_slice %25 {offsets = [0, 1], sizes = [80, 1], strides = [1, 1]} : vector<80x16xf32> to vector<80x1xf32>
    %95 = vector.broadcast %41 : vector<1x80xf32> to vector<80x80xf32>
    %96 = vector.broadcast %94 : vector<80x1xf32> to vector<80x80xf32>
    %97 = arith.cmpf oeq, %95, %96 : vector<80x80xf32>
    %98 = vector.extract_strided_slice %38 {offsets = [0, 1], sizes = [80, 1], strides = [1, 1]} : vector<80x16xf32> to vector<80x1xf32>
    %99 = vector.extract_strided_slice %30 {offsets = [0, 1], sizes = [80, 1], strides = [1, 1]} : vector<80x16xf32> to vector<80x1xf32>
    %100 = vector.broadcast %41 : vector<1x80xf32> to vector<80x80xf32>
    %101 = vector.broadcast %99 : vector<80x1xf32> to vector<80x80xf32>
    %102 = arith.cmpf oeq, %100, %101 : vector<80x80xf32>
    %103 = vector.extract_strided_slice %27 {offsets = [0, 1], sizes = [80, 1], strides = [1, 1]} : vector<80x16xf32> to vector<80x1xf32>
    %cst_25 = arith.constant 0.000000e+00 : f32
    %104 = vector.shape_cast %103 : vector<80x1xf32> to vector<80x1xf32>
    %105 = vector.broadcast %104 : vector<80x1xf32> to vector<80x80xf32>
    %106 = vector.broadcast %cst_25 : f32 to vector<80x80xf32>
    %107 = arith.select %102, %105, %106 : vector<80x80xi1>, vector<80x80xf32>
    %108 = vector.shape_cast %98 : vector<80x1xf32> to vector<80x1xf32>
    %109 = vector.broadcast %108 : vector<80x1xf32> to vector<80x80xf32>
    %110 = arith.select %97, %109, %107 : vector<80x80xi1>, vector<80x80xf32>
    %111 = arith.mulf %93, %110 : vector<80x80xf32>
    %112 = vector.extract_strided_slice %39 {offsets = [2, 0], sizes = [1, 80], strides = [1, 1]} : vector<4x80xf32> to vector<1x80xf32>
    %113 = vector.extract_strided_slice %39 {offsets = [3, 0], sizes = [1, 80], strides = [1, 1]} : vector<4x80xf32> to vector<1x80xf32>
    %114 = vector.extract_strided_slice %26 {offsets = [0, 2], sizes = [80, 1], strides = [1, 1]} : vector<80x16xf32> to vector<80x1xf32>
    %115 = vector.broadcast %112 : vector<1x80xf32> to vector<80x80xf32>
    %116 = vector.broadcast %114 : vector<80x1xf32> to vector<80x80xf32>
    %117 = arith.cmpf oeq, %115, %116 : vector<80x80xf32>
    %118 = vector.extract_strided_slice %35 {offsets = [0, 2], sizes = [80, 1], strides = [1, 1]} : vector<80x16xf32> to vector<80x1xf32>
    %119 = vector.extract_strided_slice %32 {offsets = [0, 2], sizes = [80, 1], strides = [1, 1]} : vector<80x16xf32> to vector<80x1xf32>
    %120 = vector.broadcast %112 : vector<1x80xf32> to vector<80x80xf32>
    %121 = vector.broadcast %119 : vector<80x1xf32> to vector<80x80xf32>
    %122 = arith.cmpf oeq, %120, %121 : vector<80x80xf32>
    %123 = vector.extract_strided_slice %36 {offsets = [0, 2], sizes = [80, 1], strides = [1, 1]} : vector<80x16xf32> to vector<80x1xf32>
    %cst_26 = arith.constant 0.000000e+00 : f32
    %124 = vector.shape_cast %123 : vector<80x1xf32> to vector<80x1xf32>
    %125 = vector.broadcast %124 : vector<80x1xf32> to vector<80x80xf32>
    %126 = vector.broadcast %cst_26 : f32 to vector<80x80xf32>
    %127 = arith.select %122, %125, %126 : vector<80x80xi1>, vector<80x80xf32>
    %128 = vector.shape_cast %118 : vector<80x1xf32> to vector<80x1xf32>
    %129 = vector.broadcast %128 : vector<80x1xf32> to vector<80x80xf32>
    %130 = arith.select %117, %129, %127 : vector<80x80xi1>, vector<80x80xf32>
    %131 = vector.extract_strided_slice %25 {offsets = [0, 2], sizes = [80, 1], strides = [1, 1]} : vector<80x16xf32> to vector<80x1xf32>
    %132 = vector.broadcast %113 : vector<1x80xf32> to vector<80x80xf32>
    %133 = vector.broadcast %131 : vector<80x1xf32> to vector<80x80xf32>
    %134 = arith.cmpf oeq, %132, %133 : vector<80x80xf32>
    %135 = vector.extract_strided_slice %38 {offsets = [0, 2], sizes = [80, 1], strides = [1, 1]} : vector<80x16xf32> to vector<80x1xf32>
    %136 = vector.extract_strided_slice %30 {offsets = [0, 2], sizes = [80, 1], strides = [1, 1]} : vector<80x16xf32> to vector<80x1xf32>
    %137 = vector.broadcast %113 : vector<1x80xf32> to vector<80x80xf32>
    %138 = vector.broadcast %136 : vector<80x1xf32> to vector<80x80xf32>
    %139 = arith.cmpf oeq, %137, %138 : vector<80x80xf32>
    %140 = vector.extract_strided_slice %27 {offsets = [0, 2], sizes = [80, 1], strides = [1, 1]} : vector<80x16xf32> to vector<80x1xf32>
    %cst_27 = arith.constant 0.000000e+00 : f32
    %141 = vector.shape_cast %140 : vector<80x1xf32> to vector<80x1xf32>
    %142 = vector.broadcast %141 : vector<80x1xf32> to vector<80x80xf32>
    %143 = vector.broadcast %cst_27 : f32 to vector<80x80xf32>
    %144 = arith.select %139, %142, %143 : vector<80x80xi1>, vector<80x80xf32>
    %145 = vector.shape_cast %135 : vector<80x1xf32> to vector<80x1xf32>
    %146 = vector.broadcast %145 : vector<80x1xf32> to vector<80x80xf32>
    %147 = arith.select %134, %146, %144 : vector<80x80xi1>, vector<80x80xf32>
    %148 = arith.mulf %130, %147 : vector<80x80xf32>
    %149 = vector.extract_strided_slice %26 {offsets = [0, 3], sizes = [80, 1], strides = [1, 1]} : vector<80x16xf32> to vector<80x1xf32>
    %150 = vector.broadcast %112 : vector<1x80xf32> to vector<80x80xf32>
    %151 = vector.broadcast %149 : vector<80x1xf32> to vector<80x80xf32>
    %152 = arith.cmpf oeq, %150, %151 : vector<80x80xf32>
    %153 = vector.extract_strided_slice %35 {offsets = [0, 3], sizes = [80, 1], strides = [1, 1]} : vector<80x16xf32> to vector<80x1xf32>
    %154 = vector.extract_strided_slice %32 {offsets = [0, 3], sizes = [80, 1], strides = [1, 1]} : vector<80x16xf32> to vector<80x1xf32>
    %155 = vector.broadcast %112 : vector<1x80xf32> to vector<80x80xf32>
    %156 = vector.broadcast %154 : vector<80x1xf32> to vector<80x80xf32>
    %157 = arith.cmpf oeq, %155, %156 : vector<80x80xf32>
    %158 = vector.extract_strided_slice %36 {offsets = [0, 3], sizes = [80, 1], strides = [1, 1]} : vector<80x16xf32> to vector<80x1xf32>
    %cst_28 = arith.constant 0.000000e+00 : f32
    %159 = vector.shape_cast %158 : vector<80x1xf32> to vector<80x1xf32>
    %160 = vector.broadcast %159 : vector<80x1xf32> to vector<80x80xf32>
    %161 = vector.broadcast %cst_28 : f32 to vector<80x80xf32>
    %162 = arith.select %157, %160, %161 : vector<80x80xi1>, vector<80x80xf32>
    %163 = vector.shape_cast %153 : vector<80x1xf32> to vector<80x1xf32>
    %164 = vector.broadcast %163 : vector<80x1xf32> to vector<80x80xf32>
    %165 = arith.select %152, %164, %162 : vector<80x80xi1>, vector<80x80xf32>
    %166 = vector.extract_strided_slice %25 {offsets = [0, 3], sizes = [80, 1], strides = [1, 1]} : vector<80x16xf32> to vector<80x1xf32>
    %167 = vector.broadcast %113 : vector<1x80xf32> to vector<80x80xf32>
    %168 = vector.broadcast %166 : vector<80x1xf32> to vector<80x80xf32>
    %169 = arith.cmpf oeq, %167, %168 : vector<80x80xf32>
    %170 = vector.extract_strided_slice %38 {offsets = [0, 3], sizes = [80, 1], strides = [1, 1]} : vector<80x16xf32> to vector<80x1xf32>
    %171 = vector.extract_strided_slice %30 {offsets = [0, 3], sizes = [80, 1], strides = [1, 1]} : vector<80x16xf32> to vector<80x1xf32>
    %172 = vector.broadcast %113 : vector<1x80xf32> to vector<80x80xf32>
    %173 = vector.broadcast %171 : vector<80x1xf32> to vector<80x80xf32>
    %174 = arith.cmpf oeq, %172, %173 : vector<80x80xf32>
    %175 = vector.extract_strided_slice %27 {offsets = [0, 3], sizes = [80, 1], strides = [1, 1]} : vector<80x16xf32> to vector<80x1xf32>
    %cst_29 = arith.constant 0.000000e+00 : f32
    %176 = vector.shape_cast %175 : vector<80x1xf32> to vector<80x1xf32>
    %177 = vector.broadcast %176 : vector<80x1xf32> to vector<80x80xf32>
    %178 = vector.broadcast %cst_29 : f32 to vector<80x80xf32>
    %179 = arith.select %174, %177, %178 : vector<80x80xi1>, vector<80x80xf32>
    %180 = vector.shape_cast %170 : vector<80x1xf32> to vector<80x1xf32>
    %181 = vector.broadcast %180 : vector<80x1xf32> to vector<80x80xf32>
    %182 = arith.select %169, %181, %179 : vector<80x80xi1>, vector<80x80xf32>
    %183 = arith.mulf %165, %182 : vector<80x80xf32>
    %184 = arith.addf %76, %111 : vector<80x80xf32>
    %185 = arith.addf %148, %183 : vector<80x80xf32>
    %186 = arith.addf %184, %185 : vector<80x80xf32>
    %187 = vector.extract_strided_slice %39 {offsets = [0, 0], sizes = [1, 80], strides = [1, 1]} : vector<4x80xf32> to vector<1x80xf32>
    %188 = vector.extract_strided_slice %39 {offsets = [1, 0], sizes = [1, 80], strides = [1, 1]} : vector<4x80xf32> to vector<1x80xf32>
    %189 = vector.extract_strided_slice %26 {offsets = [0, 4], sizes = [80, 1], strides = [1, 1]} : vector<80x16xf32> to vector<80x1xf32>
    %190 = vector.broadcast %187 : vector<1x80xf32> to vector<80x80xf32>
    %191 = vector.broadcast %189 : vector<80x1xf32> to vector<80x80xf32>
    %192 = arith.cmpf oeq, %190, %191 : vector<80x80xf32>
    %193 = vector.extract_strided_slice %35 {offsets = [0, 4], sizes = [80, 1], strides = [1, 1]} : vector<80x16xf32> to vector<80x1xf32>
    %194 = vector.extract_strided_slice %32 {offsets = [0, 4], sizes = [80, 1], strides = [1, 1]} : vector<80x16xf32> to vector<80x1xf32>
    %195 = vector.broadcast %187 : vector<1x80xf32> to vector<80x80xf32>
    %196 = vector.broadcast %194 : vector<80x1xf32> to vector<80x80xf32>
    %197 = arith.cmpf oeq, %195, %196 : vector<80x80xf32>
    %198 = vector.extract_strided_slice %36 {offsets = [0, 4], sizes = [80, 1], strides = [1, 1]} : vector<80x16xf32> to vector<80x1xf32>
    %cst_30 = arith.constant 0.000000e+00 : f32
    %199 = vector.shape_cast %198 : vector<80x1xf32> to vector<80x1xf32>
    %200 = vector.broadcast %199 : vector<80x1xf32> to vector<80x80xf32>
    %201 = vector.broadcast %cst_30 : f32 to vector<80x80xf32>
    %202 = arith.select %197, %200, %201 : vector<80x80xi1>, vector<80x80xf32>
    %203 = vector.shape_cast %193 : vector<80x1xf32> to vector<80x1xf32>
    %204 = vector.broadcast %203 : vector<80x1xf32> to vector<80x80xf32>
    %205 = arith.select %192, %204, %202 : vector<80x80xi1>, vector<80x80xf32>
    %206 = vector.extract_strided_slice %25 {offsets = [0, 4], sizes = [80, 1], strides = [1, 1]} : vector<80x16xf32> to vector<80x1xf32>
    %207 = vector.broadcast %188 : vector<1x80xf32> to vector<80x80xf32>
    %208 = vector.broadcast %206 : vector<80x1xf32> to vector<80x80xf32>
    %209 = arith.cmpf oeq, %207, %208 : vector<80x80xf32>
    %210 = vector.extract_strided_slice %38 {offsets = [0, 4], sizes = [80, 1], strides = [1, 1]} : vector<80x16xf32> to vector<80x1xf32>
    %211 = vector.extract_strided_slice %30 {offsets = [0, 4], sizes = [80, 1], strides = [1, 1]} : vector<80x16xf32> to vector<80x1xf32>
    %212 = vector.broadcast %188 : vector<1x80xf32> to vector<80x80xf32>
    %213 = vector.broadcast %211 : vector<80x1xf32> to vector<80x80xf32>
    %214 = arith.cmpf oeq, %212, %213 : vector<80x80xf32>
    %215 = vector.extract_strided_slice %27 {offsets = [0, 4], sizes = [80, 1], strides = [1, 1]} : vector<80x16xf32> to vector<80x1xf32>
    %cst_31 = arith.constant 0.000000e+00 : f32
    %216 = vector.shape_cast %215 : vector<80x1xf32> to vector<80x1xf32>
    %217 = vector.broadcast %216 : vector<80x1xf32> to vector<80x80xf32>
    %218 = vector.broadcast %cst_31 : f32 to vector<80x80xf32>
    %219 = arith.select %214, %217, %218 : vector<80x80xi1>, vector<80x80xf32>
    %220 = vector.shape_cast %210 : vector<80x1xf32> to vector<80x1xf32>
    %221 = vector.broadcast %220 : vector<80x1xf32> to vector<80x80xf32>
    %222 = arith.select %209, %221, %219 : vector<80x80xi1>, vector<80x80xf32>
    %223 = arith.mulf %205, %222 : vector<80x80xf32>
    %224 = vector.extract_strided_slice %26 {offsets = [0, 5], sizes = [80, 1], strides = [1, 1]} : vector<80x16xf32> to vector<80x1xf32>
    %225 = vector.broadcast %187 : vector<1x80xf32> to vector<80x80xf32>
    %226 = vector.broadcast %224 : vector<80x1xf32> to vector<80x80xf32>
    %227 = arith.cmpf oeq, %225, %226 : vector<80x80xf32>
    %228 = vector.extract_strided_slice %35 {offsets = [0, 5], sizes = [80, 1], strides = [1, 1]} : vector<80x16xf32> to vector<80x1xf32>
    %229 = vector.extract_strided_slice %32 {offsets = [0, 5], sizes = [80, 1], strides = [1, 1]} : vector<80x16xf32> to vector<80x1xf32>
    %230 = vector.broadcast %187 : vector<1x80xf32> to vector<80x80xf32>
    %231 = vector.broadcast %229 : vector<80x1xf32> to vector<80x80xf32>
    %232 = arith.cmpf oeq, %230, %231 : vector<80x80xf32>
    %233 = vector.extract_strided_slice %36 {offsets = [0, 5], sizes = [80, 1], strides = [1, 1]} : vector<80x16xf32> to vector<80x1xf32>
    %cst_32 = arith.constant 0.000000e+00 : f32
    %234 = vector.shape_cast %233 : vector<80x1xf32> to vector<80x1xf32>
    %235 = vector.broadcast %234 : vector<80x1xf32> to vector<80x80xf32>
    %236 = vector.broadcast %cst_32 : f32 to vector<80x80xf32>
    %237 = arith.select %232, %235, %236 : vector<80x80xi1>, vector<80x80xf32>
    %238 = vector.shape_cast %228 : vector<80x1xf32> to vector<80x1xf32>
    %239 = vector.broadcast %238 : vector<80x1xf32> to vector<80x80xf32>
    %240 = arith.select %227, %239, %237 : vector<80x80xi1>, vector<80x80xf32>
    %241 = vector.extract_strided_slice %25 {offsets = [0, 5], sizes = [80, 1], strides = [1, 1]} : vector<80x16xf32> to vector<80x1xf32>
    %242 = vector.broadcast %188 : vector<1x80xf32> to vector<80x80xf32>
    %243 = vector.broadcast %241 : vector<80x1xf32> to vector<80x80xf32>
    %244 = arith.cmpf oeq, %242, %243 : vector<80x80xf32>
    %245 = vector.extract_strided_slice %38 {offsets = [0, 5], sizes = [80, 1], strides = [1, 1]} : vector<80x16xf32> to vector<80x1xf32>
    %246 = vector.extract_strided_slice %30 {offsets = [0, 5], sizes = [80, 1], strides = [1, 1]} : vector<80x16xf32> to vector<80x1xf32>
    %247 = vector.broadcast %188 : vector<1x80xf32> to vector<80x80xf32>
    %248 = vector.broadcast %246 : vector<80x1xf32> to vector<80x80xf32>
    %249 = arith.cmpf oeq, %247, %248 : vector<80x80xf32>
    %250 = vector.extract_strided_slice %27 {offsets = [0, 5], sizes = [80, 1], strides = [1, 1]} : vector<80x16xf32> to vector<80x1xf32>
    %cst_33 = arith.constant 0.000000e+00 : f32
    %251 = vector.shape_cast %250 : vector<80x1xf32> to vector<80x1xf32>
    %252 = vector.broadcast %251 : vector<80x1xf32> to vector<80x80xf32>
    %253 = vector.broadcast %cst_33 : f32 to vector<80x80xf32>
    %254 = arith.select %249, %252, %253 : vector<80x80xi1>, vector<80x80xf32>
    %255 = vector.shape_cast %245 : vector<80x1xf32> to vector<80x1xf32>
    %256 = vector.broadcast %255 : vector<80x1xf32> to vector<80x80xf32>
    %257 = arith.select %244, %256, %254 : vector<80x80xi1>, vector<80x80xf32>
    %258 = arith.mulf %240, %257 : vector<80x80xf32>
    %259 = vector.extract_strided_slice %39 {offsets = [2, 0], sizes = [1, 80], strides = [1, 1]} : vector<4x80xf32> to vector<1x80xf32>
    %260 = vector.extract_strided_slice %39 {offsets = [3, 0], sizes = [1, 80], strides = [1, 1]} : vector<4x80xf32> to vector<1x80xf32>
    %261 = vector.extract_strided_slice %26 {offsets = [0, 6], sizes = [80, 1], strides = [1, 1]} : vector<80x16xf32> to vector<80x1xf32>
    %262 = vector.broadcast %259 : vector<1x80xf32> to vector<80x80xf32>
    %263 = vector.broadcast %261 : vector<80x1xf32> to vector<80x80xf32>
    %264 = arith.cmpf oeq, %262, %263 : vector<80x80xf32>
    %265 = vector.extract_strided_slice %35 {offsets = [0, 6], sizes = [80, 1], strides = [1, 1]} : vector<80x16xf32> to vector<80x1xf32>
    %266 = vector.extract_strided_slice %32 {offsets = [0, 6], sizes = [80, 1], strides = [1, 1]} : vector<80x16xf32> to vector<80x1xf32>
    %267 = vector.broadcast %259 : vector<1x80xf32> to vector<80x80xf32>
    %268 = vector.broadcast %266 : vector<80x1xf32> to vector<80x80xf32>
    %269 = arith.cmpf oeq, %267, %268 : vector<80x80xf32>
    %270 = vector.extract_strided_slice %36 {offsets = [0, 6], sizes = [80, 1], strides = [1, 1]} : vector<80x16xf32> to vector<80x1xf32>
    %cst_34 = arith.constant 0.000000e+00 : f32
    %271 = vector.shape_cast %270 : vector<80x1xf32> to vector<80x1xf32>
    %272 = vector.broadcast %271 : vector<80x1xf32> to vector<80x80xf32>
    %273 = vector.broadcast %cst_34 : f32 to vector<80x80xf32>
    %274 = arith.select %269, %272, %273 : vector<80x80xi1>, vector<80x80xf32>
    %275 = vector.shape_cast %265 : vector<80x1xf32> to vector<80x1xf32>
    %276 = vector.broadcast %275 : vector<80x1xf32> to vector<80x80xf32>
    %277 = arith.select %264, %276, %274 : vector<80x80xi1>, vector<80x80xf32>
    %278 = vector.extract_strided_slice %25 {offsets = [0, 6], sizes = [80, 1], strides = [1, 1]} : vector<80x16xf32> to vector<80x1xf32>
    %279 = vector.broadcast %260 : vector<1x80xf32> to vector<80x80xf32>
    %280 = vector.broadcast %278 : vector<80x1xf32> to vector<80x80xf32>
    %281 = arith.cmpf oeq, %279, %280 : vector<80x80xf32>
    %282 = vector.extract_strided_slice %38 {offsets = [0, 6], sizes = [80, 1], strides = [1, 1]} : vector<80x16xf32> to vector<80x1xf32>
    %283 = vector.extract_strided_slice %30 {offsets = [0, 6], sizes = [80, 1], strides = [1, 1]} : vector<80x16xf32> to vector<80x1xf32>
    %284 = vector.broadcast %260 : vector<1x80xf32> to vector<80x80xf32>
    %285 = vector.broadcast %283 : vector<80x1xf32> to vector<80x80xf32>
    %286 = arith.cmpf oeq, %284, %285 : vector<80x80xf32>
    %287 = vector.extract_strided_slice %27 {offsets = [0, 6], sizes = [80, 1], strides = [1, 1]} : vector<80x16xf32> to vector<80x1xf32>
    %cst_35 = arith.constant 0.000000e+00 : f32
    %288 = vector.shape_cast %287 : vector<80x1xf32> to vector<80x1xf32>
    %289 = vector.broadcast %288 : vector<80x1xf32> to vector<80x80xf32>
    %290 = vector.broadcast %cst_35 : f32 to vector<80x80xf32>
    %291 = arith.select %286, %289, %290 : vector<80x80xi1>, vector<80x80xf32>
    %292 = vector.shape_cast %282 : vector<80x1xf32> to vector<80x1xf32>
    %293 = vector.broadcast %292 : vector<80x1xf32> to vector<80x80xf32>
    %294 = arith.select %281, %293, %291 : vector<80x80xi1>, vector<80x80xf32>
    %295 = arith.mulf %277, %294 : vector<80x80xf32>
    %296 = vector.extract_strided_slice %26 {offsets = [0, 7], sizes = [80, 1], strides = [1, 1]} : vector<80x16xf32> to vector<80x1xf32>
    %297 = vector.broadcast %259 : vector<1x80xf32> to vector<80x80xf32>
    %298 = vector.broadcast %296 : vector<80x1xf32> to vector<80x80xf32>
    %299 = arith.cmpf oeq, %297, %298 : vector<80x80xf32>
    %300 = vector.extract_strided_slice %35 {offsets = [0, 7], sizes = [80, 1], strides = [1, 1]} : vector<80x16xf32> to vector<80x1xf32>
    %301 = vector.extract_strided_slice %32 {offsets = [0, 7], sizes = [80, 1], strides = [1, 1]} : vector<80x16xf32> to vector<80x1xf32>
    %302 = vector.broadcast %259 : vector<1x80xf32> to vector<80x80xf32>
    %303 = vector.broadcast %301 : vector<80x1xf32> to vector<80x80xf32>
    %304 = arith.cmpf oeq, %302, %303 : vector<80x80xf32>
    %305 = vector.extract_strided_slice %36 {offsets = [0, 7], sizes = [80, 1], strides = [1, 1]} : vector<80x16xf32> to vector<80x1xf32>
    %cst_36 = arith.constant 0.000000e+00 : f32
    %306 = vector.shape_cast %305 : vector<80x1xf32> to vector<80x1xf32>
    %307 = vector.broadcast %306 : vector<80x1xf32> to vector<80x80xf32>
    %308 = vector.broadcast %cst_36 : f32 to vector<80x80xf32>
    %309 = arith.select %304, %307, %308 : vector<80x80xi1>, vector<80x80xf32>
    %310 = vector.shape_cast %300 : vector<80x1xf32> to vector<80x1xf32>
    %311 = vector.broadcast %310 : vector<80x1xf32> to vector<80x80xf32>
    %312 = arith.select %299, %311, %309 : vector<80x80xi1>, vector<80x80xf32>
    %313 = vector.extract_strided_slice %25 {offsets = [0, 7], sizes = [80, 1], strides = [1, 1]} : vector<80x16xf32> to vector<80x1xf32>
    %314 = vector.broadcast %260 : vector<1x80xf32> to vector<80x80xf32>
    %315 = vector.broadcast %313 : vector<80x1xf32> to vector<80x80xf32>
    %316 = arith.cmpf oeq, %314, %315 : vector<80x80xf32>
    %317 = vector.extract_strided_slice %38 {offsets = [0, 7], sizes = [80, 1], strides = [1, 1]} : vector<80x16xf32> to vector<80x1xf32>
    %318 = vector.extract_strided_slice %30 {offsets = [0, 7], sizes = [80, 1], strides = [1, 1]} : vector<80x16xf32> to vector<80x1xf32>
    %319 = vector.broadcast %260 : vector<1x80xf32> to vector<80x80xf32>
    %320 = vector.broadcast %318 : vector<80x1xf32> to vector<80x80xf32>
    %321 = arith.cmpf oeq, %319, %320 : vector<80x80xf32>
    %322 = vector.extract_strided_slice %27 {offsets = [0, 7], sizes = [80, 1], strides = [1, 1]} : vector<80x16xf32> to vector<80x1xf32>
    %cst_37 = arith.constant 0.000000e+00 : f32
    %323 = vector.shape_cast %322 : vector<80x1xf32> to vector<80x1xf32>
    %324 = vector.broadcast %323 : vector<80x1xf32> to vector<80x80xf32>
    %325 = vector.broadcast %cst_37 : f32 to vector<80x80xf32>
    %326 = arith.select %321, %324, %325 : vector<80x80xi1>, vector<80x80xf32>
    %327 = vector.shape_cast %317 : vector<80x1xf32> to vector<80x1xf32>
    %328 = vector.broadcast %327 : vector<80x1xf32> to vector<80x80xf32>
    %329 = arith.select %316, %328, %326 : vector<80x80xi1>, vector<80x80xf32>
    %330 = arith.mulf %312, %329 : vector<80x80xf32>
    %331 = arith.addf %223, %258 : vector<80x80xf32>
    %332 = arith.addf %295, %330 : vector<80x80xf32>
    %333 = arith.addf %331, %332 : vector<80x80xf32>
    %334 = vector.extract_strided_slice %39 {offsets = [0, 0], sizes = [1, 80], strides = [1, 1]} : vector<4x80xf32> to vector<1x80xf32>
    %335 = vector.extract_strided_slice %39 {offsets = [1, 0], sizes = [1, 80], strides = [1, 1]} : vector<4x80xf32> to vector<1x80xf32>
    %336 = vector.extract_strided_slice %26 {offsets = [0, 8], sizes = [80, 1], strides = [1, 1]} : vector<80x16xf32> to vector<80x1xf32>
    %337 = vector.broadcast %334 : vector<1x80xf32> to vector<80x80xf32>
    %338 = vector.broadcast %336 : vector<80x1xf32> to vector<80x80xf32>
    %339 = arith.cmpf oeq, %337, %338 : vector<80x80xf32>
    %340 = vector.extract_strided_slice %35 {offsets = [0, 8], sizes = [80, 1], strides = [1, 1]} : vector<80x16xf32> to vector<80x1xf32>
    %341 = vector.extract_strided_slice %32 {offsets = [0, 8], sizes = [80, 1], strides = [1, 1]} : vector<80x16xf32> to vector<80x1xf32>
    %342 = vector.broadcast %334 : vector<1x80xf32> to vector<80x80xf32>
    %343 = vector.broadcast %341 : vector<80x1xf32> to vector<80x80xf32>
    %344 = arith.cmpf oeq, %342, %343 : vector<80x80xf32>
    %345 = vector.extract_strided_slice %36 {offsets = [0, 8], sizes = [80, 1], strides = [1, 1]} : vector<80x16xf32> to vector<80x1xf32>
    %cst_38 = arith.constant 0.000000e+00 : f32
    %346 = vector.shape_cast %345 : vector<80x1xf32> to vector<80x1xf32>
    %347 = vector.broadcast %346 : vector<80x1xf32> to vector<80x80xf32>
    %348 = vector.broadcast %cst_38 : f32 to vector<80x80xf32>
    %349 = arith.select %344, %347, %348 : vector<80x80xi1>, vector<80x80xf32>
    %350 = vector.shape_cast %340 : vector<80x1xf32> to vector<80x1xf32>
    %351 = vector.broadcast %350 : vector<80x1xf32> to vector<80x80xf32>
    %352 = arith.select %339, %351, %349 : vector<80x80xi1>, vector<80x80xf32>
    %353 = vector.extract_strided_slice %25 {offsets = [0, 8], sizes = [80, 1], strides = [1, 1]} : vector<80x16xf32> to vector<80x1xf32>
    %354 = vector.broadcast %335 : vector<1x80xf32> to vector<80x80xf32>
    %355 = vector.broadcast %353 : vector<80x1xf32> to vector<80x80xf32>
    %356 = arith.cmpf oeq, %354, %355 : vector<80x80xf32>
    %357 = vector.extract_strided_slice %38 {offsets = [0, 8], sizes = [80, 1], strides = [1, 1]} : vector<80x16xf32> to vector<80x1xf32>
    %358 = vector.extract_strided_slice %30 {offsets = [0, 8], sizes = [80, 1], strides = [1, 1]} : vector<80x16xf32> to vector<80x1xf32>
    %359 = vector.broadcast %335 : vector<1x80xf32> to vector<80x80xf32>
    %360 = vector.broadcast %358 : vector<80x1xf32> to vector<80x80xf32>
    %361 = arith.cmpf oeq, %359, %360 : vector<80x80xf32>
    %362 = vector.extract_strided_slice %27 {offsets = [0, 8], sizes = [80, 1], strides = [1, 1]} : vector<80x16xf32> to vector<80x1xf32>
    %cst_39 = arith.constant 0.000000e+00 : f32
    %363 = vector.shape_cast %362 : vector<80x1xf32> to vector<80x1xf32>
    %364 = vector.broadcast %363 : vector<80x1xf32> to vector<80x80xf32>
    %365 = vector.broadcast %cst_39 : f32 to vector<80x80xf32>
    %366 = arith.select %361, %364, %365 : vector<80x80xi1>, vector<80x80xf32>
    %367 = vector.shape_cast %357 : vector<80x1xf32> to vector<80x1xf32>
    %368 = vector.broadcast %367 : vector<80x1xf32> to vector<80x80xf32>
    %369 = arith.select %356, %368, %366 : vector<80x80xi1>, vector<80x80xf32>
    %370 = arith.mulf %352, %369 : vector<80x80xf32>
    %371 = vector.extract_strided_slice %26 {offsets = [0, 9], sizes = [80, 1], strides = [1, 1]} : vector<80x16xf32> to vector<80x1xf32>
    %372 = vector.broadcast %334 : vector<1x80xf32> to vector<80x80xf32>
    %373 = vector.broadcast %371 : vector<80x1xf32> to vector<80x80xf32>
    %374 = arith.cmpf oeq, %372, %373 : vector<80x80xf32>
    %375 = vector.extract_strided_slice %35 {offsets = [0, 9], sizes = [80, 1], strides = [1, 1]} : vector<80x16xf32> to vector<80x1xf32>
    %376 = vector.extract_strided_slice %32 {offsets = [0, 9], sizes = [80, 1], strides = [1, 1]} : vector<80x16xf32> to vector<80x1xf32>
    %377 = vector.broadcast %334 : vector<1x80xf32> to vector<80x80xf32>
    %378 = vector.broadcast %376 : vector<80x1xf32> to vector<80x80xf32>
    %379 = arith.cmpf oeq, %377, %378 : vector<80x80xf32>
    %380 = vector.extract_strided_slice %36 {offsets = [0, 9], sizes = [80, 1], strides = [1, 1]} : vector<80x16xf32> to vector<80x1xf32>
    %cst_40 = arith.constant 0.000000e+00 : f32
    %381 = vector.shape_cast %380 : vector<80x1xf32> to vector<80x1xf32>
    %382 = vector.broadcast %381 : vector<80x1xf32> to vector<80x80xf32>
    %383 = vector.broadcast %cst_40 : f32 to vector<80x80xf32>
    %384 = arith.select %379, %382, %383 : vector<80x80xi1>, vector<80x80xf32>
    %385 = vector.shape_cast %375 : vector<80x1xf32> to vector<80x1xf32>
    %386 = vector.broadcast %385 : vector<80x1xf32> to vector<80x80xf32>
    %387 = arith.select %374, %386, %384 : vector<80x80xi1>, vector<80x80xf32>
    %388 = vector.extract_strided_slice %25 {offsets = [0, 9], sizes = [80, 1], strides = [1, 1]} : vector<80x16xf32> to vector<80x1xf32>
    %389 = vector.broadcast %335 : vector<1x80xf32> to vector<80x80xf32>
    %390 = vector.broadcast %388 : vector<80x1xf32> to vector<80x80xf32>
    %391 = arith.cmpf oeq, %389, %390 : vector<80x80xf32>
    %392 = vector.extract_strided_slice %38 {offsets = [0, 9], sizes = [80, 1], strides = [1, 1]} : vector<80x16xf32> to vector<80x1xf32>
    %393 = vector.extract_strided_slice %30 {offsets = [0, 9], sizes = [80, 1], strides = [1, 1]} : vector<80x16xf32> to vector<80x1xf32>
    %394 = vector.broadcast %335 : vector<1x80xf32> to vector<80x80xf32>
    %395 = vector.broadcast %393 : vector<80x1xf32> to vector<80x80xf32>
    %396 = arith.cmpf oeq, %394, %395 : vector<80x80xf32>
    %397 = vector.extract_strided_slice %27 {offsets = [0, 9], sizes = [80, 1], strides = [1, 1]} : vector<80x16xf32> to vector<80x1xf32>
    %cst_41 = arith.constant 0.000000e+00 : f32
    %398 = vector.shape_cast %397 : vector<80x1xf32> to vector<80x1xf32>
    %399 = vector.broadcast %398 : vector<80x1xf32> to vector<80x80xf32>
    %400 = vector.broadcast %cst_41 : f32 to vector<80x80xf32>
    %401 = arith.select %396, %399, %400 : vector<80x80xi1>, vector<80x80xf32>
    %402 = vector.shape_cast %392 : vector<80x1xf32> to vector<80x1xf32>
    %403 = vector.broadcast %402 : vector<80x1xf32> to vector<80x80xf32>
    %404 = arith.select %391, %403, %401 : vector<80x80xi1>, vector<80x80xf32>
    %405 = arith.mulf %387, %404 : vector<80x80xf32>
    %406 = vector.extract_strided_slice %39 {offsets = [2, 0], sizes = [1, 80], strides = [1, 1]} : vector<4x80xf32> to vector<1x80xf32>
    %407 = vector.extract_strided_slice %39 {offsets = [3, 0], sizes = [1, 80], strides = [1, 1]} : vector<4x80xf32> to vector<1x80xf32>
    %408 = vector.extract_strided_slice %26 {offsets = [0, 10], sizes = [80, 1], strides = [1, 1]} : vector<80x16xf32> to vector<80x1xf32>
    %409 = vector.broadcast %406 : vector<1x80xf32> to vector<80x80xf32>
    %410 = vector.broadcast %408 : vector<80x1xf32> to vector<80x80xf32>
    %411 = arith.cmpf oeq, %409, %410 : vector<80x80xf32>
    %412 = vector.extract_strided_slice %35 {offsets = [0, 10], sizes = [80, 1], strides = [1, 1]} : vector<80x16xf32> to vector<80x1xf32>
    %413 = vector.extract_strided_slice %32 {offsets = [0, 10], sizes = [80, 1], strides = [1, 1]} : vector<80x16xf32> to vector<80x1xf32>
    %414 = vector.broadcast %406 : vector<1x80xf32> to vector<80x80xf32>
    %415 = vector.broadcast %413 : vector<80x1xf32> to vector<80x80xf32>
    %416 = arith.cmpf oeq, %414, %415 : vector<80x80xf32>
    %417 = vector.extract_strided_slice %36 {offsets = [0, 10], sizes = [80, 1], strides = [1, 1]} : vector<80x16xf32> to vector<80x1xf32>
    %cst_42 = arith.constant 0.000000e+00 : f32
    %418 = vector.shape_cast %417 : vector<80x1xf32> to vector<80x1xf32>
    %419 = vector.broadcast %418 : vector<80x1xf32> to vector<80x80xf32>
    %420 = vector.broadcast %cst_42 : f32 to vector<80x80xf32>
    %421 = arith.select %416, %419, %420 : vector<80x80xi1>, vector<80x80xf32>
    %422 = vector.shape_cast %412 : vector<80x1xf32> to vector<80x1xf32>
    %423 = vector.broadcast %422 : vector<80x1xf32> to vector<80x80xf32>
    %424 = arith.select %411, %423, %421 : vector<80x80xi1>, vector<80x80xf32>
    %425 = vector.extract_strided_slice %25 {offsets = [0, 10], sizes = [80, 1], strides = [1, 1]} : vector<80x16xf32> to vector<80x1xf32>
    %426 = vector.broadcast %407 : vector<1x80xf32> to vector<80x80xf32>
    %427 = vector.broadcast %425 : vector<80x1xf32> to vector<80x80xf32>
    %428 = arith.cmpf oeq, %426, %427 : vector<80x80xf32>
    %429 = vector.extract_strided_slice %38 {offsets = [0, 10], sizes = [80, 1], strides = [1, 1]} : vector<80x16xf32> to vector<80x1xf32>
    %430 = vector.extract_strided_slice %30 {offsets = [0, 10], sizes = [80, 1], strides = [1, 1]} : vector<80x16xf32> to vector<80x1xf32>
    %431 = vector.broadcast %407 : vector<1x80xf32> to vector<80x80xf32>
    %432 = vector.broadcast %430 : vector<80x1xf32> to vector<80x80xf32>
    %433 = arith.cmpf oeq, %431, %432 : vector<80x80xf32>
    %434 = vector.extract_strided_slice %27 {offsets = [0, 10], sizes = [80, 1], strides = [1, 1]} : vector<80x16xf32> to vector<80x1xf32>
    %cst_43 = arith.constant 0.000000e+00 : f32
    %435 = vector.shape_cast %434 : vector<80x1xf32> to vector<80x1xf32>
    %436 = vector.broadcast %435 : vector<80x1xf32> to vector<80x80xf32>
    %437 = vector.broadcast %cst_43 : f32 to vector<80x80xf32>
    %438 = arith.select %433, %436, %437 : vector<80x80xi1>, vector<80x80xf32>
    %439 = vector.shape_cast %429 : vector<80x1xf32> to vector<80x1xf32>
    %440 = vector.broadcast %439 : vector<80x1xf32> to vector<80x80xf32>
    %441 = arith.select %428, %440, %438 : vector<80x80xi1>, vector<80x80xf32>
    %442 = arith.mulf %424, %441 : vector<80x80xf32>
    %443 = vector.extract_strided_slice %26 {offsets = [0, 11], sizes = [80, 1], strides = [1, 1]} : vector<80x16xf32> to vector<80x1xf32>
    %444 = vector.broadcast %406 : vector<1x80xf32> to vector<80x80xf32>
    %445 = vector.broadcast %443 : vector<80x1xf32> to vector<80x80xf32>
    %446 = arith.cmpf oeq, %444, %445 : vector<80x80xf32>
    %447 = vector.extract_strided_slice %35 {offsets = [0, 11], sizes = [80, 1], strides = [1, 1]} : vector<80x16xf32> to vector<80x1xf32>
    %448 = vector.extract_strided_slice %32 {offsets = [0, 11], sizes = [80, 1], strides = [1, 1]} : vector<80x16xf32> to vector<80x1xf32>
    %449 = vector.broadcast %406 : vector<1x80xf32> to vector<80x80xf32>
    %450 = vector.broadcast %448 : vector<80x1xf32> to vector<80x80xf32>
    %451 = arith.cmpf oeq, %449, %450 : vector<80x80xf32>
    %452 = vector.extract_strided_slice %36 {offsets = [0, 11], sizes = [80, 1], strides = [1, 1]} : vector<80x16xf32> to vector<80x1xf32>
    %cst_44 = arith.constant 0.000000e+00 : f32
    %453 = vector.shape_cast %452 : vector<80x1xf32> to vector<80x1xf32>
    %454 = vector.broadcast %453 : vector<80x1xf32> to vector<80x80xf32>
    %455 = vector.broadcast %cst_44 : f32 to vector<80x80xf32>
    %456 = arith.select %451, %454, %455 : vector<80x80xi1>, vector<80x80xf32>
    %457 = vector.shape_cast %447 : vector<80x1xf32> to vector<80x1xf32>
    %458 = vector.broadcast %457 : vector<80x1xf32> to vector<80x80xf32>
    %459 = arith.select %446, %458, %456 : vector<80x80xi1>, vector<80x80xf32>
    %460 = vector.extract_strided_slice %25 {offsets = [0, 11], sizes = [80, 1], strides = [1, 1]} : vector<80x16xf32> to vector<80x1xf32>
    %461 = vector.broadcast %407 : vector<1x80xf32> to vector<80x80xf32>
    %462 = vector.broadcast %460 : vector<80x1xf32> to vector<80x80xf32>
    %463 = arith.cmpf oeq, %461, %462 : vector<80x80xf32>
    %464 = vector.extract_strided_slice %38 {offsets = [0, 11], sizes = [80, 1], strides = [1, 1]} : vector<80x16xf32> to vector<80x1xf32>
    %465 = vector.extract_strided_slice %30 {offsets = [0, 11], sizes = [80, 1], strides = [1, 1]} : vector<80x16xf32> to vector<80x1xf32>
    %466 = vector.broadcast %407 : vector<1x80xf32> to vector<80x80xf32>
    %467 = vector.broadcast %465 : vector<80x1xf32> to vector<80x80xf32>
    %468 = arith.cmpf oeq, %466, %467 : vector<80x80xf32>
    %469 = vector.extract_strided_slice %27 {offsets = [0, 11], sizes = [80, 1], strides = [1, 1]} : vector<80x16xf32> to vector<80x1xf32>
    %cst_45 = arith.constant 0.000000e+00 : f32
    %470 = vector.shape_cast %469 : vector<80x1xf32> to vector<80x1xf32>
    %471 = vector.broadcast %470 : vector<80x1xf32> to vector<80x80xf32>
    %472 = vector.broadcast %cst_45 : f32 to vector<80x80xf32>
    %473 = arith.select %468, %471, %472 : vector<80x80xi1>, vector<80x80xf32>
    %474 = vector.shape_cast %464 : vector<80x1xf32> to vector<80x1xf32>
    %475 = vector.broadcast %474 : vector<80x1xf32> to vector<80x80xf32>
    %476 = arith.select %463, %475, %473 : vector<80x80xi1>, vector<80x80xf32>
    %477 = arith.mulf %459, %476 : vector<80x80xf32>
    %478 = arith.addf %370, %405 : vector<80x80xf32>
    %479 = arith.addf %442, %477 : vector<80x80xf32>
    %480 = arith.addf %478, %479 : vector<80x80xf32>
    %481 = vector.extract_strided_slice %39 {offsets = [0, 0], sizes = [1, 80], strides = [1, 1]} : vector<4x80xf32> to vector<1x80xf32>
    %482 = vector.extract_strided_slice %39 {offsets = [1, 0], sizes = [1, 80], strides = [1, 1]} : vector<4x80xf32> to vector<1x80xf32>
    %483 = vector.extract_strided_slice %26 {offsets = [0, 12], sizes = [80, 1], strides = [1, 1]} : vector<80x16xf32> to vector<80x1xf32>
    %484 = vector.broadcast %481 : vector<1x80xf32> to vector<80x80xf32>
    %485 = vector.broadcast %483 : vector<80x1xf32> to vector<80x80xf32>
    %486 = arith.cmpf oeq, %484, %485 : vector<80x80xf32>
    %487 = vector.extract_strided_slice %35 {offsets = [0, 12], sizes = [80, 1], strides = [1, 1]} : vector<80x16xf32> to vector<80x1xf32>
    %488 = vector.extract_strided_slice %32 {offsets = [0, 12], sizes = [80, 1], strides = [1, 1]} : vector<80x16xf32> to vector<80x1xf32>
    %489 = vector.broadcast %481 : vector<1x80xf32> to vector<80x80xf32>
    %490 = vector.broadcast %488 : vector<80x1xf32> to vector<80x80xf32>
    %491 = arith.cmpf oeq, %489, %490 : vector<80x80xf32>
    %492 = vector.extract_strided_slice %36 {offsets = [0, 12], sizes = [80, 1], strides = [1, 1]} : vector<80x16xf32> to vector<80x1xf32>
    %cst_46 = arith.constant 0.000000e+00 : f32
    %493 = vector.shape_cast %492 : vector<80x1xf32> to vector<80x1xf32>
    %494 = vector.broadcast %493 : vector<80x1xf32> to vector<80x80xf32>
    %495 = vector.broadcast %cst_46 : f32 to vector<80x80xf32>
    %496 = arith.select %491, %494, %495 : vector<80x80xi1>, vector<80x80xf32>
    %497 = vector.shape_cast %487 : vector<80x1xf32> to vector<80x1xf32>
    %498 = vector.broadcast %497 : vector<80x1xf32> to vector<80x80xf32>
    %499 = arith.select %486, %498, %496 : vector<80x80xi1>, vector<80x80xf32>
    %500 = vector.extract_strided_slice %25 {offsets = [0, 12], sizes = [80, 1], strides = [1, 1]} : vector<80x16xf32> to vector<80x1xf32>
    %501 = vector.broadcast %482 : vector<1x80xf32> to vector<80x80xf32>
    %502 = vector.broadcast %500 : vector<80x1xf32> to vector<80x80xf32>
    %503 = arith.cmpf oeq, %501, %502 : vector<80x80xf32>
    %504 = vector.extract_strided_slice %38 {offsets = [0, 12], sizes = [80, 1], strides = [1, 1]} : vector<80x16xf32> to vector<80x1xf32>
    %505 = vector.extract_strided_slice %30 {offsets = [0, 12], sizes = [80, 1], strides = [1, 1]} : vector<80x16xf32> to vector<80x1xf32>
    %506 = vector.broadcast %482 : vector<1x80xf32> to vector<80x80xf32>
    %507 = vector.broadcast %505 : vector<80x1xf32> to vector<80x80xf32>
    %508 = arith.cmpf oeq, %506, %507 : vector<80x80xf32>
    %509 = vector.extract_strided_slice %27 {offsets = [0, 12], sizes = [80, 1], strides = [1, 1]} : vector<80x16xf32> to vector<80x1xf32>
    %cst_47 = arith.constant 0.000000e+00 : f32
    %510 = vector.shape_cast %509 : vector<80x1xf32> to vector<80x1xf32>
    %511 = vector.broadcast %510 : vector<80x1xf32> to vector<80x80xf32>
    %512 = vector.broadcast %cst_47 : f32 to vector<80x80xf32>
    %513 = arith.select %508, %511, %512 : vector<80x80xi1>, vector<80x80xf32>
    %514 = vector.shape_cast %504 : vector<80x1xf32> to vector<80x1xf32>
    %515 = vector.broadcast %514 : vector<80x1xf32> to vector<80x80xf32>
    %516 = arith.select %503, %515, %513 : vector<80x80xi1>, vector<80x80xf32>
    %517 = arith.mulf %499, %516 : vector<80x80xf32>
    %518 = vector.extract_strided_slice %26 {offsets = [0, 13], sizes = [80, 1], strides = [1, 1]} : vector<80x16xf32> to vector<80x1xf32>
    %519 = vector.broadcast %481 : vector<1x80xf32> to vector<80x80xf32>
    %520 = vector.broadcast %518 : vector<80x1xf32> to vector<80x80xf32>
    %521 = arith.cmpf oeq, %519, %520 : vector<80x80xf32>
    %522 = vector.extract_strided_slice %35 {offsets = [0, 13], sizes = [80, 1], strides = [1, 1]} : vector<80x16xf32> to vector<80x1xf32>
    %523 = vector.extract_strided_slice %32 {offsets = [0, 13], sizes = [80, 1], strides = [1, 1]} : vector<80x16xf32> to vector<80x1xf32>
    %524 = vector.broadcast %481 : vector<1x80xf32> to vector<80x80xf32>
    %525 = vector.broadcast %523 : vector<80x1xf32> to vector<80x80xf32>
    %526 = arith.cmpf oeq, %524, %525 : vector<80x80xf32>
    %527 = vector.extract_strided_slice %36 {offsets = [0, 13], sizes = [80, 1], strides = [1, 1]} : vector<80x16xf32> to vector<80x1xf32>
    %cst_48 = arith.constant 0.000000e+00 : f32
    %528 = vector.shape_cast %527 : vector<80x1xf32> to vector<80x1xf32>
    %529 = vector.broadcast %528 : vector<80x1xf32> to vector<80x80xf32>
    %530 = vector.broadcast %cst_48 : f32 to vector<80x80xf32>
    %531 = arith.select %526, %529, %530 : vector<80x80xi1>, vector<80x80xf32>
    %532 = vector.shape_cast %522 : vector<80x1xf32> to vector<80x1xf32>
    %533 = vector.broadcast %532 : vector<80x1xf32> to vector<80x80xf32>
    %534 = arith.select %521, %533, %531 : vector<80x80xi1>, vector<80x80xf32>
    %535 = vector.extract_strided_slice %25 {offsets = [0, 13], sizes = [80, 1], strides = [1, 1]} : vector<80x16xf32> to vector<80x1xf32>
    %536 = vector.broadcast %482 : vector<1x80xf32> to vector<80x80xf32>
    %537 = vector.broadcast %535 : vector<80x1xf32> to vector<80x80xf32>
    %538 = arith.cmpf oeq, %536, %537 : vector<80x80xf32>
    %539 = vector.extract_strided_slice %38 {offsets = [0, 13], sizes = [80, 1], strides = [1, 1]} : vector<80x16xf32> to vector<80x1xf32>
    %540 = vector.extract_strided_slice %30 {offsets = [0, 13], sizes = [80, 1], strides = [1, 1]} : vector<80x16xf32> to vector<80x1xf32>
    %541 = vector.broadcast %482 : vector<1x80xf32> to vector<80x80xf32>
    %542 = vector.broadcast %540 : vector<80x1xf32> to vector<80x80xf32>
    %543 = arith.cmpf oeq, %541, %542 : vector<80x80xf32>
    %544 = vector.extract_strided_slice %27 {offsets = [0, 13], sizes = [80, 1], strides = [1, 1]} : vector<80x16xf32> to vector<80x1xf32>
    %cst_49 = arith.constant 0.000000e+00 : f32
    %545 = vector.shape_cast %544 : vector<80x1xf32> to vector<80x1xf32>
    %546 = vector.broadcast %545 : vector<80x1xf32> to vector<80x80xf32>
    %547 = vector.broadcast %cst_49 : f32 to vector<80x80xf32>
    %548 = arith.select %543, %546, %547 : vector<80x80xi1>, vector<80x80xf32>
    %549 = vector.shape_cast %539 : vector<80x1xf32> to vector<80x1xf32>
    %550 = vector.broadcast %549 : vector<80x1xf32> to vector<80x80xf32>
    %551 = arith.select %538, %550, %548 : vector<80x80xi1>, vector<80x80xf32>
    %552 = arith.mulf %534, %551 : vector<80x80xf32>
    %553 = vector.extract_strided_slice %39 {offsets = [2, 0], sizes = [1, 80], strides = [1, 1]} : vector<4x80xf32> to vector<1x80xf32>
    %554 = vector.extract_strided_slice %39 {offsets = [3, 0], sizes = [1, 80], strides = [1, 1]} : vector<4x80xf32> to vector<1x80xf32>
    %555 = vector.extract_strided_slice %26 {offsets = [0, 14], sizes = [80, 1], strides = [1, 1]} : vector<80x16xf32> to vector<80x1xf32>
    %556 = vector.broadcast %553 : vector<1x80xf32> to vector<80x80xf32>
    %557 = vector.broadcast %555 : vector<80x1xf32> to vector<80x80xf32>
    %558 = arith.cmpf oeq, %556, %557 : vector<80x80xf32>
    %559 = vector.extract_strided_slice %35 {offsets = [0, 14], sizes = [80, 1], strides = [1, 1]} : vector<80x16xf32> to vector<80x1xf32>
    %560 = vector.extract_strided_slice %32 {offsets = [0, 14], sizes = [80, 1], strides = [1, 1]} : vector<80x16xf32> to vector<80x1xf32>
    %561 = vector.broadcast %553 : vector<1x80xf32> to vector<80x80xf32>
    %562 = vector.broadcast %560 : vector<80x1xf32> to vector<80x80xf32>
    %563 = arith.cmpf oeq, %561, %562 : vector<80x80xf32>
    %564 = vector.extract_strided_slice %36 {offsets = [0, 14], sizes = [80, 1], strides = [1, 1]} : vector<80x16xf32> to vector<80x1xf32>
    %cst_50 = arith.constant 0.000000e+00 : f32
    %565 = vector.shape_cast %564 : vector<80x1xf32> to vector<80x1xf32>
    %566 = vector.broadcast %565 : vector<80x1xf32> to vector<80x80xf32>
    %567 = vector.broadcast %cst_50 : f32 to vector<80x80xf32>
    %568 = arith.select %563, %566, %567 : vector<80x80xi1>, vector<80x80xf32>
    %569 = vector.shape_cast %559 : vector<80x1xf32> to vector<80x1xf32>
    %570 = vector.broadcast %569 : vector<80x1xf32> to vector<80x80xf32>
    %571 = arith.select %558, %570, %568 : vector<80x80xi1>, vector<80x80xf32>
    %572 = vector.extract_strided_slice %25 {offsets = [0, 14], sizes = [80, 1], strides = [1, 1]} : vector<80x16xf32> to vector<80x1xf32>
    %573 = vector.broadcast %554 : vector<1x80xf32> to vector<80x80xf32>
    %574 = vector.broadcast %572 : vector<80x1xf32> to vector<80x80xf32>
    %575 = arith.cmpf oeq, %573, %574 : vector<80x80xf32>
    %576 = vector.extract_strided_slice %38 {offsets = [0, 14], sizes = [80, 1], strides = [1, 1]} : vector<80x16xf32> to vector<80x1xf32>
    %577 = vector.extract_strided_slice %30 {offsets = [0, 14], sizes = [80, 1], strides = [1, 1]} : vector<80x16xf32> to vector<80x1xf32>
    %578 = vector.broadcast %554 : vector<1x80xf32> to vector<80x80xf32>
    %579 = vector.broadcast %577 : vector<80x1xf32> to vector<80x80xf32>
    %580 = arith.cmpf oeq, %578, %579 : vector<80x80xf32>
    %581 = vector.extract_strided_slice %27 {offsets = [0, 14], sizes = [80, 1], strides = [1, 1]} : vector<80x16xf32> to vector<80x1xf32>
    %cst_51 = arith.constant 0.000000e+00 : f32
    %582 = vector.shape_cast %581 : vector<80x1xf32> to vector<80x1xf32>
    %583 = vector.broadcast %582 : vector<80x1xf32> to vector<80x80xf32>
    %584 = vector.broadcast %cst_51 : f32 to vector<80x80xf32>
    %585 = arith.select %580, %583, %584 : vector<80x80xi1>, vector<80x80xf32>
    %586 = vector.shape_cast %576 : vector<80x1xf32> to vector<80x1xf32>
    %587 = vector.broadcast %586 : vector<80x1xf32> to vector<80x80xf32>
    %588 = arith.select %575, %587, %585 : vector<80x80xi1>, vector<80x80xf32>
    %589 = arith.mulf %571, %588 : vector<80x80xf32>
    %590 = vector.extract_strided_slice %26 {offsets = [0, 15], sizes = [80, 1], strides = [1, 1]} : vector<80x16xf32> to vector<80x1xf32>
    %591 = vector.broadcast %553 : vector<1x80xf32> to vector<80x80xf32>
    %592 = vector.broadcast %590 : vector<80x1xf32> to vector<80x80xf32>
    %593 = arith.cmpf oeq, %591, %592 : vector<80x80xf32>
    %594 = vector.extract_strided_slice %35 {offsets = [0, 15], sizes = [80, 1], strides = [1, 1]} : vector<80x16xf32> to vector<80x1xf32>
    %595 = vector.extract_strided_slice %32 {offsets = [0, 15], sizes = [80, 1], strides = [1, 1]} : vector<80x16xf32> to vector<80x1xf32>
    %596 = vector.broadcast %553 : vector<1x80xf32> to vector<80x80xf32>
    %597 = vector.broadcast %595 : vector<80x1xf32> to vector<80x80xf32>
    %598 = arith.cmpf oeq, %596, %597 : vector<80x80xf32>
    %599 = vector.extract_strided_slice %36 {offsets = [0, 15], sizes = [80, 1], strides = [1, 1]} : vector<80x16xf32> to vector<80x1xf32>
    %cst_52 = arith.constant 0.000000e+00 : f32
    %600 = vector.shape_cast %599 : vector<80x1xf32> to vector<80x1xf32>
    %601 = vector.broadcast %600 : vector<80x1xf32> to vector<80x80xf32>
    %602 = vector.broadcast %cst_52 : f32 to vector<80x80xf32>
    %603 = arith.select %598, %601, %602 : vector<80x80xi1>, vector<80x80xf32>
    %604 = vector.shape_cast %594 : vector<80x1xf32> to vector<80x1xf32>
    %605 = vector.broadcast %604 : vector<80x1xf32> to vector<80x80xf32>
    %606 = arith.select %593, %605, %603 : vector<80x80xi1>, vector<80x80xf32>
    %607 = vector.extract_strided_slice %25 {offsets = [0, 15], sizes = [80, 1], strides = [1, 1]} : vector<80x16xf32> to vector<80x1xf32>
    %608 = vector.broadcast %554 : vector<1x80xf32> to vector<80x80xf32>
    %609 = vector.broadcast %607 : vector<80x1xf32> to vector<80x80xf32>
    %610 = arith.cmpf oeq, %608, %609 : vector<80x80xf32>
    %611 = vector.extract_strided_slice %38 {offsets = [0, 15], sizes = [80, 1], strides = [1, 1]} : vector<80x16xf32> to vector<80x1xf32>
    %612 = vector.extract_strided_slice %30 {offsets = [0, 15], sizes = [80, 1], strides = [1, 1]} : vector<80x16xf32> to vector<80x1xf32>
    %613 = vector.broadcast %554 : vector<1x80xf32> to vector<80x80xf32>
    %614 = vector.broadcast %612 : vector<80x1xf32> to vector<80x80xf32>
    %615 = arith.cmpf oeq, %613, %614 : vector<80x80xf32>
    %616 = vector.extract_strided_slice %27 {offsets = [0, 15], sizes = [80, 1], strides = [1, 1]} : vector<80x16xf32> to vector<80x1xf32>
    %cst_53 = arith.constant 0.000000e+00 : f32
    %617 = vector.shape_cast %616 : vector<80x1xf32> to vector<80x1xf32>
    %618 = vector.broadcast %617 : vector<80x1xf32> to vector<80x80xf32>
    %619 = vector.broadcast %cst_53 : f32 to vector<80x80xf32>
    %620 = arith.select %615, %618, %619 : vector<80x80xi1>, vector<80x80xf32>
    %621 = vector.shape_cast %611 : vector<80x1xf32> to vector<80x1xf32>
    %622 = vector.broadcast %621 : vector<80x1xf32> to vector<80x80xf32>
    %623 = arith.select %610, %622, %620 : vector<80x80xi1>, vector<80x80xf32>
    %624 = arith.mulf %606, %623 : vector<80x80xf32>
    %625 = arith.addf %517, %552 : vector<80x80xf32>
    %626 = arith.addf %589, %624 : vector<80x80xf32>
    %627 = arith.addf %625, %626 : vector<80x80xf32>
    %628 = tpu.concatenate %186, %333, %480, %627 in 1 : vector<80x80xf32>, vector<80x80xf32>, vector<80x80xf32>, vector<80x80xf32> -> vector<80x320xf32>
    %c0_54 = arith.constant 0 : index
    %c0_55 = arith.constant 0 : index
    %629 = vector.load %arg6[%c0_54, %c0_55] : memref<4x32xf32, #tpu.memory_space<vmem>>, vector<4x32xf32>
    %630 = vector.extract_strided_slice %629 {offsets = [0, 0], sizes = [1, 32], strides = [1, 1]} : vector<4x32xf32> to vector<1x32xf32>
    %631 = vector.broadcast %630 : vector<1x32xf32> to vector<80x32xf32>
    %632 = arith.mulf %12, %631 : vector<80x32xf32>
    %633 = vector.extract_strided_slice %629 {offsets = [1, 0], sizes = [1, 32], strides = [1, 1]} : vector<4x32xf32> to vector<1x32xf32>
    %634 = vector.broadcast %633 : vector<1x32xf32> to vector<80x32xf32>
    %635 = arith.mulf %12, %634 : vector<80x32xf32>
    %636 = vector.extract_strided_slice %629 {offsets = [2, 0], sizes = [1, 32], strides = [1, 1]} : vector<4x32xf32> to vector<1x32xf32>
    %637 = vector.broadcast %636 : vector<1x32xf32> to vector<80x32xf32>
    %638 = arith.mulf %12, %637 : vector<80x32xf32>
    %639 = vector.extract_strided_slice %629 {offsets = [3, 0], sizes = [1, 32], strides = [1, 1]} : vector<4x32xf32> to vector<1x32xf32>
    %640 = vector.broadcast %639 : vector<1x32xf32> to vector<80x32xf32>
    %641 = arith.mulf %12, %640 : vector<80x32xf32>
    %642 = tpu.concatenate %632, %635, %638, %641 in 0 : vector<80x32xf32>, vector<80x32xf32>, vector<80x32xf32>, vector<80x32xf32> -> vector<320x32xf32>
    %cst_56 = arith.constant dense<0.000000e+00> : vector<80x32xf32>
    %643 = tpu.matmul %628, %642, %cst_56 {dimension_numbers = #tpu.dot_dimension_numbers<[1], [0], [0], [1], [0, 0, 1, 1], [], []>} : vector<80x320xf32>, vector<320x32xf32>, vector<80x32xf32> -> vector<80x32xf32>
    %c0_57 = arith.constant 0 : index
    %c0_58 = arith.constant 0 : index
    %644 = vector.load %arg9[%c0_57, %c0_58] : memref<32x32xf32, #tpu.memory_space<vmem>>, vector<32x32xf32>
    %cst_59 = arith.constant dense<0.000000e+00> : vector<80x32xf32>
    %645 = tpu.matmul %643, %644, %cst_59 {dimension_numbers = #tpu.dot_dimension_numbers<[1], [0], [0], [1], [0, 0, 1, 1], [], []>} : vector<80x32xf32>, vector<32x32xf32>, vector<80x32xf32> -> vector<80x32xf32>
    %c0_60 = arith.constant 0 : index
    %c0_61 = arith.constant 0 : index
    %646 = vector.load %arg10[%c0_60, %c0_61] : memref<1x32xf32, #tpu.memory_space<vmem>>, vector<1x32xf32>
    %647 = vector.broadcast %646 : vector<1x32xf32> to vector<80x32xf32>
    %648 = arith.addf %645, %647 : vector<80x32xf32>
    %649 = arith.addf %1, %648 : vector<80x32xf32>
    %cst_62 = arith.constant dense<0.000000e+00> : vector<80xf32>
    %650 = vector.multi_reduction <add>, %649, %cst_62 [1] : vector<80x32xf32> to vector<80xf32>
    %651 = vector.shape_cast %650 : vector<80xf32> to vector<80x1xf32>
    %cst_63 = arith.constant 3.200000e+01 : f32
    %652 = vector.broadcast %cst_63 : f32 to vector<80x1xf32>
    %653 = arith.divf %651, %652 : vector<80x1xf32>
    %654 = vector.broadcast %653 : vector<80x1xf32> to vector<80x32xf32>
    %655 = arith.subf %649, %654 : vector<80x32xf32>
    %656 = arith.mulf %655, %655 : vector<80x32xf32>
    %cst_64 = arith.constant dense<0.000000e+00> : vector<80xf32>
    %657 = vector.multi_reduction <add>, %656, %cst_64 [1] : vector<80x32xf32> to vector<80xf32>
    %658 = vector.shape_cast %657 : vector<80xf32> to vector<80x1xf32>
    %cst_65 = arith.constant 3.200000e+01 : f32
    %659 = vector.broadcast %cst_65 : f32 to vector<80x1xf32>
    %660 = arith.divf %658, %659 : vector<80x1xf32>
    %661 = vector.broadcast %653 : vector<80x1xf32> to vector<80x32xf32>
    %662 = arith.subf %649, %661 : vector<80x32xf32>
    %cst_66 = arith.constant 9.99999974E-6 : f32
    %663 = vector.broadcast %cst_66 : f32 to vector<80x1xf32>
    %664 = arith.addf %660, %663 : vector<80x1xf32>
    %665 = math.rsqrt %664 : vector<80x1xf32>
    %666 = vector.broadcast %665 : vector<80x1xf32> to vector<80x32xf32>
    %667 = arith.mulf %662, %666 : vector<80x32xf32>
    %c0_67 = arith.constant 0 : index
    %c0_68 = arith.constant 0 : index
    %668 = vector.load %arg11[%c0_67, %c0_68] : memref<1x32xf32, #tpu.memory_space<vmem>>, vector<1x32xf32>
    %669 = vector.broadcast %668 : vector<1x32xf32> to vector<80x32xf32>
    %670 = arith.mulf %667, %669 : vector<80x32xf32>
    %c0_69 = arith.constant 0 : index
    %c0_70 = arith.constant 0 : index
    %671 = vector.load %arg12[%c0_69, %c0_70] : memref<1x32xf32, #tpu.memory_space<vmem>>, vector<1x32xf32>
    %672 = vector.broadcast %671 : vector<1x32xf32> to vector<80x32xf32>
    %673 = arith.addf %670, %672 : vector<80x32xf32>
    %c0_71 = arith.constant 0 : index
    %c0_72 = arith.constant 0 : index
    %674 = vector.load %arg13[%c0_71, %c0_72] : memref<32x64xf32, #tpu.memory_space<vmem>>, vector<32x64xf32>
    %cst_73 = arith.constant dense<0.000000e+00> : vector<80x64xf32>
    %675 = tpu.matmul %673, %674, %cst_73 {dimension_numbers = #tpu.dot_dimension_numbers<[1], [0], [0], [1], [0, 0, 1, 1], [], []>} : vector<80x32xf32>, vector<32x64xf32>, vector<80x64xf32> -> vector<80x64xf32>
    %c0_74 = arith.constant 0 : index
    %c0_75 = arith.constant 0 : index
    %676 = vector.load %arg14[%c0_74, %c0_75] : memref<1x64xf32, #tpu.memory_space<vmem>>, vector<1x64xf32>
    %677 = vector.broadcast %676 : vector<1x64xf32> to vector<80x64xf32>
    %678 = arith.addf %675, %677 : vector<80x64xf32>
    %cst_76 = arith.constant 0.000000e+00 : f32
    %679 = vector.broadcast %cst_76 : f32 to vector<80x64xf32>
    %680 = arith.maximumf %678, %679 : vector<80x64xf32>
    %c0_77 = arith.constant 0 : index
    %c0_78 = arith.constant 0 : index
    %681 = vector.load %arg15[%c0_77, %c0_78] : memref<64x32xf32, #tpu.memory_space<vmem>>, vector<64x32xf32>
    %cst_79 = arith.constant dense<0.000000e+00> : vector<80x32xf32>
    %682 = tpu.matmul %680, %681, %cst_79 {dimension_numbers = #tpu.dot_dimension_numbers<[1], [0], [0], [1], [0, 0, 1, 1], [], []>} : vector<80x64xf32>, vector<64x32xf32>, vector<80x32xf32> -> vector<80x32xf32>
    %683 = arith.addf %673, %682 : vector<80x32xf32>
    %c0_80 = arith.constant 0 : index
    %c0_81 = arith.constant 0 : index
    %684 = vector.load %arg16[%c0_80, %c0_81] : memref<1x32xf32, #tpu.memory_space<vmem>>, vector<1x32xf32>
    %685 = vector.broadcast %684 : vector<1x32xf32> to vector<80x32xf32>
    %686 = arith.addf %683, %685 : vector<80x32xf32>
    %cst_82 = arith.constant dense<0.000000e+00> : vector<80xf32>
    %687 = vector.multi_reduction <add>, %686, %cst_82 [1] : vector<80x32xf32> to vector<80xf32>
    %688 = vector.shape_cast %687 : vector<80xf32> to vector<80x1xf32>
    %cst_83 = arith.constant 3.200000e+01 : f32
    %689 = vector.broadcast %cst_83 : f32 to vector<80x1xf32>
    %690 = arith.divf %688, %689 : vector<80x1xf32>
    %691 = vector.broadcast %690 : vector<80x1xf32> to vector<80x32xf32>
    %692 = arith.subf %686, %691 : vector<80x32xf32>
    %693 = arith.mulf %692, %692 : vector<80x32xf32>
    %cst_84 = arith.constant dense<0.000000e+00> : vector<80xf32>
    %694 = vector.multi_reduction <add>, %693, %cst_84 [1] : vector<80x32xf32> to vector<80xf32>
    %695 = vector.shape_cast %694 : vector<80xf32> to vector<80x1xf32>
    %cst_85 = arith.constant 3.200000e+01 : f32
    %696 = vector.broadcast %cst_85 : f32 to vector<80x1xf32>
    %697 = arith.divf %695, %696 : vector<80x1xf32>
    %698 = vector.broadcast %690 : vector<80x1xf32> to vector<80x32xf32>
    %699 = arith.subf %686, %698 : vector<80x32xf32>
    %cst_86 = arith.constant 9.99999974E-6 : f32
    %700 = vector.broadcast %cst_86 : f32 to vector<80x1xf32>
    %701 = arith.addf %697, %700 : vector<80x1xf32>
    %702 = math.rsqrt %701 : vector<80x1xf32>
    %703 = vector.broadcast %702 : vector<80x1xf32> to vector<80x32xf32>
    %704 = arith.mulf %699, %703 : vector<80x32xf32>
    %c0_87 = arith.constant 0 : index
    %c0_88 = arith.constant 0 : index
    %705 = vector.load %arg17[%c0_87, %c0_88] : memref<1x32xf32, #tpu.memory_space<vmem>>, vector<1x32xf32>
    %706 = vector.broadcast %705 : vector<1x32xf32> to vector<80x32xf32>
    %707 = arith.mulf %704, %706 : vector<80x32xf32>
    %c0_89 = arith.constant 0 : index
    %c0_90 = arith.constant 0 : index
    %708 = vector.load %arg18[%c0_89, %c0_90] : memref<1x32xf32, #tpu.memory_space<vmem>>, vector<1x32xf32>
    %709 = vector.broadcast %708 : vector<1x32xf32> to vector<80x32xf32>
    %710 = arith.addf %707, %709 : vector<80x32xf32>
    %c0_91 = arith.constant 0 : index
    %c0_92 = arith.constant 0 : index
    %c0_93 = arith.constant 0 : index
    %711 = vector.load %arg19[%c0_91, %c0_92, %c0_93] : memref<1x80x32xf32, #tpu.memory_space<vmem>>, vector<1x80x32xf32>
    %712 = vector.shape_cast %711 : vector<1x80x32xf32> to vector<80x32xf32>
    %713 = vector.shape_cast %710 : vector<80x32xf32> to vector<1x80x32xf32>
    tpu.vector_store %arg19[%c0_91, %c0_92, %c0_93], %713 {strides = array<i32>} : memref<1x80x32xf32, #tpu.memory_space<vmem>>, vector<1x80x32xf32>,
    return
  }
  func.func @transform_0(%arg0: i32) -> (i32, i32, i32) {
    %c0_i32 = arith.constant 0 : i32
    %c0_i32_0 = arith.constant 0 : i32
    %c0_i32_1 = arith.constant 0 : i32
    return %arg0, %c0_i32, %c0_i32_0 : i32, i32, i32
  }
  func.func @transform_1(%arg0: i32) -> (i32, i32, i32) {
    %c0_i32 = arith.constant 0 : i32
    %c0_i32_0 = arith.constant 0 : i32
    %c0_i32_1 = arith.constant 0 : i32
    return %arg0, %c0_i32, %c0_i32_0 : i32, i32, i32
  }
  func.func @transform_2(%arg0: i32) -> (i32, i32, i32) {
    %c0_i32 = arith.constant 0 : i32
    %c0_i32_0 = arith.constant 0 : i32
    %c0_i32_1 = arith.constant 0 : i32
    return %arg0, %c0_i32, %c0_i32_0 : i32, i32, i32
  }
  func.func @transform_3(%arg0: i32) -> (i32, i32) {
    %c0_i32 = arith.constant 0 : i32
    %c0_i32_0 = arith.constant 0 : i32
    %c0_i32_1 = arith.constant 0 : i32
    return %c0_i32, %c0_i32_0 : i32, i32
  }
  func.func @transform_4(%arg0: i32) -> (i32, i32) {
    %c0_i32 = arith.constant 0 : i32
    %c0_i32_0 = arith.constant 0 : i32
    %c0_i32_1 = arith.constant 0 : i32
    return %c0_i32, %c0_i32_0 : i32, i32
  }
  func.func @transform_5(%arg0: i32) -> (i32, i32) {
    %c0_i32 = arith.constant 0 : i32
    %c0_i32_0 = arith.constant 0 : i32
    %c0_i32_1 = arith.constant 0 : i32
    return %c0_i32, %c0_i32_0 : i32, i32
  }
  func.func @transform_6(%arg0: i32) -> (i32, i32) {
    %c0_i32 = arith.constant 0 : i32
    %c0_i32_0 = arith.constant 0 : i32
    %c0_i32_1 = arith.constant 0 : i32
    return %c0_i32, %c0_i32_0 : i32, i32
  }
  func.func @transform_7(%arg0: i32) -> (i32, i32) {
    %c0_i32 = arith.constant 0 : i32
    %c0_i32_0 = arith.constant 0 : i32
    %c0_i32_1 = arith.constant 0 : i32
    return %c0_i32, %c0_i32_0 : i32, i32
  }
  func.func @transform_8(%arg0: i32) -> (i32, i32) {
    %c0_i32 = arith.constant 0 : i32
    %c0_i32_0 = arith.constant 0 : i32
    %c0_i32_1 = arith.constant 0 : i32
    return %c0_i32, %c0_i32_0 : i32, i32
  }
  func.func @transform_9(%arg0: i32) -> (i32, i32) {
    %c0_i32 = arith.constant 0 : i32
    %c0_i32_0 = arith.constant 0 : i32
    %c0_i32_1 = arith.constant 0 : i32
    return %c0_i32, %c0_i32_0 : i32, i32
  }
  func.func @transform_10(%arg0: i32) -> (i32, i32) {
    %c0_i32 = arith.constant 0 : i32
    %c0_i32_0 = arith.constant 0 : i32
    %c0_i32_1 = arith.constant 0 : i32
    return %c0_i32, %c0_i32_0 : i32, i32
  }
  func.func @transform_11(%arg0: i32) -> (i32, i32) {
    %c0_i32 = arith.constant 0 : i32
    %c0_i32_0 = arith.constant 0 : i32
    %c0_i32_1 = arith.constant 0 : i32
    return %c0_i32, %c0_i32_0 : i32, i32
  }
  func.func @transform_12(%arg0: i32) -> (i32, i32) {
    %c0_i32 = arith.constant 0 : i32
    %c0_i32_0 = arith.constant 0 : i32
    %c0_i32_1 = arith.constant 0 : i32
    return %c0_i32, %c0_i32_0 : i32, i32
  }
  func.func @transform_13(%arg0: i32) -> (i32, i32) {
    %c0_i32 = arith.constant 0 : i32
    %c0_i32_0 = arith.constant 0 : i32
    %c0_i32_1 = arith.constant 0 : i32
    return %c0_i32, %c0_i32_0 : i32, i32
  }
  func.func @transform_14(%arg0: i32) -> (i32, i32) {
    %c0_i32 = arith.constant 0 : i32
    %c0_i32_0 = arith.constant 0 : i32
    %c0_i32_1 = arith.constant 0 : i32
    return %c0_i32, %c0_i32_0 : i32, i32
  }
  func.func @transform_15(%arg0: i32) -> (i32, i32) {
    %c0_i32 = arith.constant 0 : i32
    %c0_i32_0 = arith.constant 0 : i32
    %c0_i32_1 = arith.constant 0 : i32
    return %c0_i32, %c0_i32_0 : i32, i32
  }
  func.func @transform_16(%arg0: i32) -> (i32, i32) {
    %c0_i32 = arith.constant 0 : i32
    %c0_i32_0 = arith.constant 0 : i32
    %c0_i32_1 = arith.constant 0 : i32
    return %c0_i32, %c0_i32_0 : i32, i32
  }
  func.func @transform_17(%arg0: i32) -> (i32, i32) {
    %c0_i32 = arith.constant 0 : i32
    %c0_i32_0 = arith.constant 0 : i32
    %c0_i32_1 = arith.constant 0 : i32
    return %c0_i32, %c0_i32_0 : i32, i32
  }
  func.func @transform_18(%arg0: i32) -> (i32, i32, i32) {
    %c0_i32 = arith.constant 0 : i32
    %c0_i32_0 = arith.constant 0 : i32
    %c0_i32_1 = arith.constant 0 : i32
    return %arg0, %c0_i32, %c0_i32_0 : i32, i32, i32
  }
}

</mosaic_0001>

<llo_original>
// kernel: tpu_custom_call.1
$region0: #{tpu_custom_call.1}
  #allocation0 [shape = 'u32[]', space=smem, size = 0x4, offset = 0x4, fixed_abs, tag = 'smem constant byte address 0x4 - core index']
  #allocation1 [shape = 'u32[144,128]{1,0:T(1,128)}', space=vmem, size = 0x12000, scoped, tag = 'internal scratch']
  %s0 = inlined_call_operand.vmem [shape: f32[2,80,32], index: 0, kind: input, shape index: {}]
  %s1 = inlined_call_operand.vmem [shape: f32[2,80,32], index: 1, kind: input, shape index: {}]
  %s2 = inlined_call_operand.vmem [shape: f32[2,80,4], index: 2, kind: input, shape index: {}]
  %s3 = inlined_call_operand.vmem [shape: f32[4,80], index: 3, kind: input, shape index: {}]
  %s4 = inlined_call_operand.vmem [shape: f32[16,16], index: 4, kind: input, shape index: {}]
  %s5 = inlined_call_operand.vmem [shape: f32[4,32], index: 5, kind: input, shape index: {}]
  %s6 = inlined_call_operand.vmem [shape: f32[68,80], index: 6, kind: input, shape index: {}]
  %s7 = inlined_call_operand.vmem [shape: f32[1,80], index: 7, kind: input, shape index: {}]
  %s8 = inlined_call_operand.vmem [shape: f32[32,32], index: 8, kind: input, shape index: {}]
  %s9 = inlined_call_operand.vmem [shape: f32[1,32], index: 9, kind: input, shape index: {}]
  %s10 = inlined_call_operand.vmem [shape: f32[1,32], index: 10, kind: input, shape index: {}]
  %s11 = inlined_call_operand.vmem [shape: f32[1,32], index: 11, kind: input, shape index: {}]
  %s12 = inlined_call_operand.vmem [shape: f32[32,64], index: 12, kind: input, shape index: {}]
  %s13 = inlined_call_operand.vmem [shape: f32[1,64], index: 13, kind: input, shape index: {}]
  %s14 = inlined_call_operand.vmem [shape: f32[64,32], index: 14, kind: input, shape index: {}]
  %s15 = inlined_call_operand.vmem [shape: f32[1,32], index: 15, kind: input, shape index: {}]
  %s16 = inlined_call_operand.vmem [shape: f32[1,32], index: 16, kind: input, shape index: {}]
  %s17 = inlined_call_operand.vmem [shape: f32[1,32], index: 17, kind: input, shape index: {}]
  %s18 = inlined_call_operand.vmem [shape: f32[2,80,32], index: 18, kind: output, shape index: {}]
  %s19 = sld [smem:[#allocation0]]
  $region105: #{tpu_custom_call.1} parent=0
    _
  %s21 = ssub.s32 1, %s19
  %s22 = scalar_select 0, %s21, %s19
  loop: start=0, step=1, limit=4
  $region2: #{tpu_custom_call.1} parent=0 // loop_pre_header
    _
  $region3: #{tpu_custom_call.1} parent=0 // loop_header
    %s24 = sphi 0, %s28
    %p25 = scmp.ge.s32.totalorder %s24, 4
    %s34 = sphi 0, %s36
    %s37 = sphi 0, %s34
    %s38 = sphi 0, %s37
    %s54 = sphi 0, %s38
    %s60 = sphi 0, %s62
    %s63 = sphi 0, %s60
    %s64 = sphi 0, %s63
    %s80 = sphi 0, %s64
    %s86 = sphi 0, %s88
    %s89 = sphi 0, %s86
    %s90 = sphi 0, %s89
    %s106 = sphi 0, %s90
    %s110 = sphi 0, %s110
    %s112 = sphi 0, %s110
    %s113 = sphi 0, %s112
    %s127 = sphi 0, %s113
    %s131 = sphi 0, %s131
    %s133 = sphi 0, %s131
    %s134 = sphi 0, %s133
    %s148 = sphi 0, %s134
    %s152 = sphi 0, %s152
    %s154 = sphi 0, %s152
    %s155 = sphi 0, %s154
    %s169 = sphi 0, %s155
    %s173 = sphi 0, %s173
    %s175 = sphi 0, %s173
    %s176 = sphi 0, %s175
    %s190 = sphi 0, %s176
    %s194 = sphi 0, %s194
    %s196 = sphi 0, %s194
    %s197 = sphi 0, %s196
    %s211 = sphi 0, %s197
    %s215 = sphi 0, %s215
    %s217 = sphi 0, %s215
    %s218 = sphi 0, %s217
    %s232 = sphi 0, %s218
    %s236 = sphi 0, %s236
    %s238 = sphi 0, %s236
    %s239 = sphi 0, %s238
    %s253 = sphi 0, %s239
    %s257 = sphi 0, %s257
    %s259 = sphi 0, %s257
    %s260 = sphi 0, %s259
    %s274 = sphi 0, %s260
    %s278 = sphi 0, %s278
    %s280 = sphi 0, %s278
    %s281 = sphi 0, %s280
    %s295 = sphi 0, %s281
    %s299 = sphi 0, %s299
    %s301 = sphi 0, %s299
    %s302 = sphi 0, %s301
    %s316 = sphi 0, %s302
    %s320 = sphi 0, %s320
    %s322 = sphi 0, %s320
    %s323 = sphi 0, %s322
    %s337 = sphi 0, %s323
    %s341 = sphi 0, %s341
    %s343 = sphi 0, %s341
    %s344 = sphi 0, %s343
    %s358 = sphi 0, %s344
    %s362 = sphi 0, %s362
    %s364 = sphi 0, %s362
    %s365 = sphi 0, %s364
    %s379 = sphi 0, %s365
    %s383 = sphi 0, %s383
    %s385 = sphi 0, %s383
    %s386 = sphi 0, %s385
    %s400 = sphi 0, %s386
    %s404 = sphi 0, %s404
    %s406 = sphi 0, %s404
    %s407 = sphi 0, %s406
    %s421 = sphi 0, %s407
    %s427 = sphi 0, %s429
    %s430 = sphi 0, %s427
    %s431 = sphi 0, %s430
    %s447 = sphi 0, %s431
  $region4: #{tpu_custom_call.1} parent=0 // loop_header_branch
    %27 = sbr.rel (%p25) target = $region8
  $region5: #{tpu_custom_call.1} parent=0 // loop_body
    %s29 = ssub.s32 %s24, 1
    %s30 = ssub.s32 %s24, 2
    %s31 = sadd.s32 %s24, 1
    %s32 = ssub.s32 %s24, %s31
    %p33 = scmp.eq.s32.totalorder %s32, 0
    %s35 = sadd.s32 %s34, 1
    %s36 = scalar_select %p33, %s34, %s35
    %p39 = pneg %p33
    %p40 = scmp.eq.s32.totalorder %s24, 1
    %p41 = por %p39, %p40
    %p42 = scmp.ne.s32.totalorder %s34, %s37
    %p43 = scmp.eq.s32.totalorder %s24, 0
    %p44 = por %p42, %p43
    %p45 = scmp.ne.s32.totalorder %s34, %s37
    %p46 = scmp.eq.s32.totalorder %s29, 1
    %p47 = por %p45, %p46
    %p48 = scmp.ne.s32.totalorder %s37, %s38
    %p49 = scmp.eq.s32.totalorder %s29, 0
    %p50 = por %p48, %p49
    %p51 = scmp.ne.s32.totalorder %s37, %s38
    %p52 = scmp.eq.s32.totalorder %s30, 1
    %p53 = por %p51, %p52
    %p55 = scmp.ne.s32.totalorder %s38, %s54
    %p56 = scmp.eq.s32.totalorder %s30, 0
    %p57 = por %p55, %p56
    %s58 = ssub.s32 %s24, %s31
    %p59 = scmp.eq.s32.totalorder %s58, 0
    %s61 = sadd.s32 %s60, 1
    %s62 = scalar_select %p59, %s60, %s61
    %p65 = pneg %p59
    %p66 = scmp.eq.s32.totalorder %s24, 1
    %p67 = por %p65, %p66
    %p68 = scmp.ne.s32.totalorder %s60, %s63
    %p69 = scmp.eq.s32.totalorder %s24, 0
    %p70 = por %p68, %p69
    %p71 = scmp.ne.s32.totalorder %s60, %s63
    %p72 = scmp.eq.s32.totalorder %s29, 1
    %p73 = por %p71, %p72
    %p74 = scmp.ne.s32.totalorder %s63, %s64
    %p75 = scmp.eq.s32.totalorder %s29, 0
    %p76 = por %p74, %p75
    %p77 = scmp.ne.s32.totalorder %s63, %s64
    %p78 = scmp.eq.s32.totalorder %s30, 1
    %p79 = por %p77, %p78
    %p81 = scmp.ne.s32.totalorder %s64, %s80
    %p82 = scmp.eq.s32.totalorder %s30, 0
    %p83 = por %p81, %p82
    %s84 = ssub.s32 %s24, %s31
    %p85 = scmp.eq.s32.totalorder %s84, 0
    %s87 = sadd.s32 %s86, 1
    %s88 = scalar_select %p85, %s86, %s87
    %p91 = pneg %p85
    %p92 = scmp.eq.s32.totalorder %s24, 1
    %p93 = por %p91, %p92
    %p94 = scmp.ne.s32.totalorder %s86, %s89
    %p95 = scmp.eq.s32.totalorder %s24, 0
    %p96 = por %p94, %p95
    %p97 = scmp.ne.s32.totalorder %s86, %s89
    %p98 = scmp.eq.s32.totalorder %s29, 1
    %p99 = por %p97, %p98
    %p100 = scmp.ne.s32.totalorder %s89, %s90
    %p101 = scmp.eq.s32.totalorder %s29, 0
    %p102 = por %p100, %p101
    %p103 = scmp.ne.s32.totalorder %s89, %s90
    %p104 = scmp.eq.s32.totalorder %s30, 1
    %p105 = por %p103, %p104
    %p107 = scmp.ne.s32.totalorder %s90, %s106
    %p108 = scmp.eq.s32.totalorder %s30, 0
    %p109 = por %p107, %p108
    %s111 = sadd.s32 %s110, 1
    %p114 = scmp.eq.s32.totalorder %s24, 1
    %p115 = scmp.ne.s32.totalorder %s110, %s112
    %p116 = scmp.eq.s32.totalorder %s24, 0
    %p117 = por %p115, %p116
    %p118 = scmp.ne.s32.totalorder %s110, %s112
    %p119 = scmp.eq.s32.totalorder %s29, 1
    %p120 = por %p118, %p119
    %p121 = scmp.ne.s32.totalorder %s112, %s113
    %p122 = scmp.eq.s32.totalorder %s29, 0
    %p123 = por %p121, %p122
    %p124 = scmp.ne.s32.totalorder %s112, %s113
    %p125 = scmp.eq.s32.totalorder %s30, 1
    %p126 = por %p124, %p125
    %p128 = scmp.ne.s32.totalorder %s113, %s127
    %p129 = scmp.eq.s32.totalorder %s30, 0
    %p130 = por %p128, %p129
    %s132 = sadd.s32 %s131, 1
    %p135 = scmp.eq.s32.totalorder %s24, 1
    %p136 = scmp.ne.s32.totalorder %s131, %s133
    %p137 = scmp.eq.s32.totalorder %s24, 0
    %p138 = por %p136, %p137
    %p139 = scmp.ne.s32.totalorder %s131, %s133
    %p140 = scmp.eq.s32.totalorder %s29, 1
    %p141 = por %p139, %p140
    %p142 = scmp.ne.s32.totalorder %s133, %s134
    %p143 = scmp.eq.s32.totalorder %s29, 0
    %p144 = por %p142, %p143
    %p145 = scmp.ne.s32.totalorder %s133, %s134
    %p146 = scmp.eq.s32.totalorder %s30, 1
    %p147 = por %p145, %p146
    %p149 = scmp.ne.s32.totalorder %s134, %s148
    %p150 = scmp.eq.s32.totalorder %s30, 0
    %p151 = por %p149, %p150
    %s153 = sadd.s32 %s152, 1
    %p156 = scmp.eq.s32.totalorder %s24, 1
    %p157 = scmp.ne.s32.totalorder %s152, %s154
    %p158 = scmp.eq.s32.totalorder %s24, 0
    %p159 = por %p157, %p158
    %p160 = scmp.ne.s32.totalorder %s152, %s154
    %p161 = scmp.eq.s32.totalorder %s29, 1
    %p162 = por %p160, %p161
    %p163 = scmp.ne.s32.totalorder %s154, %s155
    %p164 = scmp.eq.s32.totalorder %s29, 0
    %p165 = por %p163, %p164
    %p166 = scmp.ne.s32.totalorder %s154, %s155
    %p167 = scmp.eq.s32.totalorder %s30, 1
    %p168 = por %p166, %p167
    %p170 = scmp.ne.s32.totalorder %s155, %s169
    %p171 = scmp.eq.s32.totalorder %s30, 0
    %p172 = por %p170, %p171
    %s174 = sadd.s32 %s173, 1
    %p177 = scmp.eq.s32.totalorder %s24, 1
    %p178 = scmp.ne.s32.totalorder %s173, %s175
    %p179 = scmp.eq.s32.totalorder %s24, 0
    %p180 = por %p178, %p179
    %p181 = scmp.ne.s32.totalorder %s173, %s175
    %p182 = scmp.eq.s32.totalorder %s29, 1
    %p183 = por %p181, %p182
    %p184 = scmp.ne.s32.totalorder %s175, %s176
    %p185 = scmp.eq.s32.totalorder %s29, 0
    %p186 = por %p184, %p185
    %p187 = scmp.ne.s32.totalorder %s175, %s176
    %p188 = scmp.eq.s32.totalorder %s30, 1
    %p189 = por %p187, %p188
    %p191 = scmp.ne.s32.totalorder %s176, %s190
    %p192 = scmp.eq.s32.totalorder %s30, 0
    %p193 = por %p191, %p192
    %s195 = sadd.s32 %s194, 1
    %p198 = scmp.eq.s32.totalorder %s24, 1
    %p199 = scmp.ne.s32.totalorder %s194, %s196
    %p200 = scmp.eq.s32.totalorder %s24, 0
    %p201 = por %p199, %p200
    %p202 = scmp.ne.s32.totalorder %s194, %s196
    %p203 = scmp.eq.s32.totalorder %s29, 1
    %p204 = por %p202, %p203
    %p205 = scmp.ne.s32.totalorder %s196, %s197
    %p206 = scmp.eq.s32.totalorder %s29, 0
    %p207 = por %p205, %p206
    %p208 = scmp.ne.s32.totalorder %s196, %s197
    %p209 = scmp.eq.s32.totalorder %s30, 1
    %p210 = por %p208, %p209
    %p212 = scmp.ne.s32.totalorder %s197, %s211
    %p213 = scmp.eq.s32.totalorder %s30, 0
    %p214 = por %p212, %p213
    %s216 = sadd.s32 %s215, 1
    %p219 = scmp.eq.s32.totalorder %s24, 1
    %p220 = scmp.ne.s32.totalorder %s215, %s217
    %p221 = scmp.eq.s32.totalorder %s24, 0
    %p222 = por %p220, %p221
    %p223 = scmp.ne.s32.totalorder %s215, %s217
    %p224 = scmp.eq.s32.totalorder %s29, 1
    %p225 = por %p223, %p224
    %p226 = scmp.ne.s32.totalorder %s217, %s218
    %p227 = scmp.eq.s32.totalorder %s29, 0
    %p228 = por %p226, %p227
    %p229 = scmp.ne.s32.totalorder %s217, %s218
    %p230 = scmp.eq.s32.totalorder %s30, 1
    %p231 = por %p229, %p230
    %p233 = scmp.ne.s32.totalorder %s218, %s232
    %p234 = scmp.eq.s32.totalorder %s30, 0
    %p235 = por %p233, %p234
    %s237 = sadd.s32 %s236, 1
    %p240 = scmp.eq.s32.totalorder %s24, 1
    %p241 = scmp.ne.s32.totalorder %s236, %s238
    %p242 = scmp.eq.s32.totalorder %s24, 0
    %p243 = por %p241, %p242
    %p244 = scmp.ne.s32.totalorder %s236, %s238
    %p245 = scmp.eq.s32.totalorder %s29, 1
    %p246 = por %p244, %p245
    %p247 = scmp.ne.s32.totalorder %s238, %s239
    %p248 = scmp.eq.s32.totalorder %s29, 0
    %p249 = por %p247, %p248
    %p250 = scmp.ne.s32.totalorder %s238, %s239
    %p251 = scmp.eq.s32.totalorder %s30, 1
    %p252 = por %p250, %p251
    %p254 = scmp.ne.s32.totalorder %s239, %s253
    %p255 = scmp.eq.s32.totalorder %s30, 0
    %p256 = por %p254, %p255
    %s258 = sadd.s32 %s257, 1
    %p261 = scmp.eq.s32.totalorder %s24, 1
    %p262 = scmp.ne.s32.totalorder %s257, %s259
    %p263 = scmp.eq.s32.totalorder %s24, 0
    %p264 = por %p262, %p263
    %p265 = scmp.ne.s32.totalorder %s257, %s259
    %p266 = scmp.eq.s32.totalorder %s29, 1
    %p267 = por %p265, %p266
    %p268 = scmp.ne.s32.totalorder %s259, %s260
    %p269 = scmp.eq.s32.totalorder %s29, 0
    %p270 = por %p268, %p269
    %p271 = scmp.ne.s32.totalorder %s259, %s260
    %p272 = scmp.eq.s32.totalorder %s30, 1
    %p273 = por %p271, %p272
    %p275 = scmp.ne.s32.totalorder %s260, %s274
    %p276 = scmp.eq.s32.totalorder %s30, 0
    %p277 = por %p275, %p276
    %s279 = sadd.s32 %s278, 1
    %p282 = scmp.eq.s32.totalorder %s24, 1
    %p283 = scmp.ne.s32.totalorder %s278, %s280
    %p284 = scmp.eq.s32.totalorder %s24, 0
    %p285 = por %p283, %p284
    %p286 = scmp.ne.s32.totalorder %s278, %s280
    %p287 = scmp.eq.s32.totalorder %s29, 1
    %p288 = por %p286, %p287
    %p289 = scmp.ne.s32.totalorder %s280, %s281
    %p290 = scmp.eq.s32.totalorder %s29, 0
    %p291 = por %p289, %p290
    %p292 = scmp.ne.s32.totalorder %s280, %s281
    %p293 = scmp.eq.s32.totalorder %s30, 1
    %p294 = por %p292, %p293
    %p296 = scmp.ne.s32.totalorder %s281, %s295
    %p297 = scmp.eq.s32.totalorder %s30, 0
    %p298 = por %p296, %p297
    %s300 = sadd.s32 %s299, 1
    %p303 = scmp.eq.s32.totalorder %s24, 1
    %p304 = scmp.ne.s32.totalorder %s299, %s301
    %p305 = scmp.eq.s32.totalorder %s24, 0
    %p306 = por %p304, %p305
    %p307 = scmp.ne.s32.totalorder %s299, %s301
    %p308 = scmp.eq.s32.totalorder %s29, 1
    %p309 = por %p307, %p308
    %p310 = scmp.ne.s32.totalorder %s301, %s302
    %p311 = scmp.eq.s32.totalorder %s29, 0
    %p312 = por %p310, %p311
    %p313 = scmp.ne.s32.totalorder %s301, %s302
    %p314 = scmp.eq.s32.totalorder %s30, 1
    %p315 = por %p313, %p314
    %p317 = scmp.ne.s32.totalorder %s302, %s316
    %p318 = scmp.eq.s32.totalorder %s30, 0
    %p319 = por %p317, %p318
    %s321 = sadd.s32 %s320, 1
    %p324 = scmp.eq.s32.totalorder %s24, 1
    %p325 = scmp.ne.s32.totalorder %s320, %s322
    %p326 = scmp.eq.s32.totalorder %s24, 0
    %p327 = por %p325, %p326
    %p328 = scmp.ne.s32.totalorder %s320, %s322
    %p329 = scmp.eq.s32.totalorder %s29, 1
    %p330 = por %p328, %p329
    %p331 = scmp.ne.s32.totalorder %s322, %s323
    %p332 = scmp.eq.s32.totalorder %s29, 0
    %p333 = por %p331, %p332
    %p334 = scmp.ne.s32.totalorder %s322, %s323
    %p335 = scmp.eq.s32.totalorder %s30, 1
    %p336 = por %p334, %p335
    %p338 = scmp.ne.s32.totalorder %s323, %s337
    %p339 = scmp.eq.s32.totalorder %s30, 0
    %p340 = por %p338, %p339
    %s342 = sadd.s32 %s341, 1
    %p345 = scmp.eq.s32.totalorder %s24, 1
    %p346 = scmp.ne.s32.totalorder %s341, %s343
    %p347 = scmp.eq.s32.totalorder %s24, 0
    %p348 = por %p346, %p347
    %p349 = scmp.ne.s32.totalorder %s341, %s343
    %p350 = scmp.eq.s32.totalorder %s29, 1
    %p351 = por %p349, %p350
    %p352 = scmp.ne.s32.totalorder %s343, %s344
    %p353 = scmp.eq.s32.totalorder %s29, 0
    %p354 = por %p352, %p353
    %p355 = scmp.ne.s32.totalorder %s343, %s344
    %p356 = scmp.eq.s32.totalorder %s30, 1
    %p357 = por %p355, %p356
    %p359 = scmp.ne.s32.totalorder %s344, %s358
    %p360 = scmp.eq.s32.totalorder %s30, 0
    %p361 = por %p359, %p360
    %s363 = sadd.s32 %s362, 1
    %p366 = scmp.eq.s32.totalorder %s24, 1
    %p367 = scmp.ne.s32.totalorder %s362, %s364
    %p368 = scmp.eq.s32.totalorder %s24, 0
    %p369 = por %p367, %p368
    %p370 = scmp.ne.s32.totalorder %s362, %s364
    %p371 = scmp.eq.s32.totalorder %s29, 1
    %p372 = por %p370, %p371
    %p373 = scmp.ne.s32.totalorder %s364, %s365
    %p374 = scmp.eq.s32.totalorder %s29, 0
    %p375 = por %p373, %p374
    %p376 = scmp.ne.s32.totalorder %s364, %s365
    %p377 = scmp.eq.s32.totalorder %s30, 1
    %p378 = por %p376, %p377
    %p380 = scmp.ne.s32.totalorder %s365, %s379
    %p381 = scmp.eq.s32.totalorder %s30, 0
    %p382 = por %p380, %p381
    %s384 = sadd.s32 %s383, 1
    %p387 = scmp.eq.s32.totalorder %s24, 1
    %p388 = scmp.ne.s32.totalorder %s383, %s385
    %p389 = scmp.eq.s32.totalorder %s24, 0
    %p390 = por %p388, %p389
    %p391 = scmp.ne.s32.totalorder %s383, %s385
    %p392 = scmp.eq.s32.totalorder %s29, 1
    %p393 = por %p391, %p392
    %p394 = scmp.ne.s32.totalorder %s385, %s386
    %p395 = scmp.eq.s32.totalorder %s29, 0
    %p396 = por %p394, %p395
    %p397 = scmp.ne.s32.totalorder %s385, %s386
    %p398 = scmp.eq.s32.totalorder %s30, 1
    %p399 = por %p397, %p398
    %p401 = scmp.ne.s32.totalorder %s386, %s400
    %p402 = scmp.eq.s32.totalorder %s30, 0
    %p403 = por %p401, %p402
    %s405 = sadd.s32 %s404, 1
    %p408 = scmp.eq.s32.totalorder %s24, 1
    %p409 = scmp.ne.s32.totalorder %s404, %s406
    %p410 = scmp.eq.s32.totalorder %s24, 0
    %p411 = por %p409, %p410
    %p412 = scmp.ne.s32.totalorder %s404, %s406
    %p413 = scmp.eq.s32.totalorder %s29, 1
    %p414 = por %p412, %p413
    %p415 = scmp.ne.s32.totalorder %s406, %s407
    %p416 = scmp.eq.s32.totalorder %s29, 0
    %p417 = por %p415, %p416
    %p418 = scmp.ne.s32.totalorder %s406, %s407
    %p419 = scmp.eq.s32.totalorder %s30, 1
    %p420 = por %p418, %p419
    %p422 = scmp.ne.s32.totalorder %s407, %s421
    %p423 = scmp.eq.s32.totalorder %s30, 0
    %p424 = por %p422, %p423
    %s425 = ssub.s32 %s24, %s31
    %p426 = scmp.eq.s32.totalorder %s425, 0
    %s428 = sadd.s32 %s427, 1
    %s429 = scalar_select %p426, %s427, %s428
    %p432 = pneg %p426
    %p433 = scmp.eq.s32.totalorder %s24, 1
    %p434 = por %p432, %p433
    %p435 = scmp.ne.s32.totalorder %s427, %s430
    %p436 = scmp.eq.s32.totalorder %s24, 0
    %p437 = por %p435, %p436
    %p438 = scmp.ne.s32.totalorder %s427, %s430
    %p439 = scmp.eq.s32.totalorder %s29, 1
    %p440 = por %p438, %p439
    %p441 = scmp.ne.s32.totalorder %s430, %s431
    %p442 = scmp.eq.s32.totalorder %s29, 0
    %p443 = por %p441, %p442
    %p444 = scmp.ne.s32.totalorder %s430, %s431
    %p445 = scmp.eq.s32.totalorder %s30, 1
    %p446 = por %p444, %p445
    %p448 = scmp.ne.s32.totalorder %s431, %s447
    %p449 = scmp.eq.s32.totalorder %s30, 0
    %p450 = por %p448, %p449
    %p451 = scmp.le.s32.totalorder 1, %s24
    %p452 = scmp.lt.s32.totalorder %s24, 3
    %p453 = pnand %p451, %p452
    %p454 = pneg %p453
    // Predicated region
    $region9: #{tpu_custom_call.1} parent=5 // pred_check
      _
    $region10: #{tpu_custom_call.1} parent=5 // pred_check_branch
      %456 = sbr.rel (%p453) target = $region12
    $region11: #{tpu_custom_call.1} parent=5 // pred_region
      %s457 = ssub.s32 %s24, 1
      // Predicated region
      $region13: #{tpu_custom_call.1} parent=11 // pred_check
        %p458 = pneg %p123
      $region14: #{tpu_custom_call.1} parent=11 // pred_check_branch
        %460 = sbr.rel (%p458) target = $region16
      $region15: #{tpu_custom_call.1} parent=11 // pred_region
        _
      $region16: #{tpu_custom_call.1} parent=11 // pred_fallthru
        _
      // Predicated region
      $region17: #{tpu_custom_call.1} parent=11 // pred_check
        %p461 = pneg %p144
      $region18: #{tpu_custom_call.1} parent=11 // pred_check_branch
        %463 = sbr.rel (%p461) target = $region20
      $region19: #{tpu_custom_call.1} parent=11 // pred_region
        _
      $region20: #{tpu_custom_call.1} parent=11 // pred_fallthru
        _
      // Predicated region
      $region21: #{tpu_custom_call.1} parent=11 // pred_check
        %p464 = pneg %p165
      $region22: #{tpu_custom_call.1} parent=11 // pred_check_branch
        %466 = sbr.rel (%p464) target = $region24
      $region23: #{tpu_custom_call.1} parent=11 // pred_region
        _
      $region24: #{tpu_custom_call.1} parent=11 // pred_fallthru
        _
      // Predicated region
      $region25: #{tpu_custom_call.1} parent=11 // pred_check
        %p467 = pneg %p186
      $region26: #{tpu_custom_call.1} parent=11 // pred_check_branch
        %469 = sbr.rel (%p467) target = $region28
      $region27: #{tpu_custom_call.1} parent=11 // pred_region
        _
      $region28: #{tpu_custom_call.1} parent=11 // pred_fallthru
        _
      // Predicated region
      $region29: #{tpu_custom_call.1} parent=11 // pred_check
        %p470 = pneg %p207
      $region30: #{tpu_custom_call.1} parent=11 // pred_check_branch
        %472 = sbr.rel (%p470) target = $region32
      $region31: #{tpu_custom_call.1} parent=11 // pred_region
        _
      $region32: #{tpu_custom_call.1} parent=11 // pred_fallthru
        _
      // Predicated region
      $region33: #{tpu_custom_call.1} parent=11 // pred_check
        %p473 = pneg %p228
      $region34: #{tpu_custom_call.1} parent=11 // pred_check_branch
        %475 = sbr.rel (%p473) target = $region36
      $region35: #{tpu_custom_call.1} parent=11 // pred_region
        _
      $region36: #{tpu_custom_call.1} parent=11 // pred_fallthru
        _
      // Predicated region
      $region37: #{tpu_custom_call.1} parent=11 // pred_check
        %p476 = pneg %p249
      $region38: #{tpu_custom_call.1} parent=11 // pred_check_branch
        %478 = sbr.rel (%p476) target = $region40
      $region39: #{tpu_custom_call.1} parent=11 // pred_region
        _
      $region40: #{tpu_custom_call.1} parent=11 // pred_fallthru
        _
      // Predicated region
      $region41: #{tpu_custom_call.1} parent=11 // pred_check
        %p479 = pneg %p270
      $region42: #{tpu_custom_call.1} parent=11 // pred_check_branch
        %481 = sbr.rel (%p479) target = $region44
      $region43: #{tpu_custom_call.1} parent=11 // pred_region
        _
      $region44: #{tpu_custom_call.1} parent=11 // pred_fallthru
        _
      // Predicated region
      $region45: #{tpu_custom_call.1} parent=11 // pred_check
        %p482 = pneg %p291
      $region46: #{tpu_custom_call.1} parent=11 // pred_check_branch
        %484 = sbr.rel (%p482) target = $region48
      $region47: #{tpu_custom_call.1} parent=11 // pred_region
        _
      $region48: #{tpu_custom_call.1} parent=11 // pred_fallthru
        _
      // Predicated region
      $region49: #{tpu_custom_call.1} parent=11 // pred_check
        %p485 = pneg %p312
      $region50: #{tpu_custom_call.1} parent=11 // pred_check_branch
        %487 = sbr.rel (%p485) target = $region52
      $region51: #{tpu_custom_call.1} parent=11 // pred_region
        _
      $region52: #{tpu_custom_call.1} parent=11 // pred_fallthru
        _
      // Predicated region
      $region53: #{tpu_custom_call.1} parent=11 // pred_check
        %p488 = pneg %p333
      $region54: #{tpu_custom_call.1} parent=11 // pred_check_branch
        %490 = sbr.rel (%p488) target = $region56
      $region55: #{tpu_custom_call.1} parent=11 // pred_region
        _
      $region56: #{tpu_custom_call.1} parent=11 // pred_fallthru
        _
      // Predicated region
      $region57: #{tpu_custom_call.1} parent=11 // pred_check
        %p491 = pneg %p354
      $region58: #{tpu_custom_call.1} parent=11 // pred_check_branch
        %493 = sbr.rel (%p491) target = $region60
      $region59: #{tpu_custom_call.1} parent=11 // pred_region
        _
      $region60: #{tpu_custom_call.1} parent=11 // pred_fallthru
        _
      // Predicated region
      $region61: #{tpu_custom_call.1} parent=11 // pred_check
        %p494 = pneg %p375
      $region62: #{tpu_custom_call.1} parent=11 // pred_check_branch
        %496 = sbr.rel (%p494) target = $region64
      $region63: #{tpu_custom_call.1} parent=11 // pred_region
        _
      $region64: #{tpu_custom_call.1} parent=11 // pred_fallthru
        _
      // Predicated region
      $region65: #{tpu_custom_call.1} parent=11 // pred_check
        %p497 = pneg %p396
      $region66: #{tpu_custom_call.1} parent=11 // pred_check_branch
        %499 = sbr.rel (%p497) target = $region68
      $region67: #{tpu_custom_call.1} parent=11 // pred_region
        _
      $region68: #{tpu_custom_call.1} parent=11 // pred_fallthru
        _
      // Predicated region
      $region69: #{tpu_custom_call.1} parent=11 // pred_check
        %p500 = pneg %p417
      $region70: #{tpu_custom_call.1} parent=11 // pred_check_branch
        %502 = sbr.rel (%p500) target = $region72
      $region71: #{tpu_custom_call.1} parent=11 // pred_region
        _
      $region72: #{tpu_custom_call.1} parent=11 // pred_fallthru
        _
    $region12: #{tpu_custom_call.1} parent=5 // pred_fallthru
      _
    %p503 = scmp.lt.s32.totalorder %s24, 2
    // Predicated region
    $region73: #{tpu_custom_call.1} parent=5 // pred_check
      %p504 = pneg %p503
    $region74: #{tpu_custom_call.1} parent=5 // pred_check_branch
      %506 = sbr.rel (%p504) target = $region76
    $region75: #{tpu_custom_call.1} parent=5 // pred_region
      // Predicated region
      $region77: #{tpu_custom_call.1} parent=75 // pred_check
        %p507 = pneg %p44
      $region78: #{tpu_custom_call.1} parent=75 // pred_check_branch
        %509 = sbr.rel (%p507) target = $region80
      $region79: #{tpu_custom_call.1} parent=75 // pred_region
        %p510 = scmp.lt.s32.totalorder %s24, 1
        %s511 = scalar_select %p510, %s24, 1
        %s512 = smul.addr %s511, 10
        %s513 = smul.addr %s512, 8
        %s514 = scalar_lea.vmem %s0, %s513
      $region80: #{tpu_custom_call.1} parent=75 // pred_fallthru
        _
      // Predicated region
      $region81: #{tpu_custom_call.1} parent=75 // pred_check
        %p515 = pneg %p70
      $region82: #{tpu_custom_call.1} parent=75 // pred_check_branch
        %517 = sbr.rel (%p515) target = $region84
      $region83: #{tpu_custom_call.1} parent=75 // pred_region
        %p518 = scmp.lt.s32.totalorder %s24, 1
        %s519 = scalar_select %p518, %s24, 1
        %s520 = smul.addr %s519, 10
        %s521 = smul.addr %s520, 8
        %s522 = scalar_lea.vmem %s1, %s521
      $region84: #{tpu_custom_call.1} parent=75 // pred_fallthru
        _
      // Predicated region
      $region85: #{tpu_custom_call.1} parent=75 // pred_check
        %p523 = pneg %p96
      $region86: #{tpu_custom_call.1} parent=75 // pred_check_branch
        %525 = sbr.rel (%p523) target = $region88
      $region87: #{tpu_custom_call.1} parent=75 // pred_region
        %p526 = scmp.lt.s32.totalorder %s24, 1
        %s527 = scalar_select %p526, %s24, 1
        %s528 = smul.addr %s527, 10
        %s529 = smul.addr %s528, 8
        %s530 = scalar_lea.vmem %s2, %s529
      $region88: #{tpu_custom_call.1} parent=75 // pred_fallthru
        _
    $region76: #{tpu_custom_call.1} parent=5 // pred_fallthru
      _
    %p531 = scmp.le.s32.totalorder 1, %s24
    %p532 = scmp.lt.s32.totalorder %s24, 3
    %p533 = pnand %p531, %p532
    %p534 = pneg %p533
    // Predicated region
    $region89: #{tpu_custom_call.1} parent=5 // pred_check
      _
    $region90: #{tpu_custom_call.1} parent=5 // pred_check_branch
      %536 = sbr.rel (%p533) target = $region92
    $region91: #{tpu_custom_call.1} parent=5 // pred_region
      %s537 = ssub.s32 %s24, 1
      %p538 = scmp.lt.s32.totalorder %s29, 1
      %s539 = scalar_select %p538, %s29, 1
      %s540 = smul.addr %s539, 10
      %s541 = smul.addr %s540, 8
      %s542 = scalar_lea.vmem %s0, %s541
      %p543 = pneg %p50
      %p544 = pneg %p47
      %p545 = scmp.lt.s32.totalorder %s29, 1
      %s546 = scalar_select %p545, %s29, 1
      %s547 = smul.addr %s546, 10
      %s548 = smul.addr %s547, 8
      %s549 = scalar_lea.vmem %s1, %s548
      %p550 = pneg %p76
      %p551 = pneg %p73
      %p552 = scmp.lt.s32.totalorder %s29, 1
      %s553 = scalar_select %p552, %s29, 1
      %s554 = smul.addr %s553, 10
      %s555 = smul.addr %s554, 8
      %s556 = scalar_lea.vmem %s2, %s555
      %p557 = pneg %p102
      %p558 = pneg %p99
      %p559 = pneg %p123
      %p560 = pneg %p120
      %p561 = pneg %p144
      %p562 = pneg %p141
      %p563 = pneg %p165
      %p564 = pneg %p162
      %p565 = pneg %p186
      %p566 = pneg %p183
      %p567 = pneg %p207
      %p568 = pneg %p204
      %p569 = pneg %p228
      %p570 = pneg %p225
      %p571 = pneg %p249
      %p572 = pneg %p246
      %p573 = pneg %p270
      %p574 = pneg %p267
      %p575 = pneg %p291
      %p576 = pneg %p288
      %p577 = pneg %p312
      %p578 = pneg %p309
      %p579 = pneg %p333
      %p580 = pneg %p330
      %p581 = pneg %p354
      %p582 = pneg %p351
      %p583 = pneg %p375
      %p584 = pneg %p372
      %p585 = pneg %p396
      %p586 = pneg %p393
      %p587 = pneg %p417
      %p588 = pneg %p414
      %p589 = pneg %p443
      %p590 = pneg %p440
      %p591 = scmp.lt.s32.totalorder %s29, 1
      %s592 = scalar_select %p591, %s29, 1
      %s593 = smul.addr %s592, 10
      %s594 = smul.addr %s593, 8
      %s595 = scalar_lea.vmem %s18, %s594
      %p596 = scmp.lt.s32.totalorder %s29, 1
      %s597 = scalar_select %p596, %s29, 1
      %s598 = smul.addr %s597, 10
      %s599 = smul.addr %s598, 8
      %s600 = scalar_lea.vmem %s0, %s599
      %p601 = scmp.lt.s32.totalorder %s29, 1
      %s602 = scalar_select %p601, %s29, 1
      %s603 = smul.addr %s602, 10
      %s604 = smul.addr %s603, 8
      %s605 = scalar_lea.vmem %s1, %s604
      %p606 = scmp.lt.s32.totalorder %s29, 1
      %s607 = scalar_select %p606, %s29, 1
      %s608 = smul.addr %s607, 10
      %s609 = smul.addr %s608, 8
      %s610 = scalar_lea.vmem %s2, %s609
      %p611 = scmp.lt.s32.totalorder %s29, 1
      %s612 = scalar_select %p611, %s29, 1
      %s613 = smul.addr %s612, 10
      %s614 = smul.addr %s613, 8
      %s615 = scalar_lea.vmem %s18, %s614
      %v616 = vld [vmem:[%s600] sm:$0xff]
      %v617 = vld [vmem:[%s600 + $0x8] sm:$0xff]
      %v618 = vld [vmem:[%s600 + $0x10] sm:$0xff]
      %v619 = vld [vmem:[%s600 + $0x18] sm:$0xff]
      %v620 = vld [vmem:[%s600 + $0x20] sm:$0xff]
      %v621 = vld [vmem:[%s600 + $0x28] sm:$0xff]
      %v622 = vld [vmem:[%s600 + $0x30] sm:$0xff]
      %v623 = vld [vmem:[%s600 + $0x38] sm:$0xff]
      %v624 = vld [vmem:[%s600 + $0x40] sm:$0xff]
      %v625 = vld [vmem:[%s600 + $0x48] sm:$0xff]
      %v626 = vld [vmem:[%s605] sm:$0xff]
      %v627 = vld [vmem:[%s605 + $0x8] sm:$0xff]
      %v628 = vld [vmem:[%s605 + $0x10] sm:$0xff]
      %v629 = vld [vmem:[%s605 + $0x18] sm:$0xff]
      %v630 = vld [vmem:[%s605 + $0x20] sm:$0xff]
      %v631 = vld [vmem:[%s605 + $0x28] sm:$0xff]
      %v632 = vld [vmem:[%s605 + $0x30] sm:$0xff]
      %v633 = vld [vmem:[%s605 + $0x38] sm:$0xff]
      %v634 = vld [vmem:[%s605 + $0x40] sm:$0xff]
      %v635 = vld [vmem:[%s605 + $0x48] sm:$0xff]
      %v636 = vld [vmem:[%s610] sm:$0xff]
      %v637 = vld [vmem:[%s610 + $0x8] sm:$0xff]
      %v638 = vld [vmem:[%s610 + $0x10] sm:$0xff]
      %v639 = vld [vmem:[%s610 + $0x18] sm:$0xff]
      %v640 = vld [vmem:[%s610 + $0x20] sm:$0xff]
      %v641 = vld [vmem:[%s610 + $0x28] sm:$0xff]
      %v642 = vld [vmem:[%s610 + $0x30] sm:$0xff]
      %v643 = vld [vmem:[%s610 + $0x38] sm:$0xff]
      %v644 = vld [vmem:[%s610 + $0x40] sm:$0xff]
      %v645 = vld [vmem:[%s610 + $0x48] sm:$0xff]
      %656 = vrot.lane.b32.xlu0 %v626, 32
      %v657 = vpop.permute.xlu0 %656
      %658 = vrot.lane.b32.xlu0 %v627, 32
      %v659 = vpop.permute.xlu0 %658
      %660 = vrot.lane.b32.xlu0 %v628, 32
      %v661 = vpop.permute.xlu0 %660
      %662 = vrot.lane.b32.xlu0 %v629, 32
      %v663 = vpop.permute.xlu0 %662
      %664 = vrot.lane.b32.xlu0 %v630, 32
      %v665 = vpop.permute.xlu0 %664
      %666 = vrot.lane.b32.xlu0 %v631, 32
      %v667 = vpop.permute.xlu0 %666
      %668 = vrot.lane.b32.xlu0 %v632, 32
      %v669 = vpop.permute.xlu0 %668
      %670 = vrot.lane.b32.xlu0 %v633, 32
      %v671 = vpop.permute.xlu0 %670
      %672 = vrot.lane.b32.xlu0 %v634, 32
      %v673 = vpop.permute.xlu0 %672
      %674 = vrot.lane.b32.xlu0 %v635, 32
      %v675 = vpop.permute.xlu0 %674
      %696 = vrot.lane.b32.xlu0 %v636, 64
      %v697 = vpop.permute.xlu0 %696
      %698 = vrot.lane.b32.xlu0 %v637, 64
      %v699 = vpop.permute.xlu0 %698
      %700 = vrot.lane.b32.xlu0 %v638, 64
      %v701 = vpop.permute.xlu0 %700
      %702 = vrot.lane.b32.xlu0 %v639, 64
      %v703 = vpop.permute.xlu0 %702
      %704 = vrot.lane.b32.xlu0 %v640, 64
      %v705 = vpop.permute.xlu0 %704
      %706 = vrot.lane.b32.xlu0 %v641, 64
      %v707 = vpop.permute.xlu0 %706
      %708 = vrot.lane.b32.xlu0 %v642, 64
      %v709 = vpop.permute.xlu0 %708
      %710 = vrot.lane.b32.xlu0 %v643, 64
      %v711 = vpop.permute.xlu0 %710
      %712 = vrot.lane.b32.xlu0 %v644, 64
      %v713 = vpop.permute.xlu0 %712
      %714 = vrot.lane.b32.xlu0 %v645, 64
      %v715 = vpop.permute.xlu0 %714
      %vm726 = vcmask 261120
      %v727 = vsel %vm726, %v616, %v657
      %v728 = vsel %vm726, %v617, %v659
      %v729 = vsel %vm726, %v618, %v661
      %v730 = vsel %vm726, %v619, %v663
      %v731 = vsel %vm726, %v620, %v665
      %v732 = vsel %vm726, %v621, %v667
      %v733 = vsel %vm726, %v622, %v669
      %v734 = vsel %vm726, %v623, %v671
      %v735 = vsel %vm726, %v624, %v673
      %v736 = vsel %vm726, %v625, %v675
      %vm737 = vcmask 523264
      %v738 = vsel %vm737, %v727, %v697
      %v739 = vsel %vm737, %v728, %v699
      %v740 = vsel %vm737, %v729, %v701
      %v741 = vsel %vm737, %v730, %v703
      %v742 = vsel %vm737, %v731, %v705
      %v743 = vsel %vm737, %v732, %v707
      %v744 = vsel %vm737, %v733, %v709
      %v745 = vsel %vm737, %v734, %v711
      %v746 = vsel %vm737, %v735, %v713
      %v747 = vsel %vm737, %v736, %v715
      %v748 = vld [vmem:[%s6] sm:$0xff]
      %v749 = vld [vmem:[%s6 + $0x8] sm:$0xff]
      %v750 = vld [vmem:[%s6 + $0x10] sm:$0xff]
      %v751 = vld [vmem:[%s6 + $0x18] sm:$0xff]
      %v752 = vld [vmem:[%s6 + $0x20] sm:$0xff]
      %v753 = vld [vmem:[%s6 + $0x28] sm:$0xff]
      %v754 = vld [vmem:[%s6 + $0x30] sm:$0xff]
      %v755 = vld [vmem:[%s6 + $0x38] sm:$0xff]
      %v756 = vld [vmem:[%s6 + $0x40] sm:$0xf]
      %v757 = vld [vmem:[%s7] sm:$0x1]
      %v759 = vlaneseq
      %v760 = vshrl.u32 %v759, 7
      %v761 = vsub.s32 0, %v760
      %v762 = vrot.slane %v757, %v761
      %vm764 = vcmask 556032
      %v766 = vsel %vm764, %v738, 0
      %v769 = vsel %vm764, %v739, 0
      %v772 = vsel %vm764, %v740, 0
      %v775 = vsel %vm764, %v741, 0
      %v778 = vsel %vm764, %v742, 0
      %v781 = vsel %vm764, %v743, 0
      %v784 = vsel %vm764, %v744, 0
      %v787 = vsel %vm764, %v745, 0
      %v790 = vsel %vm764, %v746, 0
      %v793 = vsel %vm764, %v747, 0
      %vm795 = vcmask 1043456
      %v797 = vsel %vm795, %v756, 0
      %799 = vmatprep.subr.mxu0 0.0
      %800 = vmatpush1.msra.mxu0 0.0
      %801 = vmatprep.subr.mxu0 0.0
      %802 = vmatpush1.msra.mxu0 0.0
      %803 = vmatprep.subr.mxu0 0.0
      %804 = vmatpush1.msra.mxu0 0.0
      %805 = vmatprep.subr.mxu0 0.0
      %806 = vmatpush1.msra.mxu0 0.0
      %807 = vmatprep.subr.mxu0 0.0
      %808 = vmatpush1.msra.mxu0 0.0
      %809 = vmatprep.subr.mxu0 0.0
      %810 = vmatpush1.msra.mxu0 0.0
      %811 = vmatprep.subr.mxu0 0.0
      %812 = vmatpush1.msra.mxu0 0.0
      %813 = vmatprep.subr.mxu0 0.0
      %814 = vmatpush1.msra.mxu0 %v797
      %815 = vmatprep.subr.mxu0 0.0
      %816 = vmatpush1.msra.mxu0 %v755
      %817 = vmatprep.subr.mxu0 0.0
      %818 = vmatpush1.msra.mxu0 %v754
      %819 = vmatprep.subr.mxu0 0.0
      %820 = vmatpush1.msra.mxu0 %v753
      %821 = vmatprep.subr.mxu0 0.0
      %822 = vmatpush1.msra.mxu0 %v752
      %823 = vmatprep.subr.mxu0 0.0
      %824 = vmatpush1.msra.mxu0 %v751
      %825 = vmatprep.subr.mxu0 0.0
      %826 = vmatpush1.msra.mxu0 %v750
      %827 = vmatprep.subr.mxu0 0.0
      %828 = vmatpush1.msra.mxu0 %v749
      %829 = vmatprep.subr.mxu0 0.0
      %830 = vmatpush1.msra.mxu0 %v748
      %831 = vmatprep.subr.mxu0 0.0
      %832 = vmatpush2.msra.mxu0 0.0
      %833 = vmatprep.subr.mxu0 0.0
      %834 = vmatpush2.msra.mxu0 0.0
      %835 = vmatprep.subr.mxu0 0.0
      %836 = vmatpush2.msra.mxu0 0.0
      %837 = vmatprep.subr.mxu0 0.0
      %838 = vmatpush2.msra.mxu0 0.0
      %839 = vmatprep.subr.mxu0 0.0
      %840 = vmatpush2.msra.mxu0 0.0
      %841 = vmatprep.subr.mxu0 0.0
      %842 = vmatpush2.msra.mxu0 0.0
      %843 = vmatprep.subr.mxu0 0.0
      %844 = vmatpush2.msra.mxu0 0.0
      %845 = vmatprep.subr.mxu0 0.0
      %846 = vmatpush2.msra.mxu0 0.0
      %847 = vmatprep.subr.mxu0 0.0
      %848 = vmatpush2.msra.mxu0 0.0
      %849 = vmatprep.subr.mxu0 0.0
      %850 = vmatpush2.msra.mxu0 0.0
      %851 = vmatprep.subr.mxu0 0.0
      %852 = vmatpush2.msra.mxu0 0.0
      %853 = vmatprep.subr.mxu0 0.0
      %854 = vmatpush2.msra.mxu0 0.0
      %855 = vmatprep.subr.mxu0 0.0
      %856 = vmatpush2.msra.mxu0 0.0
      %857 = vmatprep.subr.mxu0 0.0
      %858 = vmatpush2.msra.mxu0 0.0
      %859 = vmatprep.subr.mxu0 0.0
      %860 = vmatpush2.msra.mxu0 0.0
      %861 = vmatprep.subr.mxu0 0.0
      %862 = vmatpush2.msra.mxu0 0.0
      %863 = vmatprep.mubr.f32.mxu0 0.0
      %864 = vmatmul.mubr.f32.gmra.mxu0 %v766
      %v865 = vpop.f32.mrf.mxu0
      %v866 = vadd.f32 %v762, %v865
      %v867 = vpop.f32.mrf.mxu0
      %868 = vmatprep.mubr.f32.mxu0 0.0
      %869 = vmatmul.mubr.f32.gmra.mxu0 %v769
      %v870 = vpop.f32.mrf.mxu0
      %v871 = vadd.f32 %v762, %v870
      %v872 = vpop.f32.mrf.mxu0
      %873 = vmatprep.mubr.f32.mxu0 0.0
      %874 = vmatmul.mubr.f32.gmra.mxu0 %v772
      %v875 = vpop.f32.mrf.mxu0
      %v876 = vadd.f32 %v762, %v875
      %v877 = vpop.f32.mrf.mxu0
      %878 = vmatprep.mubr.f32.mxu0 0.0
      %879 = vmatmul.mubr.f32.gmra.mxu0 %v775
      %v880 = vpop.f32.mrf.mxu0
      %v881 = vadd.f32 %v762, %v880
      %v882 = vpop.f32.mrf.mxu0
      %883 = vmatprep.mubr.f32.mxu0 0.0
      %884 = vmatmul.mubr.f32.gmra.mxu0 %v778
      %v885 = vpop.f32.mrf.mxu0
      %v886 = vadd.f32 %v762, %v885
      %v887 = vpop.f32.mrf.mxu0
      %888 = vmatprep.mubr.f32.mxu0 0.0
      %889 = vmatmul.mubr.f32.gmra.mxu0 %v781
      %v890 = vpop.f32.mrf.mxu0
      %v891 = vadd.f32 %v762, %v890
      %v892 = vpop.f32.mrf.mxu0
      %893 = vmatprep.mubr.f32.mxu0 0.0
      %894 = vmatmul.mubr.f32.gmra.mxu0 %v784
      %v895 = vpop.f32.mrf.mxu0
      %v896 = vadd.f32 %v762, %v895
      %v897 = vpop.f32.mrf.mxu0
      %898 = vmatprep.mubr.f32.mxu0 0.0
      %899 = vmatmul.mubr.f32.gmra.mxu0 %v787
      %v900 = vpop.f32.mrf.mxu0
      %v901 = vadd.f32 %v762, %v900
      %v902 = vpop.f32.mrf.mxu0
      %903 = vmatprep.mubr.f32.mxu0 0.0
      %904 = vmatmul.mubr.f32.gmra.mxu0 %v790
      %v905 = vpop.f32.mrf.mxu0
      %v906 = vadd.f32 %v762, %v905
      %v907 = vpop.f32.mrf.mxu0
      %908 = vmatprep.mubr.f32.mxu0 0.0
      %909 = vmatmul.mubr.f32.gmra.mxu0 %v793
      %v910 = vpop.f32.mrf.mxu0
      %v911 = vadd.f32 %v762, %v910
      %v912 = vpop.f32.mrf.mxu0
      %913 = vdwg.mxu0
      %vm914 = vcmask 654848
      %v915 = vsel %vm914, %v866, -inf
      %916 = vmax.xlane.f32.xlu0 %v915
      %v917 = vpop.xlane.xlu0 %916
      %v918 = vsel %vm914, %v871, -inf
      %919 = vmax.xlane.f32.xlu0 %v918
      %v920 = vpop.xlane.xlu0 %919
      %v921 = vsel %vm914, %v876, -inf
      %922 = vmax.xlane.f32.xlu0 %v921
      %v923 = vpop.xlane.xlu0 %922
      %v924 = vsel %vm914, %v881, -inf
      %925 = vmax.xlane.f32.xlu0 %v924
      %v926 = vpop.xlane.xlu0 %925
      %v927 = vsel %vm914, %v886, -inf
      %928 = vmax.xlane.f32.xlu0 %v927
      %v929 = vpop.xlane.xlu0 %928
      %v930 = vsel %vm914, %v891, -inf
      %931 = vmax.xlane.f32.xlu0 %v930
      %v932 = vpop.xlane.xlu0 %931
      %v933 = vsel %vm914, %v896, -inf
      %934 = vmax.xlane.f32.xlu0 %v933
      %v935 = vpop.xlane.xlu0 %934
      %v936 = vsel %vm914, %v901, -inf
      %937 = vmax.xlane.f32.xlu0 %v936
      %v938 = vpop.xlane.xlu0 %937
      %v939 = vsel %vm914, %v906, -inf
      %940 = vmax.xlane.f32.xlu0 %v939
      %v941 = vpop.xlane.xlu0 %940
      %v942 = vsel %vm914, %v911, -inf
      %943 = vmax.xlane.f32.xlu0 %v942
      %v944 = vpop.xlane.xlu0 %943
      %v945 = vsub.f32 %v866, %v917
      %v946 = vsub.f32 %v871, %v920
      %v947 = vsub.f32 %v876, %v923
      %v948 = vsub.f32 %v881, %v926
      %v949 = vsub.f32 %v886, %v929
      %v950 = vsub.f32 %v891, %v932
      %v951 = vsub.f32 %v896, %v935
      %v952 = vsub.f32 %v901, %v938
      %v953 = vsub.f32 %v906, %v941
      %v954 = vsub.f32 %v911, %v944
      %v955 = vmul.f32 %v945, 1.442695
      %v956 = vpow.pop %v955
      %v957 = vmul.f32 %v946, 1.442695
      %v958 = vpow.pop %v957
      %v959 = vmul.f32 %v947, 1.442695
      %v960 = vpow.pop %v959
      %v961 = vmul.f32 %v948, 1.442695
      %v962 = vpow.pop %v961
      %v963 = vmul.f32 %v949, 1.442695
      %v964 = vpow.pop %v963
      %v965 = vmul.f32 %v950, 1.442695
      %v966 = vpow.pop %v965
      %v967 = vmul.f32 %v951, 1.442695
      %v968 = vpow.pop %v967
      %v969 = vmul.f32 %v952, 1.442695
      %v970 = vpow.pop %v969
      %v971 = vmul.f32 %v953, 1.442695
      %v972 = vpow.pop %v971
      %v973 = vmul.f32 %v954, 1.442695
      %v974 = vpow.pop %v973
      %v975 = vld [vmem:[%s4] sm:$0xff]
      %v976 = vld [vmem:[%s4 + $0x8] sm:$0xff]
      %987 = vrot.lane.b32.xlu0 %v956, 64
      %v988 = vpop.permute.xlu0 %987
      %989 = vrot.lane.b32.xlu0 %v958, 64
      %v990 = vpop.permute.xlu0 %989
      %991 = vrot.lane.b32.xlu0 %v960, 64
      %v992 = vpop.permute.xlu0 %991
      %993 = vrot.lane.b32.xlu0 %v962, 64
      %v994 = vpop.permute.xlu0 %993
      %995 = vrot.lane.b32.xlu0 %v964, 64
      %v996 = vpop.permute.xlu0 %995
      %997 = vrot.lane.b32.xlu0 %v966, 64
      %v998 = vpop.permute.xlu0 %997
      %999 = vrot.lane.b32.xlu0 %v968, 64
      %v1000 = vpop.permute.xlu0 %999
      %1001 = vrot.lane.b32.xlu0 %v970, 64
      %v1002 = vpop.permute.xlu0 %1001
      %1003 = vrot.lane.b32.xlu0 %v972, 64
      %v1004 = vpop.permute.xlu0 %1003
      %1005 = vrot.lane.b32.xlu0 %v974, 64
      %v1006 = vpop.permute.xlu0 %1005
      %vm1007 = vcmask 130048
      %v1008 = vsel %vm1007, %v988, 0
      %v1010 = vsel %vm1007, %v990, 0
      %v1012 = vsel %vm1007, %v992, 0
      %v1014 = vsel %vm1007, %v994, 0
      %v1016 = vsel %vm1007, %v996, 0
      %v1018 = vsel %vm1007, %v998, 0
      %v1020 = vsel %vm1007, %v1000, 0
      %v1022 = vsel %vm1007, %v1002, 0
      %v1024 = vsel %vm1007, %v1004, 0
      %v1026 = vsel %vm1007, %v1006, 0
      %1028 = vmatprep.subr.mxu0 0.0
      %1029 = vmatpush1.msra.mxu0 0.0
      %1030 = vmatprep.subr.mxu0 0.0
      %1031 = vmatpush1.msra.mxu0 0.0
      %1032 = vmatprep.subr.mxu0 0.0
      %1033 = vmatpush1.msra.mxu0 0.0
      %1034 = vmatprep.subr.mxu0 0.0
      %1035 = vmatpush1.msra.mxu0 0.0
      %1036 = vmatprep.subr.mxu0 0.0
      %1037 = vmatpush1.msra.mxu0 0.0
      %1038 = vmatprep.subr.mxu0 0.0
      %1039 = vmatpush1.msra.mxu0 0.0
      %1040 = vmatprep.subr.mxu0 0.0
      %1041 = vmatpush1.msra.mxu0 0.0
      %1042 = vmatprep.subr.mxu0 0.0
      %1043 = vmatpush1.msra.mxu0 0.0
      %1044 = vmatprep.subr.mxu0 0.0
      %1045 = vmatpush1.msra.mxu0 0.0
      %1046 = vmatprep.subr.mxu0 0.0
      %1047 = vmatpush1.msra.mxu0 0.0
      %1048 = vmatprep.subr.mxu0 0.0
      %1049 = vmatpush1.msra.mxu0 0.0
      %1050 = vmatprep.subr.mxu0 0.0
      %1051 = vmatpush1.msra.mxu0 0.0
      %1052 = vmatprep.subr.mxu0 0.0
      %1053 = vmatpush1.msra.mxu0 0.0
      %1054 = vmatprep.subr.mxu0 0.0
      %1055 = vmatpush1.msra.mxu0 0.0
      %1056 = vmatprep.subr.mxu0 0.0
      %1057 = vmatpush1.msra.mxu0 %v976
      %1058 = vmatprep.subr.mxu0 0.0
      %1059 = vmatpush1.msra.mxu0 %v975
      %1060 = vmatprep.subr.mxu0 0.0
      %1061 = vmatpush2.msra.mxu0 0.0
      %1062 = vmatprep.subr.mxu0 0.0
      %1063 = vmatpush2.msra.mxu0 0.0
      %1064 = vmatprep.subr.mxu0 0.0
      %1065 = vmatpush2.msra.mxu0 0.0
      %1066 = vmatprep.subr.mxu0 0.0
      %1067 = vmatpush2.msra.mxu0 0.0
      %1068 = vmatprep.subr.mxu0 0.0
      %1069 = vmatpush2.msra.mxu0 0.0
      %1070 = vmatprep.subr.mxu0 0.0
      %1071 = vmatpush2.msra.mxu0 0.0
      %1072 = vmatprep.subr.mxu0 0.0
      %1073 = vmatpush2.msra.mxu0 0.0
      %1074 = vmatprep.subr.mxu0 0.0
      %1075 = vmatpush2.msra.mxu0 0.0
      %1076 = vmatprep.subr.mxu0 0.0
      %1077 = vmatpush2.msra.mxu0 0.0
      %1078 = vmatprep.subr.mxu0 0.0
      %1079 = vmatpush2.msra.mxu0 0.0
      %1080 = vmatprep.subr.mxu0 0.0
      %1081 = vmatpush2.msra.mxu0 0.0
      %1082 = vmatprep.subr.mxu0 0.0
      %1083 = vmatpush2.msra.mxu0 0.0
      %1084 = vmatprep.subr.mxu0 0.0
      %1085 = vmatpush2.msra.mxu0 0.0
      %1086 = vmatprep.subr.mxu0 0.0
      %1087 = vmatpush2.msra.mxu0 0.0
      %1088 = vmatprep.subr.mxu0 0.0
      %1089 = vmatpush2.msra.mxu0 0.0
      %1090 = vmatprep.subr.mxu0 0.0
      %1091 = vmatpush2.msra.mxu0 0.0
      %1092 = vmatprep.mubr.f32.mxu0 0.0
      %1093 = vmatmul.mubr.f32.gmra.mxu0 %v1008
      %v1094 = vpop.f32.mrf.mxu0
      %v1095 = vadd.f32 0.0, %v1094
      %v1096 = vpop.f32.mrf.mxu0
      %1097 = vmatprep.mubr.f32.mxu0 0.0
      %1098 = vmatmul.mubr.f32.gmra.mxu0 %v1010
      %v1099 = vpop.f32.mrf.mxu0
      %v1100 = vadd.f32 0.0, %v1099
      %v1101 = vpop.f32.mrf.mxu0
      %1102 = vmatprep.mubr.f32.mxu0 0.0
      %1103 = vmatmul.mubr.f32.gmra.mxu0 %v1012
      %v1104 = vpop.f32.mrf.mxu0
      %v1105 = vadd.f32 0.0, %v1104
      %v1106 = vpop.f32.mrf.mxu0
      %1107 = vmatprep.mubr.f32.mxu0 0.0
      %1108 = vmatmul.mubr.f32.gmra.mxu0 %v1014
      %v1109 = vpop.f32.mrf.mxu0
      %v1110 = vadd.f32 0.0, %v1109
      %v1111 = vpop.f32.mrf.mxu0
      %1112 = vmatprep.mubr.f32.mxu0 0.0
      %1113 = vmatmul.mubr.f32.gmra.mxu0 %v1016
      %v1114 = vpop.f32.mrf.mxu0
      %v1115 = vadd.f32 0.0, %v1114
      %v1116 = vpop.f32.mrf.mxu0
      %1117 = vmatprep.mubr.f32.mxu0 0.0
      %1118 = vmatmul.mubr.f32.gmra.mxu0 %v1018
      %v1119 = vpop.f32.mrf.mxu0
      %v1120 = vadd.f32 0.0, %v1119
      %v1121 = vpop.f32.mrf.mxu0
      %1122 = vmatprep.mubr.f32.mxu0 0.0
      %1123 = vmatmul.mubr.f32.gmra.mxu0 %v1020
      %v1124 = vpop.f32.mrf.mxu0
      %v1125 = vadd.f32 0.0, %v1124
      %v1126 = vpop.f32.mrf.mxu0
      %1127 = vmatprep.mubr.f32.mxu0 0.0
      %1128 = vmatmul.mubr.f32.gmra.mxu0 %v1022
      %v1129 = vpop.f32.mrf.mxu0
      %v1130 = vadd.f32 0.0, %v1129
      %v1131 = vpop.f32.mrf.mxu0
      %1132 = vmatprep.mubr.f32.mxu0 0.0
      %1133 = vmatmul.mubr.f32.gmra.mxu0 %v1024
      %v1134 = vpop.f32.mrf.mxu0
      %v1135 = vadd.f32 0.0, %v1134
      %v1136 = vpop.f32.mrf.mxu0
      %1137 = vmatprep.mubr.f32.mxu0 0.0
      %1138 = vmatmul.mubr.f32.gmra.mxu0 %v1026
      %v1139 = vpop.f32.mrf.mxu0
      %v1140 = vadd.f32 0.0, %v1139
      %v1141 = vpop.f32.mrf.mxu0
      %1142 = vdwg.mxu0
      %v1143 = vrcp.pop %v1095
      %v1144 = vrcp.pop %v1100
      %v1145 = vrcp.pop %v1105
      %v1146 = vrcp.pop %v1110
      %v1147 = vrcp.pop %v1115
      %v1148 = vrcp.pop %v1120
      %v1149 = vrcp.pop %v1125
      %v1150 = vrcp.pop %v1130
      %v1151 = vrcp.pop %v1135
      %v1152 = vrcp.pop %v1140
      %1163 = vrot.lane.b32.xlu0 %v1143, 64
      %v1164 = vpop.permute.xlu0 %1163
      %1165 = vrot.lane.b32.xlu0 %v1144, 64
      %v1166 = vpop.permute.xlu0 %1165
      %1167 = vrot.lane.b32.xlu0 %v1145, 64
      %v1168 = vpop.permute.xlu0 %1167
      %1169 = vrot.lane.b32.xlu0 %v1146, 64
      %v1170 = vpop.permute.xlu0 %1169
      %1171 = vrot.lane.b32.xlu0 %v1147, 64
      %v1172 = vpop.permute.xlu0 %1171
      %1173 = vrot.lane.b32.xlu0 %v1148, 64
      %v1174 = vpop.permute.xlu0 %1173
      %1175 = vrot.lane.b32.xlu0 %v1149, 64
      %v1176 = vpop.permute.xlu0 %1175
      %1177 = vrot.lane.b32.xlu0 %v1150, 64
      %v1178 = vpop.permute.xlu0 %1177
      %1179 = vrot.lane.b32.xlu0 %v1151, 64
      %v1180 = vpop.permute.xlu0 %1179
      %1181 = vrot.lane.b32.xlu0 %v1152, 64
      %v1182 = vpop.permute.xlu0 %1181
      %v1193 = vmul.f32 %v956, %v1164
      %v1194 = vmul.f32 %v958, %v1166
      %v1195 = vmul.f32 %v960, %v1168
      %v1196 = vmul.f32 %v962, %v1170
      %v1197 = vmul.f32 %v964, %v1172
      %v1198 = vmul.f32 %v966, %v1174
      %v1199 = vmul.f32 %v968, %v1176
      %v1200 = vmul.f32 %v970, %v1178
      %v1201 = vmul.f32 %v972, %v1180
      %v1202 = vmul.f32 %v974, %v1182
      %v1203 = vfloor.f32 %v866
      %v1204 = vfloor.f32 %v871
      %v1205 = vfloor.f32 %v876
      %v1206 = vfloor.f32 %v881
      %v1207 = vfloor.f32 %v886
      %v1208 = vfloor.f32 %v891
      %v1209 = vfloor.f32 %v896
      %v1210 = vfloor.f32 %v901
      %v1211 = vfloor.f32 %v906
      %v1212 = vfloor.f32 %v911
      %v1213 = vsub.f32 %v866, %v1203
      %v1214 = vsub.f32 %v871, %v1204
      %v1215 = vsub.f32 %v876, %v1205
      %v1216 = vsub.f32 %v881, %v1206
      %v1217 = vsub.f32 %v886, %v1207
      %v1218 = vsub.f32 %v891, %v1208
      %v1219 = vsub.f32 %v896, %v1209
      %v1220 = vsub.f32 %v901, %v1210
      %v1221 = vsub.f32 %v906, %v1211
      %v1222 = vsub.f32 %v911, %v1212
      %v1223 = vadd.f32 %v1203, 1.0
      %v1224 = vadd.f32 %v1204, 1.0
      %v1225 = vadd.f32 %v1205, 1.0
      %v1226 = vadd.f32 %v1206, 1.0
      %v1227 = vadd.f32 %v1207, 1.0
      %v1228 = vadd.f32 %v1208, 1.0
      %v1229 = vadd.f32 %v1209, 1.0
      %v1230 = vadd.f32 %v1210, 1.0
      %v1231 = vadd.f32 %v1211, 1.0
      %v1232 = vadd.f32 %v1212, 1.0
      %v1233 = vsub.f32 1.0, %v1213
      %v1234 = vsub.f32 1.0, %v1214
      %v1235 = vsub.f32 1.0, %v1215
      %v1236 = vsub.f32 1.0, %v1216
      %v1237 = vsub.f32 1.0, %v1217
      %v1238 = vsub.f32 1.0, %v1218
      %v1239 = vsub.f32 1.0, %v1219
      %v1240 = vsub.f32 1.0, %v1220
      %v1241 = vsub.f32 1.0, %v1221
      %v1242 = vsub.f32 1.0, %v1222
      %1253 = vrot.lane.b32.xlu0 %v1233, 16
      %v1254 = vpop.permute.xlu0 %1253
      %1255 = vrot.lane.b32.xlu0 %v1234, 16
      %v1256 = vpop.permute.xlu0 %1255
      %1257 = vrot.lane.b32.xlu0 %v1235, 16
      %v1258 = vpop.permute.xlu0 %1257
      %1259 = vrot.lane.b32.xlu0 %v1236, 16
      %v1260 = vpop.permute.xlu0 %1259
      %1261 = vrot.lane.b32.xlu0 %v1237, 16
      %v1262 = vpop.permute.xlu0 %1261
      %1263 = vrot.lane.b32.xlu0 %v1238, 16
      %v1264 = vpop.permute.xlu0 %1263
      %1265 = vrot.lane.b32.xlu0 %v1239, 16
      %v1266 = vpop.permute.xlu0 %1265
      %1267 = vrot.lane.b32.xlu0 %v1240, 16
      %v1268 = vpop.permute.xlu0 %1267
      %1269 = vrot.lane.b32.xlu0 %v1241, 16
      %v1270 = vpop.permute.xlu0 %1269
      %1271 = vrot.lane.b32.xlu0 %v1242, 16
      %v1272 = vpop.permute.xlu0 %1271
      %v1283 = vmul.f32 %v1193, %v1254
      %v1284 = vmul.f32 %v1194, %v1256
      %v1285 = vmul.f32 %v1195, %v1258
      %v1286 = vmul.f32 %v1196, %v1260
      %v1287 = vmul.f32 %v1197, %v1262
      %v1288 = vmul.f32 %v1198, %v1264
      %v1289 = vmul.f32 %v1199, %v1266
      %v1290 = vmul.f32 %v1200, %v1268
      %v1291 = vmul.f32 %v1201, %v1270
      %v1292 = vmul.f32 %v1202, %v1272
      %1303 = vrot.lane.b32.xlu0 %v1213, 16
      %v1304 = vpop.permute.xlu0 %1303
      %1305 = vrot.lane.b32.xlu0 %v1214, 16
      %v1306 = vpop.permute.xlu0 %1305
      %1307 = vrot.lane.b32.xlu0 %v1215, 16
      %v1308 = vpop.permute.xlu0 %1307
      %1309 = vrot.lane.b32.xlu0 %v1216, 16
      %v1310 = vpop.permute.xlu0 %1309
      %1311 = vrot.lane.b32.xlu0 %v1217, 16
      %v1312 = vpop.permute.xlu0 %1311
      %1313 = vrot.lane.b32.xlu0 %v1218, 16
      %v1314 = vpop.permute.xlu0 %1313
      %1315 = vrot.lane.b32.xlu0 %v1219, 16
      %v1316 = vpop.permute.xlu0 %1315
      %1317 = vrot.lane.b32.xlu0 %v1220, 16
      %v1318 = vpop.permute.xlu0 %1317
      %1319 = vrot.lane.b32.xlu0 %v1221, 16
      %v1320 = vpop.permute.xlu0 %1319
      %1321 = vrot.lane.b32.xlu0 %v1222, 16
      %v1322 = vpop.permute.xlu0 %1321
      %v1333 = vmul.f32 %v1193, %v1304
      %v1334 = vmul.f32 %v1194, %v1306
      %v1335 = vmul.f32 %v1195, %v1308
      %v1336 = vmul.f32 %v1196, %v1310
      %v1337 = vmul.f32 %v1197, %v1312
      %v1338 = vmul.f32 %v1198, %v1314
      %v1339 = vmul.f32 %v1199, %v1316
      %v1340 = vmul.f32 %v1200, %v1318
      %v1341 = vmul.f32 %v1201, %v1320
      %v1342 = vmul.f32 %v1202, %v1322
      %v1343 = vld [vmem:[%s3] sm:$0xf]
      %v1344 = vlaneseq
      %v1345 = vshrl.u32 %v1344, 7
      %v1346 = vsub.s32 0, %v1345
      %v1347 = vrot.slane %v1343, %v1346
      %1349 = vset.pattern.permute.xlu0 48
      %1350 = vperm.xlu0 %1349, %v1203
      %v1351 = vpop.permute.xlu0 %1350
      %1354 = vset.pattern.permute.xlu0 48
      %1355 = vperm.xlu0 %1354, %v1204
      %v1356 = vpop.permute.xlu0 %1355
      %1359 = vset.pattern.permute.xlu0 48
      %1360 = vperm.xlu0 %1359, %v1205
      %v1361 = vpop.permute.xlu0 %1360
      %1364 = vset.pattern.permute.xlu0 48
      %1365 = vperm.xlu0 %1364, %v1206
      %v1366 = vpop.permute.xlu0 %1365
      %1369 = vset.pattern.permute.xlu0 48
      %1370 = vperm.xlu0 %1369, %v1207
      %v1371 = vpop.permute.xlu0 %1370
      %1374 = vset.pattern.permute.xlu0 48
      %1375 = vperm.xlu0 %1374, %v1208
      %v1376 = vpop.permute.xlu0 %1375
      %1379 = vset.pattern.permute.xlu0 48
      %1380 = vperm.xlu0 %1379, %v1209
      %v1381 = vpop.permute.xlu0 %1380
      %1384 = vset.pattern.permute.xlu0 48
      %1385 = vperm.xlu0 %1384, %v1210
      %v1386 = vpop.permute.xlu0 %1385
      %1389 = vset.pattern.permute.xlu0 48
      %1390 = vperm.xlu0 %1389, %v1211
      %v1391 = vpop.permute.xlu0 %1390
      %1394 = vset.pattern.permute.xlu0 48
      %1395 = vperm.xlu0 %1394, %v1212
      %v1396 = vpop.permute.xlu0 %1395
      %vm1398 = vcmp.eq.f32.partialorder %v1347, %v1351
      %vm1399 = vcmp.eq.f32.partialorder %v1347, %v1356
      %vm1400 = vcmp.eq.f32.partialorder %v1347, %v1361
      %vm1401 = vcmp.eq.f32.partialorder %v1347, %v1366
      %vm1402 = vcmp.eq.f32.partialorder %v1347, %v1371
      %vm1403 = vcmp.eq.f32.partialorder %v1347, %v1376
      %vm1404 = vcmp.eq.f32.partialorder %v1347, %v1381
      %vm1405 = vcmp.eq.f32.partialorder %v1347, %v1386
      %vm1406 = vcmp.eq.f32.partialorder %v1347, %v1391
      %vm1407 = vcmp.eq.f32.partialorder %v1347, %v1396
      %1409 = vset.pattern.permute.xlu0 48
      %1410 = vperm.xlu0 %1409, %v1223
      %v1411 = vpop.permute.xlu0 %1410
      %1414 = vset.pattern.permute.xlu0 48
      %1415 = vperm.xlu0 %1414, %v1224
      %v1416 = vpop.permute.xlu0 %1415
      %1419 = vset.pattern.permute.xlu0 48
      %1420 = vperm.xlu0 %1419, %v1225
      %v1421 = vpop.permute.xlu0 %1420
      %1424 = vset.pattern.permute.xlu0 48
      %1425 = vperm.xlu0 %1424, %v1226
      %v1426 = vpop.permute.xlu0 %1425
      %1429 = vset.pattern.permute.xlu0 48
      %1430 = vperm.xlu0 %1429, %v1227
      %v1431 = vpop.permute.xlu0 %1430
      %1434 = vset.pattern.permute.xlu0 48
      %1435 = vperm.xlu0 %1434, %v1228
      %v1436 = vpop.permute.xlu0 %1435
      %1439 = vset.pattern.permute.xlu0 48
      %1440 = vperm.xlu0 %1439, %v1229
      %v1441 = vpop.permute.xlu0 %1440
      %1444 = vset.pattern.permute.xlu0 48
      %1445 = vperm.xlu0 %1444, %v1230
      %v1446 = vpop.permute.xlu0 %1445
      %1449 = vset.pattern.permute.xlu0 48
      %1450 = vperm.xlu0 %1449, %v1231
      %v1451 = vpop.permute.xlu0 %1450
      %1454 = vset.pattern.permute.xlu0 48
      %1455 = vperm.xlu0 %1454, %v1232
      %v1456 = vpop.permute.xlu0 %1455
      %vm1458 = vcmp.eq.f32.partialorder %v1347, %v1411
      %vm1459 = vcmp.eq.f32.partialorder %v1347, %v1416
      %vm1460 = vcmp.eq.f32.partialorder %v1347, %v1421
      %vm1461 = vcmp.eq.f32.partialorder %v1347, %v1426
      %vm1462 = vcmp.eq.f32.partialorder %v1347, %v1431
      %vm1463 = vcmp.eq.f32.partialorder %v1347, %v1436
      %vm1464 = vcmp.eq.f32.partialorder %v1347, %v1441
      %vm1465 = vcmp.eq.f32.partialorder %v1347, %v1446
      %vm1466 = vcmp.eq.f32.partialorder %v1347, %v1451
      %vm1467 = vcmp.eq.f32.partialorder %v1347, %v1456
      %1469 = vset.pattern.permute.xlu0 64
      %1470 = vperm.xlu0 %1469, %v1333
      %v1471 = vpop.permute.xlu0 %1470
      %1474 = vset.pattern.permute.xlu0 64
      %1475 = vperm.xlu0 %1474, %v1334
      %v1476 = vpop.permute.xlu0 %1475
      %1479 = vset.pattern.permute.xlu0 64
      %1480 = vperm.xlu0 %1479, %v1335
      %v1481 = vpop.permute.xlu0 %1480
      %1484 = vset.pattern.permute.xlu0 64
      %1485 = vperm.xlu0 %1484, %v1336
      %v1486 = vpop.permute.xlu0 %1485
      %1489 = vset.pattern.permute.xlu0 64
      %1490 = vperm.xlu0 %1489, %v1337
      %v1491 = vpop.permute.xlu0 %1490
      %1494 = vset.pattern.permute.xlu0 64
      %1495 = vperm.xlu0 %1494, %v1338
      %v1496 = vpop.permute.xlu0 %1495
      %1499 = vset.pattern.permute.xlu0 64
      %1500 = vperm.xlu0 %1499, %v1339
      %v1501 = vpop.permute.xlu0 %1500
      %1504 = vset.pattern.permute.xlu0 64
      %1505 = vperm.xlu0 %1504, %v1340
      %v1506 = vpop.permute.xlu0 %1505
      %1509 = vset.pattern.permute.xlu0 64
      %1510 = vperm.xlu0 %1509, %v1341
      %v1511 = vpop.permute.xlu0 %1510
      %1514 = vset.pattern.permute.xlu0 64
      %1515 = vperm.xlu0 %1514, %v1342
      %v1516 = vpop.permute.xlu0 %1515
      %v1518 = vsel %vm1458, %v1471, 0.0
      %v1519 = vsel %vm1459, %v1476, 0.0
      %v1520 = vsel %vm1460, %v1481, 0.0
      %v1521 = vsel %vm1461, %v1486, 0.0
      %v1522 = vsel %vm1462, %v1491, 0.0
      %v1523 = vsel %vm1463, %v1496, 0.0
      %v1524 = vsel %vm1464, %v1501, 0.0
      %v1525 = vsel %vm1465, %v1506, 0.0
      %v1526 = vsel %vm1466, %v1511, 0.0
      %v1527 = vsel %vm1467, %v1516, 0.0
      %1529 = vset.pattern.permute.xlu0 64
      %1530 = vperm.xlu0 %1529, %v1283
      %v1531 = vpop.permute.xlu0 %1530
      %1534 = vset.pattern.permute.xlu0 64
      %1535 = vperm.xlu0 %1534, %v1284
      %v1536 = vpop.permute.xlu0 %1535
      %1539 = vset.pattern.permute.xlu0 64
      %1540 = vperm.xlu0 %1539, %v1285
      %v1541 = vpop.permute.xlu0 %1540
      %1544 = vset.pattern.permute.xlu0 64
      %1545 = vperm.xlu0 %1544, %v1286
      %v1546 = vpop.permute.xlu0 %1545
      %1549 = vset.pattern.permute.xlu0 64
      %1550 = vperm.xlu0 %1549, %v1287
      %v1551 = vpop.permute.xlu0 %1550
      %1554 = vset.pattern.permute.xlu0 64
      %1555 = vperm.xlu0 %1554, %v1288
      %v1556 = vpop.permute.xlu0 %1555
      %1559 = vset.pattern.permute.xlu0 64
      %1560 = vperm.xlu0 %1559, %v1289
      %v1561 = vpop.permute.xlu0 %1560
      %1564 = vset.pattern.permute.xlu0 64
      %1565 = vperm.xlu0 %1564, %v1290
      %v1566 = vpop.permute.xlu0 %1565
      %1569 = vset.pattern.permute.xlu0 64
      %1570 = vperm.xlu0 %1569, %v1291
      %v1571 = vpop.permute.xlu0 %1570
      %1574 = vset.pattern.permute.xlu0 64
      %1575 = vperm.xlu0 %1574, %v1292
      %v1576 = vpop.permute.xlu0 %1575
      %v1578 = vsel %vm1398, %v1531, %v1518
      %v1579 = vsel %vm1399, %v1536, %v1519
      %v1580 = vsel %vm1400, %v1541, %v1520
      %v1581 = vsel %vm1401, %v1546, %v1521
      %v1582 = vsel %vm1402, %v1551, %v1522
      %v1583 = vsel %vm1403, %v1556, %v1523
      %v1584 = vsel %vm1404, %v1561, %v1524
      %v1585 = vsel %vm1405, %v1566, %v1525
      %v1586 = vsel %vm1406, %v1571, %v1526
      %v1587 = vsel %vm1407, %v1576, %v1527
      %v1588 = vlaneseq
      %v1589 = vshrl.u32 %v1588, 7
      %v1590 = vsub.s32 1, %v1589
      %v1591 = vrot.slane %v1343, %v1590
      %1592 = vset.pattern.permute.xlu0 32
      %1593 = vperm.xlu0 %1592, %v1203
      %v1594 = vpop.permute.xlu0 %1593
      %1596 = vset.pattern.permute.xlu0 32
      %1597 = vperm.xlu0 %1596, %v1204
      %v1598 = vpop.permute.xlu0 %1597
      %1600 = vset.pattern.permute.xlu0 32
      %1601 = vperm.xlu0 %1600, %v1205
      %v1602 = vpop.permute.xlu0 %1601
      %1604 = vset.pattern.permute.xlu0 32
      %1605 = vperm.xlu0 %1604, %v1206
      %v1606 = vpop.permute.xlu0 %1605
      %1608 = vset.pattern.permute.xlu0 32
      %1609 = vperm.xlu0 %1608, %v1207
      %v1610 = vpop.permute.xlu0 %1609
      %1612 = vset.pattern.permute.xlu0 32
      %1613 = vperm.xlu0 %1612, %v1208
      %v1614 = vpop.permute.xlu0 %1613
      %1616 = vset.pattern.permute.xlu0 32
      %1617 = vperm.xlu0 %1616, %v1209
      %v1618 = vpop.permute.xlu0 %1617
      %1620 = vset.pattern.permute.xlu0 32
      %1621 = vperm.xlu0 %1620, %v1210
      %v1622 = vpop.permute.xlu0 %1621
      %1624 = vset.pattern.permute.xlu0 32
      %1625 = vperm.xlu0 %1624, %v1211
      %v1626 = vpop.permute.xlu0 %1625
      %1628 = vset.pattern.permute.xlu0 32
      %1629 = vperm.xlu0 %1628, %v1212
      %v1630 = vpop.permute.xlu0 %1629
      %vm1632 = vcmp.eq.f32.partialorder %v1591, %v1594
      %vm1633 = vcmp.eq.f32.partialorder %v1591, %v1598
      %vm1634 = vcmp.eq.f32.partialorder %v1591, %v1602
      %vm1635 = vcmp.eq.f32.partialorder %v1591, %v1606
      %vm1636 = vcmp.eq.f32.partialorder %v1591, %v1610
      %vm1637 = vcmp.eq.f32.partialorder %v1591, %v1614
      %vm1638 = vcmp.eq.f32.partialorder %v1591, %v1618
      %vm1639 = vcmp.eq.f32.partialorder %v1591, %v1622
      %vm1640 = vcmp.eq.f32.partialorder %v1591, %v1626
      %vm1641 = vcmp.eq.f32.partialorder %v1591, %v1630
      %1642 = vset.pattern.permute.xlu0 32
      %1643 = vperm.xlu0 %1642, %v1223
      %v1644 = vpop.permute.xlu0 %1643
      %1646 = vset.pattern.permute.xlu0 32
      %1647 = vperm.xlu0 %1646, %v1224
      %v1648 = vpop.permute.xlu0 %1647
      %1650 = vset.pattern.permute.xlu0 32
      %1651 = vperm.xlu0 %1650, %v1225
      %v1652 = vpop.permute.xlu0 %1651
      %1654 = vset.pattern.permute.xlu0 32
      %1655 = vperm.xlu0 %1654, %v1226
      %v1656 = vpop.permute.xlu0 %1655
      %1658 = vset.pattern.permute.xlu0 32
      %1659 = vperm.xlu0 %1658, %v1227
      %v1660 = vpop.permute.xlu0 %1659
      %1662 = vset.pattern.permute.xlu0 32
      %1663 = vperm.xlu0 %1662, %v1228
      %v1664 = vpop.permute.xlu0 %1663
      %1666 = vset.pattern.permute.xlu0 32
      %1667 = vperm.xlu0 %1666, %v1229
      %v1668 = vpop.permute.xlu0 %1667
      %1670 = vset.pattern.permute.xlu0 32
      %1671 = vperm.xlu0 %1670, %v1230
      %v1672 = vpop.permute.xlu0 %1671
      %1674 = vset.pattern.permute.xlu0 32
      %1675 = vperm.xlu0 %1674, %v1231
      %v1676 = vpop.permute.xlu0 %1675
      %1678 = vset.pattern.permute.xlu0 32
      %1679 = vperm.xlu0 %1678, %v1232
      %v1680 = vpop.permute.xlu0 %1679
      %vm1682 = vcmp.eq.f32.partialorder %v1591, %v1644
      %vm1683 = vcmp.eq.f32.partialorder %v1591, %v1648
      %vm1684 = vcmp.eq.f32.partialorder %v1591, %v1652
      %vm1685 = vcmp.eq.f32.partialorder %v1591, %v1656
      %vm1686 = vcmp.eq.f32.partialorder %v1591, %v1660
      %vm1687 = vcmp.eq.f32.partialorder %v1591, %v1664
      %vm1688 = vcmp.eq.f32.partialorder %v1591, %v1668
      %vm1689 = vcmp.eq.f32.partialorder %v1591, %v1672
      %vm1690 = vcmp.eq.f32.partialorder %v1591, %v1676
      %vm1691 = vcmp.eq.f32.partialorder %v1591, %v1680
      %1692 = vset.pattern.permute.xlu0 32
      %1693 = vperm.xlu0 %1692, %v1213
      %v1694 = vpop.permute.xlu0 %1693
      %1696 = vset.pattern.permute.xlu0 32
      %1697 = vperm.xlu0 %1696, %v1214
      %v1698 = vpop.permute.xlu0 %1697
      %1700 = vset.pattern.permute.xlu0 32
      %1701 = vperm.xlu0 %1700, %v1215
      %v1702 = vpop.permute.xlu0 %1701
      %1704 = vset.pattern.permute.xlu0 32
      %1705 = vperm.xlu0 %1704, %v1216
      %v1706 = vpop.permute.xlu0 %1705
      %1708 = vset.pattern.permute.xlu0 32
      %1709 = vperm.xlu0 %1708, %v1217
      %v1710 = vpop.permute.xlu0 %1709
      %1712 = vset.pattern.permute.xlu0 32
      %1713 = vperm.xlu0 %1712, %v1218
      %v1714 = vpop.permute.xlu0 %1713
      %1716 = vset.pattern.permute.xlu0 32
      %1717 = vperm.xlu0 %1716, %v1219
      %v1718 = vpop.permute.xlu0 %1717
      %1720 = vset.pattern.permute.xlu0 32
      %1721 = vperm.xlu0 %1720, %v1220
      %v1722 = vpop.permute.xlu0 %1721
      %1724 = vset.pattern.permute.xlu0 32
      %1725 = vperm.xlu0 %1724, %v1221
      %v1726 = vpop.permute.xlu0 %1725
      %1728 = vset.pattern.permute.xlu0 32
      %1729 = vperm.xlu0 %1728, %v1222
      %v1730 = vpop.permute.xlu0 %1729
      %v1732 = vsel %vm1682, %v1694, 0.0
      %v1733 = vsel %vm1683, %v1698, 0.0
      %v1734 = vsel %vm1684, %v1702, 0.0
      %v1735 = vsel %vm1685, %v1706, 0.0
      %v1736 = vsel %vm1686, %v1710, 0.0
      %v1737 = vsel %vm1687, %v1714, 0.0
      %v1738 = vsel %vm1688, %v1718, 0.0
      %v1739 = vsel %vm1689, %v1722, 0.0
      %v1740 = vsel %vm1690, %v1726, 0.0
      %v1741 = vsel %vm1691, %v1730, 0.0
      %1742 = vset.pattern.permute.xlu0 32
      %1743 = vperm.xlu0 %1742, %v1233
      %v1744 = vpop.permute.xlu0 %1743
      %1746 = vset.pattern.permute.xlu0 32
      %1747 = vperm.xlu0 %1746, %v1234
      %v1748 = vpop.permute.xlu0 %1747
      %1750 = vset.pattern.permute.xlu0 32
      %1751 = vperm.xlu0 %1750, %v1235
      %v1752 = vpop.permute.xlu0 %1751
      %1754 = vset.pattern.permute.xlu0 32
      %1755 = vperm.xlu0 %1754, %v1236
      %v1756 = vpop.permute.xlu0 %1755
      %1758 = vset.pattern.permute.xlu0 32
      %1759 = vperm.xlu0 %1758, %v1237
      %v1760 = vpop.permute.xlu0 %1759
      %1762 = vset.pattern.permute.xlu0 32
      %1763 = vperm.xlu0 %1762, %v1238
      %v1764 = vpop.permute.xlu0 %1763
      %1766 = vset.pattern.permute.xlu0 32
      %1767 = vperm.xlu0 %1766, %v1239
      %v1768 = vpop.permute.xlu0 %1767
      %1770 = vset.pattern.permute.xlu0 32
      %1771 = vperm.xlu0 %1770, %v1240
      %v1772 = vpop.permute.xlu0 %1771
      %1774 = vset.pattern.permute.xlu0 32
      %1775 = vperm.xlu0 %1774, %v1241
      %v1776 = vpop.permute.xlu0 %1775
      %1778 = vset.pattern.permute.xlu0 32
      %1779 = vperm.xlu0 %1778, %v1242
      %v1780 = vpop.permute.xlu0 %1779
      %v1782 = vsel %vm1632, %v1744, %v1732
      %v1783 = vsel %vm1633, %v1748, %v1733
      %v1784 = vsel %vm1634, %v1752, %v1734
      %v1785 = vsel %vm1635, %v1756, %v1735
      %v1786 = vsel %vm1636, %v1760, %v1736
      %v1787 = vsel %vm1637, %v1764, %v1737
      %v1788 = vsel %vm1638, %v1768, %v1738
      %v1789 = vsel %vm1639, %v1772, %v1739
      %v1790 = vsel %vm1640, %v1776, %v1740
      %v1791 = vsel %vm1641, %v1780, %v1741
      %v1792 = vmul.f32 %v1578, %v1782
      %v1793 = vmul.f32 %v1579, %v1783
      %v1794 = vmul.f32 %v1580, %v1784
      %v1795 = vmul.f32 %v1581, %v1785
      %v1796 = vmul.f32 %v1582, %v1786
      %v1797 = vmul.f32 %v1583, %v1787
      %v1798 = vmul.f32 %v1584, %v1788
      %v1799 = vmul.f32 %v1585, %v1789
      %v1800 = vmul.f32 %v1586, %v1790
      %v1801 = vmul.f32 %v1587, %v1791
      %1802 = vset.pattern.permute.xlu0 49
      %1803 = vperm.xlu0 %1802, %v1203
      %v1804 = vpop.permute.xlu0 %1803
      %1806 = vset.pattern.permute.xlu0 49
      %1807 = vperm.xlu0 %1806, %v1204
      %v1808 = vpop.permute.xlu0 %1807
      %1810 = vset.pattern.permute.xlu0 49
      %1811 = vperm.xlu0 %1810, %v1205
      %v1812 = vpop.permute.xlu0 %1811
      %1814 = vset.pattern.permute.xlu0 49
      %1815 = vperm.xlu0 %1814, %v1206
      %v1816 = vpop.permute.xlu0 %1815
      %1818 = vset.pattern.permute.xlu0 49
      %1819 = vperm.xlu0 %1818, %v1207
      %v1820 = vpop.permute.xlu0 %1819
      %1822 = vset.pattern.permute.xlu0 49
      %1823 = vperm.xlu0 %1822, %v1208
      %v1824 = vpop.permute.xlu0 %1823
      %1826 = vset.pattern.permute.xlu0 49
      %1827 = vperm.xlu0 %1826, %v1209
      %v1828 = vpop.permute.xlu0 %1827
      %1830 = vset.pattern.permute.xlu0 49
      %1831 = vperm.xlu0 %1830, %v1210
      %v1832 = vpop.permute.xlu0 %1831
      %1834 = vset.pattern.permute.xlu0 49
      %1835 = vperm.xlu0 %1834, %v1211
      %v1836 = vpop.permute.xlu0 %1835
      %1838 = vset.pattern.permute.xlu0 49
      %1839 = vperm.xlu0 %1838, %v1212
      %v1840 = vpop.permute.xlu0 %1839
      %vm1842 = vcmp.eq.f32.partialorder %v1347, %v1804
      %vm1843 = vcmp.eq.f32.partialorder %v1347, %v1808
      %vm1844 = vcmp.eq.f32.partialorder %v1347, %v1812
      %vm1845 = vcmp.eq.f32.partialorder %v1347, %v1816
      %vm1846 = vcmp.eq.f32.partialorder %v1347, %v1820
      %vm1847 = vcmp.eq.f32.partialorder %v1347, %v1824
      %vm1848 = vcmp.eq.f32.partialorder %v1347, %v1828
      %vm1849 = vcmp.eq.f32.partialorder %v1347, %v1832
      %vm1850 = vcmp.eq.f32.partialorder %v1347, %v1836
      %vm1851 = vcmp.eq.f32.partialorder %v1347, %v1840
      %1852 = vset.pattern.permute.xlu0 49
      %1853 = vperm.xlu0 %1852, %v1223
      %v1854 = vpop.permute.xlu0 %1853
      %1856 = vset.pattern.permute.xlu0 49
      %1857 = vperm.xlu0 %1856, %v1224
      %v1858 = vpop.permute.xlu0 %1857
      %1860 = vset.pattern.permute.xlu0 49
      %1861 = vperm.xlu0 %1860, %v1225
      %v1862 = vpop.permute.xlu0 %1861
      %1864 = vset.pattern.permute.xlu0 49
      %1865 = vperm.xlu0 %1864, %v1226
      %v1866 = vpop.permute.xlu0 %1865
      %1868 = vset.pattern.permute.xlu0 49
      %1869 = vperm.xlu0 %1868, %v1227
      %v1870 = vpop.permute.xlu0 %1869
      %1872 = vset.pattern.permute.xlu0 49
      %1873 = vperm.xlu0 %1872, %v1228
      %v1874 = vpop.permute.xlu0 %1873
      %1876 = vset.pattern.permute.xlu0 49
      %1877 = vperm.xlu0 %1876, %v1229
      %v1878 = vpop.permute.xlu0 %1877
      %1880 = vset.pattern.permute.xlu0 49
      %1881 = vperm.xlu0 %1880, %v1230
      %v1882 = vpop.permute.xlu0 %1881
      %1884 = vset.pattern.permute.xlu0 49
      %1885 = vperm.xlu0 %1884, %v1231
      %v1886 = vpop.permute.xlu0 %1885
      %1888 = vset.pattern.permute.xlu0 49
      %1889 = vperm.xlu0 %1888, %v1232
      %v1890 = vpop.permute.xlu0 %1889
      %vm1892 = vcmp.eq.f32.partialorder %v1347, %v1854
      %vm1893 = vcmp.eq.f32.partialorder %v1347, %v1858
      %vm1894 = vcmp.eq.f32.partialorder %v1347, %v1862
      %vm1895 = vcmp.eq.f32.partialorder %v1347, %v1866
      %vm1896 = vcmp.eq.f32.partialorder %v1347, %v1870
      %vm1897 = vcmp.eq.f32.partialorder %v1347, %v1874
      %vm1898 = vcmp.eq.f32.partialorder %v1347, %v1878
      %vm1899 = vcmp.eq.f32.partialorder %v1347, %v1882
      %vm1900 = vcmp.eq.f32.partialorder %v1347, %v1886
      %vm1901 = vcmp.eq.f32.partialorder %v1347, %v1890
      %1902 = vset.pattern.permute.xlu0 65
      %1903 = vperm.xlu0 %1902, %v1333
      %v1904 = vpop.permute.xlu0 %1903
      %1906 = vset.pattern.permute.xlu0 65
      %1907 = vperm.xlu0 %1906, %v1334
      %v1908 = vpop.permute.xlu0 %1907
      %1910 = vset.pattern.permute.xlu0 65
      %1911 = vperm.xlu0 %1910, %v1335
      %v1912 = vpop.permute.xlu0 %1911
      %1914 = vset.pattern.permute.xlu0 65
      %1915 = vperm.xlu0 %1914, %v1336
      %v1916 = vpop.permute.xlu0 %1915
      %1918 = vset.pattern.permute.xlu0 65
      %1919 = vperm.xlu0 %1918, %v1337
      %v1920 = vpop.permute.xlu0 %1919
      %1922 = vset.pattern.permute.xlu0 65
      %1923 = vperm.xlu0 %1922, %v1338
      %v1924 = vpop.permute.xlu0 %1923
      %1926 = vset.pattern.permute.xlu0 65
      %1927 = vperm.xlu0 %1926, %v1339
      %v1928 = vpop.permute.xlu0 %1927
      %1930 = vset.pattern.permute.xlu0 65
      %1931 = vperm.xlu0 %1930, %v1340
      %v1932 = vpop.permute.xlu0 %1931
      %1934 = vset.pattern.permute.xlu0 65
      %1935 = vperm.xlu0 %1934, %v1341
      %v1936 = vpop.permute.xlu0 %1935
      %1938 = vset.pattern.permute.xlu0 65
      %1939 = vperm.xlu0 %1938, %v1342
      %v1940 = vpop.permute.xlu0 %1939
      %v1942 = vsel %vm1892, %v1904, 0.0
      %v1943 = vsel %vm1893, %v1908, 0.0
      %v1944 = vsel %vm1894, %v1912, 0.0
      %v1945 = vsel %vm1895, %v1916, 0.0
      %v1946 = vsel %vm1896, %v1920, 0.0
      %v1947 = vsel %vm1897, %v1924, 0.0
      %v1948 = vsel %vm1898, %v1928, 0.0
      %v1949 = vsel %vm1899, %v1932, 0.0
      %v1950 = vsel %vm1900, %v1936, 0.0
      %v1951 = vsel %vm1901, %v1940, 0.0
      %1952 = vset.pattern.permute.xlu0 65
      %1953 = vperm.xlu0 %1952, %v1283
      %v1954 = vpop.permute.xlu0 %1953
      %1956 = vset.pattern.permute.xlu0 65
      %1957 = vperm.xlu0 %1956, %v1284
      %v1958 = vpop.permute.xlu0 %1957
      %1960 = vset.pattern.permute.xlu0 65
      %1961 = vperm.xlu0 %1960, %v1285
      %v1962 = vpop.permute.xlu0 %1961
      %1964 = vset.pattern.permute.xlu0 65
      %1965 = vperm.xlu0 %1964, %v1286
      %v1966 = vpop.permute.xlu0 %1965
      %1968 = vset.pattern.permute.xlu0 65
      %1969 = vperm.xlu0 %1968, %v1287
      %v1970 = vpop.permute.xlu0 %1969
      %1972 = vset.pattern.permute.xlu0 65
      %1973 = vperm.xlu0 %1972, %v1288
      %v1974 = vpop.permute.xlu0 %1973
      %1976 = vset.pattern.permute.xlu0 65
      %1977 = vperm.xlu0 %1976, %v1289
      %v1978 = vpop.permute.xlu0 %1977
      %1980 = vset.pattern.permute.xlu0 65
      %1981 = vperm.xlu0 %1980, %v1290
      %v1982 = vpop.permute.xlu0 %1981
      %1984 = vset.pattern.permute.xlu0 65
      %1985 = vperm.xlu0 %1984, %v1291
      %v1986 = vpop.permute.xlu0 %1985
      %1988 = vset.pattern.permute.xlu0 65
      %1989 = vperm.xlu0 %1988, %v1292
      %v1990 = vpop.permute.xlu0 %1989
      %v1992 = vsel %vm1842, %v1954, %v1942
      %v1993 = vsel %vm1843, %v1958, %v1943
      %v1994 = vsel %vm1844, %v1962, %v1944
      %v1995 = vsel %vm1845, %v1966, %v1945
      %v1996 = vsel %vm1846, %v1970, %v1946
      %v1997 = vsel %vm1847, %v1974, %v1947
      %v1998 = vsel %vm1848, %v1978, %v1948
      %v1999 = vsel %vm1849, %v1982, %v1949
      %v2000 = vsel %vm1850, %v1986, %v1950
      %v2001 = vsel %vm1851, %v1990, %v1951
      %2002 = vset.pattern.permute.xlu0 33
      %2003 = vperm.xlu0 %2002, %v1203
      %v2004 = vpop.permute.xlu0 %2003
      %2006 = vset.pattern.permute.xlu0 33
      %2007 = vperm.xlu0 %2006, %v1204
      %v2008 = vpop.permute.xlu0 %2007
      %2010 = vset.pattern.permute.xlu0 33
      %2011 = vperm.xlu0 %2010, %v1205
      %v2012 = vpop.permute.xlu0 %2011
      %2014 = vset.pattern.permute.xlu0 33
      %2015 = vperm.xlu0 %2014, %v1206
      %v2016 = vpop.permute.xlu0 %2015
      %2018 = vset.pattern.permute.xlu0 33
      %2019 = vperm.xlu0 %2018, %v1207
      %v2020 = vpop.permute.xlu0 %2019
      %2022 = vset.pattern.permute.xlu0 33
      %2023 = vperm.xlu0 %2022, %v1208
      %v2024 = vpop.permute.xlu0 %2023
      %2026 = vset.pattern.permute.xlu0 33
      %2027 = vperm.xlu0 %2026, %v1209
      %v2028 = vpop.permute.xlu0 %2027
      %2030 = vset.pattern.permute.xlu0 33
      %2031 = vperm.xlu0 %2030, %v1210
      %v2032 = vpop.permute.xlu0 %2031
      %2034 = vset.pattern.permute.xlu0 33
      %2035 = vperm.xlu0 %2034, %v1211
      %v2036 = vpop.permute.xlu0 %2035
      %2038 = vset.pattern.permute.xlu0 33
      %2039 = vperm.xlu0 %2038, %v1212
      %v2040 = vpop.permute.xlu0 %2039
      %vm2042 = vcmp.eq.f32.partialorder %v1591, %v2004
      %vm2043 = vcmp.eq.f32.partialorder %v1591, %v2008
      %vm2044 = vcmp.eq.f32.partialorder %v1591, %v2012
      %vm2045 = vcmp.eq.f32.partialorder %v1591, %v2016
      %vm2046 = vcmp.eq.f32.partialorder %v1591, %v2020
      %vm2047 = vcmp.eq.f32.partialorder %v1591, %v2024
      %vm2048 = vcmp.eq.f32.partialorder %v1591, %v2028
      %vm2049 = vcmp.eq.f32.partialorder %v1591, %v2032
      %vm2050 = vcmp.eq.f32.partialorder %v1591, %v2036
      %vm2051 = vcmp.eq.f32.partialorder %v1591, %v2040
      %2052 = vset.pattern.permute.xlu0 33
      %2053 = vperm.xlu0 %2052, %v1223
      %v2054 = vpop.permute.xlu0 %2053
      %2056 = vset.pattern.permute.xlu0 33
      %2057 = vperm.xlu0 %2056, %v1224
      %v2058 = vpop.permute.xlu0 %2057
      %2060 = vset.pattern.permute.xlu0 33
      %2061 = vperm.xlu0 %2060, %v1225
      %v2062 = vpop.permute.xlu0 %2061
      %2064 = vset.pattern.permute.xlu0 33
      %2065 = vperm.xlu0 %2064, %v1226
      %v2066 = vpop.permute.xlu0 %2065
      %2068 = vset.pattern.permute.xlu0 33
      %2069 = vperm.xlu0 %2068, %v1227
      %v2070 = vpop.permute.xlu0 %2069
      %2072 = vset.pattern.permute.xlu0 33
      %2073 = vperm.xlu0 %2072, %v1228
      %v2074 = vpop.permute.xlu0 %2073
      %2076 = vset.pattern.permute.xlu0 33
      %2077 = vperm.xlu0 %2076, %v1229
      %v2078 = vpop.permute.xlu0 %2077
      %2080 = vset.pattern.permute.xlu0 33
      %2081 = vperm.xlu0 %2080, %v1230
      %v2082 = vpop.permute.xlu0 %2081
      %2084 = vset.pattern.permute.xlu0 33
      %2085 = vperm.xlu0 %2084, %v1231
      %v2086 = vpop.permute.xlu0 %2085
      %2088 = vset.pattern.permute.xlu0 33
      %2089 = vperm.xlu0 %2088, %v1232
      %v2090 = vpop.permute.xlu0 %2089
      %vm2092 = vcmp.eq.f32.partialorder %v1591, %v2054
      %vm2093 = vcmp.eq.f32.partialorder %v1591, %v2058
      %vm2094 = vcmp.eq.f32.partialorder %v1591, %v2062
      %vm2095 = vcmp.eq.f32.partialorder %v1591, %v2066
      %vm2096 = vcmp.eq.f32.partialorder %v1591, %v2070
      %vm2097 = vcmp.eq.f32.partialorder %v1591, %v2074
      %vm2098 = vcmp.eq.f32.partialorder %v1591, %v2078
      %vm2099 = vcmp.eq.f32.partialorder %v1591, %v2082
      %vm2100 = vcmp.eq.f32.partialorder %v1591, %v2086
      %vm2101 = vcmp.eq.f32.partialorder %v1591, %v2090
      %2102 = vset.pattern.permute.xlu0 33
      %2103 = vperm.xlu0 %2102, %v1213
      %v2104 = vpop.permute.xlu0 %2103
      %2106 = vset.pattern.permute.xlu0 33
      %2107 = vperm.xlu0 %2106, %v1214
      %v2108 = vpop.permute.xlu0 %2107
      %2110 = vset.pattern.permute.xlu0 33
      %2111 = vperm.xlu0 %2110, %v1215
      %v2112 = vpop.permute.xlu0 %2111
      %2114 = vset.pattern.permute.xlu0 33
      %2115 = vperm.xlu0 %2114, %v1216
      %v2116 = vpop.permute.xlu0 %2115
      %2118 = vset.pattern.permute.xlu0 33
      %2119 = vperm.xlu0 %2118, %v1217
      %v2120 = vpop.permute.xlu0 %2119
      %2122 = vset.pattern.permute.xlu0 33
      %2123 = vperm.xlu0 %2122, %v1218
      %v2124 = vpop.permute.xlu0 %2123
      %2126 = vset.pattern.permute.xlu0 33
      %2127 = vperm.xlu0 %2126, %v1219
      %v2128 = vpop.permute.xlu0 %2127
      %2130 = vset.pattern.permute.xlu0 33
      %2131 = vperm.xlu0 %2130, %v1220
      %v2132 = vpop.permute.xlu0 %2131
      %2134 = vset.pattern.permute.xlu0 33
      %2135 = vperm.xlu0 %2134, %v1221
      %v2136 = vpop.permute.xlu0 %2135
      %2138 = vset.pattern.permute.xlu0 33
      %2139 = vperm.xlu0 %2138, %v1222
      %v2140 = vpop.permute.xlu0 %2139
      %v2142 = vsel %vm2092, %v2104, 0.0
      %v2143 = vsel %vm2093, %v2108, 0.0
      %v2144 = vsel %vm2094, %v2112, 0.0
      %v2145 = vsel %vm2095, %v2116, 0.0
      %v2146 = vsel %vm2096, %v2120, 0.0
      %v2147 = vsel %vm2097, %v2124, 0.0
      %v2148 = vsel %vm2098, %v2128, 0.0
      %v2149 = vsel %vm2099, %v2132, 0.0
      %v2150 = vsel %vm2100, %v2136, 0.0
      %v2151 = vsel %vm2101, %v2140, 0.0
      %2152 = vset.pattern.permute.xlu0 33
      %2153 = vperm.xlu0 %2152, %v1233
      %v2154 = vpop.permute.xlu0 %2153
      %2156 = vset.pattern.permute.xlu0 33
      %2157 = vperm.xlu0 %2156, %v1234
      %v2158 = vpop.permute.xlu0 %2157
      %2160 = vset.pattern.permute.xlu0 33
      %2161 = vperm.xlu0 %2160, %v1235
      %v2162 = vpop.permute.xlu0 %2161
      %2164 = vset.pattern.permute.xlu0 33
      %2165 = vperm.xlu0 %2164, %v1236
      %v2166 = vpop.permute.xlu0 %2165
      %2168 = vset.pattern.permute.xlu0 33
      %2169 = vperm.xlu0 %2168, %v1237
      %v2170 = vpop.permute.xlu0 %2169
      %2172 = vset.pattern.permute.xlu0 33
      %2173 = vperm.xlu0 %2172, %v1238
      %v2174 = vpop.permute.xlu0 %2173
      %2176 = vset.pattern.permute.xlu0 33
      %2177 = vperm.xlu0 %2176, %v1239
      %v2178 = vpop.permute.xlu0 %2177
      %2180 = vset.pattern.permute.xlu0 33
      %2181 = vperm.xlu0 %2180, %v1240
      %v2182 = vpop.permute.xlu0 %2181
      %2184 = vset.pattern.permute.xlu0 33
      %2185 = vperm.xlu0 %2184, %v1241
      %v2186 = vpop.permute.xlu0 %2185
      %2188 = vset.pattern.permute.xlu0 33
      %2189 = vperm.xlu0 %2188, %v1242
      %v2190 = vpop.permute.xlu0 %2189
      %v2192 = vsel %vm2042, %v2154, %v2142
      %v2193 = vsel %vm2043, %v2158, %v2143
      %v2194 = vsel %vm2044, %v2162, %v2144
      %v2195 = vsel %vm2045, %v2166, %v2145
      %v2196 = vsel %vm2046, %v2170, %v2146
      %v2197 = vsel %vm2047, %v2174, %v2147
      %v2198 = vsel %vm2048, %v2178, %v2148
      %v2199 = vsel %vm2049, %v2182, %v2149
      %v2200 = vsel %vm2050, %v2186, %v2150
      %v2201 = vsel %vm2051, %v2190, %v2151
      %v2202 = vmul.f32 %v1992, %v2192
      %v2203 = vmul.f32 %v1993, %v2193
      %v2204 = vmul.f32 %v1994, %v2194
      %v2205 = vmul.f32 %v1995, %v2195
      %v2206 = vmul.f32 %v1996, %v2196
      %v2207 = vmul.f32 %v1997, %v2197
      %v2208 = vmul.f32 %v1998, %v2198
      %v2209 = vmul.f32 %v1999, %v2199
      %v2210 = vmul.f32 %v2000, %v2200
      %v2211 = vmul.f32 %v2001, %v2201
      %v2212 = vlaneseq
      %v2213 = vshrl.u32 %v2212, 7
      %v2214 = vsub.s32 2, %v2213
      %v2215 = vrot.slane %v1343, %v2214
      %2216 = vset.pattern.permute.xlu0 50
      %2217 = vperm.xlu0 %2216, %v1203
      %v2218 = vpop.permute.xlu0 %2217
      %2220 = vset.pattern.permute.xlu0 50
      %2221 = vperm.xlu0 %2220, %v1204
      %v2222 = vpop.permute.xlu0 %2221
      %2224 = vset.pattern.permute.xlu0 50
      %2225 = vperm.xlu0 %2224, %v1205
      %v2226 = vpop.permute.xlu0 %2225
      %2228 = vset.pattern.permute.xlu0 50
      %2229 = vperm.xlu0 %2228, %v1206
      %v2230 = vpop.permute.xlu0 %2229
      %2232 = vset.pattern.permute.xlu0 50
      %2233 = vperm.xlu0 %2232, %v1207
      %v2234 = vpop.permute.xlu0 %2233
      %2236 = vset.pattern.permute.xlu0 50
      %2237 = vperm.xlu0 %2236, %v1208
      %v2238 = vpop.permute.xlu0 %2237
      %2240 = vset.pattern.permute.xlu0 50
      %2241 = vperm.xlu0 %2240, %v1209
      %v2242 = vpop.permute.xlu0 %2241
      %2244 = vset.pattern.permute.xlu0 50
      %2245 = vperm.xlu0 %2244, %v1210
      %v2246 = vpop.permute.xlu0 %2245
      %2248 = vset.pattern.permute.xlu0 50
      %2249 = vperm.xlu0 %2248, %v1211
      %v2250 = vpop.permute.xlu0 %2249
      %2252 = vset.pattern.permute.xlu0 50
      %2253 = vperm.xlu0 %2252, %v1212
      %v2254 = vpop.permute.xlu0 %2253
      %vm2256 = vcmp.eq.f32.partialorder %v2215, %v2218
      %vm2257 = vcmp.eq.f32.partialorder %v2215, %v2222
      %vm2258 = vcmp.eq.f32.partialorder %v2215, %v2226
      %vm2259 = vcmp.eq.f32.partialorder %v2215, %v2230
      %vm2260 = vcmp.eq.f32.partialorder %v2215, %v2234
      %vm2261 = vcmp.eq.f32.partialorder %v2215, %v2238
      %vm2262 = vcmp.eq.f32.partialorder %v2215, %v2242
      %vm2263 = vcmp.eq.f32.partialorder %v2215, %v2246
      %vm2264 = vcmp.eq.f32.partialorder %v2215, %v2250
      %vm2265 = vcmp.eq.f32.partialorder %v2215, %v2254
      %2266 = vset.pattern.permute.xlu0 50
      %2267 = vperm.xlu0 %2266, %v1223
      %v2268 = vpop.permute.xlu0 %2267
      %2270 = vset.pattern.permute.xlu0 50
      %2271 = vperm.xlu0 %2270, %v1224
      %v2272 = vpop.permute.xlu0 %2271
      %2274 = vset.pattern.permute.xlu0 50
      %2275 = vperm.xlu0 %2274, %v1225
      %v2276 = vpop.permute.xlu0 %2275
      %2278 = vset.pattern.permute.xlu0 50
      %2279 = vperm.xlu0 %2278, %v1226
      %v2280 = vpop.permute.xlu0 %2279
      %2282 = vset.pattern.permute.xlu0 50
      %2283 = vperm.xlu0 %2282, %v1227
      %v2284 = vpop.permute.xlu0 %2283
      %2286 = vset.pattern.permute.xlu0 50
      %2287 = vperm.xlu0 %2286, %v1228
      %v2288 = vpop.permute.xlu0 %2287
      %2290 = vset.pattern.permute.xlu0 50
      %2291 = vperm.xlu0 %2290, %v1229
      %v2292 = vpop.permute.xlu0 %2291
      %2294 = vset.pattern.permute.xlu0 50
      %2295 = vperm.xlu0 %2294, %v1230
      %v2296 = vpop.permute.xlu0 %2295
      %2298 = vset.pattern.permute.xlu0 50
      %2299 = vperm.xlu0 %2298, %v1231
      %v2300 = vpop.permute.xlu0 %2299
      %2302 = vset.pattern.permute.xlu0 50
      %2303 = vperm.xlu0 %2302, %v1232
      %v2304 = vpop.permute.xlu0 %2303
      %vm2306 = vcmp.eq.f32.partialorder %v2215, %v2268
      %vm2307 = vcmp.eq.f32.partialorder %v2215, %v2272
      %vm2308 = vcmp.eq.f32.partialorder %v2215, %v2276
      %vm2309 = vcmp.eq.f32.partialorder %v2215, %v2280
      %vm2310 = vcmp.eq.f32.partialorder %v2215, %v2284
      %vm2311 = vcmp.eq.f32.partialorder %v2215, %v2288
      %vm2312 = vcmp.eq.f32.partialorder %v2215, %v2292
      %vm2313 = vcmp.eq.f32.partialorder %v2215, %v2296
      %vm2314 = vcmp.eq.f32.partialorder %v2215, %v2300
      %vm2315 = vcmp.eq.f32.partialorder %v2215, %v2304
      %2316 = vset.pattern.permute.xlu0 66
      %2317 = vperm.xlu0 %2316, %v1333
      %v2318 = vpop.permute.xlu0 %2317
      %2320 = vset.pattern.permute.xlu0 66
      %2321 = vperm.xlu0 %2320, %v1334
      %v2322 = vpop.permute.xlu0 %2321
      %2324 = vset.pattern.permute.xlu0 66
      %2325 = vperm.xlu0 %2324, %v1335
      %v2326 = vpop.permute.xlu0 %2325
      %2328 = vset.pattern.permute.xlu0 66
      %2329 = vperm.xlu0 %2328, %v1336
      %v2330 = vpop.permute.xlu0 %2329
      %2332 = vset.pattern.permute.xlu0 66
      %2333 = vperm.xlu0 %2332, %v1337
      %v2334 = vpop.permute.xlu0 %2333
      %2336 = vset.pattern.permute.xlu0 66
      %2337 = vperm.xlu0 %2336, %v1338
      %v2338 = vpop.permute.xlu0 %2337
      %2340 = vset.pattern.permute.xlu0 66
      %2341 = vperm.xlu0 %2340, %v1339
      %v2342 = vpop.permute.xlu0 %2341
      %2344 = vset.pattern.permute.xlu0 66
      %2345 = vperm.xlu0 %2344, %v1340
      %v2346 = vpop.permute.xlu0 %2345
      %2348 = vset.pattern.permute.xlu0 66
      %2349 = vperm.xlu0 %2348, %v1341
      %v2350 = vpop.permute.xlu0 %2349
      %2352 = vset.pattern.permute.xlu0 66
      %2353 = vperm.xlu0 %2352, %v1342
      %v2354 = vpop.permute.xlu0 %2353
      %v2356 = vsel %vm2306, %v2318, 0.0
      %v2357 = vsel %vm2307, %v2322, 0.0
      %v2358 = vsel %vm2308, %v2326, 0.0
      %v2359 = vsel %vm2309, %v2330, 0.0
      %v2360 = vsel %vm2310, %v2334, 0.0
      %v2361 = vsel %vm2311, %v2338, 0.0
      %v2362 = vsel %vm2312, %v2342, 0.0
      %v2363 = vsel %vm2313, %v2346, 0.0
      %v2364 = vsel %vm2314, %v2350, 0.0
      %v2365 = vsel %vm2315, %v2354, 0.0
      %2366 = vset.pattern.permute.xlu0 66
      %2367 = vperm.xlu0 %2366, %v1283
      %v2368 = vpop.permute.xlu0 %2367
      %2370 = vset.pattern.permute.xlu0 66
      %2371 = vperm.xlu0 %2370, %v1284
      %v2372 = vpop.permute.xlu0 %2371
      %2374 = vset.pattern.permute.xlu0 66
      %2375 = vperm.xlu0 %2374, %v1285
      %v2376 = vpop.permute.xlu0 %2375
      %2378 = vset.pattern.permute.xlu0 66
      %2379 = vperm.xlu0 %2378, %v1286
      %v2380 = vpop.permute.xlu0 %2379
      %2382 = vset.pattern.permute.xlu0 66
      %2383 = vperm.xlu0 %2382, %v1287
      %v2384 = vpop.permute.xlu0 %2383
      %2386 = vset.pattern.permute.xlu0 66
      %2387 = vperm.xlu0 %2386, %v1288
      %v2388 = vpop.permute.xlu0 %2387
      %2390 = vset.pattern.permute.xlu0 66
      %2391 = vperm.xlu0 %2390, %v1289
      %v2392 = vpop.permute.xlu0 %2391
      %2394 = vset.pattern.permute.xlu0 66
      %2395 = vperm.xlu0 %2394, %v1290
      %v2396 = vpop.permute.xlu0 %2395
      %2398 = vset.pattern.permute.xlu0 66
      %2399 = vperm.xlu0 %2398, %v1291
      %v2400 = vpop.permute.xlu0 %2399
      %2402 = vset.pattern.permute.xlu0 66
      %2403 = vperm.xlu0 %2402, %v1292
      %v2404 = vpop.permute.xlu0 %2403
      %v2406 = vsel %vm2256, %v2368, %v2356
      %v2407 = vsel %vm2257, %v2372, %v2357
      %v2408 = vsel %vm2258, %v2376, %v2358
      %v2409 = vsel %vm2259, %v2380, %v2359
      %v2410 = vsel %vm2260, %v2384, %v2360
      %v2411 = vsel %vm2261, %v2388, %v2361
      %v2412 = vsel %vm2262, %v2392, %v2362
      %v2413 = vsel %vm2263, %v2396, %v2363
      %v2414 = vsel %vm2264, %v2400, %v2364
      %v2415 = vsel %vm2265, %v2404, %v2365
      %v2416 = vlaneseq
      %v2417 = vshrl.u32 %v2416, 7
      %v2418 = vsub.s32 3, %v2417
      %v2419 = vrot.slane %v1343, %v2418
      %2420 = vset.pattern.permute.xlu0 34
      %2421 = vperm.xlu0 %2420, %v1203
      %v2422 = vpop.permute.xlu0 %2421
      %2424 = vset.pattern.permute.xlu0 34
      %2425 = vperm.xlu0 %2424, %v1204
      %v2426 = vpop.permute.xlu0 %2425
      %2428 = vset.pattern.permute.xlu0 34
      %2429 = vperm.xlu0 %2428, %v1205
      %v2430 = vpop.permute.xlu0 %2429
      %2432 = vset.pattern.permute.xlu0 34
      %2433 = vperm.xlu0 %2432, %v1206
      %v2434 = vpop.permute.xlu0 %2433
      %2436 = vset.pattern.permute.xlu0 34
      %2437 = vperm.xlu0 %2436, %v1207
      %v2438 = vpop.permute.xlu0 %2437
      %2440 = vset.pattern.permute.xlu0 34
      %2441 = vperm.xlu0 %2440, %v1208
      %v2442 = vpop.permute.xlu0 %2441
      %2444 = vset.pattern.permute.xlu0 34
      %2445 = vperm.xlu0 %2444, %v1209
      %v2446 = vpop.permute.xlu0 %2445
      %2448 = vset.pattern.permute.xlu0 34
      %2449 = vperm.xlu0 %2448, %v1210
      %v2450 = vpop.permute.xlu0 %2449
      %2452 = vset.pattern.permute.xlu0 34
      %2453 = vperm.xlu0 %2452, %v1211
      %v2454 = vpop.permute.xlu0 %2453
      %2456 = vset.pattern.permute.xlu0 34
      %2457 = vperm.xlu0 %2456, %v1212
      %v2458 = vpop.permute.xlu0 %2457
      %vm2460 = vcmp.eq.f32.partialorder %v2419, %v2422
      %vm2461 = vcmp.eq.f32.partialorder %v2419, %v2426
      %vm2462 = vcmp.eq.f32.partialorder %v2419, %v2430
      %vm2463 = vcmp.eq.f32.partialorder %v2419, %v2434
      %vm2464 = vcmp.eq.f32.partialorder %v2419, %v2438
      %vm2465 = vcmp.eq.f32.partialorder %v2419, %v2442
      %vm2466 = vcmp.eq.f32.partialorder %v2419, %v2446
      %vm2467 = vcmp.eq.f32.partialorder %v2419, %v2450
      %vm2468 = vcmp.eq.f32.partialorder %v2419, %v2454
      %vm2469 = vcmp.eq.f32.partialorder %v2419, %v2458
      %2470 = vset.pattern.permute.xlu0 34
      %2471 = vperm.xlu0 %2470, %v1223
      %v2472 = vpop.permute.xlu0 %2471
      %2474 = vset.pattern.permute.xlu0 34
      %2475 = vperm.xlu0 %2474, %v1224
      %v2476 = vpop.permute.xlu0 %2475
      %2478 = vset.pattern.permute.xlu0 34
      %2479 = vperm.xlu0 %2478, %v1225
      %v2480 = vpop.permute.xlu0 %2479
      %2482 = vset.pattern.permute.xlu0 34
      %2483 = vperm.xlu0 %2482, %v1226
      %v2484 = vpop.permute.xlu0 %2483
      %2486 = vset.pattern.permute.xlu0 34
      %2487 = vperm.xlu0 %2486, %v1227
      %v2488 = vpop.permute.xlu0 %2487
      %2490 = vset.pattern.permute.xlu0 34
      %2491 = vperm.xlu0 %2490, %v1228
      %v2492 = vpop.permute.xlu0 %2491
      %2494 = vset.pattern.permute.xlu0 34
      %2495 = vperm.xlu0 %2494, %v1229
      %v2496 = vpop.permute.xlu0 %2495
      %2498 = vset.pattern.permute.xlu0 34
      %2499 = vperm.xlu0 %2498, %v1230
      %v2500 = vpop.permute.xlu0 %2499
      %2502 = vset.pattern.permute.xlu0 34
      %2503 = vperm.xlu0 %2502, %v1231
      %v2504 = vpop.permute.xlu0 %2503
      %2506 = vset.pattern.permute.xlu0 34
      %2507 = vperm.xlu0 %2506, %v1232
      %v2508 = vpop.permute.xlu0 %2507
      %vm2510 = vcmp.eq.f32.partialorder %v2419, %v2472
      %vm2511 = vcmp.eq.f32.partialorder %v2419, %v2476
      %vm2512 = vcmp.eq.f32.partialorder %v2419, %v2480
      %vm2513 = vcmp.eq.f32.partialorder %v2419, %v2484
      %vm2514 = vcmp.eq.f32.partialorder %v2419, %v2488
      %vm2515 = vcmp.eq.f32.partialorder %v2419, %v2492
      %vm2516 = vcmp.eq.f32.partialorder %v2419, %v2496
      %vm2517 = vcmp.eq.f32.partialorder %v2419, %v2500
      %vm2518 = vcmp.eq.f32.partialorder %v2419, %v2504
      %vm2519 = vcmp.eq.f32.partialorder %v2419, %v2508
      %2520 = vset.pattern.permute.xlu0 34
      %2521 = vperm.xlu0 %2520, %v1213
      %v2522 = vpop.permute.xlu0 %2521
      %2524 = vset.pattern.permute.xlu0 34
      %2525 = vperm.xlu0 %2524, %v1214
      %v2526 = vpop.permute.xlu0 %2525
      %2528 = vset.pattern.permute.xlu0 34
      %2529 = vperm.xlu0 %2528, %v1215
      %v2530 = vpop.permute.xlu0 %2529
      %2532 = vset.pattern.permute.xlu0 34
      %2533 = vperm.xlu0 %2532, %v1216
      %v2534 = vpop.permute.xlu0 %2533
      %2536 = vset.pattern.permute.xlu0 34
      %2537 = vperm.xlu0 %2536, %v1217
      %v2538 = vpop.permute.xlu0 %2537
      %2540 = vset.pattern.permute.xlu0 34
      %2541 = vperm.xlu0 %2540, %v1218
      %v2542 = vpop.permute.xlu0 %2541
      %2544 = vset.pattern.permute.xlu0 34
      %2545 = vperm.xlu0 %2544, %v1219
      %v2546 = vpop.permute.xlu0 %2545
      %2548 = vset.pattern.permute.xlu0 34
      %2549 = vperm.xlu0 %2548, %v1220
      %v2550 = vpop.permute.xlu0 %2549
      %2552 = vset.pattern.permute.xlu0 34
      %2553 = vperm.xlu0 %2552, %v1221
      %v2554 = vpop.permute.xlu0 %2553
      %2556 = vset.pattern.permute.xlu0 34
      %2557 = vperm.xlu0 %2556, %v1222
      %v2558 = vpop.permute.xlu0 %2557
      %v2560 = vsel %vm2510, %v2522, 0.0
      %v2561 = vsel %vm2511, %v2526, 0.0
      %v2562 = vsel %vm2512, %v2530, 0.0
      %v2563 = vsel %vm2513, %v2534, 0.0
      %v2564 = vsel %vm2514, %v2538, 0.0
      %v2565 = vsel %vm2515, %v2542, 0.0
      %v2566 = vsel %vm2516, %v2546, 0.0
      %v2567 = vsel %vm2517, %v2550, 0.0
      %v2568 = vsel %vm2518, %v2554, 0.0
      %v2569 = vsel %vm2519, %v2558, 0.0
      %2570 = vset.pattern.permute.xlu0 34
      %2571 = vperm.xlu0 %2570, %v1233
      %v2572 = vpop.permute.xlu0 %2571
      %2574 = vset.pattern.permute.xlu0 34
      %2575 = vperm.xlu0 %2574, %v1234
      %v2576 = vpop.permute.xlu0 %2575
      %2578 = vset.pattern.permute.xlu0 34
      %2579 = vperm.xlu0 %2578, %v1235
      %v2580 = vpop.permute.xlu0 %2579
      %2582 = vset.pattern.permute.xlu0 34
      %2583 = vperm.xlu0 %2582, %v1236
      %v2584 = vpop.permute.xlu0 %2583
      %2586 = vset.pattern.permute.xlu0 34
      %2587 = vperm.xlu0 %2586, %v1237
      %v2588 = vpop.permute.xlu0 %2587
      %2590 = vset.pattern.permute.xlu0 34
      %2591 = vperm.xlu0 %2590, %v1238
      %v2592 = vpop.permute.xlu0 %2591
      %2594 = vset.pattern.permute.xlu0 34
      %2595 = vperm.xlu0 %2594, %v1239
      %v2596 = vpop.permute.xlu0 %2595
      %2598 = vset.pattern.permute.xlu0 34
      %2599 = vperm.xlu0 %2598, %v1240
      %v2600 = vpop.permute.xlu0 %2599
      %2602 = vset.pattern.permute.xlu0 34
      %2603 = vperm.xlu0 %2602, %v1241
      %v2604 = vpop.permute.xlu0 %2603
      %2606 = vset.pattern.permute.xlu0 34
      %2607 = vperm.xlu0 %2606, %v1242
      %v2608 = vpop.permute.xlu0 %2607
      %v2610 = vsel %vm2460, %v2572, %v2560
      %v2611 = vsel %vm2461, %v2576, %v2561
      %v2612 = vsel %vm2462, %v2580, %v2562
      %v2613 = vsel %vm2463, %v2584, %v2563
      %v2614 = vsel %vm2464, %v2588, %v2564
      %v2615 = vsel %vm2465, %v2592, %v2565
      %v2616 = vsel %vm2466, %v2596, %v2566
      %v2617 = vsel %vm2467, %v2600, %v2567
      %v2618 = vsel %vm2468, %v2604, %v2568
      %v2619 = vsel %vm2469, %v2608, %v2569
      %v2620 = vmul.f32 %v2406, %v2610
      %v2621 = vmul.f32 %v2407, %v2611
      %v2622 = vmul.f32 %v2408, %v2612
      %v2623 = vmul.f32 %v2409, %v2613
      %v2624 = vmul.f32 %v2410, %v2614
      %v2625 = vmul.f32 %v2411, %v2615
      %v2626 = vmul.f32 %v2412, %v2616
      %v2627 = vmul.f32 %v2413, %v2617
      %v2628 = vmul.f32 %v2414, %v2618
      %v2629 = vmul.f32 %v2415, %v2619
      %2630 = vset.pattern.permute.xlu0 51
      %2631 = vperm.xlu0 %2630, %v1203
      %v2632 = vpop.permute.xlu0 %2631
      %2634 = vset.pattern.permute.xlu0 51
      %2635 = vperm.xlu0 %2634, %v1204
      %v2636 = vpop.permute.xlu0 %2635
      %2638 = vset.pattern.permute.xlu0 51
      %2639 = vperm.xlu0 %2638, %v1205
      %v2640 = vpop.permute.xlu0 %2639
      %2642 = vset.pattern.permute.xlu0 51
      %2643 = vperm.xlu0 %2642, %v1206
      %v2644 = vpop.permute.xlu0 %2643
      %2646 = vset.pattern.permute.xlu0 51
      %2647 = vperm.xlu0 %2646, %v1207
      %v2648 = vpop.permute.xlu0 %2647
      %2650 = vset.pattern.permute.xlu0 51
      %2651 = vperm.xlu0 %2650, %v1208
      %v2652 = vpop.permute.xlu0 %2651
      %2654 = vset.pattern.permute.xlu0 51
      %2655 = vperm.xlu0 %2654, %v1209
      %v2656 = vpop.permute.xlu0 %2655
      %2658 = vset.pattern.permute.xlu0 51
      %2659 = vperm.xlu0 %2658, %v1210
      %v2660 = vpop.permute.xlu0 %2659
      %2662 = vset.pattern.permute.xlu0 51
      %2663 = vperm.xlu0 %2662, %v1211
      %v2664 = vpop.permute.xlu0 %2663
      %2666 = vset.pattern.permute.xlu0 51
      %2667 = vperm.xlu0 %2666, %v1212
      %v2668 = vpop.permute.xlu0 %2667
      %vm2670 = vcmp.eq.f32.partialorder %v2215, %v2632
      %vm2671 = vcmp.eq.f32.partialorder %v2215, %v2636
      %vm2672 = vcmp.eq.f32.partialorder %v2215, %v2640
      %vm2673 = vcmp.eq.f32.partialorder %v2215, %v2644
      %vm2674 = vcmp.eq.f32.partialorder %v2215, %v2648
      %vm2675 = vcmp.eq.f32.partialorder %v2215, %v2652
      %vm2676 = vcmp.eq.f32.partialorder %v2215, %v2656
      %vm2677 = vcmp.eq.f32.partialorder %v2215, %v2660
      %vm2678 = vcmp.eq.f32.partialorder %v2215, %v2664
      %vm2679 = vcmp.eq.f32.partialorder %v2215, %v2668
      %2680 = vset.pattern.permute.xlu0 51
      %2681 = vperm.xlu0 %2680, %v1223
      %v2682 = vpop.permute.xlu0 %2681
      %2684 = vset.pattern.permute.xlu0 51
      %2685 = vperm.xlu0 %2684, %v1224
      %v2686 = vpop.permute.xlu0 %2685
      %2688 = vset.pattern.permute.xlu0 51
      %2689 = vperm.xlu0 %2688, %v1225
      %v2690 = vpop.permute.xlu0 %2689
      %2692 = vset.pattern.permute.xlu0 51
      %2693 = vperm.xlu0 %2692, %v1226
      %v2694 = vpop.permute.xlu0 %2693
      %2696 = vset.pattern.permute.xlu0 51
      %2697 = vperm.xlu0 %2696, %v1227
      %v2698 = vpop.permute.xlu0 %2697
      %2700 = vset.pattern.permute.xlu0 51
      %2701 = vperm.xlu0 %2700, %v1228
      %v2702 = vpop.permute.xlu0 %2701
      %2704 = vset.pattern.permute.xlu0 51
      %2705 = vperm.xlu0 %2704, %v1229
      %v2706 = vpop.permute.xlu0 %2705
      %2708 = vset.pattern.permute.xlu0 51
      %2709 = vperm.xlu0 %2708, %v1230
      %v2710 = vpop.permute.xlu0 %2709
      %2712 = vset.pattern.permute.xlu0 51
      %2713 = vperm.xlu0 %2712, %v1231
      %v2714 = vpop.permute.xlu0 %2713
      %2716 = vset.pattern.permute.xlu0 51
      %2717 = vperm.xlu0 %2716, %v1232
      %v2718 = vpop.permute.xlu0 %2717
      %vm2720 = vcmp.eq.f32.partialorder %v2215, %v2682
      %vm2721 = vcmp.eq.f32.partialorder %v2215, %v2686
      %vm2722 = vcmp.eq.f32.partialorder %v2215, %v2690
      %vm2723 = vcmp.eq.f32.partialorder %v2215, %v2694
      %vm2724 = vcmp.eq.f32.partialorder %v2215, %v2698
      %vm2725 = vcmp.eq.f32.partialorder %v2215, %v2702
      %vm2726 = vcmp.eq.f32.partialorder %v2215, %v2706
      %vm2727 = vcmp.eq.f32.partialorder %v2215, %v2710
      %vm2728 = vcmp.eq.f32.partialorder %v2215, %v2714
      %vm2729 = vcmp.eq.f32.partialorder %v2215, %v2718
      %2730 = vset.pattern.permute.xlu0 67
      %2731 = vperm.xlu0 %2730, %v1333
      %v2732 = vpop.permute.xlu0 %2731
      %2734 = vset.pattern.permute.xlu0 67
      %2735 = vperm.xlu0 %2734, %v1334
      %v2736 = vpop.permute.xlu0 %2735
      %2738 = vset.pattern.permute.xlu0 67
      %2739 = vperm.xlu0 %2738, %v1335
      %v2740 = vpop.permute.xlu0 %2739
      %2742 = vset.pattern.permute.xlu0 67
      %2743 = vperm.xlu0 %2742, %v1336
      %v2744 = vpop.permute.xlu0 %2743
      %2746 = vset.pattern.permute.xlu0 67
      %2747 = vperm.xlu0 %2746, %v1337
      %v2748 = vpop.permute.xlu0 %2747
      %2750 = vset.pattern.permute.xlu0 67
      %2751 = vperm.xlu0 %2750, %v1338
      %v2752 = vpop.permute.xlu0 %2751
      %2754 = vset.pattern.permute.xlu0 67
      %2755 = vperm.xlu0 %2754, %v1339
      %v2756 = vpop.permute.xlu0 %2755
      %2758 = vset.pattern.permute.xlu0 67
      %2759 = vperm.xlu0 %2758, %v1340
      %v2760 = vpop.permute.xlu0 %2759
      %2762 = vset.pattern.permute.xlu0 67
      %2763 = vperm.xlu0 %2762, %v1341
      %v2764 = vpop.permute.xlu0 %2763
      %2766 = vset.pattern.permute.xlu0 67
      %2767 = vperm.xlu0 %2766, %v1342
      %v2768 = vpop.permute.xlu0 %2767
      %v2770 = vsel %vm2720, %v2732, 0.0
      %v2771 = vsel %vm2721, %v2736, 0.0
      %v2772 = vsel %vm2722, %v2740, 0.0
      %v2773 = vsel %vm2723, %v2744, 0.0
      %v2774 = vsel %vm2724, %v2748, 0.0
      %v2775 = vsel %vm2725, %v2752, 0.0
      %v2776 = vsel %vm2726, %v2756, 0.0
      %v2777 = vsel %vm2727, %v2760, 0.0
      %v2778 = vsel %vm2728, %v2764, 0.0
      %v2779 = vsel %vm2729, %v2768, 0.0
      %2780 = vset.pattern.permute.xlu0 67
      %2781 = vperm.xlu0 %2780, %v1283
      %v2782 = vpop.permute.xlu0 %2781
      %2784 = vset.pattern.permute.xlu0 67
      %2785 = vperm.xlu0 %2784, %v1284
      %v2786 = vpop.permute.xlu0 %2785
      %2788 = vset.pattern.permute.xlu0 67
      %2789 = vperm.xlu0 %2788, %v1285
      %v2790 = vpop.permute.xlu0 %2789
      %2792 = vset.pattern.permute.xlu0 67
      %2793 = vperm.xlu0 %2792, %v1286
      %v2794 = vpop.permute.xlu0 %2793
      %2796 = vset.pattern.permute.xlu0 67
      %2797 = vperm.xlu0 %2796, %v1287
      %v2798 = vpop.permute.xlu0 %2797
      %2800 = vset.pattern.permute.xlu0 67
      %2801 = vperm.xlu0 %2800, %v1288
      %v2802 = vpop.permute.xlu0 %2801
      %2804 = vset.pattern.permute.xlu0 67
      %2805 = vperm.xlu0 %2804, %v1289
      %v2806 = vpop.permute.xlu0 %2805
      %2808 = vset.pattern.permute.xlu0 67
      %2809 = vperm.xlu0 %2808, %v1290
      %v2810 = vpop.permute.xlu0 %2809
      %2812 = vset.pattern.permute.xlu0 67
      %2813 = vperm.xlu0 %2812, %v1291
      %v2814 = vpop.permute.xlu0 %2813
      %2816 = vset.pattern.permute.xlu0 67
      %2817 = vperm.xlu0 %2816, %v1292
      %v2818 = vpop.permute.xlu0 %2817
      %v2820 = vsel %vm2670, %v2782, %v2770
      %v2821 = vsel %vm2671, %v2786, %v2771
      %v2822 = vsel %vm2672, %v2790, %v2772
      %v2823 = vsel %vm2673, %v2794, %v2773
      %v2824 = vsel %vm2674, %v2798, %v2774
      %v2825 = vsel %vm2675, %v2802, %v2775
      %v2826 = vsel %vm2676, %v2806, %v2776
      %v2827 = vsel %vm2677, %v2810, %v2777
      %v2828 = vsel %vm2678, %v2814, %v2778
      %v2829 = vsel %vm2679, %v2818, %v2779
      %2830 = vset.pattern.permute.xlu0 35
      %2831 = vperm.xlu0 %2830, %v1203
      %v2832 = vpop.permute.xlu0 %2831
      %2834 = vset.pattern.permute.xlu0 35
      %2835 = vperm.xlu0 %2834, %v1204
      %v2836 = vpop.permute.xlu0 %2835
      %2838 = vset.pattern.permute.xlu0 35
      %2839 = vperm.xlu0 %2838, %v1205
      %v2840 = vpop.permute.xlu0 %2839
      %2842 = vset.pattern.permute.xlu0 35
      %2843 = vperm.xlu0 %2842, %v1206
      %v2844 = vpop.permute.xlu0 %2843
      %2846 = vset.pattern.permute.xlu0 35
      %2847 = vperm.xlu0 %2846, %v1207
      %v2848 = vpop.permute.xlu0 %2847
      %2850 = vset.pattern.permute.xlu0 35
      %2851 = vperm.xlu0 %2850, %v1208
      %v2852 = vpop.permute.xlu0 %2851
      %2854 = vset.pattern.permute.xlu0 35
      %2855 = vperm.xlu0 %2854, %v1209
      %v2856 = vpop.permute.xlu0 %2855
      %2858 = vset.pattern.permute.xlu0 35
      %2859 = vperm.xlu0 %2858, %v1210
      %v2860 = vpop.permute.xlu0 %2859
      %2862 = vset.pattern.permute.xlu0 35
      %2863 = vperm.xlu0 %2862, %v1211
      %v2864 = vpop.permute.xlu0 %2863
      %2866 = vset.pattern.permute.xlu0 35
      %2867 = vperm.xlu0 %2866, %v1212
      %v2868 = vpop.permute.xlu0 %2867
      %vm2870 = vcmp.eq.f32.partialorder %v2419, %v2832
      %vm2871 = vcmp.eq.f32.partialorder %v2419, %v2836
      %vm2872 = vcmp.eq.f32.partialorder %v2419, %v2840
      %vm2873 = vcmp.eq.f32.partialorder %v2419, %v2844
      %vm2874 = vcmp.eq.f32.partialorder %v2419, %v2848
      %vm2875 = vcmp.eq.f32.partialorder %v2419, %v2852
      %vm2876 = vcmp.eq.f32.partialorder %v2419, %v2856
      %vm2877 = vcmp.eq.f32.partialorder %v2419, %v2860
      %vm2878 = vcmp.eq.f32.partialorder %v2419, %v2864
      %vm2879 = vcmp.eq.f32.partialorder %v2419, %v2868
      %2880 = vset.pattern.permute.xlu0 35
      %2881 = vperm.xlu0 %2880, %v1223
      %v2882 = vpop.permute.xlu0 %2881
      %2884 = vset.pattern.permute.xlu0 35
      %2885 = vperm.xlu0 %2884, %v1224
      %v2886 = vpop.permute.xlu0 %2885
      %2888 = vset.pattern.permute.xlu0 35
      %2889 = vperm.xlu0 %2888, %v1225
      %v2890 = vpop.permute.xlu0 %2889
      %2892 = vset.pattern.permute.xlu0 35
      %2893 = vperm.xlu0 %2892, %v1226
      %v2894 = vpop.permute.xlu0 %2893
      %2896 = vset.pattern.permute.xlu0 35
      %2897 = vperm.xlu0 %2896, %v1227
      %v2898 = vpop.permute.xlu0 %2897
      %2900 = vset.pattern.permute.xlu0 35
      %2901 = vperm.xlu0 %2900, %v1228
      %v2902 = vpop.permute.xlu0 %2901
      %2904 = vset.pattern.permute.xlu0 35
      %2905 = vperm.xlu0 %2904, %v1229
      %v2906 = vpop.permute.xlu0 %2905
      %2908 = vset.pattern.permute.xlu0 35
      %2909 = vperm.xlu0 %2908, %v1230
      %v2910 = vpop.permute.xlu0 %2909
      %2912 = vset.pattern.permute.xlu0 35
      %2913 = vperm.xlu0 %2912, %v1231
      %v2914 = vpop.permute.xlu0 %2913
      %2916 = vset.pattern.permute.xlu0 35
      %2917 = vperm.xlu0 %2916, %v1232
      %v2918 = vpop.permute.xlu0 %2917
      %vm2920 = vcmp.eq.f32.partialorder %v2419, %v2882
      %vm2921 = vcmp.eq.f32.partialorder %v2419, %v2886
      %vm2922 = vcmp.eq.f32.partialorder %v2419, %v2890
      %vm2923 = vcmp.eq.f32.partialorder %v2419, %v2894
      %vm2924 = vcmp.eq.f32.partialorder %v2419, %v2898
      %vm2925 = vcmp.eq.f32.partialorder %v2419, %v2902
      %vm2926 = vcmp.eq.f32.partialorder %v2419, %v2906
      %vm2927 = vcmp.eq.f32.partialorder %v2419, %v2910
      %vm2928 = vcmp.eq.f32.partialorder %v2419, %v2914
      %vm2929 = vcmp.eq.f32.partialorder %v2419, %v2918
      %2930 = vset.pattern.permute.xlu0 35
      %2931 = vperm.xlu0 %2930, %v1213
      %v2932 = vpop.permute.xlu0 %2931
      %2934 = vset.pattern.permute.xlu0 35
      %2935 = vperm.xlu0 %2934, %v1214
      %v2936 = vpop.permute.xlu0 %2935
      %2938 = vset.pattern.permute.xlu0 35
      %2939 = vperm.xlu0 %2938, %v1215
      %v2940 = vpop.permute.xlu0 %2939
      %2942 = vset.pattern.permute.xlu0 35
      %2943 = vperm.xlu0 %2942, %v1216
      %v2944 = vpop.permute.xlu0 %2943
      %2946 = vset.pattern.permute.xlu0 35
      %2947 = vperm.xlu0 %2946, %v1217
      %v2948 = vpop.permute.xlu0 %2947
      %2950 = vset.pattern.permute.xlu0 35
      %2951 = vperm.xlu0 %2950, %v1218
      %v2952 = vpop.permute.xlu0 %2951
      %2954 = vset.pattern.permute.xlu0 35
      %2955 = vperm.xlu0 %2954, %v1219
      %v2956 = vpop.permute.xlu0 %2955
      %2958 = vset.pattern.permute.xlu0 35
      %2959 = vperm.xlu0 %2958, %v1220
      %v2960 = vpop.permute.xlu0 %2959
      %2962 = vset.pattern.permute.xlu0 35
      %2963 = vperm.xlu0 %2962, %v1221
      %v2964 = vpop.permute.xlu0 %2963
      %2966 = vset.pattern.permute.xlu0 35
      %2967 = vperm.xlu0 %2966, %v1222
      %v2968 = vpop.permute.xlu0 %2967
      %v2970 = vsel %vm2920, %v2932, 0.0
      %v2971 = vsel %vm2921, %v2936, 0.0
      %v2972 = vsel %vm2922, %v2940, 0.0
      %v2973 = vsel %vm2923, %v2944, 0.0
      %v2974 = vsel %vm2924, %v2948, 0.0
      %v2975 = vsel %vm2925, %v2952, 0.0
      %v2976 = vsel %vm2926, %v2956, 0.0
      %v2977 = vsel %vm2927, %v2960, 0.0
      %v2978 = vsel %vm2928, %v2964, 0.0
      %v2979 = vsel %vm2929, %v2968, 0.0
      %2980 = vset.pattern.permute.xlu0 35
      %2981 = vperm.xlu0 %2980, %v1233
      %v2982 = vpop.permute.xlu0 %2981
      %2984 = vset.pattern.permute.xlu0 35
      %2985 = vperm.xlu0 %2984, %v1234
      %v2986 = vpop.permute.xlu0 %2985
      %2988 = vset.pattern.permute.xlu0 35
      %2989 = vperm.xlu0 %2988, %v1235
      %v2990 = vpop.permute.xlu0 %2989
      %2992 = vset.pattern.permute.xlu0 35
      %2993 = vperm.xlu0 %2992, %v1236
      %v2994 = vpop.permute.xlu0 %2993
      %2996 = vset.pattern.permute.xlu0 35
      %2997 = vperm.xlu0 %2996, %v1237
      %v2998 = vpop.permute.xlu0 %2997
      %3000 = vset.pattern.permute.xlu0 35
      %3001 = vperm.xlu0 %3000, %v1238
      %v3002 = vpop.permute.xlu0 %3001
      %3004 = vset.pattern.permute.xlu0 35
      %3005 = vperm.xlu0 %3004, %v1239
      %v3006 = vpop.permute.xlu0 %3005
      %3008 = vset.pattern.permute.xlu0 35
      %3009 = vperm.xlu0 %3008, %v1240
      %v3010 = vpop.permute.xlu0 %3009
      %3012 = vset.pattern.permute.xlu0 35
      %3013 = vperm.xlu0 %3012, %v1241
      %v3014 = vpop.permute.xlu0 %3013
      %3016 = vset.pattern.permute.xlu0 35
      %3017 = vperm.xlu0 %3016, %v1242
      %v3018 = vpop.permute.xlu0 %3017
      %v3020 = vsel %vm2870, %v2982, %v2970
      %v3021 = vsel %vm2871, %v2986, %v2971
      %v3022 = vsel %vm2872, %v2990, %v2972
      %v3023 = vsel %vm2873, %v2994, %v2973
      %v3024 = vsel %vm2874, %v2998, %v2974
      %v3025 = vsel %vm2875, %v3002, %v2975
      %v3026 = vsel %vm2876, %v3006, %v2976
      %v3027 = vsel %vm2877, %v3010, %v2977
      %v3028 = vsel %vm2878, %v3014, %v2978
      %v3029 = vsel %vm2879, %v3018, %v2979
      %v3030 = vmul.f32 %v2820, %v3020
      %v3031 = vmul.f32 %v2821, %v3021
      %v3032 = vmul.f32 %v2822, %v3022
      %v3033 = vmul.f32 %v2823, %v3023
      %v3034 = vmul.f32 %v2824, %v3024
      %v3035 = vmul.f32 %v2825, %v3025
      %v3036 = vmul.f32 %v2826, %v3026
      %v3037 = vmul.f32 %v2827, %v3027
      %v3038 = vmul.f32 %v2828, %v3028
      %v3039 = vmul.f32 %v2829, %v3029
      %v3040 = vadd.f32 %v1792, %v2202
      %v3041 = vadd.f32 %v1793, %v2203
      %v3042 = vadd.f32 %v1794, %v2204
      %v3043 = vadd.f32 %v1795, %v2205
      %v3044 = vadd.f32 %v1796, %v2206
      %v3045 = vadd.f32 %v1797, %v2207
      %v3046 = vadd.f32 %v1798, %v2208
      %v3047 = vadd.f32 %v1799, %v2209
      %v3048 = vadd.f32 %v1800, %v2210
      %v3049 = vadd.f32 %v1801, %v2211
      %v3050 = vadd.f32 %v2620, %v3030
      %v3051 = vadd.f32 %v2621, %v3031
      %v3052 = vadd.f32 %v2622, %v3032
      %v3053 = vadd.f32 %v2623, %v3033
      %v3054 = vadd.f32 %v2624, %v3034
      %v3055 = vadd.f32 %v2625, %v3035
      %v3056 = vadd.f32 %v2626, %v3036
      %v3057 = vadd.f32 %v2627, %v3037
      %v3058 = vadd.f32 %v2628, %v3038
      %v3059 = vadd.f32 %v2629, %v3039
      %v3060 = vadd.f32 %v3040, %v3050
      %v3061 = vadd.f32 %v3041, %v3051
      %v3062 = vadd.f32 %v3042, %v3052
      %v3063 = vadd.f32 %v3043, %v3053
      %v3064 = vadd.f32 %v3044, %v3054
      %v3065 = vadd.f32 %v3045, %v3055
      %v3066 = vadd.f32 %v3046, %v3056
      %v3067 = vadd.f32 %v3047, %v3057
      %v3068 = vadd.f32 %v3048, %v3058
      %v3069 = vadd.f32 %v3049, %v3059
      %3070 = vset.pattern.permute.xlu0 52
      %3071 = vperm.xlu0 %3070, %v1203
      %v3072 = vpop.permute.xlu0 %3071
      %3074 = vset.pattern.permute.xlu0 52
      %3075 = vperm.xlu0 %3074, %v1204
      %v3076 = vpop.permute.xlu0 %3075
      %3078 = vset.pattern.permute.xlu0 52
      %3079 = vperm.xlu0 %3078, %v1205
      %v3080 = vpop.permute.xlu0 %3079
      %3082 = vset.pattern.permute.xlu0 52
      %3083 = vperm.xlu0 %3082, %v1206
      %v3084 = vpop.permute.xlu0 %3083
      %3086 = vset.pattern.permute.xlu0 52
      %3087 = vperm.xlu0 %3086, %v1207
      %v3088 = vpop.permute.xlu0 %3087
      %3090 = vset.pattern.permute.xlu0 52
      %3091 = vperm.xlu0 %3090, %v1208
      %v3092 = vpop.permute.xlu0 %3091
      %3094 = vset.pattern.permute.xlu0 52
      %3095 = vperm.xlu0 %3094, %v1209
      %v3096 = vpop.permute.xlu0 %3095
      %3098 = vset.pattern.permute.xlu0 52
      %3099 = vperm.xlu0 %3098, %v1210
      %v3100 = vpop.permute.xlu0 %3099
      %3102 = vset.pattern.permute.xlu0 52
      %3103 = vperm.xlu0 %3102, %v1211
      %v3104 = vpop.permute.xlu0 %3103
      %3106 = vset.pattern.permute.xlu0 52
      %3107 = vperm.xlu0 %3106, %v1212
      %v3108 = vpop.permute.xlu0 %3107
      %vm3110 = vcmp.eq.f32.partialorder %v1347, %v3072
      %vm3111 = vcmp.eq.f32.partialorder %v1347, %v3076
      %vm3112 = vcmp.eq.f32.partialorder %v1347, %v3080
      %vm3113 = vcmp.eq.f32.partialorder %v1347, %v3084
      %vm3114 = vcmp.eq.f32.partialorder %v1347, %v3088
      %vm3115 = vcmp.eq.f32.partialorder %v1347, %v3092
      %vm3116 = vcmp.eq.f32.partialorder %v1347, %v3096
      %vm3117 = vcmp.eq.f32.partialorder %v1347, %v3100
      %vm3118 = vcmp.eq.f32.partialorder %v1347, %v3104
      %vm3119 = vcmp.eq.f32.partialorder %v1347, %v3108
      %3120 = vset.pattern.permute.xlu0 52
      %3121 = vperm.xlu0 %3120, %v1223
      %v3122 = vpop.permute.xlu0 %3121
      %3124 = vset.pattern.permute.xlu0 52
      %3125 = vperm.xlu0 %3124, %v1224
      %v3126 = vpop.permute.xlu0 %3125
      %3128 = vset.pattern.permute.xlu0 52
      %3129 = vperm.xlu0 %3128, %v1225
      %v3130 = vpop.permute.xlu0 %3129
      %3132 = vset.pattern.permute.xlu0 52
      %3133 = vperm.xlu0 %3132, %v1226
      %v3134 = vpop.permute.xlu0 %3133
      %3136 = vset.pattern.permute.xlu0 52
      %3137 = vperm.xlu0 %3136, %v1227
      %v3138 = vpop.permute.xlu0 %3137
      %3140 = vset.pattern.permute.xlu0 52
      %3141 = vperm.xlu0 %3140, %v1228
      %v3142 = vpop.permute.xlu0 %3141
      %3144 = vset.pattern.permute.xlu0 52
      %3145 = vperm.xlu0 %3144, %v1229
      %v3146 = vpop.permute.xlu0 %3145
      %3148 = vset.pattern.permute.xlu0 52
      %3149 = vperm.xlu0 %3148, %v1230
      %v3150 = vpop.permute.xlu0 %3149
      %3152 = vset.pattern.permute.xlu0 52
      %3153 = vperm.xlu0 %3152, %v1231
      %v3154 = vpop.permute.xlu0 %3153
      %3156 = vset.pattern.permute.xlu0 52
      %3157 = vperm.xlu0 %3156, %v1232
      %v3158 = vpop.permute.xlu0 %3157
      %vm3160 = vcmp.eq.f32.partialorder %v1347, %v3122
      %vm3161 = vcmp.eq.f32.partialorder %v1347, %v3126
      %vm3162 = vcmp.eq.f32.partialorder %v1347, %v3130
      %vm3163 = vcmp.eq.f32.partialorder %v1347, %v3134
      %vm3164 = vcmp.eq.f32.partialorder %v1347, %v3138
      %vm3165 = vcmp.eq.f32.partialorder %v1347, %v3142
      %vm3166 = vcmp.eq.f32.partialorder %v1347, %v3146
      %vm3167 = vcmp.eq.f32.partialorder %v1347, %v3150
      %vm3168 = vcmp.eq.f32.partialorder %v1347, %v3154
      %vm3169 = vcmp.eq.f32.partialorder %v1347, %v3158
      %3170 = vset.pattern.permute.xlu0 68
      %3171 = vperm.xlu0 %3170, %v1333
      %v3172 = vpop.permute.xlu0 %3171
      %3174 = vset.pattern.permute.xlu0 68
      %3175 = vperm.xlu0 %3174, %v1334
      %v3176 = vpop.permute.xlu0 %3175
      %3178 = vset.pattern.permute.xlu0 68
      %3179 = vperm.xlu0 %3178, %v1335
      %v3180 = vpop.permute.xlu0 %3179
      %3182 = vset.pattern.permute.xlu0 68
      %3183 = vperm.xlu0 %3182, %v1336
      %v3184 = vpop.permute.xlu0 %3183
      %3186 = vset.pattern.permute.xlu0 68
      %3187 = vperm.xlu0 %3186, %v1337
      %v3188 = vpop.permute.xlu0 %3187
      %3190 = vset.pattern.permute.xlu0 68
      %3191 = vperm.xlu0 %3190, %v1338
      %v3192 = vpop.permute.xlu0 %3191
      %3194 = vset.pattern.permute.xlu0 68
      %3195 = vperm.xlu0 %3194, %v1339
      %v3196 = vpop.permute.xlu0 %3195
      %3198 = vset.pattern.permute.xlu0 68
      %3199 = vperm.xlu0 %3198, %v1340
      %v3200 = vpop.permute.xlu0 %3199
      %3202 = vset.pattern.permute.xlu0 68
      %3203 = vperm.xlu0 %3202, %v1341
      %v3204 = vpop.permute.xlu0 %3203
      %3206 = vset.pattern.permute.xlu0 68
      %3207 = vperm.xlu0 %3206, %v1342
      %v3208 = vpop.permute.xlu0 %3207
      %v3210 = vsel %vm3160, %v3172, 0.0
      %v3211 = vsel %vm3161, %v3176, 0.0
      %v3212 = vsel %vm3162, %v3180, 0.0
      %v3213 = vsel %vm3163, %v3184, 0.0
      %v3214 = vsel %vm3164, %v3188, 0.0
      %v3215 = vsel %vm3165, %v3192, 0.0
      %v3216 = vsel %vm3166, %v3196, 0.0
      %v3217 = vsel %vm3167, %v3200, 0.0
      %v3218 = vsel %vm3168, %v3204, 0.0
      %v3219 = vsel %vm3169, %v3208, 0.0
      %3220 = vset.pattern.permute.xlu0 68
      %3221 = vperm.xlu0 %3220, %v1283
      %v3222 = vpop.permute.xlu0 %3221
      %3224 = vset.pattern.permute.xlu0 68
      %3225 = vperm.xlu0 %3224, %v1284
      %v3226 = vpop.permute.xlu0 %3225
      %3228 = vset.pattern.permute.xlu0 68
      %3229 = vperm.xlu0 %3228, %v1285
      %v3230 = vpop.permute.xlu0 %3229
      %3232 = vset.pattern.permute.xlu0 68
      %3233 = vperm.xlu0 %3232, %v1286
      %v3234 = vpop.permute.xlu0 %3233
      %3236 = vset.pattern.permute.xlu0 68
      %3237 = vperm.xlu0 %3236, %v1287
      %v3238 = vpop.permute.xlu0 %3237
      %3240 = vset.pattern.permute.xlu0 68
      %3241 = vperm.xlu0 %3240, %v1288
      %v3242 = vpop.permute.xlu0 %3241
      %3244 = vset.pattern.permute.xlu0 68
      %3245 = vperm.xlu0 %3244, %v1289
      %v3246 = vpop.permute.xlu0 %3245
      %3248 = vset.pattern.permute.xlu0 68
      %3249 = vperm.xlu0 %3248, %v1290
      %v3250 = vpop.permute.xlu0 %3249
      %3252 = vset.pattern.permute.xlu0 68
      %3253 = vperm.xlu0 %3252, %v1291
      %v3254 = vpop.permute.xlu0 %3253
      %3256 = vset.pattern.permute.xlu0 68
      %3257 = vperm.xlu0 %3256, %v1292
      %v3258 = vpop.permute.xlu0 %3257
      %v3260 = vsel %vm3110, %v3222, %v3210
      %v3261 = vsel %vm3111, %v3226, %v3211
      %v3262 = vsel %vm3112, %v3230, %v3212
      %v3263 = vsel %vm3113, %v3234, %v3213
      %v3264 = vsel %vm3114, %v3238, %v3214
      %v3265 = vsel %vm3115, %v3242, %v3215
      %v3266 = vsel %vm3116, %v3246, %v3216
      %v3267 = vsel %vm3117, %v3250, %v3217
      %v3268 = vsel %vm3118, %v3254, %v3218
      %v3269 = vsel %vm3119, %v3258, %v3219
      %3270 = vset.pattern.permute.xlu0 36
      %3271 = vperm.xlu0 %3270, %v1203
      %v3272 = vpop.permute.xlu0 %3271
      %3274 = vset.pattern.permute.xlu0 36
      %3275 = vperm.xlu0 %3274, %v1204
      %v3276 = vpop.permute.xlu0 %3275
      %3278 = vset.pattern.permute.xlu0 36
      %3279 = vperm.xlu0 %3278, %v1205
      %v3280 = vpop.permute.xlu0 %3279
      %3282 = vset.pattern.permute.xlu0 36
      %3283 = vperm.xlu0 %3282, %v1206
      %v3284 = vpop.permute.xlu0 %3283
      %3286 = vset.pattern.permute.xlu0 36
      %3287 = vperm.xlu0 %3286, %v1207
      %v3288 = vpop.permute.xlu0 %3287
      %3290 = vset.pattern.permute.xlu0 36
      %3291 = vperm.xlu0 %3290, %v1208
      %v3292 = vpop.permute.xlu0 %3291
      %3294 = vset.pattern.permute.xlu0 36
      %3295 = vperm.xlu0 %3294, %v1209
      %v3296 = vpop.permute.xlu0 %3295
      %3298 = vset.pattern.permute.xlu0 36
      %3299 = vperm.xlu0 %3298, %v1210
      %v3300 = vpop.permute.xlu0 %3299
      %3302 = vset.pattern.permute.xlu0 36
      %3303 = vperm.xlu0 %3302, %v1211
      %v3304 = vpop.permute.xlu0 %3303
      %3306 = vset.pattern.permute.xlu0 36
      %3307 = vperm.xlu0 %3306, %v1212
      %v3308 = vpop.permute.xlu0 %3307
      %vm3310 = vcmp.eq.f32.partialorder %v1591, %v3272
      %vm3311 = vcmp.eq.f32.partialorder %v1591, %v3276
      %vm3312 = vcmp.eq.f32.partialorder %v1591, %v3280
      %vm3313 = vcmp.eq.f32.partialorder %v1591, %v3284
      %vm3314 = vcmp.eq.f32.partialorder %v1591, %v3288
      %vm3315 = vcmp.eq.f32.partialorder %v1591, %v3292
      %vm3316 = vcmp.eq.f32.partialorder %v1591, %v3296
      %vm3317 = vcmp.eq.f32.partialorder %v1591, %v3300
      %vm3318 = vcmp.eq.f32.partialorder %v1591, %v3304
      %vm3319 = vcmp.eq.f32.partialorder %v1591, %v3308
      %3320 = vset.pattern.permute.xlu0 36
      %3321 = vperm.xlu0 %3320, %v1223
      %v3322 = vpop.permute.xlu0 %3321
      %3324 = vset.pattern.permute.xlu0 36
      %3325 = vperm.xlu0 %3324, %v1224
      %v3326 = vpop.permute.xlu0 %3325
      %3328 = vset.pattern.permute.xlu0 36
      %3329 = vperm.xlu0 %3328, %v1225
      %v3330 = vpop.permute.xlu0 %3329
      %3332 = vset.pattern.permute.xlu0 36
      %3333 = vperm.xlu0 %3332, %v1226
      %v3334 = vpop.permute.xlu0 %3333
      %3336 = vset.pattern.permute.xlu0 36
      %3337 = vperm.xlu0 %3336, %v1227
      %v3338 = vpop.permute.xlu0 %3337
      %3340 = vset.pattern.permute.xlu0 36
      %3341 = vperm.xlu0 %3340, %v1228
      %v3342 = vpop.permute.xlu0 %3341
      %3344 = vset.pattern.permute.xlu0 36
      %3345 = vperm.xlu0 %3344, %v1229
      %v3346 = vpop.permute.xlu0 %3345
      %3348 = vset.pattern.permute.xlu0 36
      %3349 = vperm.xlu0 %3348, %v1230
      %v3350 = vpop.permute.xlu0 %3349
      %3352 = vset.pattern.permute.xlu0 36
      %3353 = vperm.xlu0 %3352, %v1231
      %v3354 = vpop.permute.xlu0 %3353
      %3356 = vset.pattern.permute.xlu0 36
      %3357 = vperm.xlu0 %3356, %v1232
      %v3358 = vpop.permute.xlu0 %3357
      %vm3360 = vcmp.eq.f32.partialorder %v1591, %v3322
      %vm3361 = vcmp.eq.f32.partialorder %v1591, %v3326
      %vm3362 = vcmp.eq.f32.partialorder %v1591, %v3330
      %vm3363 = vcmp.eq.f32.partialorder %v1591, %v3334
      %vm3364 = vcmp.eq.f32.partialorder %v1591, %v3338
      %vm3365 = vcmp.eq.f32.partialorder %v1591, %v3342
      %vm3366 = vcmp.eq.f32.partialorder %v1591, %v3346
      %vm3367 = vcmp.eq.f32.partialorder %v1591, %v3350
      %vm3368 = vcmp.eq.f32.partialorder %v1591, %v3354
      %vm3369 = vcmp.eq.f32.partialorder %v1591, %v3358
      %3370 = vset.pattern.permute.xlu0 36
      %3371 = vperm.xlu0 %3370, %v1213
      %v3372 = vpop.permute.xlu0 %3371
      %3374 = vset.pattern.permute.xlu0 36
      %3375 = vperm.xlu0 %3374, %v1214
      %v3376 = vpop.permute.xlu0 %3375
      %3378 = vset.pattern.permute.xlu0 36
      %3379 = vperm.xlu0 %3378, %v1215
      %v3380 = vpop.permute.xlu0 %3379
      %3382 = vset.pattern.permute.xlu0 36
      %3383 = vperm.xlu0 %3382, %v1216
      %v3384 = vpop.permute.xlu0 %3383
      %3386 = vset.pattern.permute.xlu0 36
      %3387 = vperm.xlu0 %3386, %v1217
      %v3388 = vpop.permute.xlu0 %3387
      %3390 = vset.pattern.permute.xlu0 36
      %3391 = vperm.xlu0 %3390, %v1218
      %v3392 = vpop.permute.xlu0 %3391
      %3394 = vset.pattern.permute.xlu0 36
      %3395 = vperm.xlu0 %3394, %v1219
      %v3396 = vpop.permute.xlu0 %3395
      %3398 = vset.pattern.permute.xlu0 36
      %3399 = vperm.xlu0 %3398, %v1220
      %v3400 = vpop.permute.xlu0 %3399
      %3402 = vset.pattern.permute.xlu0 36
      %3403 = vperm.xlu0 %3402, %v1221
      %v3404 = vpop.permute.xlu0 %3403
      %3406 = vset.pattern.permute.xlu0 36
      %3407 = vperm.xlu0 %3406, %v1222
      %v3408 = vpop.permute.xlu0 %3407
      %v3410 = vsel %vm3360, %v3372, 0.0
      %v3411 = vsel %vm3361, %v3376, 0.0
      %v3412 = vsel %vm3362, %v3380, 0.0
      %v3413 = vsel %vm3363, %v3384, 0.0
      %v3414 = vsel %vm3364, %v3388, 0.0
      %v3415 = vsel %vm3365, %v3392, 0.0
      %v3416 = vsel %vm3366, %v3396, 0.0
      %v3417 = vsel %vm3367, %v3400, 0.0
      %v3418 = vsel %vm3368, %v3404, 0.0
      %v3419 = vsel %vm3369, %v3408, 0.0
      %3420 = vset.pattern.permute.xlu0 36
      %3421 = vperm.xlu0 %3420, %v1233
      %v3422 = vpop.permute.xlu0 %3421
      %3424 = vset.pattern.permute.xlu0 36
      %3425 = vperm.xlu0 %3424, %v1234
      %v3426 = vpop.permute.xlu0 %3425
      %3428 = vset.pattern.permute.xlu0 36
      %3429 = vperm.xlu0 %3428, %v1235
      %v3430 = vpop.permute.xlu0 %3429
      %3432 = vset.pattern.permute.xlu0 36
      %3433 = vperm.xlu0 %3432, %v1236
      %v3434 = vpop.permute.xlu0 %3433
      %3436 = vset.pattern.permute.xlu0 36
      %3437 = vperm.xlu0 %3436, %v1237
      %v3438 = vpop.permute.xlu0 %3437
      %3440 = vset.pattern.permute.xlu0 36
      %3441 = vperm.xlu0 %3440, %v1238
      %v3442 = vpop.permute.xlu0 %3441
      %3444 = vset.pattern.permute.xlu0 36
      %3445 = vperm.xlu0 %3444, %v1239
      %v3446 = vpop.permute.xlu0 %3445
      %3448 = vset.pattern.permute.xlu0 36
      %3449 = vperm.xlu0 %3448, %v1240
      %v3450 = vpop.permute.xlu0 %3449
      %3452 = vset.pattern.permute.xlu0 36
      %3453 = vperm.xlu0 %3452, %v1241
      %v3454 = vpop.permute.xlu0 %3453
      %3456 = vset.pattern.permute.xlu0 36
      %3457 = vperm.xlu0 %3456, %v1242
      %v3458 = vpop.permute.xlu0 %3457
      %v3460 = vsel %vm3310, %v3422, %v3410
      %v3461 = vsel %vm3311, %v3426, %v3411
      %v3462 = vsel %vm3312, %v3430, %v3412
      %v3463 = vsel %vm3313, %v3434, %v3413
      %v3464 = vsel %vm3314, %v3438, %v3414
      %v3465 = vsel %vm3315, %v3442, %v3415
      %v3466 = vsel %vm3316, %v3446, %v3416
      %v3467 = vsel %vm3317, %v3450, %v3417
      %v3468 = vsel %vm3318, %v3454, %v3418
      %v3469 = vsel %vm3319, %v3458, %v3419
      %v3470 = vmul.f32 %v3260, %v3460
      %v3471 = vmul.f32 %v3261, %v3461
      %v3472 = vmul.f32 %v3262, %v3462
      %v3473 = vmul.f32 %v3263, %v3463
      %v3474 = vmul.f32 %v3264, %v3464
      %v3475 = vmul.f32 %v3265, %v3465
      %v3476 = vmul.f32 %v3266, %v3466
      %v3477 = vmul.f32 %v3267, %v3467
      %v3478 = vmul.f32 %v3268, %v3468
      %v3479 = vmul.f32 %v3269, %v3469
      %3480 = vset.pattern.permute.xlu0 53
      %3481 = vperm.xlu0 %3480, %v1203
      %v3482 = vpop.permute.xlu0 %3481
      %3484 = vset.pattern.permute.xlu0 53
      %3485 = vperm.xlu0 %3484, %v1204
      %v3486 = vpop.permute.xlu0 %3485
      %3488 = vset.pattern.permute.xlu0 53
      %3489 = vperm.xlu0 %3488, %v1205
      %v3490 = vpop.permute.xlu0 %3489
      %3492 = vset.pattern.permute.xlu0 53
      %3493 = vperm.xlu0 %3492, %v1206
      %v3494 = vpop.permute.xlu0 %3493
      %3496 = vset.pattern.permute.xlu0 53
      %3497 = vperm.xlu0 %3496, %v1207
      %v3498 = vpop.permute.xlu0 %3497
      %3500 = vset.pattern.permute.xlu0 53
      %3501 = vperm.xlu0 %3500, %v1208
      %v3502 = vpop.permute.xlu0 %3501
      %3504 = vset.pattern.permute.xlu0 53
      %3505 = vperm.xlu0 %3504, %v1209
      %v3506 = vpop.permute.xlu0 %3505
      %3508 = vset.pattern.permute.xlu0 53
      %3509 = vperm.xlu0 %3508, %v1210
      %v3510 = vpop.permute.xlu0 %3509
      %3512 = vset.pattern.permute.xlu0 53
      %3513 = vperm.xlu0 %3512, %v1211
      %v3514 = vpop.permute.xlu0 %3513
      %3516 = vset.pattern.permute.xlu0 53
      %3517 = vperm.xlu0 %3516, %v1212
      %v3518 = vpop.permute.xlu0 %3517
      %vm3520 = vcmp.eq.f32.partialorder %v1347, %v3482
      %vm3521 = vcmp.eq.f32.partialorder %v1347, %v3486
      %vm3522 = vcmp.eq.f32.partialorder %v1347, %v3490
      %vm3523 = vcmp.eq.f32.partialorder %v1347, %v3494
      %vm3524 = vcmp.eq.f32.partialorder %v1347, %v3498
      %vm3525 = vcmp.eq.f32.partialorder %v1347, %v3502
      %vm3526 = vcmp.eq.f32.partialorder %v1347, %v3506
      %vm3527 = vcmp.eq.f32.partialorder %v1347, %v3510
      %vm3528 = vcmp.eq.f32.partialorder %v1347, %v3514
      %vm3529 = vcmp.eq.f32.partialorder %v1347, %v3518
      %3530 = vset.pattern.permute.xlu0 53
      %3531 = vperm.xlu0 %3530, %v1223
      %v3532 = vpop.permute.xlu0 %3531
      %3534 = vset.pattern.permute.xlu0 53
      %3535 = vperm.xlu0 %3534, %v1224
      %v3536 = vpop.permute.xlu0 %3535
      %3538 = vset.pattern.permute.xlu0 53
      %3539 = vperm.xlu0 %3538, %v1225
      %v3540 = vpop.permute.xlu0 %3539
      %3542 = vset.pattern.permute.xlu0 53
      %3543 = vperm.xlu0 %3542, %v1226
      %v3544 = vpop.permute.xlu0 %3543
      %3546 = vset.pattern.permute.xlu0 53
      %3547 = vperm.xlu0 %3546, %v1227
      %v3548 = vpop.permute.xlu0 %3547
      %3550 = vset.pattern.permute.xlu0 53
      %3551 = vperm.xlu0 %3550, %v1228
      %v3552 = vpop.permute.xlu0 %3551
      %3554 = vset.pattern.permute.xlu0 53
      %3555 = vperm.xlu0 %3554, %v1229
      %v3556 = vpop.permute.xlu0 %3555
      %3558 = vset.pattern.permute.xlu0 53
      %3559 = vperm.xlu0 %3558, %v1230
      %v3560 = vpop.permute.xlu0 %3559
      %3562 = vset.pattern.permute.xlu0 53
      %3563 = vperm.xlu0 %3562, %v1231
      %v3564 = vpop.permute.xlu0 %3563
      %3566 = vset.pattern.permute.xlu0 53
      %3567 = vperm.xlu0 %3566, %v1232
      %v3568 = vpop.permute.xlu0 %3567
      %vm3570 = vcmp.eq.f32.partialorder %v1347, %v3532
      %vm3571 = vcmp.eq.f32.partialorder %v1347, %v3536
      %vm3572 = vcmp.eq.f32.partialorder %v1347, %v3540
      %vm3573 = vcmp.eq.f32.partialorder %v1347, %v3544
      %vm3574 = vcmp.eq.f32.partialorder %v1347, %v3548
      %vm3575 = vcmp.eq.f32.partialorder %v1347, %v3552
      %vm3576 = vcmp.eq.f32.partialorder %v1347, %v3556
      %vm3577 = vcmp.eq.f32.partialorder %v1347, %v3560
      %vm3578 = vcmp.eq.f32.partialorder %v1347, %v3564
      %vm3579 = vcmp.eq.f32.partialorder %v1347, %v3568
      %3580 = vset.pattern.permute.xlu0 69
      %3581 = vperm.xlu0 %3580, %v1333
      %v3582 = vpop.permute.xlu0 %3581
      %3584 = vset.pattern.permute.xlu0 69
      %3585 = vperm.xlu0 %3584, %v1334
      %v3586 = vpop.permute.xlu0 %3585
      %3588 = vset.pattern.permute.xlu0 69
      %3589 = vperm.xlu0 %3588, %v1335
      %v3590 = vpop.permute.xlu0 %3589
      %3592 = vset.pattern.permute.xlu0 69
      %3593 = vperm.xlu0 %3592, %v1336
      %v3594 = vpop.permute.xlu0 %3593
      %3596 = vset.pattern.permute.xlu0 69
      %3597 = vperm.xlu0 %3596, %v1337
      %v3598 = vpop.permute.xlu0 %3597
      %3600 = vset.pattern.permute.xlu0 69
      %3601 = vperm.xlu0 %3600, %v1338
      %v3602 = vpop.permute.xlu0 %3601
      %3604 = vset.pattern.permute.xlu0 69
      %3605 = vperm.xlu0 %3604, %v1339
      %v3606 = vpop.permute.xlu0 %3605
      %3608 = vset.pattern.permute.xlu0 69
      %3609 = vperm.xlu0 %3608, %v1340
      %v3610 = vpop.permute.xlu0 %3609
      %3612 = vset.pattern.permute.xlu0 69
      %3613 = vperm.xlu0 %3612, %v1341
      %v3614 = vpop.permute.xlu0 %3613
      %3616 = vset.pattern.permute.xlu0 69
      %3617 = vperm.xlu0 %3616, %v1342
      %v3618 = vpop.permute.xlu0 %3617
      %v3620 = vsel %vm3570, %v3582, 0.0
      %v3621 = vsel %vm3571, %v3586, 0.0
      %v3622 = vsel %vm3572, %v3590, 0.0
      %v3623 = vsel %vm3573, %v3594, 0.0
      %v3624 = vsel %vm3574, %v3598, 0.0
      %v3625 = vsel %vm3575, %v3602, 0.0
      %v3626 = vsel %vm3576, %v3606, 0.0
      %v3627 = vsel %vm3577, %v3610, 0.0
      %v3628 = vsel %vm3578, %v3614, 0.0
      %v3629 = vsel %vm3579, %v3618, 0.0
      %3630 = vset.pattern.permute.xlu0 69
      %3631 = vperm.xlu0 %3630, %v1283
      %v3632 = vpop.permute.xlu0 %3631
      %3634 = vset.pattern.permute.xlu0 69
      %3635 = vperm.xlu0 %3634, %v1284
      %v3636 = vpop.permute.xlu0 %3635
      %3638 = vset.pattern.permute.xlu0 69
      %3639 = vperm.xlu0 %3638, %v1285
      %v3640 = vpop.permute.xlu0 %3639
      %3642 = vset.pattern.permute.xlu0 69
      %3643 = vperm.xlu0 %3642, %v1286
      %v3644 = vpop.permute.xlu0 %3643
      %3646 = vset.pattern.permute.xlu0 69
      %3647 = vperm.xlu0 %3646, %v1287
      %v3648 = vpop.permute.xlu0 %3647
      %3650 = vset.pattern.permute.xlu0 69
      %3651 = vperm.xlu0 %3650, %v1288
      %v3652 = vpop.permute.xlu0 %3651
      %3654 = vset.pattern.permute.xlu0 69
      %3655 = vperm.xlu0 %3654, %v1289
      %v3656 = vpop.permute.xlu0 %3655
      %3658 = vset.pattern.permute.xlu0 69
      %3659 = vperm.xlu0 %3658, %v1290
      %v3660 = vpop.permute.xlu0 %3659
      %3662 = vset.pattern.permute.xlu0 69
      %3663 = vperm.xlu0 %3662, %v1291
      %v3664 = vpop.permute.xlu0 %3663
      %3666 = vset.pattern.permute.xlu0 69
      %3667 = vperm.xlu0 %3666, %v1292
      %v3668 = vpop.permute.xlu0 %3667
      %v3670 = vsel %vm3520, %v3632, %v3620
      %v3671 = vsel %vm3521, %v3636, %v3621
      %v3672 = vsel %vm3522, %v3640, %v3622
      %v3673 = vsel %vm3523, %v3644, %v3623
      %v3674 = vsel %vm3524, %v3648, %v3624
      %v3675 = vsel %vm3525, %v3652, %v3625
      %v3676 = vsel %vm3526, %v3656, %v3626
      %v3677 = vsel %vm3527, %v3660, %v3627
      %v3678 = vsel %vm3528, %v3664, %v3628
      %v3679 = vsel %vm3529, %v3668, %v3629
      %3680 = vset.pattern.permute.xlu0 37
      %3681 = vperm.xlu0 %3680, %v1203
      %v3682 = vpop.permute.xlu0 %3681
      %3684 = vset.pattern.permute.xlu0 37
      %3685 = vperm.xlu0 %3684, %v1204
      %v3686 = vpop.permute.xlu0 %3685
      %3688 = vset.pattern.permute.xlu0 37
      %3689 = vperm.xlu0 %3688, %v1205
      %v3690 = vpop.permute.xlu0 %3689
      %3692 = vset.pattern.permute.xlu0 37
      %3693 = vperm.xlu0 %3692, %v1206
      %v3694 = vpop.permute.xlu0 %3693
      %3696 = vset.pattern.permute.xlu0 37
      %3697 = vperm.xlu0 %3696, %v1207
      %v3698 = vpop.permute.xlu0 %3697
      %3700 = vset.pattern.permute.xlu0 37
      %3701 = vperm.xlu0 %3700, %v1208
      %v3702 = vpop.permute.xlu0 %3701
      %3704 = vset.pattern.permute.xlu0 37
      %3705 = vperm.xlu0 %3704, %v1209
      %v3706 = vpop.permute.xlu0 %3705
      %3708 = vset.pattern.permute.xlu0 37
      %3709 = vperm.xlu0 %3708, %v1210
      %v3710 = vpop.permute.xlu0 %3709
      %3712 = vset.pattern.permute.xlu0 37
      %3713 = vperm.xlu0 %3712, %v1211
      %v3714 = vpop.permute.xlu0 %3713
      %3716 = vset.pattern.permute.xlu0 37
      %3717 = vperm.xlu0 %3716, %v1212
      %v3718 = vpop.permute.xlu0 %3717
      %vm3720 = vcmp.eq.f32.partialorder %v1591, %v3682
      %vm3721 = vcmp.eq.f32.partialorder %v1591, %v3686
      %vm3722 = vcmp.eq.f32.partialorder %v1591, %v3690
      %vm3723 = vcmp.eq.f32.partialorder %v1591, %v3694
      %vm3724 = vcmp.eq.f32.partialorder %v1591, %v3698
      %vm3725 = vcmp.eq.f32.partialorder %v1591, %v3702
      %vm3726 = vcmp.eq.f32.partialorder %v1591, %v3706
      %vm3727 = vcmp.eq.f32.partialorder %v1591, %v3710
      %vm3728 = vcmp.eq.f32.partialorder %v1591, %v3714
      %vm3729 = vcmp.eq.f32.partialorder %v1591, %v3718
      %3730 = vset.pattern.permute.xlu0 37
      %3731 = vperm.xlu0 %3730, %v1223
      %v3732 = vpop.permute.xlu0 %3731
      %3734 = vset.pattern.permute.xlu0 37
      %3735 = vperm.xlu0 %3734, %v1224
      %v3736 = vpop.permute.xlu0 %3735
      %3738 = vset.pattern.permute.xlu0 37
      %3739 = vperm.xlu0 %3738, %v1225
      %v3740 = vpop.permute.xlu0 %3739
      %3742 = vset.pattern.permute.xlu0 37
      %3743 = vperm.xlu0 %3742, %v1226
      %v3744 = vpop.permute.xlu0 %3743
      %3746 = vset.pattern.permute.xlu0 37
      %3747 = vperm.xlu0 %3746, %v1227
      %v3748 = vpop.permute.xlu0 %3747
      %3750 = vset.pattern.permute.xlu0 37
      %3751 = vperm.xlu0 %3750, %v1228
      %v3752 = vpop.permute.xlu0 %3751
      %3754 = vset.pattern.permute.xlu0 37
      %3755 = vperm.xlu0 %3754, %v1229
      %v3756 = vpop.permute.xlu0 %3755
      %3758 = vset.pattern.permute.xlu0 37
      %3759 = vperm.xlu0 %3758, %v1230
      %v3760 = vpop.permute.xlu0 %3759
      %3762 = vset.pattern.permute.xlu0 37
      %3763 = vperm.xlu0 %3762, %v1231
      %v3764 = vpop.permute.xlu0 %3763
      %3766 = vset.pattern.permute.xlu0 37
      %3767 = vperm.xlu0 %3766, %v1232
      %v3768 = vpop.permute.xlu0 %3767
      %vm3770 = vcmp.eq.f32.partialorder %v1591, %v3732
      %vm3771 = vcmp.eq.f32.partialorder %v1591, %v3736
      %vm3772 = vcmp.eq.f32.partialorder %v1591, %v3740
      %vm3773 = vcmp.eq.f32.partialorder %v1591, %v3744
      %vm3774 = vcmp.eq.f32.partialorder %v1591, %v3748
      %vm3775 = vcmp.eq.f32.partialorder %v1591, %v3752
      %vm3776 = vcmp.eq.f32.partialorder %v1591, %v3756
      %vm3777 = vcmp.eq.f32.partialorder %v1591, %v3760
      %vm3778 = vcmp.eq.f32.partialorder %v1591, %v3764
      %vm3779 = vcmp.eq.f32.partialorder %v1591, %v3768
      %3780 = vset.pattern.permute.xlu0 37
      %3781 = vperm.xlu0 %3780, %v1213
      %v3782 = vpop.permute.xlu0 %3781
      %3784 = vset.pattern.permute.xlu0 37
      %3785 = vperm.xlu0 %3784, %v1214
      %v3786 = vpop.permute.xlu0 %3785
      %3788 = vset.pattern.permute.xlu0 37
      %3789 = vperm.xlu0 %3788, %v1215
      %v3790 = vpop.permute.xlu0 %3789
      %3792 = vset.pattern.permute.xlu0 37
      %3793 = vperm.xlu0 %3792, %v1216
      %v3794 = vpop.permute.xlu0 %3793
      %3796 = vset.pattern.permute.xlu0 37
      %3797 = vperm.xlu0 %3796, %v1217
      %v3798 = vpop.permute.xlu0 %3797
      %3800 = vset.pattern.permute.xlu0 37
      %3801 = vperm.xlu0 %3800, %v1218
      %v3802 = vpop.permute.xlu0 %3801
      %3804 = vset.pattern.permute.xlu0 37
      %3805 = vperm.xlu0 %3804, %v1219
      %v3806 = vpop.permute.xlu0 %3805
      %3808 = vset.pattern.permute.xlu0 37
      %3809 = vperm.xlu0 %3808, %v1220
      %v3810 = vpop.permute.xlu0 %3809
      %3812 = vset.pattern.permute.xlu0 37
      %3813 = vperm.xlu0 %3812, %v1221
      %v3814 = vpop.permute.xlu0 %3813
      %3816 = vset.pattern.permute.xlu0 37
      %3817 = vperm.xlu0 %3816, %v1222
      %v3818 = vpop.permute.xlu0 %3817
      %v3820 = vsel %vm3770, %v3782, 0.0
      %v3821 = vsel %vm3771, %v3786, 0.0
      %v3822 = vsel %vm3772, %v3790, 0.0
      %v3823 = vsel %vm3773, %v3794, 0.0
      %v3824 = vsel %vm3774, %v3798, 0.0
      %v3825 = vsel %vm3775, %v3802, 0.0
      %v3826 = vsel %vm3776, %v3806, 0.0
      %v3827 = vsel %vm3777, %v3810, 0.0
      %v3828 = vsel %vm3778, %v3814, 0.0
      %v3829 = vsel %vm3779, %v3818, 0.0
      %3830 = vset.pattern.permute.xlu0 37
      %3831 = vperm.xlu0 %3830, %v1233
      %v3832 = vpop.permute.xlu0 %3831
      %3834 = vset.pattern.permute.xlu0 37
      %3835 = vperm.xlu0 %3834, %v1234
      %v3836 = vpop.permute.xlu0 %3835
      %3838 = vset.pattern.permute.xlu0 37
      %3839 = vperm.xlu0 %3838, %v1235
      %v3840 = vpop.permute.xlu0 %3839
      %3842 = vset.pattern.permute.xlu0 37
      %3843 = vperm.xlu0 %3842, %v1236
      %v3844 = vpop.permute.xlu0 %3843
      %3846 = vset.pattern.permute.xlu0 37
      %3847 = vperm.xlu0 %3846, %v1237
      %v3848 = vpop.permute.xlu0 %3847
      %3850 = vset.pattern.permute.xlu0 37
      %3851 = vperm.xlu0 %3850, %v1238
      %v3852 = vpop.permute.xlu0 %3851
      %3854 = vset.pattern.permute.xlu0 37
      %3855 = vperm.xlu0 %3854, %v1239
      %v3856 = vpop.permute.xlu0 %3855
      %3858 = vset.pattern.permute.xlu0 37
      %3859 = vperm.xlu0 %3858, %v1240
      %v3860 = vpop.permute.xlu0 %3859
      %3862 = vset.pattern.permute.xlu0 37
      %3863 = vperm.xlu0 %3862, %v1241
      %v3864 = vpop.permute.xlu0 %3863
      %3866 = vset.pattern.permute.xlu0 37
      %3867 = vperm.xlu0 %3866, %v1242
      %v3868 = vpop.permute.xlu0 %3867
      %v3870 = vsel %vm3720, %v3832, %v3820
      %v3871 = vsel %vm3721, %v3836, %v3821
      %v3872 = vsel %vm3722, %v3840, %v3822
      %v3873 = vsel %vm3723, %v3844, %v3823
      %v3874 = vsel %vm3724, %v3848, %v3824
      %v3875 = vsel %vm3725, %v3852, %v3825
      %v3876 = vsel %vm3726, %v3856, %v3826
      %v3877 = vsel %vm3727, %v3860, %v3827
      %v3878 = vsel %vm3728, %v3864, %v3828
      %v3879 = vsel %vm3729, %v3868, %v3829
      %v3880 = vmul.f32 %v3670, %v3870
      %v3881 = vmul.f32 %v3671, %v3871
      %v3882 = vmul.f32 %v3672, %v3872
      %v3883 = vmul.f32 %v3673, %v3873
      %v3884 = vmul.f32 %v3674, %v3874
      %v3885 = vmul.f32 %v3675, %v3875
      %v3886 = vmul.f32 %v3676, %v3876
      %v3887 = vmul.f32 %v3677, %v3877
      %v3888 = vmul.f32 %v3678, %v3878
      %v3889 = vmul.f32 %v3679, %v3879
      %3890 = vset.pattern.permute.xlu0 54
      %3891 = vperm.xlu0 %3890, %v1203
      %v3892 = vpop.permute.xlu0 %3891
      %3894 = vset.pattern.permute.xlu0 54
      %3895 = vperm.xlu0 %3894, %v1204
      %v3896 = vpop.permute.xlu0 %3895
      %3898 = vset.pattern.permute.xlu0 54
      %3899 = vperm.xlu0 %3898, %v1205
      %v3900 = vpop.permute.xlu0 %3899
      %3902 = vset.pattern.permute.xlu0 54
      %3903 = vperm.xlu0 %3902, %v1206
      %v3904 = vpop.permute.xlu0 %3903
      %3906 = vset.pattern.permute.xlu0 54
      %3907 = vperm.xlu0 %3906, %v1207
      %v3908 = vpop.permute.xlu0 %3907
      %3910 = vset.pattern.permute.xlu0 54
      %3911 = vperm.xlu0 %3910, %v1208
      %v3912 = vpop.permute.xlu0 %3911
      %3914 = vset.pattern.permute.xlu0 54
      %3915 = vperm.xlu0 %3914, %v1209
      %v3916 = vpop.permute.xlu0 %3915
      %3918 = vset.pattern.permute.xlu0 54
      %3919 = vperm.xlu0 %3918, %v1210
      %v3920 = vpop.permute.xlu0 %3919
      %3922 = vset.pattern.permute.xlu0 54
      %3923 = vperm.xlu0 %3922, %v1211
      %v3924 = vpop.permute.xlu0 %3923
      %3926 = vset.pattern.permute.xlu0 54
      %3927 = vperm.xlu0 %3926, %v1212
      %v3928 = vpop.permute.xlu0 %3927
      %vm3930 = vcmp.eq.f32.partialorder %v2215, %v3892
      %vm3931 = vcmp.eq.f32.partialorder %v2215, %v3896
      %vm3932 = vcmp.eq.f32.partialorder %v2215, %v3900
      %vm3933 = vcmp.eq.f32.partialorder %v2215, %v3904
      %vm3934 = vcmp.eq.f32.partialorder %v2215, %v3908
      %vm3935 = vcmp.eq.f32.partialorder %v2215, %v3912
      %vm3936 = vcmp.eq.f32.partialorder %v2215, %v3916
      %vm3937 = vcmp.eq.f32.partialorder %v2215, %v3920
      %vm3938 = vcmp.eq.f32.partialorder %v2215, %v3924
      %vm3939 = vcmp.eq.f32.partialorder %v2215, %v3928
      %3940 = vset.pattern.permute.xlu0 54
      %3941 = vperm.xlu0 %3940, %v1223
      %v3942 = vpop.permute.xlu0 %3941
      %3944 = vset.pattern.permute.xlu0 54
      %3945 = vperm.xlu0 %3944, %v1224
      %v3946 = vpop.permute.xlu0 %3945
      %3948 = vset.pattern.permute.xlu0 54
      %3949 = vperm.xlu0 %3948, %v1225
      %v3950 = vpop.permute.xlu0 %3949
      %3952 = vset.pattern.permute.xlu0 54
      %3953 = vperm.xlu0 %3952, %v1226
      %v3954 = vpop.permute.xlu0 %3953
      %3956 = vset.pattern.permute.xlu0 54
      %3957 = vperm.xlu0 %3956, %v1227
      %v3958 = vpop.permute.xlu0 %3957
      %3960 = vset.pattern.permute.xlu0 54
      %3961 = vperm.xlu0 %3960, %v1228
      %v3962 = vpop.permute.xlu0 %3961
      %3964 = vset.pattern.permute.xlu0 54
      %3965 = vperm.xlu0 %3964, %v1229
      %v3966 = vpop.permute.xlu0 %3965
      %3968 = vset.pattern.permute.xlu0 54
      %3969 = vperm.xlu0 %3968, %v1230
      %v3970 = vpop.permute.xlu0 %3969
      %3972 = vset.pattern.permute.xlu0 54
      %3973 = vperm.xlu0 %3972, %v1231
      %v3974 = vpop.permute.xlu0 %3973
      %3976 = vset.pattern.permute.xlu0 54
      %3977 = vperm.xlu0 %3976, %v1232
      %v3978 = vpop.permute.xlu0 %3977
      %vm3980 = vcmp.eq.f32.partialorder %v2215, %v3942
      %vm3981 = vcmp.eq.f32.partialorder %v2215, %v3946
      %vm3982 = vcmp.eq.f32.partialorder %v2215, %v3950
      %vm3983 = vcmp.eq.f32.partialorder %v2215, %v3954
      %vm3984 = vcmp.eq.f32.partialorder %v2215, %v3958
      %vm3985 = vcmp.eq.f32.partialorder %v2215, %v3962
      %vm3986 = vcmp.eq.f32.partialorder %v2215, %v3966
      %vm3987 = vcmp.eq.f32.partialorder %v2215, %v3970
      %vm3988 = vcmp.eq.f32.partialorder %v2215, %v3974
      %vm3989 = vcmp.eq.f32.partialorder %v2215, %v3978
      %3990 = vset.pattern.permute.xlu0 70
      %3991 = vperm.xlu0 %3990, %v1333
      %v3992 = vpop.permute.xlu0 %3991
      %3994 = vset.pattern.permute.xlu0 70
      %3995 = vperm.xlu0 %3994, %v1334
      %v3996 = vpop.permute.xlu0 %3995
      %3998 = vset.pattern.permute.xlu0 70
      %3999 = vperm.xlu0 %3998, %v1335
      %v4000 = vpop.permute.xlu0 %3999
      %4002 = vset.pattern.permute.xlu0 70
      %4003 = vperm.xlu0 %4002, %v1336
      %v4004 = vpop.permute.xlu0 %4003
      %4006 = vset.pattern.permute.xlu0 70
      %4007 = vperm.xlu0 %4006, %v1337
      %v4008 = vpop.permute.xlu0 %4007
      %4010 = vset.pattern.permute.xlu0 70
      %4011 = vperm.xlu0 %4010, %v1338
      %v4012 = vpop.permute.xlu0 %4011
      %4014 = vset.pattern.permute.xlu0 70
      %4015 = vperm.xlu0 %4014, %v1339
      %v4016 = vpop.permute.xlu0 %4015
      %4018 = vset.pattern.permute.xlu0 70
      %4019 = vperm.xlu0 %4018, %v1340
      %v4020 = vpop.permute.xlu0 %4019
      %4022 = vset.pattern.permute.xlu0 70
      %4023 = vperm.xlu0 %4022, %v1341
      %v4024 = vpop.permute.xlu0 %4023
      %4026 = vset.pattern.permute.xlu0 70
      %4027 = vperm.xlu0 %4026, %v1342
      %v4028 = vpop.permute.xlu0 %4027
      %v4030 = vsel %vm3980, %v3992, 0.0
      %v4031 = vsel %vm3981, %v3996, 0.0
      %v4032 = vsel %vm3982, %v4000, 0.0
      %v4033 = vsel %vm3983, %v4004, 0.0
      %v4034 = vsel %vm3984, %v4008, 0.0
      %v4035 = vsel %vm3985, %v4012, 0.0
      %v4036 = vsel %vm3986, %v4016, 0.0
      %v4037 = vsel %vm3987, %v4020, 0.0
      %v4038 = vsel %vm3988, %v4024, 0.0
      %v4039 = vsel %vm3989, %v4028, 0.0
      %4040 = vset.pattern.permute.xlu0 70
      %4041 = vperm.xlu0 %4040, %v1283
      %v4042 = vpop.permute.xlu0 %4041
      %4044 = vset.pattern.permute.xlu0 70
      %4045 = vperm.xlu0 %4044, %v1284
      %v4046 = vpop.permute.xlu0 %4045
      %4048 = vset.pattern.permute.xlu0 70
      %4049 = vperm.xlu0 %4048, %v1285
      %v4050 = vpop.permute.xlu0 %4049
      %4052 = vset.pattern.permute.xlu0 70
      %4053 = vperm.xlu0 %4052, %v1286
      %v4054 = vpop.permute.xlu0 %4053
      %4056 = vset.pattern.permute.xlu0 70
      %4057 = vperm.xlu0 %4056, %v1287
      %v4058 = vpop.permute.xlu0 %4057
      %4060 = vset.pattern.permute.xlu0 70
      %4061 = vperm.xlu0 %4060, %v1288
      %v4062 = vpop.permute.xlu0 %4061
      %4064 = vset.pattern.permute.xlu0 70
      %4065 = vperm.xlu0 %4064, %v1289
      %v4066 = vpop.permute.xlu0 %4065
      %4068 = vset.pattern.permute.xlu0 70
      %4069 = vperm.xlu0 %4068, %v1290
      %v4070 = vpop.permute.xlu0 %4069
      %4072 = vset.pattern.permute.xlu0 70
      %4073 = vperm.xlu0 %4072, %v1291
      %v4074 = vpop.permute.xlu0 %4073
      %4076 = vset.pattern.permute.xlu0 70
      %4077 = vperm.xlu0 %4076, %v1292
      %v4078 = vpop.permute.xlu0 %4077
      %v4080 = vsel %vm3930, %v4042, %v4030
      %v4081 = vsel %vm3931, %v4046, %v4031
      %v4082 = vsel %vm3932, %v4050, %v4032
      %v4083 = vsel %vm3933, %v4054, %v4033
      %v4084 = vsel %vm3934, %v4058, %v4034
      %v4085 = vsel %vm3935, %v4062, %v4035
      %v4086 = vsel %vm3936, %v4066, %v4036
      %v4087 = vsel %vm3937, %v4070, %v4037
      %v4088 = vsel %vm3938, %v4074, %v4038
      %v4089 = vsel %vm3939, %v4078, %v4039
      %4090 = vset.pattern.permute.xlu0 38
      %4091 = vperm.xlu0 %4090, %v1203
      %v4092 = vpop.permute.xlu0 %4091
      %4094 = vset.pattern.permute.xlu0 38
      %4095 = vperm.xlu0 %4094, %v1204
      %v4096 = vpop.permute.xlu0 %4095
      %4098 = vset.pattern.permute.xlu0 38
      %4099 = vperm.xlu0 %4098, %v1205
      %v4100 = vpop.permute.xlu0 %4099
      %4102 = vset.pattern.permute.xlu0 38
      %4103 = vperm.xlu0 %4102, %v1206
      %v4104 = vpop.permute.xlu0 %4103
      %4106 = vset.pattern.permute.xlu0 38
      %4107 = vperm.xlu0 %4106, %v1207
      %v4108 = vpop.permute.xlu0 %4107
      %4110 = vset.pattern.permute.xlu0 38
      %4111 = vperm.xlu0 %4110, %v1208
      %v4112 = vpop.permute.xlu0 %4111
      %4114 = vset.pattern.permute.xlu0 38
      %4115 = vperm.xlu0 %4114, %v1209
      %v4116 = vpop.permute.xlu0 %4115
      %4118 = vset.pattern.permute.xlu0 38
      %4119 = vperm.xlu0 %4118, %v1210
      %v4120 = vpop.permute.xlu0 %4119
      %4122 = vset.pattern.permute.xlu0 38
      %4123 = vperm.xlu0 %4122, %v1211
      %v4124 = vpop.permute.xlu0 %4123
      %4126 = vset.pattern.permute.xlu0 38
      %4127 = vperm.xlu0 %4126, %v1212
      %v4128 = vpop.permute.xlu0 %4127
      %vm4130 = vcmp.eq.f32.partialorder %v2419, %v4092
      %vm4131 = vcmp.eq.f32.partialorder %v2419, %v4096
      %vm4132 = vcmp.eq.f32.partialorder %v2419, %v4100
      %vm4133 = vcmp.eq.f32.partialorder %v2419, %v4104
      %vm4134 = vcmp.eq.f32.partialorder %v2419, %v4108
      %vm4135 = vcmp.eq.f32.partialorder %v2419, %v4112
      %vm4136 = vcmp.eq.f32.partialorder %v2419, %v4116
      %vm4137 = vcmp.eq.f32.partialorder %v2419, %v4120
      %vm4138 = vcmp.eq.f32.partialorder %v2419, %v4124
      %vm4139 = vcmp.eq.f32.partialorder %v2419, %v4128
      %4140 = vset.pattern.permute.xlu0 38
      %4141 = vperm.xlu0 %4140, %v1223
      %v4142 = vpop.permute.xlu0 %4141
      %4144 = vset.pattern.permute.xlu0 38
      %4145 = vperm.xlu0 %4144, %v1224
      %v4146 = vpop.permute.xlu0 %4145
      %4148 = vset.pattern.permute.xlu0 38
      %4149 = vperm.xlu0 %4148, %v1225
      %v4150 = vpop.permute.xlu0 %4149
      %4152 = vset.pattern.permute.xlu0 38
      %4153 = vperm.xlu0 %4152, %v1226
      %v4154 = vpop.permute.xlu0 %4153
      %4156 = vset.pattern.permute.xlu0 38
      %4157 = vperm.xlu0 %4156, %v1227
      %v4158 = vpop.permute.xlu0 %4157
      %4160 = vset.pattern.permute.xlu0 38
      %4161 = vperm.xlu0 %4160, %v1228
      %v4162 = vpop.permute.xlu0 %4161
      %4164 = vset.pattern.permute.xlu0 38
      %4165 = vperm.xlu0 %4164, %v1229
      %v4166 = vpop.permute.xlu0 %4165
      %4168 = vset.pattern.permute.xlu0 38
      %4169 = vperm.xlu0 %4168, %v1230
      %v4170 = vpop.permute.xlu0 %4169
      %4172 = vset.pattern.permute.xlu0 38
      %4173 = vperm.xlu0 %4172, %v1231
      %v4174 = vpop.permute.xlu0 %4173
      %4176 = vset.pattern.permute.xlu0 38
      %4177 = vperm.xlu0 %4176, %v1232
      %v4178 = vpop.permute.xlu0 %4177
      %vm4180 = vcmp.eq.f32.partialorder %v2419, %v4142
      %vm4181 = vcmp.eq.f32.partialorder %v2419, %v4146
      %vm4182 = vcmp.eq.f32.partialorder %v2419, %v4150
      %vm4183 = vcmp.eq.f32.partialorder %v2419, %v4154
      %vm4184 = vcmp.eq.f32.partialorder %v2419, %v4158
      %vm4185 = vcmp.eq.f32.partialorder %v2419, %v4162
      %vm4186 = vcmp.eq.f32.partialorder %v2419, %v4166
      %vm4187 = vcmp.eq.f32.partialorder %v2419, %v4170
      %vm4188 = vcmp.eq.f32.partialorder %v2419, %v4174
      %vm4189 = vcmp.eq.f32.partialorder %v2419, %v4178
      %4190 = vset.pattern.permute.xlu0 38
      %4191 = vperm.xlu0 %4190, %v1213
      %v4192 = vpop.permute.xlu0 %4191
      %4194 = vset.pattern.permute.xlu0 38
      %4195 = vperm.xlu0 %4194, %v1214
      %v4196 = vpop.permute.xlu0 %4195
      %4198 = vset.pattern.permute.xlu0 38
      %4199 = vperm.xlu0 %4198, %v1215
      %v4200 = vpop.permute.xlu0 %4199
      %4202 = vset.pattern.permute.xlu0 38
      %4203 = vperm.xlu0 %4202, %v1216
      %v4204 = vpop.permute.xlu0 %4203
      %4206 = vset.pattern.permute.xlu0 38
      %4207 = vperm.xlu0 %4206, %v1217
      %v4208 = vpop.permute.xlu0 %4207
      %4210 = vset.pattern.permute.xlu0 38
      %4211 = vperm.xlu0 %4210, %v1218
      %v4212 = vpop.permute.xlu0 %4211
      %4214 = vset.pattern.permute.xlu0 38
      %4215 = vperm.xlu0 %4214, %v1219
      %v4216 = vpop.permute.xlu0 %4215
      %4218 = vset.pattern.permute.xlu0 38
      %4219 = vperm.xlu0 %4218, %v1220
      %v4220 = vpop.permute.xlu0 %4219
      %4222 = vset.pattern.permute.xlu0 38
      %4223 = vperm.xlu0 %4222, %v1221
      %v4224 = vpop.permute.xlu0 %4223
      %4226 = vset.pattern.permute.xlu0 38
      %4227 = vperm.xlu0 %4226, %v1222
      %v4228 = vpop.permute.xlu0 %4227
      %v4230 = vsel %vm4180, %v4192, 0.0
      %v4231 = vsel %vm4181, %v4196, 0.0
      %v4232 = vsel %vm4182, %v4200, 0.0
      %v4233 = vsel %vm4183, %v4204, 0.0
      %v4234 = vsel %vm4184, %v4208, 0.0
      %v4235 = vsel %vm4185, %v4212, 0.0
      %v4236 = vsel %vm4186, %v4216, 0.0
      %v4237 = vsel %vm4187, %v4220, 0.0
      %v4238 = vsel %vm4188, %v4224, 0.0
      %v4239 = vsel %vm4189, %v4228, 0.0
      %4240 = vset.pattern.permute.xlu0 38
      %4241 = vperm.xlu0 %4240, %v1233
      %v4242 = vpop.permute.xlu0 %4241
      %4244 = vset.pattern.permute.xlu0 38
      %4245 = vperm.xlu0 %4244, %v1234
      %v4246 = vpop.permute.xlu0 %4245
      %4248 = vset.pattern.permute.xlu0 38
      %4249 = vperm.xlu0 %4248, %v1235
      %v4250 = vpop.permute.xlu0 %4249
      %4252 = vset.pattern.permute.xlu0 38
      %4253 = vperm.xlu0 %4252, %v1236
      %v4254 = vpop.permute.xlu0 %4253
      %4256 = vset.pattern.permute.xlu0 38
      %4257 = vperm.xlu0 %4256, %v1237
      %v4258 = vpop.permute.xlu0 %4257
      %4260 = vset.pattern.permute.xlu0 38
      %4261 = vperm.xlu0 %4260, %v1238
      %v4262 = vpop.permute.xlu0 %4261
      %4264 = vset.pattern.permute.xlu0 38
      %4265 = vperm.xlu0 %4264, %v1239
      %v4266 = vpop.permute.xlu0 %4265
      %4268 = vset.pattern.permute.xlu0 38
      %4269 = vperm.xlu0 %4268, %v1240
      %v4270 = vpop.permute.xlu0 %4269
      %4272 = vset.pattern.permute.xlu0 38
      %4273 = vperm.xlu0 %4272, %v1241
      %v4274 = vpop.permute.xlu0 %4273
      %4276 = vset.pattern.permute.xlu0 38
      %4277 = vperm.xlu0 %4276, %v1242
      %v4278 = vpop.permute.xlu0 %4277
      %v4280 = vsel %vm4130, %v4242, %v4230
      %v4281 = vsel %vm4131, %v4246, %v4231
      %v4282 = vsel %vm4132, %v4250, %v4232
      %v4283 = vsel %vm4133, %v4254, %v4233
      %v4284 = vsel %vm4134, %v4258, %v4234
      %v4285 = vsel %vm4135, %v4262, %v4235
      %v4286 = vsel %vm4136, %v4266, %v4236
      %v4287 = vsel %vm4137, %v4270, %v4237
      %v4288 = vsel %vm4138, %v4274, %v4238
      %v4289 = vsel %vm4139, %v4278, %v4239
      %v4290 = vmul.f32 %v4080, %v4280
      %v4291 = vmul.f32 %v4081, %v4281
      %v4292 = vmul.f32 %v4082, %v4282
      %v4293 = vmul.f32 %v4083, %v4283
      %v4294 = vmul.f32 %v4084, %v4284
      %v4295 = vmul.f32 %v4085, %v4285
      %v4296 = vmul.f32 %v4086, %v4286
      %v4297 = vmul.f32 %v4087, %v4287
      %v4298 = vmul.f32 %v4088, %v4288
      %v4299 = vmul.f32 %v4089, %v4289
      %4300 = vset.pattern.permute.xlu0 55
      %4301 = vperm.xlu0 %4300, %v1203
      %v4302 = vpop.permute.xlu0 %4301
      %4304 = vset.pattern.permute.xlu0 55
      %4305 = vperm.xlu0 %4304, %v1204
      %v4306 = vpop.permute.xlu0 %4305
      %4308 = vset.pattern.permute.xlu0 55
      %4309 = vperm.xlu0 %4308, %v1205
      %v4310 = vpop.permute.xlu0 %4309
      %4312 = vset.pattern.permute.xlu0 55
      %4313 = vperm.xlu0 %4312, %v1206
      %v4314 = vpop.permute.xlu0 %4313
      %4316 = vset.pattern.permute.xlu0 55
      %4317 = vperm.xlu0 %4316, %v1207
      %v4318 = vpop.permute.xlu0 %4317
      %4320 = vset.pattern.permute.xlu0 55
      %4321 = vperm.xlu0 %4320, %v1208
      %v4322 = vpop.permute.xlu0 %4321
      %4324 = vset.pattern.permute.xlu0 55
      %4325 = vperm.xlu0 %4324, %v1209
      %v4326 = vpop.permute.xlu0 %4325
      %4328 = vset.pattern.permute.xlu0 55
      %4329 = vperm.xlu0 %4328, %v1210
      %v4330 = vpop.permute.xlu0 %4329
      %4332 = vset.pattern.permute.xlu0 55
      %4333 = vperm.xlu0 %4332, %v1211
      %v4334 = vpop.permute.xlu0 %4333
      %4336 = vset.pattern.permute.xlu0 55
      %4337 = vperm.xlu0 %4336, %v1212
      %v4338 = vpop.permute.xlu0 %4337
      %vm4340 = vcmp.eq.f32.partialorder %v2215, %v4302
      %vm4341 = vcmp.eq.f32.partialorder %v2215, %v4306
      %vm4342 = vcmp.eq.f32.partialorder %v2215, %v4310
      %vm4343 = vcmp.eq.f32.partialorder %v2215, %v4314
      %vm4344 = vcmp.eq.f32.partialorder %v2215, %v4318
      %vm4345 = vcmp.eq.f32.partialorder %v2215, %v4322
      %vm4346 = vcmp.eq.f32.partialorder %v2215, %v4326
      %vm4347 = vcmp.eq.f32.partialorder %v2215, %v4330
      %vm4348 = vcmp.eq.f32.partialorder %v2215, %v4334
      %vm4349 = vcmp.eq.f32.partialorder %v2215, %v4338
      %4350 = vset.pattern.permute.xlu0 55
      %4351 = vperm.xlu0 %4350, %v1223
      %v4352 = vpop.permute.xlu0 %4351
      %4354 = vset.pattern.permute.xlu0 55
      %4355 = vperm.xlu0 %4354, %v1224
      %v4356 = vpop.permute.xlu0 %4355
      %4358 = vset.pattern.permute.xlu0 55
      %4359 = vperm.xlu0 %4358, %v1225
      %v4360 = vpop.permute.xlu0 %4359
      %4362 = vset.pattern.permute.xlu0 55
      %4363 = vperm.xlu0 %4362, %v1226
      %v4364 = vpop.permute.xlu0 %4363
      %4366 = vset.pattern.permute.xlu0 55
      %4367 = vperm.xlu0 %4366, %v1227
      %v4368 = vpop.permute.xlu0 %4367
      %4370 = vset.pattern.permute.xlu0 55
      %4371 = vperm.xlu0 %4370, %v1228
      %v4372 = vpop.permute.xlu0 %4371
      %4374 = vset.pattern.permute.xlu0 55
      %4375 = vperm.xlu0 %4374, %v1229
      %v4376 = vpop.permute.xlu0 %4375
      %4378 = vset.pattern.permute.xlu0 55
      %4379 = vperm.xlu0 %4378, %v1230
      %v4380 = vpop.permute.xlu0 %4379
      %4382 = vset.pattern.permute.xlu0 55
      %4383 = vperm.xlu0 %4382, %v1231
      %v4384 = vpop.permute.xlu0 %4383
      %4386 = vset.pattern.permute.xlu0 55
      %4387 = vperm.xlu0 %4386, %v1232
      %v4388 = vpop.permute.xlu0 %4387
      %vm4390 = vcmp.eq.f32.partialorder %v2215, %v4352
      %vm4391 = vcmp.eq.f32.partialorder %v2215, %v4356
      %vm4392 = vcmp.eq.f32.partialorder %v2215, %v4360
      %vm4393 = vcmp.eq.f32.partialorder %v2215, %v4364
      %vm4394 = vcmp.eq.f32.partialorder %v2215, %v4368
      %vm4395 = vcmp.eq.f32.partialorder %v2215, %v4372
      %vm4396 = vcmp.eq.f32.partialorder %v2215, %v4376
      %vm4397 = vcmp.eq.f32.partialorder %v2215, %v4380
      %vm4398 = vcmp.eq.f32.partialorder %v2215, %v4384
      %vm4399 = vcmp.eq.f32.partialorder %v2215, %v4388
      %4400 = vset.pattern.permute.xlu0 71
      %4401 = vperm.xlu0 %4400, %v1333
      %v4402 = vpop.permute.xlu0 %4401
      %4404 = vset.pattern.permute.xlu0 71
      %4405 = vperm.xlu0 %4404, %v1334
      %v4406 = vpop.permute.xlu0 %4405
      %4408 = vset.pattern.permute.xlu0 71
      %4409 = vperm.xlu0 %4408, %v1335
      %v4410 = vpop.permute.xlu0 %4409
      %4412 = vset.pattern.permute.xlu0 71
      %4413 = vperm.xlu0 %4412, %v1336
      %v4414 = vpop.permute.xlu0 %4413
      %4416 = vset.pattern.permute.xlu0 71
      %4417 = vperm.xlu0 %4416, %v1337
      %v4418 = vpop.permute.xlu0 %4417
      %4420 = vset.pattern.permute.xlu0 71
      %4421 = vperm.xlu0 %4420, %v1338
      %v4422 = vpop.permute.xlu0 %4421
      %4424 = vset.pattern.permute.xlu0 71
      %4425 = vperm.xlu0 %4424, %v1339
      %v4426 = vpop.permute.xlu0 %4425
      %4428 = vset.pattern.permute.xlu0 71
      %4429 = vperm.xlu0 %4428, %v1340
      %v4430 = vpop.permute.xlu0 %4429
      %4432 = vset.pattern.permute.xlu0 71
      %4433 = vperm.xlu0 %4432, %v1341
      %v4434 = vpop.permute.xlu0 %4433
      %4436 = vset.pattern.permute.xlu0 71
      %4437 = vperm.xlu0 %4436, %v1342
      %v4438 = vpop.permute.xlu0 %4437
      %v4440 = vsel %vm4390, %v4402, 0.0
      %v4441 = vsel %vm4391, %v4406, 0.0
      %v4442 = vsel %vm4392, %v4410, 0.0
      %v4443 = vsel %vm4393, %v4414, 0.0
      %v4444 = vsel %vm4394, %v4418, 0.0
      %v4445 = vsel %vm4395, %v4422, 0.0
      %v4446 = vsel %vm4396, %v4426, 0.0
      %v4447 = vsel %vm4397, %v4430, 0.0
      %v4448 = vsel %vm4398, %v4434, 0.0
      %v4449 = vsel %vm4399, %v4438, 0.0
      %4450 = vset.pattern.permute.xlu0 71
      %4451 = vperm.xlu0 %4450, %v1283
      %v4452 = vpop.permute.xlu0 %4451
      %4454 = vset.pattern.permute.xlu0 71
      %4455 = vperm.xlu0 %4454, %v1284
      %v4456 = vpop.permute.xlu0 %4455
      %4458 = vset.pattern.permute.xlu0 71
      %4459 = vperm.xlu0 %4458, %v1285
      %v4460 = vpop.permute.xlu0 %4459
      %4462 = vset.pattern.permute.xlu0 71
      %4463 = vperm.xlu0 %4462, %v1286
      %v4464 = vpop.permute.xlu0 %4463
      %4466 = vset.pattern.permute.xlu0 71
      %4467 = vperm.xlu0 %4466, %v1287
      %v4468 = vpop.permute.xlu0 %4467
      %4470 = vset.pattern.permute.xlu0 71
      %4471 = vperm.xlu0 %4470, %v1288
      %v4472 = vpop.permute.xlu0 %4471
      %4474 = vset.pattern.permute.xlu0 71
      %4475 = vperm.xlu0 %4474, %v1289
      %v4476 = vpop.permute.xlu0 %4475
      %4478 = vset.pattern.permute.xlu0 71
      %4479 = vperm.xlu0 %4478, %v1290
      %v4480 = vpop.permute.xlu0 %4479
      %4482 = vset.pattern.permute.xlu0 71
      %4483 = vperm.xlu0 %4482, %v1291
      %v4484 = vpop.permute.xlu0 %4483
      %4486 = vset.pattern.permute.xlu0 71
      %4487 = vperm.xlu0 %4486, %v1292
      %v4488 = vpop.permute.xlu0 %4487
      %v4490 = vsel %vm4340, %v4452, %v4440
      %v4491 = vsel %vm4341, %v4456, %v4441
      %v4492 = vsel %vm4342, %v4460, %v4442
      %v4493 = vsel %vm4343, %v4464, %v4443
      %v4494 = vsel %vm4344, %v4468, %v4444
      %v4495 = vsel %vm4345, %v4472, %v4445
      %v4496 = vsel %vm4346, %v4476, %v4446
      %v4497 = vsel %vm4347, %v4480, %v4447
      %v4498 = vsel %vm4348, %v4484, %v4448
      %v4499 = vsel %vm4349, %v4488, %v4449
      %4500 = vset.pattern.permute.xlu0 39
      %4501 = vperm.xlu0 %4500, %v1203
      %v4502 = vpop.permute.xlu0 %4501
      %4504 = vset.pattern.permute.xlu0 39
      %4505 = vperm.xlu0 %4504, %v1204
      %v4506 = vpop.permute.xlu0 %4505
      %4508 = vset.pattern.permute.xlu0 39
      %4509 = vperm.xlu0 %4508, %v1205
      %v4510 = vpop.permute.xlu0 %4509
      %4512 = vset.pattern.permute.xlu0 39
      %4513 = vperm.xlu0 %4512, %v1206
      %v4514 = vpop.permute.xlu0 %4513
      %4516 = vset.pattern.permute.xlu0 39
      %4517 = vperm.xlu0 %4516, %v1207
      %v4518 = vpop.permute.xlu0 %4517
      %4520 = vset.pattern.permute.xlu0 39
      %4521 = vperm.xlu0 %4520, %v1208
      %v4522 = vpop.permute.xlu0 %4521
      %4524 = vset.pattern.permute.xlu0 39
      %4525 = vperm.xlu0 %4524, %v1209
      %v4526 = vpop.permute.xlu0 %4525
      %4528 = vset.pattern.permute.xlu0 39
      %4529 = vperm.xlu0 %4528, %v1210
      %v4530 = vpop.permute.xlu0 %4529
      %4532 = vset.pattern.permute.xlu0 39
      %4533 = vperm.xlu0 %4532, %v1211
      %v4534 = vpop.permute.xlu0 %4533
      %4536 = vset.pattern.permute.xlu0 39
      %4537 = vperm.xlu0 %4536, %v1212
      %v4538 = vpop.permute.xlu0 %4537
      %vm4540 = vcmp.eq.f32.partialorder %v2419, %v4502
      %vm4541 = vcmp.eq.f32.partialorder %v2419, %v4506
      %vm4542 = vcmp.eq.f32.partialorder %v2419, %v4510
      %vm4543 = vcmp.eq.f32.partialorder %v2419, %v4514
      %vm4544 = vcmp.eq.f32.partialorder %v2419, %v4518
      %vm4545 = vcmp.eq.f32.partialorder %v2419, %v4522
      %vm4546 = vcmp.eq.f32.partialorder %v2419, %v4526
      %vm4547 = vcmp.eq.f32.partialorder %v2419, %v4530
      %vm4548 = vcmp.eq.f32.partialorder %v2419, %v4534
      %vm4549 = vcmp.eq.f32.partialorder %v2419, %v4538
      %4550 = vset.pattern.permute.xlu0 39
      %4551 = vperm.xlu0 %4550, %v1223
      %v4552 = vpop.permute.xlu0 %4551
      %4554 = vset.pattern.permute.xlu0 39
      %4555 = vperm.xlu0 %4554, %v1224
      %v4556 = vpop.permute.xlu0 %4555
      %4558 = vset.pattern.permute.xlu0 39
      %4559 = vperm.xlu0 %4558, %v1225
      %v4560 = vpop.permute.xlu0 %4559
      %4562 = vset.pattern.permute.xlu0 39
      %4563 = vperm.xlu0 %4562, %v1226
      %v4564 = vpop.permute.xlu0 %4563
      %4566 = vset.pattern.permute.xlu0 39
      %4567 = vperm.xlu0 %4566, %v1227
      %v4568 = vpop.permute.xlu0 %4567
      %4570 = vset.pattern.permute.xlu0 39
      %4571 = vperm.xlu0 %4570, %v1228
      %v4572 = vpop.permute.xlu0 %4571
      %4574 = vset.pattern.permute.xlu0 39
      %4575 = vperm.xlu0 %4574, %v1229
      %v4576 = vpop.permute.xlu0 %4575
      %4578 = vset.pattern.permute.xlu0 39
      %4579 = vperm.xlu0 %4578, %v1230
      %v4580 = vpop.permute.xlu0 %4579
      %4582 = vset.pattern.permute.xlu0 39
      %4583 = vperm.xlu0 %4582, %v1231
      %v4584 = vpop.permute.xlu0 %4583
      %4586 = vset.pattern.permute.xlu0 39
      %4587 = vperm.xlu0 %4586, %v1232
      %v4588 = vpop.permute.xlu0 %4587
      %vm4590 = vcmp.eq.f32.partialorder %v2419, %v4552
      %vm4591 = vcmp.eq.f32.partialorder %v2419, %v4556
      %vm4592 = vcmp.eq.f32.partialorder %v2419, %v4560
      %vm4593 = vcmp.eq.f32.partialorder %v2419, %v4564
      %vm4594 = vcmp.eq.f32.partialorder %v2419, %v4568
      %vm4595 = vcmp.eq.f32.partialorder %v2419, %v4572
      %vm4596 = vcmp.eq.f32.partialorder %v2419, %v4576
      %vm4597 = vcmp.eq.f32.partialorder %v2419, %v4580
      %vm4598 = vcmp.eq.f32.partialorder %v2419, %v4584
      %vm4599 = vcmp.eq.f32.partialorder %v2419, %v4588
      %4600 = vset.pattern.permute.xlu0 39
      %4601 = vperm.xlu0 %4600, %v1213
      %v4602 = vpop.permute.xlu0 %4601
      %4604 = vset.pattern.permute.xlu0 39
      %4605 = vperm.xlu0 %4604, %v1214
      %v4606 = vpop.permute.xlu0 %4605
      %4608 = vset.pattern.permute.xlu0 39
      %4609 = vperm.xlu0 %4608, %v1215
      %v4610 = vpop.permute.xlu0 %4609
      %4612 = vset.pattern.permute.xlu0 39
      %4613 = vperm.xlu0 %4612, %v1216
      %v4614 = vpop.permute.xlu0 %4613
      %4616 = vset.pattern.permute.xlu0 39
      %4617 = vperm.xlu0 %4616, %v1217
      %v4618 = vpop.permute.xlu0 %4617
      %4620 = vset.pattern.permute.xlu0 39
      %4621 = vperm.xlu0 %4620, %v1218
      %v4622 = vpop.permute.xlu0 %4621
      %4624 = vset.pattern.permute.xlu0 39
      %4625 = vperm.xlu0 %4624, %v1219
      %v4626 = vpop.permute.xlu0 %4625
      %4628 = vset.pattern.permute.xlu0 39
      %4629 = vperm.xlu0 %4628, %v1220
      %v4630 = vpop.permute.xlu0 %4629
      %4632 = vset.pattern.permute.xlu0 39
      %4633 = vperm.xlu0 %4632, %v1221
      %v4634 = vpop.permute.xlu0 %4633
      %4636 = vset.pattern.permute.xlu0 39
      %4637 = vperm.xlu0 %4636, %v1222
      %v4638 = vpop.permute.xlu0 %4637
      %v4640 = vsel %vm4590, %v4602, 0.0
      %v4641 = vsel %vm4591, %v4606, 0.0
      %v4642 = vsel %vm4592, %v4610, 0.0
      %v4643 = vsel %vm4593, %v4614, 0.0
      %v4644 = vsel %vm4594, %v4618, 0.0
      %v4645 = vsel %vm4595, %v4622, 0.0
      %v4646 = vsel %vm4596, %v4626, 0.0
      %v4647 = vsel %vm4597, %v4630, 0.0
      %v4648 = vsel %vm4598, %v4634, 0.0
      %v4649 = vsel %vm4599, %v4638, 0.0
      %4650 = vset.pattern.permute.xlu0 39
      %4651 = vperm.xlu0 %4650, %v1233
      %v4652 = vpop.permute.xlu0 %4651
      %4654 = vset.pattern.permute.xlu0 39
      %4655 = vperm.xlu0 %4654, %v1234
      %v4656 = vpop.permute.xlu0 %4655
      %4658 = vset.pattern.permute.xlu0 39
      %4659 = vperm.xlu0 %4658, %v1235
      %v4660 = vpop.permute.xlu0 %4659
      %4662 = vset.pattern.permute.xlu0 39
      %4663 = vperm.xlu0 %4662, %v1236
      %v4664 = vpop.permute.xlu0 %4663
      %4666 = vset.pattern.permute.xlu0 39
      %4667 = vperm.xlu0 %4666, %v1237
      %v4668 = vpop.permute.xlu0 %4667
      %4670 = vset.pattern.permute.xlu0 39
      %4671 = vperm.xlu0 %4670, %v1238
      %v4672 = vpop.permute.xlu0 %4671
      %4674 = vset.pattern.permute.xlu0 39
      %4675 = vperm.xlu0 %4674, %v1239
      %v4676 = vpop.permute.xlu0 %4675
      %4678 = vset.pattern.permute.xlu0 39
      %4679 = vperm.xlu0 %4678, %v1240
      %v4680 = vpop.permute.xlu0 %4679
      %4682 = vset.pattern.permute.xlu0 39
      %4683 = vperm.xlu0 %4682, %v1241
      %v4684 = vpop.permute.xlu0 %4683
      %4686 = vset.pattern.permute.xlu0 39
      %4687 = vperm.xlu0 %4686, %v1242
      %v4688 = vpop.permute.xlu0 %4687
      %v4690 = vsel %vm4540, %v4652, %v4640
      %v4691 = vsel %vm4541, %v4656, %v4641
      %v4692 = vsel %vm4542, %v4660, %v4642
      %v4693 = vsel %vm4543, %v4664, %v4643
      %v4694 = vsel %vm4544, %v4668, %v4644
      %v4695 = vsel %vm4545, %v4672, %v4645
      %v4696 = vsel %vm4546, %v4676, %v4646
      %v4697 = vsel %vm4547, %v4680, %v4647
      %v4698 = vsel %vm4548, %v4684, %v4648
      %v4699 = vsel %vm4549, %v4688, %v4649
      %v4700 = vmul.f32 %v4490, %v4690
      %v4701 = vmul.f32 %v4491, %v4691
      %v4702 = vmul.f32 %v4492, %v4692
      %v4703 = vmul.f32 %v4493, %v4693
      %v4704 = vmul.f32 %v4494, %v4694
      %v4705 = vmul.f32 %v4495, %v4695
      %v4706 = vmul.f32 %v4496, %v4696
      %v4707 = vmul.f32 %v4497, %v4697
      %v4708 = vmul.f32 %v4498, %v4698
      %v4709 = vmul.f32 %v4499, %v4699
      %v4710 = vadd.f32 %v3470, %v3880
      %v4711 = vadd.f32 %v3471, %v3881
      %v4712 = vadd.f32 %v3472, %v3882
      %v4713 = vadd.f32 %v3473, %v3883
      %v4714 = vadd.f32 %v3474, %v3884
      %v4715 = vadd.f32 %v3475, %v3885
      %v4716 = vadd.f32 %v3476, %v3886
      %v4717 = vadd.f32 %v3477, %v3887
      %v4718 = vadd.f32 %v3478, %v3888
      %v4719 = vadd.f32 %v3479, %v3889
      %v4720 = vadd.f32 %v4290, %v4700
      %v4721 = vadd.f32 %v4291, %v4701
      %v4722 = vadd.f32 %v4292, %v4702
      %v4723 = vadd.f32 %v4293, %v4703
      %v4724 = vadd.f32 %v4294, %v4704
      %v4725 = vadd.f32 %v4295, %v4705
      %v4726 = vadd.f32 %v4296, %v4706
      %v4727 = vadd.f32 %v4297, %v4707
      %v4728 = vadd.f32 %v4298, %v4708
      %v4729 = vadd.f32 %v4299, %v4709
      %v4730 = vadd.f32 %v4710, %v4720
      %v4731 = vadd.f32 %v4711, %v4721
      %v4732 = vadd.f32 %v4712, %v4722
      %v4733 = vadd.f32 %v4713, %v4723
      %v4734 = vadd.f32 %v4714, %v4724
      %v4735 = vadd.f32 %v4715, %v4725
      %v4736 = vadd.f32 %v4716, %v4726
      %v4737 = vadd.f32 %v4717, %v4727
      %v4738 = vadd.f32 %v4718, %v4728
      %v4739 = vadd.f32 %v4719, %v4729
      %4740 = vset.pattern.permute.xlu0 56
      %4741 = vperm.xlu0 %4740, %v1203
      %v4742 = vpop.permute.xlu0 %4741
      %4744 = vset.pattern.permute.xlu0 56
      %4745 = vperm.xlu0 %4744, %v1204
      %v4746 = vpop.permute.xlu0 %4745
      %4748 = vset.pattern.permute.xlu0 56
      %4749 = vperm.xlu0 %4748, %v1205
      %v4750 = vpop.permute.xlu0 %4749
      %4752 = vset.pattern.permute.xlu0 56
      %4753 = vperm.xlu0 %4752, %v1206
      %v4754 = vpop.permute.xlu0 %4753
      %4756 = vset.pattern.permute.xlu0 56
      %4757 = vperm.xlu0 %4756, %v1207
      %v4758 = vpop.permute.xlu0 %4757
      %4760 = vset.pattern.permute.xlu0 56
      %4761 = vperm.xlu0 %4760, %v1208
      %v4762 = vpop.permute.xlu0 %4761
      %4764 = vset.pattern.permute.xlu0 56
      %4765 = vperm.xlu0 %4764, %v1209
      %v4766 = vpop.permute.xlu0 %4765
      %4768 = vset.pattern.permute.xlu0 56
      %4769 = vperm.xlu0 %4768, %v1210
      %v4770 = vpop.permute.xlu0 %4769
      %4772 = vset.pattern.permute.xlu0 56
      %4773 = vperm.xlu0 %4772, %v1211
      %v4774 = vpop.permute.xlu0 %4773
      %4776 = vset.pattern.permute.xlu0 56
      %4777 = vperm.xlu0 %4776, %v1212
      %v4778 = vpop.permute.xlu0 %4777
      %vm4780 = vcmp.eq.f32.partialorder %v1347, %v4742
      %vm4781 = vcmp.eq.f32.partialorder %v1347, %v4746
      %vm4782 = vcmp.eq.f32.partialorder %v1347, %v4750
      %vm4783 = vcmp.eq.f32.partialorder %v1347, %v4754
      %vm4784 = vcmp.eq.f32.partialorder %v1347, %v4758
      %vm4785 = vcmp.eq.f32.partialorder %v1347, %v4762
      %vm4786 = vcmp.eq.f32.partialorder %v1347, %v4766
      %vm4787 = vcmp.eq.f32.partialorder %v1347, %v4770
      %vm4788 = vcmp.eq.f32.partialorder %v1347, %v4774
      %vm4789 = vcmp.eq.f32.partialorder %v1347, %v4778
      %4790 = vset.pattern.permute.xlu0 56
      %4791 = vperm.xlu0 %4790, %v1223
      %v4792 = vpop.permute.xlu0 %4791
      %4794 = vset.pattern.permute.xlu0 56
      %4795 = vperm.xlu0 %4794, %v1224
      %v4796 = vpop.permute.xlu0 %4795
      %4798 = vset.pattern.permute.xlu0 56
      %4799 = vperm.xlu0 %4798, %v1225
      %v4800 = vpop.permute.xlu0 %4799
      %4802 = vset.pattern.permute.xlu0 56
      %4803 = vperm.xlu0 %4802, %v1226
      %v4804 = vpop.permute.xlu0 %4803
      %4806 = vset.pattern.permute.xlu0 56
      %4807 = vperm.xlu0 %4806, %v1227
      %v4808 = vpop.permute.xlu0 %4807
      %4810 = vset.pattern.permute.xlu0 56
      %4811 = vperm.xlu0 %4810, %v1228
      %v4812 = vpop.permute.xlu0 %4811
      %4814 = vset.pattern.permute.xlu0 56
      %4815 = vperm.xlu0 %4814, %v1229
      %v4816 = vpop.permute.xlu0 %4815
      %4818 = vset.pattern.permute.xlu0 56
      %4819 = vperm.xlu0 %4818, %v1230
      %v4820 = vpop.permute.xlu0 %4819
      %4822 = vset.pattern.permute.xlu0 56
      %4823 = vperm.xlu0 %4822, %v1231
      %v4824 = vpop.permute.xlu0 %4823
      %4826 = vset.pattern.permute.xlu0 56
      %4827 = vperm.xlu0 %4826, %v1232
      %v4828 = vpop.permute.xlu0 %4827
      %vm4830 = vcmp.eq.f32.partialorder %v1347, %v4792
      %vm4831 = vcmp.eq.f32.partialorder %v1347, %v4796
      %vm4832 = vcmp.eq.f32.partialorder %v1347, %v4800
      %vm4833 = vcmp.eq.f32.partialorder %v1347, %v4804
      %vm4834 = vcmp.eq.f32.partialorder %v1347, %v4808
      %vm4835 = vcmp.eq.f32.partialorder %v1347, %v4812
      %vm4836 = vcmp.eq.f32.partialorder %v1347, %v4816
      %vm4837 = vcmp.eq.f32.partialorder %v1347, %v4820
      %vm4838 = vcmp.eq.f32.partialorder %v1347, %v4824
      %vm4839 = vcmp.eq.f32.partialorder %v1347, %v4828
      %4840 = vset.pattern.permute.xlu0 72
      %4841 = vperm.xlu0 %4840, %v1333
      %v4842 = vpop.permute.xlu0 %4841
      %4844 = vset.pattern.permute.xlu0 72
      %4845 = vperm.xlu0 %4844, %v1334
      %v4846 = vpop.permute.xlu0 %4845
      %4848 = vset.pattern.permute.xlu0 72
      %4849 = vperm.xlu0 %4848, %v1335
      %v4850 = vpop.permute.xlu0 %4849
      %4852 = vset.pattern.permute.xlu0 72
      %4853 = vperm.xlu0 %4852, %v1336
      %v4854 = vpop.permute.xlu0 %4853
      %4856 = vset.pattern.permute.xlu0 72
      %4857 = vperm.xlu0 %4856, %v1337
      %v4858 = vpop.permute.xlu0 %4857
      %4860 = vset.pattern.permute.xlu0 72
      %4861 = vperm.xlu0 %4860, %v1338
      %v4862 = vpop.permute.xlu0 %4861
      %4864 = vset.pattern.permute.xlu0 72
      %4865 = vperm.xlu0 %4864, %v1339
      %v4866 = vpop.permute.xlu0 %4865
      %4868 = vset.pattern.permute.xlu0 72
      %4869 = vperm.xlu0 %4868, %v1340
      %v4870 = vpop.permute.xlu0 %4869
      %4872 = vset.pattern.permute.xlu0 72
      %4873 = vperm.xlu0 %4872, %v1341
      %v4874 = vpop.permute.xlu0 %4873
      %4876 = vset.pattern.permute.xlu0 72
      %4877 = vperm.xlu0 %4876, %v1342
      %v4878 = vpop.permute.xlu0 %4877
      %v4880 = vsel %vm4830, %v4842, 0.0
      %v4881 = vsel %vm4831, %v4846, 0.0
      %v4882 = vsel %vm4832, %v4850, 0.0
      %v4883 = vsel %vm4833, %v4854, 0.0
      %v4884 = vsel %vm4834, %v4858, 0.0
      %v4885 = vsel %vm4835, %v4862, 0.0
      %v4886 = vsel %vm4836, %v4866, 0.0
      %v4887 = vsel %vm4837, %v4870, 0.0
      %v4888 = vsel %vm4838, %v4874, 0.0
      %v4889 = vsel %vm4839, %v4878, 0.0
      %4890 = vset.pattern.permute.xlu0 72
      %4891 = vperm.xlu0 %4890, %v1283
      %v4892 = vpop.permute.xlu0 %4891
      %4894 = vset.pattern.permute.xlu0 72
      %4895 = vperm.xlu0 %4894, %v1284
      %v4896 = vpop.permute.xlu0 %4895
      %4898 = vset.pattern.permute.xlu0 72
      %4899 = vperm.xlu0 %4898, %v1285
      %v4900 = vpop.permute.xlu0 %4899
      %4902 = vset.pattern.permute.xlu0 72
      %4903 = vperm.xlu0 %4902, %v1286
      %v4904 = vpop.permute.xlu0 %4903
      %4906 = vset.pattern.permute.xlu0 72
      %4907 = vperm.xlu0 %4906, %v1287
      %v4908 = vpop.permute.xlu0 %4907
      %4910 = vset.pattern.permute.xlu0 72
      %4911 = vperm.xlu0 %4910, %v1288
      %v4912 = vpop.permute.xlu0 %4911
      %4914 = vset.pattern.permute.xlu0 72
      %4915 = vperm.xlu0 %4914, %v1289
      %v4916 = vpop.permute.xlu0 %4915
      %4918 = vset.pattern.permute.xlu0 72
      %4919 = vperm.xlu0 %4918, %v1290
      %v4920 = vpop.permute.xlu0 %4919
      %4922 = vset.pattern.permute.xlu0 72
      %4923 = vperm.xlu0 %4922, %v1291
      %v4924 = vpop.permute.xlu0 %4923
      %4926 = vset.pattern.permute.xlu0 72
      %4927 = vperm.xlu0 %4926, %v1292
      %v4928 = vpop.permute.xlu0 %4927
      %v4930 = vsel %vm4780, %v4892, %v4880
      %v4931 = vsel %vm4781, %v4896, %v4881
      %v4932 = vsel %vm4782, %v4900, %v4882
      %v4933 = vsel %vm4783, %v4904, %v4883
      %v4934 = vsel %vm4784, %v4908, %v4884
      %v4935 = vsel %vm4785, %v4912, %v4885
      %v4936 = vsel %vm4786, %v4916, %v4886
      %v4937 = vsel %vm4787, %v4920, %v4887
      %v4938 = vsel %vm4788, %v4924, %v4888
      %v4939 = vsel %vm4789, %v4928, %v4889
      %4940 = vset.pattern.permute.xlu0 40
      %4941 = vperm.xlu0 %4940, %v1203
      %v4942 = vpop.permute.xlu0 %4941
      %4944 = vset.pattern.permute.xlu0 40
      %4945 = vperm.xlu0 %4944, %v1204
      %v4946 = vpop.permute.xlu0 %4945
      %4948 = vset.pattern.permute.xlu0 40
      %4949 = vperm.xlu0 %4948, %v1205
      %v4950 = vpop.permute.xlu0 %4949
      %4952 = vset.pattern.permute.xlu0 40
      %4953 = vperm.xlu0 %4952, %v1206
      %v4954 = vpop.permute.xlu0 %4953
      %4956 = vset.pattern.permute.xlu0 40
      %4957 = vperm.xlu0 %4956, %v1207
      %v4958 = vpop.permute.xlu0 %4957
      %4960 = vset.pattern.permute.xlu0 40
      %4961 = vperm.xlu0 %4960, %v1208
      %v4962 = vpop.permute.xlu0 %4961
      %4964 = vset.pattern.permute.xlu0 40
      %4965 = vperm.xlu0 %4964, %v1209
      %v4966 = vpop.permute.xlu0 %4965
      %4968 = vset.pattern.permute.xlu0 40
      %4969 = vperm.xlu0 %4968, %v1210
      %v4970 = vpop.permute.xlu0 %4969
      %4972 = vset.pattern.permute.xlu0 40
      %4973 = vperm.xlu0 %4972, %v1211
      %v4974 = vpop.permute.xlu0 %4973
      %4976 = vset.pattern.permute.xlu0 40
      %4977 = vperm.xlu0 %4976, %v1212
      %v4978 = vpop.permute.xlu0 %4977
      %vm4980 = vcmp.eq.f32.partialorder %v1591, %v4942
      %vm4981 = vcmp.eq.f32.partialorder %v1591, %v4946
      %vm4982 = vcmp.eq.f32.partialorder %v1591, %v4950
      %vm4983 = vcmp.eq.f32.partialorder %v1591, %v4954
      %vm4984 = vcmp.eq.f32.partialorder %v1591, %v4958
      %vm4985 = vcmp.eq.f32.partialorder %v1591, %v4962
      %vm4986 = vcmp.eq.f32.partialorder %v1591, %v4966
      %vm4987 = vcmp.eq.f32.partialorder %v1591, %v4970
      %vm4988 = vcmp.eq.f32.partialorder %v1591, %v4974
      %vm4989 = vcmp.eq.f32.partialorder %v1591, %v4978
      %4990 = vset.pattern.permute.xlu0 40
      %4991 = vperm.xlu0 %4990, %v1223
      %v4992 = vpop.permute.xlu0 %4991
      %4994 = vset.pattern.permute.xlu0 40
      %4995 = vperm.xlu0 %4994, %v1224
      %v4996 = vpop.permute.xlu0 %4995
      %4998 = vset.pattern.permute.xlu0 40
      %4999 = vperm.xlu0 %4998, %v1225
      %v5000 = vpop.permute.xlu0 %4999
      %5002 = vset.pattern.permute.xlu0 40
      %5003 = vperm.xlu0 %5002, %v1226
      %v5004 = vpop.permute.xlu0 %5003
      %5006 = vset.pattern.permute.xlu0 40
      %5007 = vperm.xlu0 %5006, %v1227
      %v5008 = vpop.permute.xlu0 %5007
      %5010 = vset.pattern.permute.xlu0 40
      %5011 = vperm.xlu0 %5010, %v1228
      %v5012 = vpop.permute.xlu0 %5011
      %5014 = vset.pattern.permute.xlu0 40
      %5015 = vperm.xlu0 %5014, %v1229
      %v5016 = vpop.permute.xlu0 %5015
      %5018 = vset.pattern.permute.xlu0 40
      %5019 = vperm.xlu0 %5018, %v1230
      %v5020 = vpop.permute.xlu0 %5019
      %5022 = vset.pattern.permute.xlu0 40
      %5023 = vperm.xlu0 %5022, %v1231
      %v5024 = vpop.permute.xlu0 %5023
      %5026 = vset.pattern.permute.xlu0 40
      %5027 = vperm.xlu0 %5026, %v1232
      %v5028 = vpop.permute.xlu0 %5027
      %vm5030 = vcmp.eq.f32.partialorder %v1591, %v4992
      %vm5031 = vcmp.eq.f32.partialorder %v1591, %v4996
      %vm5032 = vcmp.eq.f32.partialorder %v1591, %v5000
      %vm5033 = vcmp.eq.f32.partialorder %v1591, %v5004
      %vm5034 = vcmp.eq.f32.partialorder %v1591, %v5008
      %vm5035 = vcmp.eq.f32.partialorder %v1591, %v5012
      %vm5036 = vcmp.eq.f32.partialorder %v1591, %v5016
      %vm5037 = vcmp.eq.f32.partialorder %v1591, %v5020
      %vm5038 = vcmp.eq.f32.partialorder %v1591, %v5024
      %vm5039 = vcmp.eq.f32.partialorder %v1591, %v5028
      %5040 = vset.pattern.permute.xlu0 40
      %5041 = vperm.xlu0 %5040, %v1213
      %v5042 = vpop.permute.xlu0 %5041
      %5044 = vset.pattern.permute.xlu0 40
      %5045 = vperm.xlu0 %5044, %v1214
      %v5046 = vpop.permute.xlu0 %5045
      %5048 = vset.pattern.permute.xlu0 40
      %5049 = vperm.xlu0 %5048, %v1215
      %v5050 = vpop.permute.xlu0 %5049
      %5052 = vset.pattern.permute.xlu0 40
      %5053 = vperm.xlu0 %5052, %v1216
      %v5054 = vpop.permute.xlu0 %5053
      %5056 = vset.pattern.permute.xlu0 40
      %5057 = vperm.xlu0 %5056, %v1217
      %v5058 = vpop.permute.xlu0 %5057
      %5060 = vset.pattern.permute.xlu0 40
      %5061 = vperm.xlu0 %5060, %v1218
      %v5062 = vpop.permute.xlu0 %5061
      %5064 = vset.pattern.permute.xlu0 40
      %5065 = vperm.xlu0 %5064, %v1219
      %v5066 = vpop.permute.xlu0 %5065
      %5068 = vset.pattern.permute.xlu0 40
      %5069 = vperm.xlu0 %5068, %v1220
      %v5070 = vpop.permute.xlu0 %5069
      %5072 = vset.pattern.permute.xlu0 40
      %5073 = vperm.xlu0 %5072, %v1221
      %v5074 = vpop.permute.xlu0 %5073
      %5076 = vset.pattern.permute.xlu0 40
      %5077 = vperm.xlu0 %5076, %v1222
      %v5078 = vpop.permute.xlu0 %5077
      %v5080 = vsel %vm5030, %v5042, 0.0
      %v5081 = vsel %vm5031, %v5046, 0.0
      %v5082 = vsel %vm5032, %v5050, 0.0
      %v5083 = vsel %vm5033, %v5054, 0.0
      %v5084 = vsel %vm5034, %v5058, 0.0
      %v5085 = vsel %vm5035, %v5062, 0.0
      %v5086 = vsel %vm5036, %v5066, 0.0
      %v5087 = vsel %vm5037, %v5070, 0.0
      %v5088 = vsel %vm5038, %v5074, 0.0
      %v5089 = vsel %vm5039, %v5078, 0.0
      %5090 = vset.pattern.permute.xlu0 40
      %5091 = vperm.xlu0 %5090, %v1233
      %v5092 = vpop.permute.xlu0 %5091
      %5094 = vset.pattern.permute.xlu0 40
      %5095 = vperm.xlu0 %5094, %v1234
      %v5096 = vpop.permute.xlu0 %5095
      %5098 = vset.pattern.permute.xlu0 40
      %5099 = vperm.xlu0 %5098, %v1235
      %v5100 = vpop.permute.xlu0 %5099
      %5102 = vset.pattern.permute.xlu0 40
      %5103 = vperm.xlu0 %5102, %v1236
      %v5104 = vpop.permute.xlu0 %5103
      %5106 = vset.pattern.permute.xlu0 40
      %5107 = vperm.xlu0 %5106, %v1237
      %v5108 = vpop.permute.xlu0 %5107
      %5110 = vset.pattern.permute.xlu0 40
      %5111 = vperm.xlu0 %5110, %v1238
      %v5112 = vpop.permute.xlu0 %5111
      %5114 = vset.pattern.permute.xlu0 40
      %5115 = vperm.xlu0 %5114, %v1239
      %v5116 = vpop.permute.xlu0 %5115
      %5118 = vset.pattern.permute.xlu0 40
      %5119 = vperm.xlu0 %5118, %v1240
      %v5120 = vpop.permute.xlu0 %5119
      %5122 = vset.pattern.permute.xlu0 40
      %5123 = vperm.xlu0 %5122, %v1241
      %v5124 = vpop.permute.xlu0 %5123
      %5126 = vset.pattern.permute.xlu0 40
      %5127 = vperm.xlu0 %5126, %v1242
      %v5128 = vpop.permute.xlu0 %5127
      %v5130 = vsel %vm4980, %v5092, %v5080
      %v5131 = vsel %vm4981, %v5096, %v5081
      %v5132 = vsel %vm4982, %v5100, %v5082
      %v5133 = vsel %vm4983, %v5104, %v5083
      %v5134 = vsel %vm4984, %v5108, %v5084
      %v5135 = vsel %vm4985, %v5112, %v5085
      %v5136 = vsel %vm4986, %v5116, %v5086
      %v5137 = vsel %vm4987, %v5120, %v5087
      %v5138 = vsel %vm4988, %v5124, %v5088
      %v5139 = vsel %vm4989, %v5128, %v5089
      %v5140 = vmul.f32 %v4930, %v5130
      %v5141 = vmul.f32 %v4931, %v5131
      %v5142 = vmul.f32 %v4932, %v5132
      %v5143 = vmul.f32 %v4933, %v5133
      %v5144 = vmul.f32 %v4934, %v5134
      %v5145 = vmul.f32 %v4935, %v5135
      %v5146 = vmul.f32 %v4936, %v5136
      %v5147 = vmul.f32 %v4937, %v5137
      %v5148 = vmul.f32 %v4938, %v5138
      %v5149 = vmul.f32 %v4939, %v5139
      %5150 = vset.pattern.permute.xlu0 57
      %5151 = vperm.xlu0 %5150, %v1203
      %v5152 = vpop.permute.xlu0 %5151
      %5154 = vset.pattern.permute.xlu0 57
      %5155 = vperm.xlu0 %5154, %v1204
      %v5156 = vpop.permute.xlu0 %5155
      %5158 = vset.pattern.permute.xlu0 57
      %5159 = vperm.xlu0 %5158, %v1205
      %v5160 = vpop.permute.xlu0 %5159
      %5162 = vset.pattern.permute.xlu0 57
      %5163 = vperm.xlu0 %5162, %v1206
      %v5164 = vpop.permute.xlu0 %5163
      %5166 = vset.pattern.permute.xlu0 57
      %5167 = vperm.xlu0 %5166, %v1207
      %v5168 = vpop.permute.xlu0 %5167
      %5170 = vset.pattern.permute.xlu0 57
      %5171 = vperm.xlu0 %5170, %v1208
      %v5172 = vpop.permute.xlu0 %5171
      %5174 = vset.pattern.permute.xlu0 57
      %5175 = vperm.xlu0 %5174, %v1209
      %v5176 = vpop.permute.xlu0 %5175
      %5178 = vset.pattern.permute.xlu0 57
      %5179 = vperm.xlu0 %5178, %v1210
      %v5180 = vpop.permute.xlu0 %5179
      %5182 = vset.pattern.permute.xlu0 57
      %5183 = vperm.xlu0 %5182, %v1211
      %v5184 = vpop.permute.xlu0 %5183
      %5186 = vset.pattern.permute.xlu0 57
      %5187 = vperm.xlu0 %5186, %v1212
      %v5188 = vpop.permute.xlu0 %5187
      %vm5190 = vcmp.eq.f32.partialorder %v1347, %v5152
      %vm5191 = vcmp.eq.f32.partialorder %v1347, %v5156
      %vm5192 = vcmp.eq.f32.partialorder %v1347, %v5160
      %vm5193 = vcmp.eq.f32.partialorder %v1347, %v5164
      %vm5194 = vcmp.eq.f32.partialorder %v1347, %v5168
      %vm5195 = vcmp.eq.f32.partialorder %v1347, %v5172
      %vm5196 = vcmp.eq.f32.partialorder %v1347, %v5176
      %vm5197 = vcmp.eq.f32.partialorder %v1347, %v5180
      %vm5198 = vcmp.eq.f32.partialorder %v1347, %v5184
      %vm5199 = vcmp.eq.f32.partialorder %v1347, %v5188
      %5200 = vset.pattern.permute.xlu0 57
      %5201 = vperm.xlu0 %5200, %v1223
      %v5202 = vpop.permute.xlu0 %5201
      %5204 = vset.pattern.permute.xlu0 57
      %5205 = vperm.xlu0 %5204, %v1224
      %v5206 = vpop.permute.xlu0 %5205
      %5208 = vset.pattern.permute.xlu0 57
      %5209 = vperm.xlu0 %5208, %v1225
      %v5210 = vpop.permute.xlu0 %5209
      %5212 = vset.pattern.permute.xlu0 57
      %5213 = vperm.xlu0 %5212, %v1226
      %v5214 = vpop.permute.xlu0 %5213
      %5216 = vset.pattern.permute.xlu0 57
      %5217 = vperm.xlu0 %5216, %v1227
      %v5218 = vpop.permute.xlu0 %5217
      %5220 = vset.pattern.permute.xlu0 57
      %5221 = vperm.xlu0 %5220, %v1228
      %v5222 = vpop.permute.xlu0 %5221
      %5224 = vset.pattern.permute.xlu0 57
      %5225 = vperm.xlu0 %5224, %v1229
      %v5226 = vpop.permute.xlu0 %5225
      %5228 = vset.pattern.permute.xlu0 57
      %5229 = vperm.xlu0 %5228, %v1230
      %v5230 = vpop.permute.xlu0 %5229
      %5232 = vset.pattern.permute.xlu0 57
      %5233 = vperm.xlu0 %5232, %v1231
      %v5234 = vpop.permute.xlu0 %5233
      %5236 = vset.pattern.permute.xlu0 57
      %5237 = vperm.xlu0 %5236, %v1232
      %v5238 = vpop.permute.xlu0 %5237
      %vm5240 = vcmp.eq.f32.partialorder %v1347, %v5202
      %vm5241 = vcmp.eq.f32.partialorder %v1347, %v5206
      %vm5242 = vcmp.eq.f32.partialorder %v1347, %v5210
      %vm5243 = vcmp.eq.f32.partialorder %v1347, %v5214
      %vm5244 = vcmp.eq.f32.partialorder %v1347, %v5218
      %vm5245 = vcmp.eq.f32.partialorder %v1347, %v5222
      %vm5246 = vcmp.eq.f32.partialorder %v1347, %v5226
      %vm5247 = vcmp.eq.f32.partialorder %v1347, %v5230
      %vm5248 = vcmp.eq.f32.partialorder %v1347, %v5234
      %vm5249 = vcmp.eq.f32.partialorder %v1347, %v5238
      %5250 = vset.pattern.permute.xlu0 73
      %5251 = vperm.xlu0 %5250, %v1333
      %v5252 = vpop.permute.xlu0 %5251
      %5254 = vset.pattern.permute.xlu0 73
      %5255 = vperm.xlu0 %5254, %v1334
      %v5256 = vpop.permute.xlu0 %5255
      %5258 = vset.pattern.permute.xlu0 73
      %5259 = vperm.xlu0 %5258, %v1335
      %v5260 = vpop.permute.xlu0 %5259
      %5262 = vset.pattern.permute.xlu0 73
      %5263 = vperm.xlu0 %5262, %v1336
      %v5264 = vpop.permute.xlu0 %5263
      %5266 = vset.pattern.permute.xlu0 73
      %5267 = vperm.xlu0 %5266, %v1337
      %v5268 = vpop.permute.xlu0 %5267
      %5270 = vset.pattern.permute.xlu0 73
      %5271 = vperm.xlu0 %5270, %v1338
      %v5272 = vpop.permute.xlu0 %5271
      %5274 = vset.pattern.permute.xlu0 73
      %5275 = vperm.xlu0 %5274, %v1339
      %v5276 = vpop.permute.xlu0 %5275
      %5278 = vset.pattern.permute.xlu0 73
      %5279 = vperm.xlu0 %5278, %v1340
      %v5280 = vpop.permute.xlu0 %5279
      %5282 = vset.pattern.permute.xlu0 73
      %5283 = vperm.xlu0 %5282, %v1341
      %v5284 = vpop.permute.xlu0 %5283
      %5286 = vset.pattern.permute.xlu0 73
      %5287 = vperm.xlu0 %5286, %v1342
      %v5288 = vpop.permute.xlu0 %5287
      %v5290 = vsel %vm5240, %v5252, 0.0
      %v5291 = vsel %vm5241, %v5256, 0.0
      %v5292 = vsel %vm5242, %v5260, 0.0
      %v5293 = vsel %vm5243, %v5264, 0.0
      %v5294 = vsel %vm5244, %v5268, 0.0
      %v5295 = vsel %vm5245, %v5272, 0.0
      %v5296 = vsel %vm5246, %v5276, 0.0
      %v5297 = vsel %vm5247, %v5280, 0.0
      %v5298 = vsel %vm5248, %v5284, 0.0
      %v5299 = vsel %vm5249, %v5288, 0.0
      %5300 = vset.pattern.permute.xlu0 73
      %5301 = vperm.xlu0 %5300, %v1283
      %v5302 = vpop.permute.xlu0 %5301
      %5304 = vset.pattern.permute.xlu0 73
      %5305 = vperm.xlu0 %5304, %v1284
      %v5306 = vpop.permute.xlu0 %5305
      %5308 = vset.pattern.permute.xlu0 73
      %5309 = vperm.xlu0 %5308, %v1285
      %v5310 = vpop.permute.xlu0 %5309
      %5312 = vset.pattern.permute.xlu0 73
      %5313 = vperm.xlu0 %5312, %v1286
      %v5314 = vpop.permute.xlu0 %5313
      %5316 = vset.pattern.permute.xlu0 73
      %5317 = vperm.xlu0 %5316, %v1287
      %v5318 = vpop.permute.xlu0 %5317
      %5320 = vset.pattern.permute.xlu0 73
      %5321 = vperm.xlu0 %5320, %v1288
      %v5322 = vpop.permute.xlu0 %5321
      %5324 = vset.pattern.permute.xlu0 73
      %5325 = vperm.xlu0 %5324, %v1289
      %v5326 = vpop.permute.xlu0 %5325
      %5328 = vset.pattern.permute.xlu0 73
      %5329 = vperm.xlu0 %5328, %v1290
      %v5330 = vpop.permute.xlu0 %5329
      %5332 = vset.pattern.permute.xlu0 73
      %5333 = vperm.xlu0 %5332, %v1291
      %v5334 = vpop.permute.xlu0 %5333
      %5336 = vset.pattern.permute.xlu0 73
      %5337 = vperm.xlu0 %5336, %v1292
      %v5338 = vpop.permute.xlu0 %5337
      %v5340 = vsel %vm5190, %v5302, %v5290
      %v5341 = vsel %vm5191, %v5306, %v5291
      %v5342 = vsel %vm5192, %v5310, %v5292
      %v5343 = vsel %vm5193, %v5314, %v5293
      %v5344 = vsel %vm5194, %v5318, %v5294
      %v5345 = vsel %vm5195, %v5322, %v5295
      %v5346 = vsel %vm5196, %v5326, %v5296
      %v5347 = vsel %vm5197, %v5330, %v5297
      %v5348 = vsel %vm5198, %v5334, %v5298
      %v5349 = vsel %vm5199, %v5338, %v5299
      %5350 = vset.pattern.permute.xlu0 41
      %5351 = vperm.xlu0 %5350, %v1203
      %v5352 = vpop.permute.xlu0 %5351
      %5354 = vset.pattern.permute.xlu0 41
      %5355 = vperm.xlu0 %5354, %v1204
      %v5356 = vpop.permute.xlu0 %5355
      %5358 = vset.pattern.permute.xlu0 41
      %5359 = vperm.xlu0 %5358, %v1205
      %v5360 = vpop.permute.xlu0 %5359
      %5362 = vset.pattern.permute.xlu0 41
      %5363 = vperm.xlu0 %5362, %v1206
      %v5364 = vpop.permute.xlu0 %5363
      %5366 = vset.pattern.permute.xlu0 41
      %5367 = vperm.xlu0 %5366, %v1207
      %v5368 = vpop.permute.xlu0 %5367
      %5370 = vset.pattern.permute.xlu0 41
      %5371 = vperm.xlu0 %5370, %v1208
      %v5372 = vpop.permute.xlu0 %5371
      %5374 = vset.pattern.permute.xlu0 41
      %5375 = vperm.xlu0 %5374, %v1209
      %v5376 = vpop.permute.xlu0 %5375
      %5378 = vset.pattern.permute.xlu0 41
      %5379 = vperm.xlu0 %5378, %v1210
      %v5380 = vpop.permute.xlu0 %5379
      %5382 = vset.pattern.permute.xlu0 41
      %5383 = vperm.xlu0 %5382, %v1211
      %v5384 = vpop.permute.xlu0 %5383
      %5386 = vset.pattern.permute.xlu0 41
      %5387 = vperm.xlu0 %5386, %v1212
      %v5388 = vpop.permute.xlu0 %5387
      %vm5390 = vcmp.eq.f32.partialorder %v1591, %v5352
      %vm5391 = vcmp.eq.f32.partialorder %v1591, %v5356
      %vm5392 = vcmp.eq.f32.partialorder %v1591, %v5360
      %vm5393 = vcmp.eq.f32.partialorder %v1591, %v5364
      %vm5394 = vcmp.eq.f32.partialorder %v1591, %v5368
      %vm5395 = vcmp.eq.f32.partialorder %v1591, %v5372
      %vm5396 = vcmp.eq.f32.partialorder %v1591, %v5376
      %vm5397 = vcmp.eq.f32.partialorder %v1591, %v5380
      %vm5398 = vcmp.eq.f32.partialorder %v1591, %v5384
      %vm5399 = vcmp.eq.f32.partialorder %v1591, %v5388
      %5400 = vset.pattern.permute.xlu0 41
      %5401 = vperm.xlu0 %5400, %v1223
      %v5402 = vpop.permute.xlu0 %5401
      %5404 = vset.pattern.permute.xlu0 41
      %5405 = vperm.xlu0 %5404, %v1224
      %v5406 = vpop.permute.xlu0 %5405
      %5408 = vset.pattern.permute.xlu0 41
      %5409 = vperm.xlu0 %5408, %v1225
      %v5410 = vpop.permute.xlu0 %5409
      %5412 = vset.pattern.permute.xlu0 41
      %5413 = vperm.xlu0 %5412, %v1226
      %v5414 = vpop.permute.xlu0 %5413
      %5416 = vset.pattern.permute.xlu0 41
      %5417 = vperm.xlu0 %5416, %v1227
      %v5418 = vpop.permute.xlu0 %5417
      %5420 = vset.pattern.permute.xlu0 41
      %5421 = vperm.xlu0 %5420, %v1228
      %v5422 = vpop.permute.xlu0 %5421
      %5424 = vset.pattern.permute.xlu0 41
      %5425 = vperm.xlu0 %5424, %v1229
      %v5426 = vpop.permute.xlu0 %5425
      %5428 = vset.pattern.permute.xlu0 41
      %5429 = vperm.xlu0 %5428, %v1230
      %v5430 = vpop.permute.xlu0 %5429
      %5432 = vset.pattern.permute.xlu0 41
      %5433 = vperm.xlu0 %5432, %v1231
      %v5434 = vpop.permute.xlu0 %5433
      %5436 = vset.pattern.permute.xlu0 41
      %5437 = vperm.xlu0 %5436, %v1232
      %v5438 = vpop.permute.xlu0 %5437
      %vm5440 = vcmp.eq.f32.partialorder %v1591, %v5402
      %vm5441 = vcmp.eq.f32.partialorder %v1591, %v5406
      %vm5442 = vcmp.eq.f32.partialorder %v1591, %v5410
      %vm5443 = vcmp.eq.f32.partialorder %v1591, %v5414
      %vm5444 = vcmp.eq.f32.partialorder %v1591, %v5418
      %vm5445 = vcmp.eq.f32.partialorder %v1591, %v5422
      %vm5446 = vcmp.eq.f32.partialorder %v1591, %v5426
      %vm5447 = vcmp.eq.f32.partialorder %v1591, %v5430
      %vm5448 = vcmp.eq.f32.partialorder %v1591, %v5434
      %vm5449 = vcmp.eq.f32.partialorder %v1591, %v5438
      %5450 = vset.pattern.permute.xlu0 41
      %5451 = vperm.xlu0 %5450, %v1213
      %v5452 = vpop.permute.xlu0 %5451
      %5454 = vset.pattern.permute.xlu0 41
      %5455 = vperm.xlu0 %5454, %v1214
      %v5456 = vpop.permute.xlu0 %5455
      %5458 = vset.pattern.permute.xlu0 41
      %5459 = vperm.xlu0 %5458, %v1215
      %v5460 = vpop.permute.xlu0 %5459
      %5462 = vset.pattern.permute.xlu0 41
      %5463 = vperm.xlu0 %5462, %v1216
      %v5464 = vpop.permute.xlu0 %5463
      %5466 = vset.pattern.permute.xlu0 41
      %5467 = vperm.xlu0 %5466, %v1217
      %v5468 = vpop.permute.xlu0 %5467
      %5470 = vset.pattern.permute.xlu0 41
      %5471 = vperm.xlu0 %5470, %v1218
      %v5472 = vpop.permute.xlu0 %5471
      %5474 = vset.pattern.permute.xlu0 41
      %5475 = vperm.xlu0 %5474, %v1219
      %v5476 = vpop.permute.xlu0 %5475
      %5478 = vset.pattern.permute.xlu0 41
      %5479 = vperm.xlu0 %5478, %v1220
      %v5480 = vpop.permute.xlu0 %5479
      %5482 = vset.pattern.permute.xlu0 41
      %5483 = vperm.xlu0 %5482, %v1221
      %v5484 = vpop.permute.xlu0 %5483
      %5486 = vset.pattern.permute.xlu0 41
      %5487 = vperm.xlu0 %5486, %v1222
      %v5488 = vpop.permute.xlu0 %5487
      %v5490 = vsel %vm5440, %v5452, 0.0
      %v5491 = vsel %vm5441, %v5456, 0.0
      %v5492 = vsel %vm5442, %v5460, 0.0
      %v5493 = vsel %vm5443, %v5464, 0.0
      %v5494 = vsel %vm5444, %v5468, 0.0
      %v5495 = vsel %vm5445, %v5472, 0.0
      %v5496 = vsel %vm5446, %v5476, 0.0
      %v5497 = vsel %vm5447, %v5480, 0.0
      %v5498 = vsel %vm5448, %v5484, 0.0
      %v5499 = vsel %vm5449, %v5488, 0.0
      %5500 = vset.pattern.permute.xlu0 41
      %5501 = vperm.xlu0 %5500, %v1233
      %v5502 = vpop.permute.xlu0 %5501
      %5504 = vset.pattern.permute.xlu0 41
      %5505 = vperm.xlu0 %5504, %v1234
      %v5506 = vpop.permute.xlu0 %5505
      %5508 = vset.pattern.permute.xlu0 41
      %5509 = vperm.xlu0 %5508, %v1235
      %v5510 = vpop.permute.xlu0 %5509
      %5512 = vset.pattern.permute.xlu0 41
      %5513 = vperm.xlu0 %5512, %v1236
      %v5514 = vpop.permute.xlu0 %5513
      %5516 = vset.pattern.permute.xlu0 41
      %5517 = vperm.xlu0 %5516, %v1237
      %v5518 = vpop.permute.xlu0 %5517
      %5520 = vset.pattern.permute.xlu0 41
      %5521 = vperm.xlu0 %5520, %v1238
      %v5522 = vpop.permute.xlu0 %5521
      %5524 = vset.pattern.permute.xlu0 41
      %5525 = vperm.xlu0 %5524, %v1239
      %v5526 = vpop.permute.xlu0 %5525
      %5528 = vset.pattern.permute.xlu0 41
      %5529 = vperm.xlu0 %5528, %v1240
      %v5530 = vpop.permute.xlu0 %5529
      %5532 = vset.pattern.permute.xlu0 41
      %5533 = vperm.xlu0 %5532, %v1241
      %v5534 = vpop.permute.xlu0 %5533
      %5536 = vset.pattern.permute.xlu0 41
      %5537 = vperm.xlu0 %5536, %v1242
      %v5538 = vpop.permute.xlu0 %5537
      %v5540 = vsel %vm5390, %v5502, %v5490
      %v5541 = vsel %vm5391, %v5506, %v5491
      %v5542 = vsel %vm5392, %v5510, %v5492
      %v5543 = vsel %vm5393, %v5514, %v5493
      %v5544 = vsel %vm5394, %v5518, %v5494
      %v5545 = vsel %vm5395, %v5522, %v5495
      %v5546 = vsel %vm5396, %v5526, %v5496
      %v5547 = vsel %vm5397, %v5530, %v5497
      %v5548 = vsel %vm5398, %v5534, %v5498
      %v5549 = vsel %vm5399, %v5538, %v5499
      %v5550 = vmul.f32 %v5340, %v5540
      %v5551 = vmul.f32 %v5341, %v5541
      %v5552 = vmul.f32 %v5342, %v5542
      %v5553 = vmul.f32 %v5343, %v5543
      %v5554 = vmul.f32 %v5344, %v5544
      %v5555 = vmul.f32 %v5345, %v5545
      %v5556 = vmul.f32 %v5346, %v5546
      %v5557 = vmul.f32 %v5347, %v5547
      %v5558 = vmul.f32 %v5348, %v5548
      %v5559 = vmul.f32 %v5349, %v5549
      %5560 = vset.pattern.permute.xlu0 58
      %5561 = vperm.xlu0 %5560, %v1203
      %v5562 = vpop.permute.xlu0 %5561
      %5564 = vset.pattern.permute.xlu0 58
      %5565 = vperm.xlu0 %5564, %v1204
      %v5566 = vpop.permute.xlu0 %5565
      %5568 = vset.pattern.permute.xlu0 58
      %5569 = vperm.xlu0 %5568, %v1205
      %v5570 = vpop.permute.xlu0 %5569
      %5572 = vset.pattern.permute.xlu0 58
      %5573 = vperm.xlu0 %5572, %v1206
      %v5574 = vpop.permute.xlu0 %5573
      %5576 = vset.pattern.permute.xlu0 58
      %5577 = vperm.xlu0 %5576, %v1207
      %v5578 = vpop.permute.xlu0 %5577
      %5580 = vset.pattern.permute.xlu0 58
      %5581 = vperm.xlu0 %5580, %v1208
      %v5582 = vpop.permute.xlu0 %5581
      %5584 = vset.pattern.permute.xlu0 58
      %5585 = vperm.xlu0 %5584, %v1209
      %v5586 = vpop.permute.xlu0 %5585
      %5588 = vset.pattern.permute.xlu0 58
      %5589 = vperm.xlu0 %5588, %v1210
      %v5590 = vpop.permute.xlu0 %5589
      %5592 = vset.pattern.permute.xlu0 58
      %5593 = vperm.xlu0 %5592, %v1211
      %v5594 = vpop.permute.xlu0 %5593
      %5596 = vset.pattern.permute.xlu0 58
      %5597 = vperm.xlu0 %5596, %v1212
      %v5598 = vpop.permute.xlu0 %5597
      %vm5600 = vcmp.eq.f32.partialorder %v2215, %v5562
      %vm5601 = vcmp.eq.f32.partialorder %v2215, %v5566
      %vm5602 = vcmp.eq.f32.partialorder %v2215, %v5570
      %vm5603 = vcmp.eq.f32.partialorder %v2215, %v5574
      %vm5604 = vcmp.eq.f32.partialorder %v2215, %v5578
      %vm5605 = vcmp.eq.f32.partialorder %v2215, %v5582
      %vm5606 = vcmp.eq.f32.partialorder %v2215, %v5586
      %vm5607 = vcmp.eq.f32.partialorder %v2215, %v5590
      %vm5608 = vcmp.eq.f32.partialorder %v2215, %v5594
      %vm5609 = vcmp.eq.f32.partialorder %v2215, %v5598
      %5610 = vset.pattern.permute.xlu0 58
      %5611 = vperm.xlu0 %5610, %v1223
      %v5612 = vpop.permute.xlu0 %5611
      %5614 = vset.pattern.permute.xlu0 58
      %5615 = vperm.xlu0 %5614, %v1224
      %v5616 = vpop.permute.xlu0 %5615
      %5618 = vset.pattern.permute.xlu0 58
      %5619 = vperm.xlu0 %5618, %v1225
      %v5620 = vpop.permute.xlu0 %5619
      %5622 = vset.pattern.permute.xlu0 58
      %5623 = vperm.xlu0 %5622, %v1226
      %v5624 = vpop.permute.xlu0 %5623
      %5626 = vset.pattern.permute.xlu0 58
      %5627 = vperm.xlu0 %5626, %v1227
      %v5628 = vpop.permute.xlu0 %5627
      %5630 = vset.pattern.permute.xlu0 58
      %5631 = vperm.xlu0 %5630, %v1228
      %v5632 = vpop.permute.xlu0 %5631
      %5634 = vset.pattern.permute.xlu0 58
      %5635 = vperm.xlu0 %5634, %v1229
      %v5636 = vpop.permute.xlu0 %5635
      %5638 = vset.pattern.permute.xlu0 58
      %5639 = vperm.xlu0 %5638, %v1230
      %v5640 = vpop.permute.xlu0 %5639
      %5642 = vset.pattern.permute.xlu0 58
      %5643 = vperm.xlu0 %5642, %v1231
      %v5644 = vpop.permute.xlu0 %5643
      %5646 = vset.pattern.permute.xlu0 58
      %5647 = vperm.xlu0 %5646, %v1232
      %v5648 = vpop.permute.xlu0 %5647
      %vm5650 = vcmp.eq.f32.partialorder %v2215, %v5612
      %vm5651 = vcmp.eq.f32.partialorder %v2215, %v5616
      %vm5652 = vcmp.eq.f32.partialorder %v2215, %v5620
      %vm5653 = vcmp.eq.f32.partialorder %v2215, %v5624
      %vm5654 = vcmp.eq.f32.partialorder %v2215, %v5628
      %vm5655 = vcmp.eq.f32.partialorder %v2215, %v5632
      %vm5656 = vcmp.eq.f32.partialorder %v2215, %v5636
      %vm5657 = vcmp.eq.f32.partialorder %v2215, %v5640
      %vm5658 = vcmp.eq.f32.partialorder %v2215, %v5644
      %vm5659 = vcmp.eq.f32.partialorder %v2215, %v5648
      %5660 = vset.pattern.permute.xlu0 74
      %5661 = vperm.xlu0 %5660, %v1333
      %v5662 = vpop.permute.xlu0 %5661
      %5664 = vset.pattern.permute.xlu0 74
      %5665 = vperm.xlu0 %5664, %v1334
      %v5666 = vpop.permute.xlu0 %5665
      %5668 = vset.pattern.permute.xlu0 74
      %5669 = vperm.xlu0 %5668, %v1335
      %v5670 = vpop.permute.xlu0 %5669
      %5672 = vset.pattern.permute.xlu0 74
      %5673 = vperm.xlu0 %5672, %v1336
      %v5674 = vpop.permute.xlu0 %5673
      %5676 = vset.pattern.permute.xlu0 74
      %5677 = vperm.xlu0 %5676, %v1337
      %v5678 = vpop.permute.xlu0 %5677
      %5680 = vset.pattern.permute.xlu0 74
      %5681 = vperm.xlu0 %5680, %v1338
      %v5682 = vpop.permute.xlu0 %5681
      %5684 = vset.pattern.permute.xlu0 74
      %5685 = vperm.xlu0 %5684, %v1339
      %v5686 = vpop.permute.xlu0 %5685
      %5688 = vset.pattern.permute.xlu0 74
      %5689 = vperm.xlu0 %5688, %v1340
      %v5690 = vpop.permute.xlu0 %5689
      %5692 = vset.pattern.permute.xlu0 74
      %5693 = vperm.xlu0 %5692, %v1341
      %v5694 = vpop.permute.xlu0 %5693
      %5696 = vset.pattern.permute.xlu0 74
      %5697 = vperm.xlu0 %5696, %v1342
      %v5698 = vpop.permute.xlu0 %5697
      %v5700 = vsel %vm5650, %v5662, 0.0
      %v5701 = vsel %vm5651, %v5666, 0.0
      %v5702 = vsel %vm5652, %v5670, 0.0
      %v5703 = vsel %vm5653, %v5674, 0.0
      %v5704 = vsel %vm5654, %v5678, 0.0
      %v5705 = vsel %vm5655, %v5682, 0.0
      %v5706 = vsel %vm5656, %v5686, 0.0
      %v5707 = vsel %vm5657, %v5690, 0.0
      %v5708 = vsel %vm5658, %v5694, 0.0
      %v5709 = vsel %vm5659, %v5698, 0.0
      %5710 = vset.pattern.permute.xlu0 74
      %5711 = vperm.xlu0 %5710, %v1283
      %v5712 = vpop.permute.xlu0 %5711
      %5714 = vset.pattern.permute.xlu0 74
      %5715 = vperm.xlu0 %5714, %v1284
      %v5716 = vpop.permute.xlu0 %5715
      %5718 = vset.pattern.permute.xlu0 74
      %5719 = vperm.xlu0 %5718, %v1285
      %v5720 = vpop.permute.xlu0 %5719
      %5722 = vset.pattern.permute.xlu0 74
      %5723 = vperm.xlu0 %5722, %v1286
      %v5724 = vpop.permute.xlu0 %5723
      %5726 = vset.pattern.permute.xlu0 74
      %5727 = vperm.xlu0 %5726, %v1287
      %v5728 = vpop.permute.xlu0 %5727
      %5730 = vset.pattern.permute.xlu0 74
      %5731 = vperm.xlu0 %5730, %v1288
      %v5732 = vpop.permute.xlu0 %5731
      %5734 = vset.pattern.permute.xlu0 74
      %5735 = vperm.xlu0 %5734, %v1289
      %v5736 = vpop.permute.xlu0 %5735
      %5738 = vset.pattern.permute.xlu0 74
      %5739 = vperm.xlu0 %5738, %v1290
      %v5740 = vpop.permute.xlu0 %5739
      %5742 = vset.pattern.permute.xlu0 74
      %5743 = vperm.xlu0 %5742, %v1291
      %v5744 = vpop.permute.xlu0 %5743
      %5746 = vset.pattern.permute.xlu0 74
      %5747 = vperm.xlu0 %5746, %v1292
      %v5748 = vpop.permute.xlu0 %5747
      %v5750 = vsel %vm5600, %v5712, %v5700
      %v5751 = vsel %vm5601, %v5716, %v5701
      %v5752 = vsel %vm5602, %v5720, %v5702
      %v5753 = vsel %vm5603, %v5724, %v5703
      %v5754 = vsel %vm5604, %v5728, %v5704
      %v5755 = vsel %vm5605, %v5732, %v5705
      %v5756 = vsel %vm5606, %v5736, %v5706
      %v5757 = vsel %vm5607, %v5740, %v5707
      %v5758 = vsel %vm5608, %v5744, %v5708
      %v5759 = vsel %vm5609, %v5748, %v5709
      %5760 = vset.pattern.permute.xlu0 42
      %5761 = vperm.xlu0 %5760, %v1203
      %v5762 = vpop.permute.xlu0 %5761
      %5764 = vset.pattern.permute.xlu0 42
      %5765 = vperm.xlu0 %5764, %v1204
      %v5766 = vpop.permute.xlu0 %5765
      %5768 = vset.pattern.permute.xlu0 42
      %5769 = vperm.xlu0 %5768, %v1205
      %v5770 = vpop.permute.xlu0 %5769
      %5772 = vset.pattern.permute.xlu0 42
      %5773 = vperm.xlu0 %5772, %v1206
      %v5774 = vpop.permute.xlu0 %5773
      %5776 = vset.pattern.permute.xlu0 42
      %5777 = vperm.xlu0 %5776, %v1207
      %v5778 = vpop.permute.xlu0 %5777
      %5780 = vset.pattern.permute.xlu0 42
      %5781 = vperm.xlu0 %5780, %v1208
      %v5782 = vpop.permute.xlu0 %5781
      %5784 = vset.pattern.permute.xlu0 42
      %5785 = vperm.xlu0 %5784, %v1209
      %v5786 = vpop.permute.xlu0 %5785
      %5788 = vset.pattern.permute.xlu0 42
      %5789 = vperm.xlu0 %5788, %v1210
      %v5790 = vpop.permute.xlu0 %5789
      %5792 = vset.pattern.permute.xlu0 42
      %5793 = vperm.xlu0 %5792, %v1211
      %v5794 = vpop.permute.xlu0 %5793
      %5796 = vset.pattern.permute.xlu0 42
      %5797 = vperm.xlu0 %5796, %v1212
      %v5798 = vpop.permute.xlu0 %5797
      %vm5800 = vcmp.eq.f32.partialorder %v2419, %v5762
      %vm5801 = vcmp.eq.f32.partialorder %v2419, %v5766
      %vm5802 = vcmp.eq.f32.partialorder %v2419, %v5770
      %vm5803 = vcmp.eq.f32.partialorder %v2419, %v5774
      %vm5804 = vcmp.eq.f32.partialorder %v2419, %v5778
      %vm5805 = vcmp.eq.f32.partialorder %v2419, %v5782
      %vm5806 = vcmp.eq.f32.partialorder %v2419, %v5786
      %vm5807 = vcmp.eq.f32.partialorder %v2419, %v5790
      %vm5808 = vcmp.eq.f32.partialorder %v2419, %v5794
      %vm5809 = vcmp.eq.f32.partialorder %v2419, %v5798
      %5810 = vset.pattern.permute.xlu0 42
      %5811 = vperm.xlu0 %5810, %v1223
      %v5812 = vpop.permute.xlu0 %5811
      %5814 = vset.pattern.permute.xlu0 42
      %5815 = vperm.xlu0 %5814, %v1224
      %v5816 = vpop.permute.xlu0 %5815
      %5818 = vset.pattern.permute.xlu0 42
      %5819 = vperm.xlu0 %5818, %v1225
      %v5820 = vpop.permute.xlu0 %5819
      %5822 = vset.pattern.permute.xlu0 42
      %5823 = vperm.xlu0 %5822, %v1226
      %v5824 = vpop.permute.xlu0 %5823
      %5826 = vset.pattern.permute.xlu0 42
      %5827 = vperm.xlu0 %5826, %v1227
      %v5828 = vpop.permute.xlu0 %5827
      %5830 = vset.pattern.permute.xlu0 42
      %5831 = vperm.xlu0 %5830, %v1228
      %v5832 = vpop.permute.xlu0 %5831
      %5834 = vset.pattern.permute.xlu0 42
      %5835 = vperm.xlu0 %5834, %v1229
      %v5836 = vpop.permute.xlu0 %5835
      %5838 = vset.pattern.permute.xlu0 42
      %5839 = vperm.xlu0 %5838, %v1230
      %v5840 = vpop.permute.xlu0 %5839
      %5842 = vset.pattern.permute.xlu0 42
      %5843 = vperm.xlu0 %5842, %v1231
      %v5844 = vpop.permute.xlu0 %5843
      %5846 = vset.pattern.permute.xlu0 42
      %5847 = vperm.xlu0 %5846, %v1232
      %v5848 = vpop.permute.xlu0 %5847
      %vm5850 = vcmp.eq.f32.partialorder %v2419, %v5812
      %vm5851 = vcmp.eq.f32.partialorder %v2419, %v5816
      %vm5852 = vcmp.eq.f32.partialorder %v2419, %v5820
      %vm5853 = vcmp.eq.f32.partialorder %v2419, %v5824
      %vm5854 = vcmp.eq.f32.partialorder %v2419, %v5828
      %vm5855 = vcmp.eq.f32.partialorder %v2419, %v5832
      %vm5856 = vcmp.eq.f32.partialorder %v2419, %v5836
      %vm5857 = vcmp.eq.f32.partialorder %v2419, %v5840
      %vm5858 = vcmp.eq.f32.partialorder %v2419, %v5844
      %vm5859 = vcmp.eq.f32.partialorder %v2419, %v5848
      %5860 = vset.pattern.permute.xlu0 42
      %5861 = vperm.xlu0 %5860, %v1213
      %v5862 = vpop.permute.xlu0 %5861
      %5864 = vset.pattern.permute.xlu0 42
      %5865 = vperm.xlu0 %5864, %v1214
      %v5866 = vpop.permute.xlu0 %5865
      %5868 = vset.pattern.permute.xlu0 42
      %5869 = vperm.xlu0 %5868, %v1215
      %v5870 = vpop.permute.xlu0 %5869
      %5872 = vset.pattern.permute.xlu0 42
      %5873 = vperm.xlu0 %5872, %v1216
      %v5874 = vpop.permute.xlu0 %5873
      %5876 = vset.pattern.permute.xlu0 42
      %5877 = vperm.xlu0 %5876, %v1217
      %v5878 = vpop.permute.xlu0 %5877
      %5880 = vset.pattern.permute.xlu0 42
      %5881 = vperm.xlu0 %5880, %v1218
      %v5882 = vpop.permute.xlu0 %5881
      %5884 = vset.pattern.permute.xlu0 42
      %5885 = vperm.xlu0 %5884, %v1219
      %v5886 = vpop.permute.xlu0 %5885
      %5888 = vset.pattern.permute.xlu0 42
      %5889 = vperm.xlu0 %5888, %v1220
      %v5890 = vpop.permute.xlu0 %5889
      %5892 = vset.pattern.permute.xlu0 42
      %5893 = vperm.xlu0 %5892, %v1221
      %v5894 = vpop.permute.xlu0 %5893
      %5896 = vset.pattern.permute.xlu0 42
      %5897 = vperm.xlu0 %5896, %v1222
      %v5898 = vpop.permute.xlu0 %5897
      %v5900 = vsel %vm5850, %v5862, 0.0
      %v5901 = vsel %vm5851, %v5866, 0.0
      %v5902 = vsel %vm5852, %v5870, 0.0
      %v5903 = vsel %vm5853, %v5874, 0.0
      %v5904 = vsel %vm5854, %v5878, 0.0
      %v5905 = vsel %vm5855, %v5882, 0.0
      %v5906 = vsel %vm5856, %v5886, 0.0
      %v5907 = vsel %vm5857, %v5890, 0.0
      %v5908 = vsel %vm5858, %v5894, 0.0
      %v5909 = vsel %vm5859, %v5898, 0.0
      %5910 = vset.pattern.permute.xlu0 42
      %5911 = vperm.xlu0 %5910, %v1233
      %v5912 = vpop.permute.xlu0 %5911
      %5914 = vset.pattern.permute.xlu0 42
      %5915 = vperm.xlu0 %5914, %v1234
      %v5916 = vpop.permute.xlu0 %5915
      %5918 = vset.pattern.permute.xlu0 42
      %5919 = vperm.xlu0 %5918, %v1235
      %v5920 = vpop.permute.xlu0 %5919
      %5922 = vset.pattern.permute.xlu0 42
      %5923 = vperm.xlu0 %5922, %v1236
      %v5924 = vpop.permute.xlu0 %5923
      %5926 = vset.pattern.permute.xlu0 42
      %5927 = vperm.xlu0 %5926, %v1237
      %v5928 = vpop.permute.xlu0 %5927
      %5930 = vset.pattern.permute.xlu0 42
      %5931 = vperm.xlu0 %5930, %v1238
      %v5932 = vpop.permute.xlu0 %5931
      %5934 = vset.pattern.permute.xlu0 42
      %5935 = vperm.xlu0 %5934, %v1239
      %v5936 = vpop.permute.xlu0 %5935
      %5938 = vset.pattern.permute.xlu0 42
      %5939 = vperm.xlu0 %5938, %v1240
      %v5940 = vpop.permute.xlu0 %5939
      %5942 = vset.pattern.permute.xlu0 42
      %5943 = vperm.xlu0 %5942, %v1241
      %v5944 = vpop.permute.xlu0 %5943
      %5946 = vset.pattern.permute.xlu0 42
      %5947 = vperm.xlu0 %5946, %v1242
      %v5948 = vpop.permute.xlu0 %5947
      %v5950 = vsel %vm5800, %v5912, %v5900
      %v5951 = vsel %vm5801, %v5916, %v5901
      %v5952 = vsel %vm5802, %v5920, %v5902
      %v5953 = vsel %vm5803, %v5924, %v5903
      %v5954 = vsel %vm5804, %v5928, %v5904
      %v5955 = vsel %vm5805, %v5932, %v5905
      %v5956 = vsel %vm5806, %v5936, %v5906
      %v5957 = vsel %vm5807, %v5940, %v5907
      %v5958 = vsel %vm5808, %v5944, %v5908
      %v5959 = vsel %vm5809, %v5948, %v5909
      %v5960 = vmul.f32 %v5750, %v5950
      %v5961 = vmul.f32 %v5751, %v5951
      %v5962 = vmul.f32 %v5752, %v5952
      %v5963 = vmul.f32 %v5753, %v5953
      %v5964 = vmul.f32 %v5754, %v5954
      %v5965 = vmul.f32 %v5755, %v5955
      %v5966 = vmul.f32 %v5756, %v5956
      %v5967 = vmul.f32 %v5757, %v5957
      %v5968 = vmul.f32 %v5758, %v5958
      %v5969 = vmul.f32 %v5759, %v5959
      %5970 = vset.pattern.permute.xlu0 59
      %5971 = vperm.xlu0 %5970, %v1203
      %v5972 = vpop.permute.xlu0 %5971
      %5974 = vset.pattern.permute.xlu0 59
      %5975 = vperm.xlu0 %5974, %v1204
      %v5976 = vpop.permute.xlu0 %5975
      %5978 = vset.pattern.permute.xlu0 59
      %5979 = vperm.xlu0 %5978, %v1205
      %v5980 = vpop.permute.xlu0 %5979
      %5982 = vset.pattern.permute.xlu0 59
      %5983 = vperm.xlu0 %5982, %v1206
      %v5984 = vpop.permute.xlu0 %5983
      %5986 = vset.pattern.permute.xlu0 59
      %5987 = vperm.xlu0 %5986, %v1207
      %v5988 = vpop.permute.xlu0 %5987
      %5990 = vset.pattern.permute.xlu0 59
      %5991 = vperm.xlu0 %5990, %v1208
      %v5992 = vpop.permute.xlu0 %5991
      %5994 = vset.pattern.permute.xlu0 59
      %5995 = vperm.xlu0 %5994, %v1209
      %v5996 = vpop.permute.xlu0 %5995
      %5998 = vset.pattern.permute.xlu0 59
      %5999 = vperm.xlu0 %5998, %v1210
      %v6000 = vpop.permute.xlu0 %5999
      %6002 = vset.pattern.permute.xlu0 59
      %6003 = vperm.xlu0 %6002, %v1211
      %v6004 = vpop.permute.xlu0 %6003
      %6006 = vset.pattern.permute.xlu0 59
      %6007 = vperm.xlu0 %6006, %v1212
      %v6008 = vpop.permute.xlu0 %6007
      %vm6010 = vcmp.eq.f32.partialorder %v2215, %v5972
      %vm6011 = vcmp.eq.f32.partialorder %v2215, %v5976
      %vm6012 = vcmp.eq.f32.partialorder %v2215, %v5980
      %vm6013 = vcmp.eq.f32.partialorder %v2215, %v5984
      %vm6014 = vcmp.eq.f32.partialorder %v2215, %v5988
      %vm6015 = vcmp.eq.f32.partialorder %v2215, %v5992
      %vm6016 = vcmp.eq.f32.partialorder %v2215, %v5996
      %vm6017 = vcmp.eq.f32.partialorder %v2215, %v6000
      %vm6018 = vcmp.eq.f32.partialorder %v2215, %v6004
      %vm6019 = vcmp.eq.f32.partialorder %v2215, %v6008
      %6020 = vset.pattern.permute.xlu0 59
      %6021 = vperm.xlu0 %6020, %v1223
      %v6022 = vpop.permute.xlu0 %6021
      %6024 = vset.pattern.permute.xlu0 59
      %6025 = vperm.xlu0 %6024, %v1224
      %v6026 = vpop.permute.xlu0 %6025
      %6028 = vset.pattern.permute.xlu0 59
      %6029 = vperm.xlu0 %6028, %v1225
      %v6030 = vpop.permute.xlu0 %6029
      %6032 = vset.pattern.permute.xlu0 59
      %6033 = vperm.xlu0 %6032, %v1226
      %v6034 = vpop.permute.xlu0 %6033
      %6036 = vset.pattern.permute.xlu0 59
      %6037 = vperm.xlu0 %6036, %v1227
      %v6038 = vpop.permute.xlu0 %6037
      %6040 = vset.pattern.permute.xlu0 59
      %6041 = vperm.xlu0 %6040, %v1228
      %v6042 = vpop.permute.xlu0 %6041
      %6044 = vset.pattern.permute.xlu0 59
      %6045 = vperm.xlu0 %6044, %v1229
      %v6046 = vpop.permute.xlu0 %6045
      %6048 = vset.pattern.permute.xlu0 59
      %6049 = vperm.xlu0 %6048, %v1230
      %v6050 = vpop.permute.xlu0 %6049
      %6052 = vset.pattern.permute.xlu0 59
      %6053 = vperm.xlu0 %6052, %v1231
      %v6054 = vpop.permute.xlu0 %6053
      %6056 = vset.pattern.permute.xlu0 59
      %6057 = vperm.xlu0 %6056, %v1232
      %v6058 = vpop.permute.xlu0 %6057
      %vm6060 = vcmp.eq.f32.partialorder %v2215, %v6022
      %vm6061 = vcmp.eq.f32.partialorder %v2215, %v6026
      %vm6062 = vcmp.eq.f32.partialorder %v2215, %v6030
      %vm6063 = vcmp.eq.f32.partialorder %v2215, %v6034
      %vm6064 = vcmp.eq.f32.partialorder %v2215, %v6038
      %vm6065 = vcmp.eq.f32.partialorder %v2215, %v6042
      %vm6066 = vcmp.eq.f32.partialorder %v2215, %v6046
      %vm6067 = vcmp.eq.f32.partialorder %v2215, %v6050
      %vm6068 = vcmp.eq.f32.partialorder %v2215, %v6054
      %vm6069 = vcmp.eq.f32.partialorder %v2215, %v6058
      %6070 = vset.pattern.permute.xlu0 75
      %6071 = vperm.xlu0 %6070, %v1333
      %v6072 = vpop.permute.xlu0 %6071
      %6074 = vset.pattern.permute.xlu0 75
      %6075 = vperm.xlu0 %6074, %v1334
      %v6076 = vpop.permute.xlu0 %6075
      %6078 = vset.pattern.permute.xlu0 75
      %6079 = vperm.xlu0 %6078, %v1335
      %v6080 = vpop.permute.xlu0 %6079
      %6082 = vset.pattern.permute.xlu0 75
      %6083 = vperm.xlu0 %6082, %v1336
      %v6084 = vpop.permute.xlu0 %6083
      %6086 = vset.pattern.permute.xlu0 75
      %6087 = vperm.xlu0 %6086, %v1337
      %v6088 = vpop.permute.xlu0 %6087
      %6090 = vset.pattern.permute.xlu0 75
      %6091 = vperm.xlu0 %6090, %v1338
      %v6092 = vpop.permute.xlu0 %6091
      %6094 = vset.pattern.permute.xlu0 75
      %6095 = vperm.xlu0 %6094, %v1339
      %v6096 = vpop.permute.xlu0 %6095
      %6098 = vset.pattern.permute.xlu0 75
      %6099 = vperm.xlu0 %6098, %v1340
      %v6100 = vpop.permute.xlu0 %6099
      %6102 = vset.pattern.permute.xlu0 75
      %6103 = vperm.xlu0 %6102, %v1341
      %v6104 = vpop.permute.xlu0 %6103
      %6106 = vset.pattern.permute.xlu0 75
      %6107 = vperm.xlu0 %6106, %v1342
      %v6108 = vpop.permute.xlu0 %6107
      %v6110 = vsel %vm6060, %v6072, 0.0
      %v6111 = vsel %vm6061, %v6076, 0.0
      %v6112 = vsel %vm6062, %v6080, 0.0
      %v6113 = vsel %vm6063, %v6084, 0.0
      %v6114 = vsel %vm6064, %v6088, 0.0
      %v6115 = vsel %vm6065, %v6092, 0.0
      %v6116 = vsel %vm6066, %v6096, 0.0
      %v6117 = vsel %vm6067, %v6100, 0.0
      %v6118 = vsel %vm6068, %v6104, 0.0
      %v6119 = vsel %vm6069, %v6108, 0.0
      %6120 = vset.pattern.permute.xlu0 75
      %6121 = vperm.xlu0 %6120, %v1283
      %v6122 = vpop.permute.xlu0 %6121
      %6124 = vset.pattern.permute.xlu0 75
      %6125 = vperm.xlu0 %6124, %v1284
      %v6126 = vpop.permute.xlu0 %6125
      %6128 = vset.pattern.permute.xlu0 75
      %6129 = vperm.xlu0 %6128, %v1285
      %v6130 = vpop.permute.xlu0 %6129
      %6132 = vset.pattern.permute.xlu0 75
      %6133 = vperm.xlu0 %6132, %v1286
      %v6134 = vpop.permute.xlu0 %6133
      %6136 = vset.pattern.permute.xlu0 75
      %6137 = vperm.xlu0 %6136, %v1287
      %v6138 = vpop.permute.xlu0 %6137
      %6140 = vset.pattern.permute.xlu0 75
      %6141 = vperm.xlu0 %6140, %v1288
      %v6142 = vpop.permute.xlu0 %6141
      %6144 = vset.pattern.permute.xlu0 75
      %6145 = vperm.xlu0 %6144, %v1289
      %v6146 = vpop.permute.xlu0 %6145
      %6148 = vset.pattern.permute.xlu0 75
      %6149 = vperm.xlu0 %6148, %v1290
      %v6150 = vpop.permute.xlu0 %6149
      %6152 = vset.pattern.permute.xlu0 75
      %6153 = vperm.xlu0 %6152, %v1291
      %v6154 = vpop.permute.xlu0 %6153
      %6156 = vset.pattern.permute.xlu0 75
      %6157 = vperm.xlu0 %6156, %v1292
      %v6158 = vpop.permute.xlu0 %6157
      %v6160 = vsel %vm6010, %v6122, %v6110
      %v6161 = vsel %vm6011, %v6126, %v6111
      %v6162 = vsel %vm6012, %v6130, %v6112
      %v6163 = vsel %vm6013, %v6134, %v6113
      %v6164 = vsel %vm6014, %v6138, %v6114
      %v6165 = vsel %vm6015, %v6142, %v6115
      %v6166 = vsel %vm6016, %v6146, %v6116
      %v6167 = vsel %vm6017, %v6150, %v6117
      %v6168 = vsel %vm6018, %v6154, %v6118
      %v6169 = vsel %vm6019, %v6158, %v6119
      %6170 = vset.pattern.permute.xlu0 43
      %6171 = vperm.xlu0 %6170, %v1203
      %v6172 = vpop.permute.xlu0 %6171
      %6174 = vset.pattern.permute.xlu0 43
      %6175 = vperm.xlu0 %6174, %v1204
      %v6176 = vpop.permute.xlu0 %6175
      %6178 = vset.pattern.permute.xlu0 43
      %6179 = vperm.xlu0 %6178, %v1205
      %v6180 = vpop.permute.xlu0 %6179
      %6182 = vset.pattern.permute.xlu0 43
      %6183 = vperm.xlu0 %6182, %v1206
      %v6184 = vpop.permute.xlu0 %6183
      %6186 = vset.pattern.permute.xlu0 43
      %6187 = vperm.xlu0 %6186, %v1207
      %v6188 = vpop.permute.xlu0 %6187
      %6190 = vset.pattern.permute.xlu0 43
      %6191 = vperm.xlu0 %6190, %v1208
      %v6192 = vpop.permute.xlu0 %6191
      %6194 = vset.pattern.permute.xlu0 43
      %6195 = vperm.xlu0 %6194, %v1209
      %v6196 = vpop.permute.xlu0 %6195
      %6198 = vset.pattern.permute.xlu0 43
      %6199 = vperm.xlu0 %6198, %v1210
      %v6200 = vpop.permute.xlu0 %6199
      %6202 = vset.pattern.permute.xlu0 43
      %6203 = vperm.xlu0 %6202, %v1211
      %v6204 = vpop.permute.xlu0 %6203
      %6206 = vset.pattern.permute.xlu0 43
      %6207 = vperm.xlu0 %6206, %v1212
      %v6208 = vpop.permute.xlu0 %6207
      %vm6210 = vcmp.eq.f32.partialorder %v2419, %v6172
      %vm6211 = vcmp.eq.f32.partialorder %v2419, %v6176
      %vm6212 = vcmp.eq.f32.partialorder %v2419, %v6180
      %vm6213 = vcmp.eq.f32.partialorder %v2419, %v6184
      %vm6214 = vcmp.eq.f32.partialorder %v2419, %v6188
      %vm6215 = vcmp.eq.f32.partialorder %v2419, %v6192
      %vm6216 = vcmp.eq.f32.partialorder %v2419, %v6196
      %vm6217 = vcmp.eq.f32.partialorder %v2419, %v6200
      %vm6218 = vcmp.eq.f32.partialorder %v2419, %v6204
      %vm6219 = vcmp.eq.f32.partialorder %v2419, %v6208
      %6220 = vset.pattern.permute.xlu0 43
      %6221 = vperm.xlu0 %6220, %v1223
      %v6222 = vpop.permute.xlu0 %6221
      %6224 = vset.pattern.permute.xlu0 43
      %6225 = vperm.xlu0 %6224, %v1224
      %v6226 = vpop.permute.xlu0 %6225
      %6228 = vset.pattern.permute.xlu0 43
      %6229 = vperm.xlu0 %6228, %v1225
      %v6230 = vpop.permute.xlu0 %6229
      %6232 = vset.pattern.permute.xlu0 43
      %6233 = vperm.xlu0 %6232, %v1226
      %v6234 = vpop.permute.xlu0 %6233
      %6236 = vset.pattern.permute.xlu0 43
      %6237 = vperm.xlu0 %6236, %v1227
      %v6238 = vpop.permute.xlu0 %6237
      %6240 = vset.pattern.permute.xlu0 43
      %6241 = vperm.xlu0 %6240, %v1228
      %v6242 = vpop.permute.xlu0 %6241
      %6244 = vset.pattern.permute.xlu0 43
      %6245 = vperm.xlu0 %6244, %v1229
      %v6246 = vpop.permute.xlu0 %6245
      %6248 = vset.pattern.permute.xlu0 43
      %6249 = vperm.xlu0 %6248, %v1230
      %v6250 = vpop.permute.xlu0 %6249
      %6252 = vset.pattern.permute.xlu0 43
      %6253 = vperm.xlu0 %6252, %v1231
      %v6254 = vpop.permute.xlu0 %6253
      %6256 = vset.pattern.permute.xlu0 43
      %6257 = vperm.xlu0 %6256, %v1232
      %v6258 = vpop.permute.xlu0 %6257
      %vm6260 = vcmp.eq.f32.partialorder %v2419, %v6222
      %vm6261 = vcmp.eq.f32.partialorder %v2419, %v6226
      %vm6262 = vcmp.eq.f32.partialorder %v2419, %v6230
      %vm6263 = vcmp.eq.f32.partialorder %v2419, %v6234
      %vm6264 = vcmp.eq.f32.partialorder %v2419, %v6238
      %vm6265 = vcmp.eq.f32.partialorder %v2419, %v6242
      %vm6266 = vcmp.eq.f32.partialorder %v2419, %v6246
      %vm6267 = vcmp.eq.f32.partialorder %v2419, %v6250
      %vm6268 = vcmp.eq.f32.partialorder %v2419, %v6254
      %vm6269 = vcmp.eq.f32.partialorder %v2419, %v6258
      %6270 = vset.pattern.permute.xlu0 43
      %6271 = vperm.xlu0 %6270, %v1213
      %v6272 = vpop.permute.xlu0 %6271
      %6274 = vset.pattern.permute.xlu0 43
      %6275 = vperm.xlu0 %6274, %v1214
      %v6276 = vpop.permute.xlu0 %6275
      %6278 = vset.pattern.permute.xlu0 43
      %6279 = vperm.xlu0 %6278, %v1215
      %v6280 = vpop.permute.xlu0 %6279
      %6282 = vset.pattern.permute.xlu0 43
      %6283 = vperm.xlu0 %6282, %v1216
      %v6284 = vpop.permute.xlu0 %6283
      %6286 = vset.pattern.permute.xlu0 43
      %6287 = vperm.xlu0 %6286, %v1217
      %v6288 = vpop.permute.xlu0 %6287
      %6290 = vset.pattern.permute.xlu0 43
      %6291 = vperm.xlu0 %6290, %v1218
      %v6292 = vpop.permute.xlu0 %6291
      %6294 = vset.pattern.permute.xlu0 43
      %6295 = vperm.xlu0 %6294, %v1219
      %v6296 = vpop.permute.xlu0 %6295
      %6298 = vset.pattern.permute.xlu0 43
      %6299 = vperm.xlu0 %6298, %v1220
      %v6300 = vpop.permute.xlu0 %6299
      %6302 = vset.pattern.permute.xlu0 43
      %6303 = vperm.xlu0 %6302, %v1221
      %v6304 = vpop.permute.xlu0 %6303
      %6306 = vset.pattern.permute.xlu0 43
      %6307 = vperm.xlu0 %6306, %v1222
      %v6308 = vpop.permute.xlu0 %6307
      %v6310 = vsel %vm6260, %v6272, 0.0
      %v6311 = vsel %vm6261, %v6276, 0.0
      %v6312 = vsel %vm6262, %v6280, 0.0
      %v6313 = vsel %vm6263, %v6284, 0.0
      %v6314 = vsel %vm6264, %v6288, 0.0
      %v6315 = vsel %vm6265, %v6292, 0.0
      %v6316 = vsel %vm6266, %v6296, 0.0
      %v6317 = vsel %vm6267, %v6300, 0.0
      %v6318 = vsel %vm6268, %v6304, 0.0
      %v6319 = vsel %vm6269, %v6308, 0.0
      %6320 = vset.pattern.permute.xlu0 43
      %6321 = vperm.xlu0 %6320, %v1233
      %v6322 = vpop.permute.xlu0 %6321
      %6324 = vset.pattern.permute.xlu0 43
      %6325 = vperm.xlu0 %6324, %v1234
      %v6326 = vpop.permute.xlu0 %6325
      %6328 = vset.pattern.permute.xlu0 43
      %6329 = vperm.xlu0 %6328, %v1235
      %v6330 = vpop.permute.xlu0 %6329
      %6332 = vset.pattern.permute.xlu0 43
      %6333 = vperm.xlu0 %6332, %v1236
      %v6334 = vpop.permute.xlu0 %6333
      %6336 = vset.pattern.permute.xlu0 43
      %6337 = vperm.xlu0 %6336, %v1237
      %v6338 = vpop.permute.xlu0 %6337
      %6340 = vset.pattern.permute.xlu0 43
      %6341 = vperm.xlu0 %6340, %v1238
      %v6342 = vpop.permute.xlu0 %6341
      %6344 = vset.pattern.permute.xlu0 43
      %6345 = vperm.xlu0 %6344, %v1239
      %v6346 = vpop.permute.xlu0 %6345
      %6348 = vset.pattern.permute.xlu0 43
      %6349 = vperm.xlu0 %6348, %v1240
      %v6350 = vpop.permute.xlu0 %6349
      %6352 = vset.pattern.permute.xlu0 43
      %6353 = vperm.xlu0 %6352, %v1241
      %v6354 = vpop.permute.xlu0 %6353
      %6356 = vset.pattern.permute.xlu0 43
      %6357 = vperm.xlu0 %6356, %v1242
      %v6358 = vpop.permute.xlu0 %6357
      %v6360 = vsel %vm6210, %v6322, %v6310
      %v6361 = vsel %vm6211, %v6326, %v6311
      %v6362 = vsel %vm6212, %v6330, %v6312
      %v6363 = vsel %vm6213, %v6334, %v6313
      %v6364 = vsel %vm6214, %v6338, %v6314
      %v6365 = vsel %vm6215, %v6342, %v6315
      %v6366 = vsel %vm6216, %v6346, %v6316
      %v6367 = vsel %vm6217, %v6350, %v6317
      %v6368 = vsel %vm6218, %v6354, %v6318
      %v6369 = vsel %vm6219, %v6358, %v6319
      %v6370 = vmul.f32 %v6160, %v6360
      %v6371 = vmul.f32 %v6161, %v6361
      %v6372 = vmul.f32 %v6162, %v6362
      %v6373 = vmul.f32 %v6163, %v6363
      %v6374 = vmul.f32 %v6164, %v6364
      %v6375 = vmul.f32 %v6165, %v6365
      %v6376 = vmul.f32 %v6166, %v6366
      %v6377 = vmul.f32 %v6167, %v6367
      %v6378 = vmul.f32 %v6168, %v6368
      %v6379 = vmul.f32 %v6169, %v6369
      %v6380 = vadd.f32 %v5140, %v5550
      %v6381 = vadd.f32 %v5141, %v5551
      %v6382 = vadd.f32 %v5142, %v5552
      %v6383 = vadd.f32 %v5143, %v5553
      %v6384 = vadd.f32 %v5144, %v5554
      %v6385 = vadd.f32 %v5145, %v5555
      %v6386 = vadd.f32 %v5146, %v5556
      %v6387 = vadd.f32 %v5147, %v5557
      %v6388 = vadd.f32 %v5148, %v5558
      %v6389 = vadd.f32 %v5149, %v5559
      %v6390 = vadd.f32 %v5960, %v6370
      %v6391 = vadd.f32 %v5961, %v6371
      %v6392 = vadd.f32 %v5962, %v6372
      %v6393 = vadd.f32 %v5963, %v6373
      %v6394 = vadd.f32 %v5964, %v6374
      %v6395 = vadd.f32 %v5965, %v6375
      %v6396 = vadd.f32 %v5966, %v6376
      %v6397 = vadd.f32 %v5967, %v6377
      %v6398 = vadd.f32 %v5968, %v6378
      %v6399 = vadd.f32 %v5969, %v6379
      %v6400 = vadd.f32 %v6380, %v6390
      %v6401 = vadd.f32 %v6381, %v6391
      %v6402 = vadd.f32 %v6382, %v6392
      %v6403 = vadd.f32 %v6383, %v6393
      %v6404 = vadd.f32 %v6384, %v6394
      %v6405 = vadd.f32 %v6385, %v6395
      %v6406 = vadd.f32 %v6386, %v6396
      %v6407 = vadd.f32 %v6387, %v6397
      %v6408 = vadd.f32 %v6388, %v6398
      %v6409 = vadd.f32 %v6389, %v6399
      %6410 = vset.pattern.permute.xlu0 60
      %6411 = vperm.xlu0 %6410, %v1203
      %v6412 = vpop.permute.xlu0 %6411
      %6414 = vset.pattern.permute.xlu0 60
      %6415 = vperm.xlu0 %6414, %v1204
      %v6416 = vpop.permute.xlu0 %6415
      %6418 = vset.pattern.permute.xlu0 60
      %6419 = vperm.xlu0 %6418, %v1205
      %v6420 = vpop.permute.xlu0 %6419
      %6422 = vset.pattern.permute.xlu0 60
      %6423 = vperm.xlu0 %6422, %v1206
      %v6424 = vpop.permute.xlu0 %6423
      %6426 = vset.pattern.permute.xlu0 60
      %6427 = vperm.xlu0 %6426, %v1207
      %v6428 = vpop.permute.xlu0 %6427
      %6430 = vset.pattern.permute.xlu0 60
      %6431 = vperm.xlu0 %6430, %v1208
      %v6432 = vpop.permute.xlu0 %6431
      %6434 = vset.pattern.permute.xlu0 60
      %6435 = vperm.xlu0 %6434, %v1209
      %v6436 = vpop.permute.xlu0 %6435
      %6438 = vset.pattern.permute.xlu0 60
      %6439 = vperm.xlu0 %6438, %v1210
      %v6440 = vpop.permute.xlu0 %6439
      %6442 = vset.pattern.permute.xlu0 60
      %6443 = vperm.xlu0 %6442, %v1211
      %v6444 = vpop.permute.xlu0 %6443
      %6446 = vset.pattern.permute.xlu0 60
      %6447 = vperm.xlu0 %6446, %v1212
      %v6448 = vpop.permute.xlu0 %6447
      %vm6450 = vcmp.eq.f32.partialorder %v1347, %v6412
      %vm6451 = vcmp.eq.f32.partialorder %v1347, %v6416
      %vm6452 = vcmp.eq.f32.partialorder %v1347, %v6420
      %vm6453 = vcmp.eq.f32.partialorder %v1347, %v6424
      %vm6454 = vcmp.eq.f32.partialorder %v1347, %v6428
      %vm6455 = vcmp.eq.f32.partialorder %v1347, %v6432
      %vm6456 = vcmp.eq.f32.partialorder %v1347, %v6436
      %vm6457 = vcmp.eq.f32.partialorder %v1347, %v6440
      %vm6458 = vcmp.eq.f32.partialorder %v1347, %v6444
      %vm6459 = vcmp.eq.f32.partialorder %v1347, %v6448
      %6460 = vset.pattern.permute.xlu0 60
      %6461 = vperm.xlu0 %6460, %v1223
      %v6462 = vpop.permute.xlu0 %6461
      %6464 = vset.pattern.permute.xlu0 60
      %6465 = vperm.xlu0 %6464, %v1224
      %v6466 = vpop.permute.xlu0 %6465
      %6468 = vset.pattern.permute.xlu0 60
      %6469 = vperm.xlu0 %6468, %v1225
      %v6470 = vpop.permute.xlu0 %6469
      %6472 = vset.pattern.permute.xlu0 60
      %6473 = vperm.xlu0 %6472, %v1226
      %v6474 = vpop.permute.xlu0 %6473
      %6476 = vset.pattern.permute.xlu0 60
      %6477 = vperm.xlu0 %6476, %v1227
      %v6478 = vpop.permute.xlu0 %6477
      %6480 = vset.pattern.permute.xlu0 60
      %6481 = vperm.xlu0 %6480, %v1228
      %v6482 = vpop.permute.xlu0 %6481
      %6484 = vset.pattern.permute.xlu0 60
      %6485 = vperm.xlu0 %6484, %v1229
      %v6486 = vpop.permute.xlu0 %6485
      %6488 = vset.pattern.permute.xlu0 60
      %6489 = vperm.xlu0 %6488, %v1230
      %v6490 = vpop.permute.xlu0 %6489
      %6492 = vset.pattern.permute.xlu0 60
      %6493 = vperm.xlu0 %6492, %v1231
      %v6494 = vpop.permute.xlu0 %6493
      %6496 = vset.pattern.permute.xlu0 60
      %6497 = vperm.xlu0 %6496, %v1232
      %v6498 = vpop.permute.xlu0 %6497
      %vm6500 = vcmp.eq.f32.partialorder %v1347, %v6462
      %vm6501 = vcmp.eq.f32.partialorder %v1347, %v6466
      %vm6502 = vcmp.eq.f32.partialorder %v1347, %v6470
      %vm6503 = vcmp.eq.f32.partialorder %v1347, %v6474
      %vm6504 = vcmp.eq.f32.partialorder %v1347, %v6478
      %vm6505 = vcmp.eq.f32.partialorder %v1347, %v6482
      %vm6506 = vcmp.eq.f32.partialorder %v1347, %v6486
      %vm6507 = vcmp.eq.f32.partialorder %v1347, %v6490
      %vm6508 = vcmp.eq.f32.partialorder %v1347, %v6494
      %vm6509 = vcmp.eq.f32.partialorder %v1347, %v6498
      %6510 = vset.pattern.permute.xlu0 76
      %6511 = vperm.xlu0 %6510, %v1333
      %v6512 = vpop.permute.xlu0 %6511
      %6514 = vset.pattern.permute.xlu0 76
      %6515 = vperm.xlu0 %6514, %v1334
      %v6516 = vpop.permute.xlu0 %6515
      %6518 = vset.pattern.permute.xlu0 76
      %6519 = vperm.xlu0 %6518, %v1335
      %v6520 = vpop.permute.xlu0 %6519
      %6522 = vset.pattern.permute.xlu0 76
      %6523 = vperm.xlu0 %6522, %v1336
      %v6524 = vpop.permute.xlu0 %6523
      %6526 = vset.pattern.permute.xlu0 76
      %6527 = vperm.xlu0 %6526, %v1337
      %v6528 = vpop.permute.xlu0 %6527
      %6530 = vset.pattern.permute.xlu0 76
      %6531 = vperm.xlu0 %6530, %v1338
      %v6532 = vpop.permute.xlu0 %6531
      %6534 = vset.pattern.permute.xlu0 76
      %6535 = vperm.xlu0 %6534, %v1339
      %v6536 = vpop.permute.xlu0 %6535
      %6538 = vset.pattern.permute.xlu0 76
      %6539 = vperm.xlu0 %6538, %v1340
      %v6540 = vpop.permute.xlu0 %6539
      %6542 = vset.pattern.permute.xlu0 76
      %6543 = vperm.xlu0 %6542, %v1341
      %v6544 = vpop.permute.xlu0 %6543
      %6546 = vset.pattern.permute.xlu0 76
      %6547 = vperm.xlu0 %6546, %v1342
      %v6548 = vpop.permute.xlu0 %6547
      %v6550 = vsel %vm6500, %v6512, 0.0
      %v6551 = vsel %vm6501, %v6516, 0.0
      %v6552 = vsel %vm6502, %v6520, 0.0
      %v6553 = vsel %vm6503, %v6524, 0.0
      %v6554 = vsel %vm6504, %v6528, 0.0
      %v6555 = vsel %vm6505, %v6532, 0.0
      %v6556 = vsel %vm6506, %v6536, 0.0
      %v6557 = vsel %vm6507, %v6540, 0.0
      %v6558 = vsel %vm6508, %v6544, 0.0
      %v6559 = vsel %vm6509, %v6548, 0.0
      %6560 = vset.pattern.permute.xlu0 76
      %6561 = vperm.xlu0 %6560, %v1283
      %v6562 = vpop.permute.xlu0 %6561
      %6564 = vset.pattern.permute.xlu0 76
      %6565 = vperm.xlu0 %6564, %v1284
      %v6566 = vpop.permute.xlu0 %6565
      %6568 = vset.pattern.permute.xlu0 76
      %6569 = vperm.xlu0 %6568, %v1285
      %v6570 = vpop.permute.xlu0 %6569
      %6572 = vset.pattern.permute.xlu0 76
      %6573 = vperm.xlu0 %6572, %v1286
      %v6574 = vpop.permute.xlu0 %6573
      %6576 = vset.pattern.permute.xlu0 76
      %6577 = vperm.xlu0 %6576, %v1287
      %v6578 = vpop.permute.xlu0 %6577
      %6580 = vset.pattern.permute.xlu0 76
      %6581 = vperm.xlu0 %6580, %v1288
      %v6582 = vpop.permute.xlu0 %6581
      %6584 = vset.pattern.permute.xlu0 76
      %6585 = vperm.xlu0 %6584, %v1289
      %v6586 = vpop.permute.xlu0 %6585
      %6588 = vset.pattern.permute.xlu0 76
      %6589 = vperm.xlu0 %6588, %v1290
      %v6590 = vpop.permute.xlu0 %6589
      %6592 = vset.pattern.permute.xlu0 76
      %6593 = vperm.xlu0 %6592, %v1291
      %v6594 = vpop.permute.xlu0 %6593
      %6596 = vset.pattern.permute.xlu0 76
      %6597 = vperm.xlu0 %6596, %v1292
      %v6598 = vpop.permute.xlu0 %6597
      %v6600 = vsel %vm6450, %v6562, %v6550
      %v6601 = vsel %vm6451, %v6566, %v6551
      %v6602 = vsel %vm6452, %v6570, %v6552
      %v6603 = vsel %vm6453, %v6574, %v6553
      %v6604 = vsel %vm6454, %v6578, %v6554
      %v6605 = vsel %vm6455, %v6582, %v6555
      %v6606 = vsel %vm6456, %v6586, %v6556
      %v6607 = vsel %vm6457, %v6590, %v6557
      %v6608 = vsel %vm6458, %v6594, %v6558
      %v6609 = vsel %vm6459, %v6598, %v6559
      %6610 = vset.pattern.permute.xlu0 44
      %6611 = vperm.xlu0 %6610, %v1203
      %v6612 = vpop.permute.xlu0 %6611
      %6614 = vset.pattern.permute.xlu0 44
      %6615 = vperm.xlu0 %6614, %v1204
      %v6616 = vpop.permute.xlu0 %6615
      %6618 = vset.pattern.permute.xlu0 44
      %6619 = vperm.xlu0 %6618, %v1205
      %v6620 = vpop.permute.xlu0 %6619
      %6622 = vset.pattern.permute.xlu0 44
      %6623 = vperm.xlu0 %6622, %v1206
      %v6624 = vpop.permute.xlu0 %6623
      %6626 = vset.pattern.permute.xlu0 44
      %6627 = vperm.xlu0 %6626, %v1207
      %v6628 = vpop.permute.xlu0 %6627
      %6630 = vset.pattern.permute.xlu0 44
      %6631 = vperm.xlu0 %6630, %v1208
      %v6632 = vpop.permute.xlu0 %6631
      %6634 = vset.pattern.permute.xlu0 44
      %6635 = vperm.xlu0 %6634, %v1209
      %v6636 = vpop.permute.xlu0 %6635
      %6638 = vset.pattern.permute.xlu0 44
      %6639 = vperm.xlu0 %6638, %v1210
      %v6640 = vpop.permute.xlu0 %6639
      %6642 = vset.pattern.permute.xlu0 44
      %6643 = vperm.xlu0 %6642, %v1211
      %v6644 = vpop.permute.xlu0 %6643
      %6646 = vset.pattern.permute.xlu0 44
      %6647 = vperm.xlu0 %6646, %v1212
      %v6648 = vpop.permute.xlu0 %6647
      %vm6650 = vcmp.eq.f32.partialorder %v1591, %v6612
      %vm6651 = vcmp.eq.f32.partialorder %v1591, %v6616
      %vm6652 = vcmp.eq.f32.partialorder %v1591, %v6620
      %vm6653 = vcmp.eq.f32.partialorder %v1591, %v6624
      %vm6654 = vcmp.eq.f32.partialorder %v1591, %v6628
      %vm6655 = vcmp.eq.f32.partialorder %v1591, %v6632
      %vm6656 = vcmp.eq.f32.partialorder %v1591, %v6636
      %vm6657 = vcmp.eq.f32.partialorder %v1591, %v6640
      %vm6658 = vcmp.eq.f32.partialorder %v1591, %v6644
      %vm6659 = vcmp.eq.f32.partialorder %v1591, %v6648
      %6660 = vset.pattern.permute.xlu0 44
      %6661 = vperm.xlu0 %6660, %v1223
      %v6662 = vpop.permute.xlu0 %6661
      %6664 = vset.pattern.permute.xlu0 44
      %6665 = vperm.xlu0 %6664, %v1224
      %v6666 = vpop.permute.xlu0 %6665
      %6668 = vset.pattern.permute.xlu0 44
      %6669 = vperm.xlu0 %6668, %v1225
      %v6670 = vpop.permute.xlu0 %6669
      %6672 = vset.pattern.permute.xlu0 44
      %6673 = vperm.xlu0 %6672, %v1226
      %v6674 = vpop.permute.xlu0 %6673
      %6676 = vset.pattern.permute.xlu0 44
      %6677 = vperm.xlu0 %6676, %v1227
      %v6678 = vpop.permute.xlu0 %6677
      %6680 = vset.pattern.permute.xlu0 44
      %6681 = vperm.xlu0 %6680, %v1228
      %v6682 = vpop.permute.xlu0 %6681
      %6684 = vset.pattern.permute.xlu0 44
      %6685 = vperm.xlu0 %6684, %v1229
      %v6686 = vpop.permute.xlu0 %6685
      %6688 = vset.pattern.permute.xlu0 44
      %6689 = vperm.xlu0 %6688, %v1230
      %v6690 = vpop.permute.xlu0 %6689
      %6692 = vset.pattern.permute.xlu0 44
      %6693 = vperm.xlu0 %6692, %v1231
      %v6694 = vpop.permute.xlu0 %6693
      %6696 = vset.pattern.permute.xlu0 44
      %6697 = vperm.xlu0 %6696, %v1232
      %v6698 = vpop.permute.xlu0 %6697
      %vm6700 = vcmp.eq.f32.partialorder %v1591, %v6662
      %vm6701 = vcmp.eq.f32.partialorder %v1591, %v6666
      %vm6702 = vcmp.eq.f32.partialorder %v1591, %v6670
      %vm6703 = vcmp.eq.f32.partialorder %v1591, %v6674
      %vm6704 = vcmp.eq.f32.partialorder %v1591, %v6678
      %vm6705 = vcmp.eq.f32.partialorder %v1591, %v6682
      %vm6706 = vcmp.eq.f32.partialorder %v1591, %v6686
      %vm6707 = vcmp.eq.f32.partialorder %v1591, %v6690
      %vm6708 = vcmp.eq.f32.partialorder %v1591, %v6694
      %vm6709 = vcmp.eq.f32.partialorder %v1591, %v6698
      %6710 = vset.pattern.permute.xlu0 44
      %6711 = vperm.xlu0 %6710, %v1213
      %v6712 = vpop.permute.xlu0 %6711
      %6714 = vset.pattern.permute.xlu0 44
      %6715 = vperm.xlu0 %6714, %v1214
      %v6716 = vpop.permute.xlu0 %6715
      %6718 = vset.pattern.permute.xlu0 44
      %6719 = vperm.xlu0 %6718, %v1215
      %v6720 = vpop.permute.xlu0 %6719
      %6722 = vset.pattern.permute.xlu0 44
      %6723 = vperm.xlu0 %6722, %v1216
      %v6724 = vpop.permute.xlu0 %6723
      %6726 = vset.pattern.permute.xlu0 44
      %6727 = vperm.xlu0 %6726, %v1217
      %v6728 = vpop.permute.xlu0 %6727
      %6730 = vset.pattern.permute.xlu0 44
      %6731 = vperm.xlu0 %6730, %v1218
      %v6732 = vpop.permute.xlu0 %6731
      %6734 = vset.pattern.permute.xlu0 44
      %6735 = vperm.xlu0 %6734, %v1219
      %v6736 = vpop.permute.xlu0 %6735
      %6738 = vset.pattern.permute.xlu0 44
      %6739 = vperm.xlu0 %6738, %v1220
      %v6740 = vpop.permute.xlu0 %6739
      %6742 = vset.pattern.permute.xlu0 44
      %6743 = vperm.xlu0 %6742, %v1221
      %v6744 = vpop.permute.xlu0 %6743
      %6746 = vset.pattern.permute.xlu0 44
      %6747 = vperm.xlu0 %6746, %v1222
      %v6748 = vpop.permute.xlu0 %6747
      %v6750 = vsel %vm6700, %v6712, 0.0
      %v6751 = vsel %vm6701, %v6716, 0.0
      %v6752 = vsel %vm6702, %v6720, 0.0
      %v6753 = vsel %vm6703, %v6724, 0.0
      %v6754 = vsel %vm6704, %v6728, 0.0
      %v6755 = vsel %vm6705, %v6732, 0.0
      %v6756 = vsel %vm6706, %v6736, 0.0
      %v6757 = vsel %vm6707, %v6740, 0.0
      %v6758 = vsel %vm6708, %v6744, 0.0
      %v6759 = vsel %vm6709, %v6748, 0.0
      %6760 = vset.pattern.permute.xlu0 44
      %6761 = vperm.xlu0 %6760, %v1233
      %v6762 = vpop.permute.xlu0 %6761
      %6764 = vset.pattern.permute.xlu0 44
      %6765 = vperm.xlu0 %6764, %v1234
      %v6766 = vpop.permute.xlu0 %6765
      %6768 = vset.pattern.permute.xlu0 44
      %6769 = vperm.xlu0 %6768, %v1235
      %v6770 = vpop.permute.xlu0 %6769
      %6772 = vset.pattern.permute.xlu0 44
      %6773 = vperm.xlu0 %6772, %v1236
      %v6774 = vpop.permute.xlu0 %6773
      %6776 = vset.pattern.permute.xlu0 44
      %6777 = vperm.xlu0 %6776, %v1237
      %v6778 = vpop.permute.xlu0 %6777
      %6780 = vset.pattern.permute.xlu0 44
      %6781 = vperm.xlu0 %6780, %v1238
      %v6782 = vpop.permute.xlu0 %6781
      %6784 = vset.pattern.permute.xlu0 44
      %6785 = vperm.xlu0 %6784, %v1239
      %v6786 = vpop.permute.xlu0 %6785
      %6788 = vset.pattern.permute.xlu0 44
      %6789 = vperm.xlu0 %6788, %v1240
      %v6790 = vpop.permute.xlu0 %6789
      %6792 = vset.pattern.permute.xlu0 44
      %6793 = vperm.xlu0 %6792, %v1241
      %v6794 = vpop.permute.xlu0 %6793
      %6796 = vset.pattern.permute.xlu0 44
      %6797 = vperm.xlu0 %6796, %v1242
      %v6798 = vpop.permute.xlu0 %6797
      %v6800 = vsel %vm6650, %v6762, %v6750
      %v6801 = vsel %vm6651, %v6766, %v6751
      %v6802 = vsel %vm6652, %v6770, %v6752
      %v6803 = vsel %vm6653, %v6774, %v6753
      %v6804 = vsel %vm6654, %v6778, %v6754
      %v6805 = vsel %vm6655, %v6782, %v6755
      %v6806 = vsel %vm6656, %v6786, %v6756
      %v6807 = vsel %vm6657, %v6790, %v6757
      %v6808 = vsel %vm6658, %v6794, %v6758
      %v6809 = vsel %vm6659, %v6798, %v6759
      %v6810 = vmul.f32 %v6600, %v6800
      %v6811 = vmul.f32 %v6601, %v6801
      %v6812 = vmul.f32 %v6602, %v6802
      %v6813 = vmul.f32 %v6603, %v6803
      %v6814 = vmul.f32 %v6604, %v6804
      %v6815 = vmul.f32 %v6605, %v6805
      %v6816 = vmul.f32 %v6606, %v6806
      %v6817 = vmul.f32 %v6607, %v6807
      %v6818 = vmul.f32 %v6608, %v6808
      %v6819 = vmul.f32 %v6609, %v6809
      %6820 = vset.pattern.permute.xlu0 61
      %6821 = vperm.xlu0 %6820, %v1203
      %v6822 = vpop.permute.xlu0 %6821
      %6824 = vset.pattern.permute.xlu0 61
      %6825 = vperm.xlu0 %6824, %v1204
      %v6826 = vpop.permute.xlu0 %6825
      %6828 = vset.pattern.permute.xlu0 61
      %6829 = vperm.xlu0 %6828, %v1205
      %v6830 = vpop.permute.xlu0 %6829
      %6832 = vset.pattern.permute.xlu0 61
      %6833 = vperm.xlu0 %6832, %v1206
      %v6834 = vpop.permute.xlu0 %6833
      %6836 = vset.pattern.permute.xlu0 61
      %6837 = vperm.xlu0 %6836, %v1207
      %v6838 = vpop.permute.xlu0 %6837
      %6840 = vset.pattern.permute.xlu0 61
      %6841 = vperm.xlu0 %6840, %v1208
      %v6842 = vpop.permute.xlu0 %6841
      %6844 = vset.pattern.permute.xlu0 61
      %6845 = vperm.xlu0 %6844, %v1209
      %v6846 = vpop.permute.xlu0 %6845
      %6848 = vset.pattern.permute.xlu0 61
      %6849 = vperm.xlu0 %6848, %v1210
      %v6850 = vpop.permute.xlu0 %6849
      %6852 = vset.pattern.permute.xlu0 61
      %6853 = vperm.xlu0 %6852, %v1211
      %v6854 = vpop.permute.xlu0 %6853
      %6856 = vset.pattern.permute.xlu0 61
      %6857 = vperm.xlu0 %6856, %v1212
      %v6858 = vpop.permute.xlu0 %6857
      %vm6860 = vcmp.eq.f32.partialorder %v1347, %v6822
      %vm6861 = vcmp.eq.f32.partialorder %v1347, %v6826
      %vm6862 = vcmp.eq.f32.partialorder %v1347, %v6830
      %vm6863 = vcmp.eq.f32.partialorder %v1347, %v6834
      %vm6864 = vcmp.eq.f32.partialorder %v1347, %v6838
      %vm6865 = vcmp.eq.f32.partialorder %v1347, %v6842
      %vm6866 = vcmp.eq.f32.partialorder %v1347, %v6846
      %vm6867 = vcmp.eq.f32.partialorder %v1347, %v6850
      %vm6868 = vcmp.eq.f32.partialorder %v1347, %v6854
      %vm6869 = vcmp.eq.f32.partialorder %v1347, %v6858
      %6870 = vset.pattern.permute.xlu0 61
      %6871 = vperm.xlu0 %6870, %v1223
      %v6872 = vpop.permute.xlu0 %6871
      %6874 = vset.pattern.permute.xlu0 61
      %6875 = vperm.xlu0 %6874, %v1224
      %v6876 = vpop.permute.xlu0 %6875
      %6878 = vset.pattern.permute.xlu0 61
      %6879 = vperm.xlu0 %6878, %v1225
      %v6880 = vpop.permute.xlu0 %6879
      %6882 = vset.pattern.permute.xlu0 61
      %6883 = vperm.xlu0 %6882, %v1226
      %v6884 = vpop.permute.xlu0 %6883
      %6886 = vset.pattern.permute.xlu0 61
      %6887 = vperm.xlu0 %6886, %v1227
      %v6888 = vpop.permute.xlu0 %6887
      %6890 = vset.pattern.permute.xlu0 61
      %6891 = vperm.xlu0 %6890, %v1228
      %v6892 = vpop.permute.xlu0 %6891
      %6894 = vset.pattern.permute.xlu0 61
      %6895 = vperm.xlu0 %6894, %v1229
      %v6896 = vpop.permute.xlu0 %6895
      %6898 = vset.pattern.permute.xlu0 61
      %6899 = vperm.xlu0 %6898, %v1230
      %v6900 = vpop.permute.xlu0 %6899
      %6902 = vset.pattern.permute.xlu0 61
      %6903 = vperm.xlu0 %6902, %v1231
      %v6904 = vpop.permute.xlu0 %6903
      %6906 = vset.pattern.permute.xlu0 61
      %6907 = vperm.xlu0 %6906, %v1232
      %v6908 = vpop.permute.xlu0 %6907
      %vm6910 = vcmp.eq.f32.partialorder %v1347, %v6872
      %vm6911 = vcmp.eq.f32.partialorder %v1347, %v6876
      %vm6912 = vcmp.eq.f32.partialorder %v1347, %v6880
      %vm6913 = vcmp.eq.f32.partialorder %v1347, %v6884
      %vm6914 = vcmp.eq.f32.partialorder %v1347, %v6888
      %vm6915 = vcmp.eq.f32.partialorder %v1347, %v6892
      %vm6916 = vcmp.eq.f32.partialorder %v1347, %v6896
      %vm6917 = vcmp.eq.f32.partialorder %v1347, %v6900
      %vm6918 = vcmp.eq.f32.partialorder %v1347, %v6904
      %vm6919 = vcmp.eq.f32.partialorder %v1347, %v6908
      %6920 = vset.pattern.permute.xlu0 77
      %6921 = vperm.xlu0 %6920, %v1333
      %v6922 = vpop.permute.xlu0 %6921
      %6924 = vset.pattern.permute.xlu0 77
      %6925 = vperm.xlu0 %6924, %v1334
      %v6926 = vpop.permute.xlu0 %6925
      %6928 = vset.pattern.permute.xlu0 77
      %6929 = vperm.xlu0 %6928, %v1335
      %v6930 = vpop.permute.xlu0 %6929
      %6932 = vset.pattern.permute.xlu0 77
      %6933 = vperm.xlu0 %6932, %v1336
      %v6934 = vpop.permute.xlu0 %6933
      %6936 = vset.pattern.permute.xlu0 77
      %6937 = vperm.xlu0 %6936, %v1337
      %v6938 = vpop.permute.xlu0 %6937
      %6940 = vset.pattern.permute.xlu0 77
      %6941 = vperm.xlu0 %6940, %v1338
      %v6942 = vpop.permute.xlu0 %6941
      %6944 = vset.pattern.permute.xlu0 77
      %6945 = vperm.xlu0 %6944, %v1339
      %v6946 = vpop.permute.xlu0 %6945
      %6948 = vset.pattern.permute.xlu0 77
      %6949 = vperm.xlu0 %6948, %v1340
      %v6950 = vpop.permute.xlu0 %6949
      %6952 = vset.pattern.permute.xlu0 77
      %6953 = vperm.xlu0 %6952, %v1341
      %v6954 = vpop.permute.xlu0 %6953
      %6956 = vset.pattern.permute.xlu0 77
      %6957 = vperm.xlu0 %6956, %v1342
      %v6958 = vpop.permute.xlu0 %6957
      %v6960 = vsel %vm6910, %v6922, 0.0
      %v6961 = vsel %vm6911, %v6926, 0.0
      %v6962 = vsel %vm6912, %v6930, 0.0
      %v6963 = vsel %vm6913, %v6934, 0.0
      %v6964 = vsel %vm6914, %v6938, 0.0
      %v6965 = vsel %vm6915, %v6942, 0.0
      %v6966 = vsel %vm6916, %v6946, 0.0
      %v6967 = vsel %vm6917, %v6950, 0.0
      %v6968 = vsel %vm6918, %v6954, 0.0
      %v6969 = vsel %vm6919, %v6958, 0.0
      %6970 = vset.pattern.permute.xlu0 77
      %6971 = vperm.xlu0 %6970, %v1283
      %v6972 = vpop.permute.xlu0 %6971
      %6974 = vset.pattern.permute.xlu0 77
      %6975 = vperm.xlu0 %6974, %v1284
      %v6976 = vpop.permute.xlu0 %6975
      %6978 = vset.pattern.permute.xlu0 77
      %6979 = vperm.xlu0 %6978, %v1285
      %v6980 = vpop.permute.xlu0 %6979
      %6982 = vset.pattern.permute.xlu0 77
      %6983 = vperm.xlu0 %6982, %v1286
      %v6984 = vpop.permute.xlu0 %6983
      %6986 = vset.pattern.permute.xlu0 77
      %6987 = vperm.xlu0 %6986, %v1287
      %v6988 = vpop.permute.xlu0 %6987
      %6990 = vset.pattern.permute.xlu0 77
      %6991 = vperm.xlu0 %6990, %v1288
      %v6992 = vpop.permute.xlu0 %6991
      %6994 = vset.pattern.permute.xlu0 77
      %6995 = vperm.xlu0 %6994, %v1289
      %v6996 = vpop.permute.xlu0 %6995
      %6998 = vset.pattern.permute.xlu0 77
      %6999 = vperm.xlu0 %6998, %v1290
      %v7000 = vpop.permute.xlu0 %6999
      %7002 = vset.pattern.permute.xlu0 77
      %7003 = vperm.xlu0 %7002, %v1291
      %v7004 = vpop.permute.xlu0 %7003
      %7006 = vset.pattern.permute.xlu0 77
      %7007 = vperm.xlu0 %7006, %v1292
      %v7008 = vpop.permute.xlu0 %7007
      %v7010 = vsel %vm6860, %v6972, %v6960
      %v7011 = vsel %vm6861, %v6976, %v6961
      %v7012 = vsel %vm6862, %v6980, %v6962
      %v7013 = vsel %vm6863, %v6984, %v6963
      %v7014 = vsel %vm6864, %v6988, %v6964
      %v7015 = vsel %vm6865, %v6992, %v6965
      %v7016 = vsel %vm6866, %v6996, %v6966
      %v7017 = vsel %vm6867, %v7000, %v6967
      %v7018 = vsel %vm6868, %v7004, %v6968
      %v7019 = vsel %vm6869, %v7008, %v6969
      %7020 = vset.pattern.permute.xlu0 45
      %7021 = vperm.xlu0 %7020, %v1203
      %v7022 = vpop.permute.xlu0 %7021
      %7024 = vset.pattern.permute.xlu0 45
      %7025 = vperm.xlu0 %7024, %v1204
      %v7026 = vpop.permute.xlu0 %7025
      %7028 = vset.pattern.permute.xlu0 45
      %7029 = vperm.xlu0 %7028, %v1205
      %v7030 = vpop.permute.xlu0 %7029
      %7032 = vset.pattern.permute.xlu0 45
      %7033 = vperm.xlu0 %7032, %v1206
      %v7034 = vpop.permute.xlu0 %7033
      %7036 = vset.pattern.permute.xlu0 45
      %7037 = vperm.xlu0 %7036, %v1207
      %v7038 = vpop.permute.xlu0 %7037
      %7040 = vset.pattern.permute.xlu0 45
      %7041 = vperm.xlu0 %7040, %v1208
      %v7042 = vpop.permute.xlu0 %7041
      %7044 = vset.pattern.permute.xlu0 45
      %7045 = vperm.xlu0 %7044, %v1209
      %v7046 = vpop.permute.xlu0 %7045
      %7048 = vset.pattern.permute.xlu0 45
      %7049 = vperm.xlu0 %7048, %v1210
      %v7050 = vpop.permute.xlu0 %7049
      %7052 = vset.pattern.permute.xlu0 45
      %7053 = vperm.xlu0 %7052, %v1211
      %v7054 = vpop.permute.xlu0 %7053
      %7056 = vset.pattern.permute.xlu0 45
      %7057 = vperm.xlu0 %7056, %v1212
      %v7058 = vpop.permute.xlu0 %7057
      %vm7060 = vcmp.eq.f32.partialorder %v1591, %v7022
      %vm7061 = vcmp.eq.f32.partialorder %v1591, %v7026
      %vm7062 = vcmp.eq.f32.partialorder %v1591, %v7030
      %vm7063 = vcmp.eq.f32.partialorder %v1591, %v7034
      %vm7064 = vcmp.eq.f32.partialorder %v1591, %v7038
      %vm7065 = vcmp.eq.f32.partialorder %v1591, %v7042
      %vm7066 = vcmp.eq.f32.partialorder %v1591, %v7046
      %vm7067 = vcmp.eq.f32.partialorder %v1591, %v7050
      %vm7068 = vcmp.eq.f32.partialorder %v1591, %v7054
      %vm7069 = vcmp.eq.f32.partialorder %v1591, %v7058
      %7070 = vset.pattern.permute.xlu0 45
      %7071 = vperm.xlu0 %7070, %v1223
      %v7072 = vpop.permute.xlu0 %7071
      %7074 = vset.pattern.permute.xlu0 45
      %7075 = vperm.xlu0 %7074, %v1224
      %v7076 = vpop.permute.xlu0 %7075
      %7078 = vset.pattern.permute.xlu0 45
      %7079 = vperm.xlu0 %7078, %v1225
      %v7080 = vpop.permute.xlu0 %7079
      %7082 = vset.pattern.permute.xlu0 45
      %7083 = vperm.xlu0 %7082, %v1226
      %v7084 = vpop.permute.xlu0 %7083
      %7086 = vset.pattern.permute.xlu0 45
      %7087 = vperm.xlu0 %7086, %v1227
      %v7088 = vpop.permute.xlu0 %7087
      %7090 = vset.pattern.permute.xlu0 45
      %7091 = vperm.xlu0 %7090, %v1228
      %v7092 = vpop.permute.xlu0 %7091
      %7094 = vset.pattern.permute.xlu0 45
      %7095 = vperm.xlu0 %7094, %v1229
      %v7096 = vpop.permute.xlu0 %7095
      %7098 = vset.pattern.permute.xlu0 45
      %7099 = vperm.xlu0 %7098, %v1230
      %v7100 = vpop.permute.xlu0 %7099
      %7102 = vset.pattern.permute.xlu0 45
      %7103 = vperm.xlu0 %7102, %v1231
      %v7104 = vpop.permute.xlu0 %7103
      %7106 = vset.pattern.permute.xlu0 45
      %7107 = vperm.xlu0 %7106, %v1232
      %v7108 = vpop.permute.xlu0 %7107
      %vm7110 = vcmp.eq.f32.partialorder %v1591, %v7072
      %vm7111 = vcmp.eq.f32.partialorder %v1591, %v7076
      %vm7112 = vcmp.eq.f32.partialorder %v1591, %v7080
      %vm7113 = vcmp.eq.f32.partialorder %v1591, %v7084
      %vm7114 = vcmp.eq.f32.partialorder %v1591, %v7088
      %vm7115 = vcmp.eq.f32.partialorder %v1591, %v7092
      %vm7116 = vcmp.eq.f32.partialorder %v1591, %v7096
      %vm7117 = vcmp.eq.f32.partialorder %v1591, %v7100
      %vm7118 = vcmp.eq.f32.partialorder %v1591, %v7104
      %vm7119 = vcmp.eq.f32.partialorder %v1591, %v7108
      %7120 = vset.pattern.permute.xlu0 45
      %7121 = vperm.xlu0 %7120, %v1213
      %v7122 = vpop.permute.xlu0 %7121
      %7124 = vset.pattern.permute.xlu0 45
      %7125 = vperm.xlu0 %7124, %v1214
      %v7126 = vpop.permute.xlu0 %7125
      %7128 = vset.pattern.permute.xlu0 45
      %7129 = vperm.xlu0 %7128, %v1215
      %v7130 = vpop.permute.xlu0 %7129
      %7132 = vset.pattern.permute.xlu0 45
      %7133 = vperm.xlu0 %7132, %v1216
      %v7134 = vpop.permute.xlu0 %7133
      %7136 = vset.pattern.permute.xlu0 45
      %7137 = vperm.xlu0 %7136, %v1217
      %v7138 = vpop.permute.xlu0 %7137
      %7140 = vset.pattern.permute.xlu0 45
      %7141 = vperm.xlu0 %7140, %v1218
      %v7142 = vpop.permute.xlu0 %7141
      %7144 = vset.pattern.permute.xlu0 45
      %7145 = vperm.xlu0 %7144, %v1219
      %v7146 = vpop.permute.xlu0 %7145
      %7148 = vset.pattern.permute.xlu0 45
      %7149 = vperm.xlu0 %7148, %v1220
      %v7150 = vpop.permute.xlu0 %7149
      %7152 = vset.pattern.permute.xlu0 45
      %7153 = vperm.xlu0 %7152, %v1221
      %v7154 = vpop.permute.xlu0 %7153
      %7156 = vset.pattern.permute.xlu0 45
      %7157 = vperm.xlu0 %7156, %v1222
      %v7158 = vpop.permute.xlu0 %7157
      %v7160 = vsel %vm7110, %v7122, 0.0
      %v7161 = vsel %vm7111, %v7126, 0.0
      %v7162 = vsel %vm7112, %v7130, 0.0
      %v7163 = vsel %vm7113, %v7134, 0.0
      %v7164 = vsel %vm7114, %v7138, 0.0
      %v7165 = vsel %vm7115, %v7142, 0.0
      %v7166 = vsel %vm7116, %v7146, 0.0
      %v7167 = vsel %vm7117, %v7150, 0.0
      %v7168 = vsel %vm7118, %v7154, 0.0
      %v7169 = vsel %vm7119, %v7158, 0.0
      %7170 = vset.pattern.permute.xlu0 45
      %7171 = vperm.xlu0 %7170, %v1233
      %v7172 = vpop.permute.xlu0 %7171
      %7174 = vset.pattern.permute.xlu0 45
      %7175 = vperm.xlu0 %7174, %v1234
      %v7176 = vpop.permute.xlu0 %7175
      %7178 = vset.pattern.permute.xlu0 45
      %7179 = vperm.xlu0 %7178, %v1235
      %v7180 = vpop.permute.xlu0 %7179
      %7182 = vset.pattern.permute.xlu0 45
      %7183 = vperm.xlu0 %7182, %v1236
      %v7184 = vpop.permute.xlu0 %7183
      %7186 = vset.pattern.permute.xlu0 45
      %7187 = vperm.xlu0 %7186, %v1237
      %v7188 = vpop.permute.xlu0 %7187
      %7190 = vset.pattern.permute.xlu0 45
      %7191 = vperm.xlu0 %7190, %v1238
      %v7192 = vpop.permute.xlu0 %7191
      %7194 = vset.pattern.permute.xlu0 45
      %7195 = vperm.xlu0 %7194, %v1239
      %v7196 = vpop.permute.xlu0 %7195
      %7198 = vset.pattern.permute.xlu0 45
      %7199 = vperm.xlu0 %7198, %v1240
      %v7200 = vpop.permute.xlu0 %7199
      %7202 = vset.pattern.permute.xlu0 45
      %7203 = vperm.xlu0 %7202, %v1241
      %v7204 = vpop.permute.xlu0 %7203
      %7206 = vset.pattern.permute.xlu0 45
      %7207 = vperm.xlu0 %7206, %v1242
      %v7208 = vpop.permute.xlu0 %7207
      %v7210 = vsel %vm7060, %v7172, %v7160
      %v7211 = vsel %vm7061, %v7176, %v7161
      %v7212 = vsel %vm7062, %v7180, %v7162
      %v7213 = vsel %vm7063, %v7184, %v7163
      %v7214 = vsel %vm7064, %v7188, %v7164
      %v7215 = vsel %vm7065, %v7192, %v7165
      %v7216 = vsel %vm7066, %v7196, %v7166
      %v7217 = vsel %vm7067, %v7200, %v7167
      %v7218 = vsel %vm7068, %v7204, %v7168
      %v7219 = vsel %vm7069, %v7208, %v7169
      %v7220 = vmul.f32 %v7010, %v7210
      %v7221 = vmul.f32 %v7011, %v7211
      %v7222 = vmul.f32 %v7012, %v7212
      %v7223 = vmul.f32 %v7013, %v7213
      %v7224 = vmul.f32 %v7014, %v7214
      %v7225 = vmul.f32 %v7015, %v7215
      %v7226 = vmul.f32 %v7016, %v7216
      %v7227 = vmul.f32 %v7017, %v7217
      %v7228 = vmul.f32 %v7018, %v7218
      %v7229 = vmul.f32 %v7019, %v7219
      %7230 = vset.pattern.permute.xlu0 62
      %7231 = vperm.xlu0 %7230, %v1203
      %v7232 = vpop.permute.xlu0 %7231
      %7234 = vset.pattern.permute.xlu0 62
      %7235 = vperm.xlu0 %7234, %v1204
      %v7236 = vpop.permute.xlu0 %7235
      %7238 = vset.pattern.permute.xlu0 62
      %7239 = vperm.xlu0 %7238, %v1205
      %v7240 = vpop.permute.xlu0 %7239
      %7242 = vset.pattern.permute.xlu0 62
      %7243 = vperm.xlu0 %7242, %v1206
      %v7244 = vpop.permute.xlu0 %7243
      %7246 = vset.pattern.permute.xlu0 62
      %7247 = vperm.xlu0 %7246, %v1207
      %v7248 = vpop.permute.xlu0 %7247
      %7250 = vset.pattern.permute.xlu0 62
      %7251 = vperm.xlu0 %7250, %v1208
      %v7252 = vpop.permute.xlu0 %7251
      %7254 = vset.pattern.permute.xlu0 62
      %7255 = vperm.xlu0 %7254, %v1209
      %v7256 = vpop.permute.xlu0 %7255
      %7258 = vset.pattern.permute.xlu0 62
      %7259 = vperm.xlu0 %7258, %v1210
      %v7260 = vpop.permute.xlu0 %7259
      %7262 = vset.pattern.permute.xlu0 62
      %7263 = vperm.xlu0 %7262, %v1211
      %v7264 = vpop.permute.xlu0 %7263
      %7266 = vset.pattern.permute.xlu0 62
      %7267 = vperm.xlu0 %7266, %v1212
      %v7268 = vpop.permute.xlu0 %7267
      %vm7270 = vcmp.eq.f32.partialorder %v2215, %v7232
      %vm7271 = vcmp.eq.f32.partialorder %v2215, %v7236
      %vm7272 = vcmp.eq.f32.partialorder %v2215, %v7240
      %vm7273 = vcmp.eq.f32.partialorder %v2215, %v7244
      %vm7274 = vcmp.eq.f32.partialorder %v2215, %v7248
      %vm7275 = vcmp.eq.f32.partialorder %v2215, %v7252
      %vm7276 = vcmp.eq.f32.partialorder %v2215, %v7256
      %vm7277 = vcmp.eq.f32.partialorder %v2215, %v7260
      %vm7278 = vcmp.eq.f32.partialorder %v2215, %v7264
      %vm7279 = vcmp.eq.f32.partialorder %v2215, %v7268
      %7280 = vset.pattern.permute.xlu0 62
      %7281 = vperm.xlu0 %7280, %v1223
      %v7282 = vpop.permute.xlu0 %7281
      %7284 = vset.pattern.permute.xlu0 62
      %7285 = vperm.xlu0 %7284, %v1224
      %v7286 = vpop.permute.xlu0 %7285
      %7288 = vset.pattern.permute.xlu0 62
      %7289 = vperm.xlu0 %7288, %v1225
      %v7290 = vpop.permute.xlu0 %7289
      %7292 = vset.pattern.permute.xlu0 62
      %7293 = vperm.xlu0 %7292, %v1226
      %v7294 = vpop.permute.xlu0 %7293
      %7296 = vset.pattern.permute.xlu0 62
      %7297 = vperm.xlu0 %7296, %v1227
      %v7298 = vpop.permute.xlu0 %7297
      %7300 = vset.pattern.permute.xlu0 62
      %7301 = vperm.xlu0 %7300, %v1228
      %v7302 = vpop.permute.xlu0 %7301
      %7304 = vset.pattern.permute.xlu0 62
      %7305 = vperm.xlu0 %7304, %v1229
      %v7306 = vpop.permute.xlu0 %7305
      %7308 = vset.pattern.permute.xlu0 62
      %7309 = vperm.xlu0 %7308, %v1230
      %v7310 = vpop.permute.xlu0 %7309
      %7312 = vset.pattern.permute.xlu0 62
      %7313 = vperm.xlu0 %7312, %v1231
      %v7314 = vpop.permute.xlu0 %7313
      %7316 = vset.pattern.permute.xlu0 62
      %7317 = vperm.xlu0 %7316, %v1232
      %v7318 = vpop.permute.xlu0 %7317
      %vm7320 = vcmp.eq.f32.partialorder %v2215, %v7282
      %vm7321 = vcmp.eq.f32.partialorder %v2215, %v7286
      %vm7322 = vcmp.eq.f32.partialorder %v2215, %v7290
      %vm7323 = vcmp.eq.f32.partialorder %v2215, %v7294
      %vm7324 = vcmp.eq.f32.partialorder %v2215, %v7298
      %vm7325 = vcmp.eq.f32.partialorder %v2215, %v7302
      %vm7326 = vcmp.eq.f32.partialorder %v2215, %v7306
      %vm7327 = vcmp.eq.f32.partialorder %v2215, %v7310
      %vm7328 = vcmp.eq.f32.partialorder %v2215, %v7314
      %vm7329 = vcmp.eq.f32.partialorder %v2215, %v7318
      %7330 = vset.pattern.permute.xlu0 78
      %7331 = vperm.xlu0 %7330, %v1333
      %v7332 = vpop.permute.xlu0 %7331
      %7334 = vset.pattern.permute.xlu0 78
      %7335 = vperm.xlu0 %7334, %v1334
      %v7336 = vpop.permute.xlu0 %7335
      %7338 = vset.pattern.permute.xlu0 78
      %7339 = vperm.xlu0 %7338, %v1335
      %v7340 = vpop.permute.xlu0 %7339
      %7342 = vset.pattern.permute.xlu0 78
      %7343 = vperm.xlu0 %7342, %v1336
      %v7344 = vpop.permute.xlu0 %7343
      %7346 = vset.pattern.permute.xlu0 78
      %7347 = vperm.xlu0 %7346, %v1337
      %v7348 = vpop.permute.xlu0 %7347
      %7350 = vset.pattern.permute.xlu0 78
      %7351 = vperm.xlu0 %7350, %v1338
      %v7352 = vpop.permute.xlu0 %7351
      %7354 = vset.pattern.permute.xlu0 78
      %7355 = vperm.xlu0 %7354, %v1339
      %v7356 = vpop.permute.xlu0 %7355
      %7358 = vset.pattern.permute.xlu0 78
      %7359 = vperm.xlu0 %7358, %v1340
      %v7360 = vpop.permute.xlu0 %7359
      %7362 = vset.pattern.permute.xlu0 78
      %7363 = vperm.xlu0 %7362, %v1341
      %v7364 = vpop.permute.xlu0 %7363
      %7366 = vset.pattern.permute.xlu0 78
      %7367 = vperm.xlu0 %7366, %v1342
      %v7368 = vpop.permute.xlu0 %7367
      %v7370 = vsel %vm7320, %v7332, 0.0
      %v7371 = vsel %vm7321, %v7336, 0.0
      %v7372 = vsel %vm7322, %v7340, 0.0
      %v7373 = vsel %vm7323, %v7344, 0.0
      %v7374 = vsel %vm7324, %v7348, 0.0
      %v7375 = vsel %vm7325, %v7352, 0.0
      %v7376 = vsel %vm7326, %v7356, 0.0
      %v7377 = vsel %vm7327, %v7360, 0.0
      %v7378 = vsel %vm7328, %v7364, 0.0
      %v7379 = vsel %vm7329, %v7368, 0.0
      %7380 = vset.pattern.permute.xlu0 78
      %7381 = vperm.xlu0 %7380, %v1283
      %v7382 = vpop.permute.xlu0 %7381
      %7384 = vset.pattern.permute.xlu0 78
      %7385 = vperm.xlu0 %7384, %v1284
      %v7386 = vpop.permute.xlu0 %7385
      %7388 = vset.pattern.permute.xlu0 78
      %7389 = vperm.xlu0 %7388, %v1285
      %v7390 = vpop.permute.xlu0 %7389
      %7392 = vset.pattern.permute.xlu0 78
      %7393 = vperm.xlu0 %7392, %v1286
      %v7394 = vpop.permute.xlu0 %7393
      %7396 = vset.pattern.permute.xlu0 78
      %7397 = vperm.xlu0 %7396, %v1287
      %v7398 = vpop.permute.xlu0 %7397
      %7400 = vset.pattern.permute.xlu0 78
      %7401 = vperm.xlu0 %7400, %v1288
      %v7402 = vpop.permute.xlu0 %7401
      %7404 = vset.pattern.permute.xlu0 78
      %7405 = vperm.xlu0 %7404, %v1289
      %v7406 = vpop.permute.xlu0 %7405
      %7408 = vset.pattern.permute.xlu0 78
      %7409 = vperm.xlu0 %7408, %v1290
      %v7410 = vpop.permute.xlu0 %7409
      %7412 = vset.pattern.permute.xlu0 78
      %7413 = vperm.xlu0 %7412, %v1291
      %v7414 = vpop.permute.xlu0 %7413
      %7416 = vset.pattern.permute.xlu0 78
      %7417 = vperm.xlu0 %7416, %v1292
      %v7418 = vpop.permute.xlu0 %7417
      %v7420 = vsel %vm7270, %v7382, %v7370
      %v7421 = vsel %vm7271, %v7386, %v7371
      %v7422 = vsel %vm7272, %v7390, %v7372
      %v7423 = vsel %vm7273, %v7394, %v7373
      %v7424 = vsel %vm7274, %v7398, %v7374
      %v7425 = vsel %vm7275, %v7402, %v7375
      %v7426 = vsel %vm7276, %v7406, %v7376
      %v7427 = vsel %vm7277, %v7410, %v7377
      %v7428 = vsel %vm7278, %v7414, %v7378
      %v7429 = vsel %vm7279, %v7418, %v7379
      %7430 = vset.pattern.permute.xlu0 46
      %7431 = vperm.xlu0 %7430, %v1203
      %v7432 = vpop.permute.xlu0 %7431
      %7434 = vset.pattern.permute.xlu0 46
      %7435 = vperm.xlu0 %7434, %v1204
      %v7436 = vpop.permute.xlu0 %7435
      %7438 = vset.pattern.permute.xlu0 46
      %7439 = vperm.xlu0 %7438, %v1205
      %v7440 = vpop.permute.xlu0 %7439
      %7442 = vset.pattern.permute.xlu0 46
      %7443 = vperm.xlu0 %7442, %v1206
      %v7444 = vpop.permute.xlu0 %7443
      %7446 = vset.pattern.permute.xlu0 46
      %7447 = vperm.xlu0 %7446, %v1207
      %v7448 = vpop.permute.xlu0 %7447
      %7450 = vset.pattern.permute.xlu0 46
      %7451 = vperm.xlu0 %7450, %v1208
      %v7452 = vpop.permute.xlu0 %7451
      %7454 = vset.pattern.permute.xlu0 46
      %7455 = vperm.xlu0 %7454, %v1209
      %v7456 = vpop.permute.xlu0 %7455
      %7458 = vset.pattern.permute.xlu0 46
      %7459 = vperm.xlu0 %7458, %v1210
      %v7460 = vpop.permute.xlu0 %7459
      %7462 = vset.pattern.permute.xlu0 46
      %7463 = vperm.xlu0 %7462, %v1211
      %v7464 = vpop.permute.xlu0 %7463
      %7466 = vset.pattern.permute.xlu0 46
      %7467 = vperm.xlu0 %7466, %v1212
      %v7468 = vpop.permute.xlu0 %7467
      %vm7470 = vcmp.eq.f32.partialorder %v2419, %v7432
      %vm7471 = vcmp.eq.f32.partialorder %v2419, %v7436
      %vm7472 = vcmp.eq.f32.partialorder %v2419, %v7440
      %vm7473 = vcmp.eq.f32.partialorder %v2419, %v7444
      %vm7474 = vcmp.eq.f32.partialorder %v2419, %v7448
      %vm7475 = vcmp.eq.f32.partialorder %v2419, %v7452
      %vm7476 = vcmp.eq.f32.partialorder %v2419, %v7456
      %vm7477 = vcmp.eq.f32.partialorder %v2419, %v7460
      %vm7478 = vcmp.eq.f32.partialorder %v2419, %v7464
      %vm7479 = vcmp.eq.f32.partialorder %v2419, %v7468
      %7480 = vset.pattern.permute.xlu0 46
      %7481 = vperm.xlu0 %7480, %v1223
      %v7482 = vpop.permute.xlu0 %7481
      %7484 = vset.pattern.permute.xlu0 46
      %7485 = vperm.xlu0 %7484, %v1224
      %v7486 = vpop.permute.xlu0 %7485
      %7488 = vset.pattern.permute.xlu0 46
      %7489 = vperm.xlu0 %7488, %v1225
      %v7490 = vpop.permute.xlu0 %7489
      %7492 = vset.pattern.permute.xlu0 46
      %7493 = vperm.xlu0 %7492, %v1226
      %v7494 = vpop.permute.xlu0 %7493
      %7496 = vset.pattern.permute.xlu0 46
      %7497 = vperm.xlu0 %7496, %v1227
      %v7498 = vpop.permute.xlu0 %7497
      %7500 = vset.pattern.permute.xlu0 46
      %7501 = vperm.xlu0 %7500, %v1228
      %v7502 = vpop.permute.xlu0 %7501
      %7504 = vset.pattern.permute.xlu0 46
      %7505 = vperm.xlu0 %7504, %v1229
      %v7506 = vpop.permute.xlu0 %7505
      %7508 = vset.pattern.permute.xlu0 46
      %7509 = vperm.xlu0 %7508, %v1230
      %v7510 = vpop.permute.xlu0 %7509
      %7512 = vset.pattern.permute.xlu0 46
      %7513 = vperm.xlu0 %7512, %v1231
      %v7514 = vpop.permute.xlu0 %7513
      %7516 = vset.pattern.permute.xlu0 46
      %7517 = vperm.xlu0 %7516, %v1232
      %v7518 = vpop.permute.xlu0 %7517
      %vm7520 = vcmp.eq.f32.partialorder %v2419, %v7482
      %vm7521 = vcmp.eq.f32.partialorder %v2419, %v7486
      %vm7522 = vcmp.eq.f32.partialorder %v2419, %v7490
      %vm7523 = vcmp.eq.f32.partialorder %v2419, %v7494
      %vm7524 = vcmp.eq.f32.partialorder %v2419, %v7498
      %vm7525 = vcmp.eq.f32.partialorder %v2419, %v7502
      %vm7526 = vcmp.eq.f32.partialorder %v2419, %v7506
      %vm7527 = vcmp.eq.f32.partialorder %v2419, %v7510
      %vm7528 = vcmp.eq.f32.partialorder %v2419, %v7514
      %vm7529 = vcmp.eq.f32.partialorder %v2419, %v7518
      %7530 = vset.pattern.permute.xlu0 46
      %7531 = vperm.xlu0 %7530, %v1213
      %v7532 = vpop.permute.xlu0 %7531
      %7534 = vset.pattern.permute.xlu0 46
      %7535 = vperm.xlu0 %7534, %v1214
      %v7536 = vpop.permute.xlu0 %7535
      %7538 = vset.pattern.permute.xlu0 46
      %7539 = vperm.xlu0 %7538, %v1215
      %v7540 = vpop.permute.xlu0 %7539
      %7542 = vset.pattern.permute.xlu0 46
      %7543 = vperm.xlu0 %7542, %v1216
      %v7544 = vpop.permute.xlu0 %7543
      %7546 = vset.pattern.permute.xlu0 46
      %7547 = vperm.xlu0 %7546, %v1217
      %v7548 = vpop.permute.xlu0 %7547
      %7550 = vset.pattern.permute.xlu0 46
      %7551 = vperm.xlu0 %7550, %v1218
      %v7552 = vpop.permute.xlu0 %7551
      %7554 = vset.pattern.permute.xlu0 46
      %7555 = vperm.xlu0 %7554, %v1219
      %v7556 = vpop.permute.xlu0 %7555
      %7558 = vset.pattern.permute.xlu0 46
      %7559 = vperm.xlu0 %7558, %v1220
      %v7560 = vpop.permute.xlu0 %7559
      %7562 = vset.pattern.permute.xlu0 46
      %7563 = vperm.xlu0 %7562, %v1221
      %v7564 = vpop.permute.xlu0 %7563
      %7566 = vset.pattern.permute.xlu0 46
      %7567 = vperm.xlu0 %7566, %v1222
      %v7568 = vpop.permute.xlu0 %7567
      %v7570 = vsel %vm7520, %v7532, 0.0
      %v7571 = vsel %vm7521, %v7536, 0.0
      %v7572 = vsel %vm7522, %v7540, 0.0
      %v7573 = vsel %vm7523, %v7544, 0.0
      %v7574 = vsel %vm7524, %v7548, 0.0
      %v7575 = vsel %vm7525, %v7552, 0.0
      %v7576 = vsel %vm7526, %v7556, 0.0
      %v7577 = vsel %vm7527, %v7560, 0.0
      %v7578 = vsel %vm7528, %v7564, 0.0
      %v7579 = vsel %vm7529, %v7568, 0.0
      %7580 = vset.pattern.permute.xlu0 46
      %7581 = vperm.xlu0 %7580, %v1233
      %v7582 = vpop.permute.xlu0 %7581
      %7584 = vset.pattern.permute.xlu0 46
      %7585 = vperm.xlu0 %7584, %v1234
      %v7586 = vpop.permute.xlu0 %7585
      %7588 = vset.pattern.permute.xlu0 46
      %7589 = vperm.xlu0 %7588, %v1235
      %v7590 = vpop.permute.xlu0 %7589
      %7592 = vset.pattern.permute.xlu0 46
      %7593 = vperm.xlu0 %7592, %v1236
      %v7594 = vpop.permute.xlu0 %7593
      %7596 = vset.pattern.permute.xlu0 46
      %7597 = vperm.xlu0 %7596, %v1237
      %v7598 = vpop.permute.xlu0 %7597
      %7600 = vset.pattern.permute.xlu0 46
      %7601 = vperm.xlu0 %7600, %v1238
      %v7602 = vpop.permute.xlu0 %7601
      %7604 = vset.pattern.permute.xlu0 46
      %7605 = vperm.xlu0 %7604, %v1239
      %v7606 = vpop.permute.xlu0 %7605
      %7608 = vset.pattern.permute.xlu0 46
      %7609 = vperm.xlu0 %7608, %v1240
      %v7610 = vpop.permute.xlu0 %7609
      %7612 = vset.pattern.permute.xlu0 46
      %7613 = vperm.xlu0 %7612, %v1241
      %v7614 = vpop.permute.xlu0 %7613
      %7616 = vset.pattern.permute.xlu0 46
      %7617 = vperm.xlu0 %7616, %v1242
      %v7618 = vpop.permute.xlu0 %7617
      %v7620 = vsel %vm7470, %v7582, %v7570
      %v7621 = vsel %vm7471, %v7586, %v7571
      %v7622 = vsel %vm7472, %v7590, %v7572
      %v7623 = vsel %vm7473, %v7594, %v7573
      %v7624 = vsel %vm7474, %v7598, %v7574
      %v7625 = vsel %vm7475, %v7602, %v7575
      %v7626 = vsel %vm7476, %v7606, %v7576
      %v7627 = vsel %vm7477, %v7610, %v7577
      %v7628 = vsel %vm7478, %v7614, %v7578
      %v7629 = vsel %vm7479, %v7618, %v7579
      %v7630 = vmul.f32 %v7420, %v7620
      %v7631 = vmul.f32 %v7421, %v7621
      %v7632 = vmul.f32 %v7422, %v7622
      %v7633 = vmul.f32 %v7423, %v7623
      %v7634 = vmul.f32 %v7424, %v7624
      %v7635 = vmul.f32 %v7425, %v7625
      %v7636 = vmul.f32 %v7426, %v7626
      %v7637 = vmul.f32 %v7427, %v7627
      %v7638 = vmul.f32 %v7428, %v7628
      %v7639 = vmul.f32 %v7429, %v7629
      %7640 = vset.pattern.permute.xlu0 63
      %7641 = vperm.xlu0 %7640, %v1203
      %v7642 = vpop.permute.xlu0 %7641
      %7644 = vset.pattern.permute.xlu0 63
      %7645 = vperm.xlu0 %7644, %v1204
      %v7646 = vpop.permute.xlu0 %7645
      %7648 = vset.pattern.permute.xlu0 63
      %7649 = vperm.xlu0 %7648, %v1205
      %v7650 = vpop.permute.xlu0 %7649
      %7652 = vset.pattern.permute.xlu0 63
      %7653 = vperm.xlu0 %7652, %v1206
      %v7654 = vpop.permute.xlu0 %7653
      %7656 = vset.pattern.permute.xlu0 63
      %7657 = vperm.xlu0 %7656, %v1207
      %v7658 = vpop.permute.xlu0 %7657
      %7660 = vset.pattern.permute.xlu0 63
      %7661 = vperm.xlu0 %7660, %v1208
      %v7662 = vpop.permute.xlu0 %7661
      %7664 = vset.pattern.permute.xlu0 63
      %7665 = vperm.xlu0 %7664, %v1209
      %v7666 = vpop.permute.xlu0 %7665
      %7668 = vset.pattern.permute.xlu0 63
      %7669 = vperm.xlu0 %7668, %v1210
      %v7670 = vpop.permute.xlu0 %7669
      %7672 = vset.pattern.permute.xlu0 63
      %7673 = vperm.xlu0 %7672, %v1211
      %v7674 = vpop.permute.xlu0 %7673
      %7676 = vset.pattern.permute.xlu0 63
      %7677 = vperm.xlu0 %7676, %v1212
      %v7678 = vpop.permute.xlu0 %7677
      %vm7680 = vcmp.eq.f32.partialorder %v2215, %v7642
      %vm7681 = vcmp.eq.f32.partialorder %v2215, %v7646
      %vm7682 = vcmp.eq.f32.partialorder %v2215, %v7650
      %vm7683 = vcmp.eq.f32.partialorder %v2215, %v7654
      %vm7684 = vcmp.eq.f32.partialorder %v2215, %v7658
      %vm7685 = vcmp.eq.f32.partialorder %v2215, %v7662
      %vm7686 = vcmp.eq.f32.partialorder %v2215, %v7666
      %vm7687 = vcmp.eq.f32.partialorder %v2215, %v7670
      %vm7688 = vcmp.eq.f32.partialorder %v2215, %v7674
      %vm7689 = vcmp.eq.f32.partialorder %v2215, %v7678
      %7690 = vset.pattern.permute.xlu0 63
      %7691 = vperm.xlu0 %7690, %v1223
      %v7692 = vpop.permute.xlu0 %7691
      %7694 = vset.pattern.permute.xlu0 63
      %7695 = vperm.xlu0 %7694, %v1224
      %v7696 = vpop.permute.xlu0 %7695
      %7698 = vset.pattern.permute.xlu0 63
      %7699 = vperm.xlu0 %7698, %v1225
      %v7700 = vpop.permute.xlu0 %7699
      %7702 = vset.pattern.permute.xlu0 63
      %7703 = vperm.xlu0 %7702, %v1226
      %v7704 = vpop.permute.xlu0 %7703
      %7706 = vset.pattern.permute.xlu0 63
      %7707 = vperm.xlu0 %7706, %v1227
      %v7708 = vpop.permute.xlu0 %7707
      %7710 = vset.pattern.permute.xlu0 63
      %7711 = vperm.xlu0 %7710, %v1228
      %v7712 = vpop.permute.xlu0 %7711
      %7714 = vset.pattern.permute.xlu0 63
      %7715 = vperm.xlu0 %7714, %v1229
      %v7716 = vpop.permute.xlu0 %7715
      %7718 = vset.pattern.permute.xlu0 63
      %7719 = vperm.xlu0 %7718, %v1230
      %v7720 = vpop.permute.xlu0 %7719
      %7722 = vset.pattern.permute.xlu0 63
      %7723 = vperm.xlu0 %7722, %v1231
      %v7724 = vpop.permute.xlu0 %7723
      %7726 = vset.pattern.permute.xlu0 63
      %7727 = vperm.xlu0 %7726, %v1232
      %v7728 = vpop.permute.xlu0 %7727
      %vm7730 = vcmp.eq.f32.partialorder %v2215, %v7692
      %vm7731 = vcmp.eq.f32.partialorder %v2215, %v7696
      %vm7732 = vcmp.eq.f32.partialorder %v2215, %v7700
      %vm7733 = vcmp.eq.f32.partialorder %v2215, %v7704
      %vm7734 = vcmp.eq.f32.partialorder %v2215, %v7708
      %vm7735 = vcmp.eq.f32.partialorder %v2215, %v7712
      %vm7736 = vcmp.eq.f32.partialorder %v2215, %v7716
      %vm7737 = vcmp.eq.f32.partialorder %v2215, %v7720
      %vm7738 = vcmp.eq.f32.partialorder %v2215, %v7724
      %vm7739 = vcmp.eq.f32.partialorder %v2215, %v7728
      %7740 = vset.pattern.permute.xlu0 79
      %7741 = vperm.xlu0 %7740, %v1333
      %v7742 = vpop.permute.xlu0 %7741
      %7744 = vset.pattern.permute.xlu0 79
      %7745 = vperm.xlu0 %7744, %v1334
      %v7746 = vpop.permute.xlu0 %7745
      %7748 = vset.pattern.permute.xlu0 79
      %7749 = vperm.xlu0 %7748, %v1335
      %v7750 = vpop.permute.xlu0 %7749
      %7752 = vset.pattern.permute.xlu0 79
      %7753 = vperm.xlu0 %7752, %v1336
      %v7754 = vpop.permute.xlu0 %7753
      %7756 = vset.pattern.permute.xlu0 79
      %7757 = vperm.xlu0 %7756, %v1337
      %v7758 = vpop.permute.xlu0 %7757
      %7760 = vset.pattern.permute.xlu0 79
      %7761 = vperm.xlu0 %7760, %v1338
      %v7762 = vpop.permute.xlu0 %7761
      %7764 = vset.pattern.permute.xlu0 79
      %7765 = vperm.xlu0 %7764, %v1339
      %v7766 = vpop.permute.xlu0 %7765
      %7768 = vset.pattern.permute.xlu0 79
      %7769 = vperm.xlu0 %7768, %v1340
      %v7770 = vpop.permute.xlu0 %7769
      %7772 = vset.pattern.permute.xlu0 79
      %7773 = vperm.xlu0 %7772, %v1341
      %v7774 = vpop.permute.xlu0 %7773
      %7776 = vset.pattern.permute.xlu0 79
      %7777 = vperm.xlu0 %7776, %v1342
      %v7778 = vpop.permute.xlu0 %7777
      %v7780 = vsel %vm7730, %v7742, 0.0
      %v7781 = vsel %vm7731, %v7746, 0.0
      %v7782 = vsel %vm7732, %v7750, 0.0
      %v7783 = vsel %vm7733, %v7754, 0.0
      %v7784 = vsel %vm7734, %v7758, 0.0
      %v7785 = vsel %vm7735, %v7762, 0.0
      %v7786 = vsel %vm7736, %v7766, 0.0
      %v7787 = vsel %vm7737, %v7770, 0.0
      %v7788 = vsel %vm7738, %v7774, 0.0
      %v7789 = vsel %vm7739, %v7778, 0.0
      %7790 = vset.pattern.permute.xlu0 79
      %7791 = vperm.xlu0 %7790, %v1283
      %v7792 = vpop.permute.xlu0 %7791
      %7794 = vset.pattern.permute.xlu0 79
      %7795 = vperm.xlu0 %7794, %v1284
      %v7796 = vpop.permute.xlu0 %7795
      %7798 = vset.pattern.permute.xlu0 79
      %7799 = vperm.xlu0 %7798, %v1285
      %v7800 = vpop.permute.xlu0 %7799
      %7802 = vset.pattern.permute.xlu0 79
      %7803 = vperm.xlu0 %7802, %v1286
      %v7804 = vpop.permute.xlu0 %7803
      %7806 = vset.pattern.permute.xlu0 79
      %7807 = vperm.xlu0 %7806, %v1287
      %v7808 = vpop.permute.xlu0 %7807
      %7810 = vset.pattern.permute.xlu0 79
      %7811 = vperm.xlu0 %7810, %v1288
      %v7812 = vpop.permute.xlu0 %7811
      %7814 = vset.pattern.permute.xlu0 79
      %7815 = vperm.xlu0 %7814, %v1289
      %v7816 = vpop.permute.xlu0 %7815
      %7818 = vset.pattern.permute.xlu0 79
      %7819 = vperm.xlu0 %7818, %v1290
      %v7820 = vpop.permute.xlu0 %7819
      %7822 = vset.pattern.permute.xlu0 79
      %7823 = vperm.xlu0 %7822, %v1291
      %v7824 = vpop.permute.xlu0 %7823
      %7826 = vset.pattern.permute.xlu0 79
      %7827 = vperm.xlu0 %7826, %v1292
      %v7828 = vpop.permute.xlu0 %7827
      %v7830 = vsel %vm7680, %v7792, %v7780
      %v7831 = vsel %vm7681, %v7796, %v7781
      %v7832 = vsel %vm7682, %v7800, %v7782
      %v7833 = vsel %vm7683, %v7804, %v7783
      %v7834 = vsel %vm7684, %v7808, %v7784
      %v7835 = vsel %vm7685, %v7812, %v7785
      %v7836 = vsel %vm7686, %v7816, %v7786
      %v7837 = vsel %vm7687, %v7820, %v7787
      %v7838 = vsel %vm7688, %v7824, %v7788
      %v7839 = vsel %vm7689, %v7828, %v7789
      %7840 = vset.pattern.permute.xlu0 47
      %7841 = vperm.xlu0 %7840, %v1203
      %v7842 = vpop.permute.xlu0 %7841
      %7844 = vset.pattern.permute.xlu0 47
      %7845 = vperm.xlu0 %7844, %v1204
      %v7846 = vpop.permute.xlu0 %7845
      %7848 = vset.pattern.permute.xlu0 47
      %7849 = vperm.xlu0 %7848, %v1205
      %v7850 = vpop.permute.xlu0 %7849
      %7852 = vset.pattern.permute.xlu0 47
      %7853 = vperm.xlu0 %7852, %v1206
      %v7854 = vpop.permute.xlu0 %7853
      %7856 = vset.pattern.permute.xlu0 47
      %7857 = vperm.xlu0 %7856, %v1207
      %v7858 = vpop.permute.xlu0 %7857
      %7860 = vset.pattern.permute.xlu0 47
      %7861 = vperm.xlu0 %7860, %v1208
      %v7862 = vpop.permute.xlu0 %7861
      %7864 = vset.pattern.permute.xlu0 47
      %7865 = vperm.xlu0 %7864, %v1209
      %v7866 = vpop.permute.xlu0 %7865
      %7868 = vset.pattern.permute.xlu0 47
      %7869 = vperm.xlu0 %7868, %v1210
      %v7870 = vpop.permute.xlu0 %7869
      %7872 = vset.pattern.permute.xlu0 47
      %7873 = vperm.xlu0 %7872, %v1211
      %v7874 = vpop.permute.xlu0 %7873
      %7876 = vset.pattern.permute.xlu0 47
      %7877 = vperm.xlu0 %7876, %v1212
      %v7878 = vpop.permute.xlu0 %7877
      %vm7880 = vcmp.eq.f32.partialorder %v2419, %v7842
      %vm7881 = vcmp.eq.f32.partialorder %v2419, %v7846
      %vm7882 = vcmp.eq.f32.partialorder %v2419, %v7850
      %vm7883 = vcmp.eq.f32.partialorder %v2419, %v7854
      %vm7884 = vcmp.eq.f32.partialorder %v2419, %v7858
      %vm7885 = vcmp.eq.f32.partialorder %v2419, %v7862
      %vm7886 = vcmp.eq.f32.partialorder %v2419, %v7866
      %vm7887 = vcmp.eq.f32.partialorder %v2419, %v7870
      %vm7888 = vcmp.eq.f32.partialorder %v2419, %v7874
      %vm7889 = vcmp.eq.f32.partialorder %v2419, %v7878
      %7890 = vset.pattern.permute.xlu0 47
      %7891 = vperm.xlu0 %7890, %v1223
      %v7892 = vpop.permute.xlu0 %7891
      %7894 = vset.pattern.permute.xlu0 47
      %7895 = vperm.xlu0 %7894, %v1224
      %v7896 = vpop.permute.xlu0 %7895
      %7898 = vset.pattern.permute.xlu0 47
      %7899 = vperm.xlu0 %7898, %v1225
      %v7900 = vpop.permute.xlu0 %7899
      %7902 = vset.pattern.permute.xlu0 47
      %7903 = vperm.xlu0 %7902, %v1226
      %v7904 = vpop.permute.xlu0 %7903
      %7906 = vset.pattern.permute.xlu0 47
      %7907 = vperm.xlu0 %7906, %v1227
      %v7908 = vpop.permute.xlu0 %7907
      %7910 = vset.pattern.permute.xlu0 47
      %7911 = vperm.xlu0 %7910, %v1228
      %v7912 = vpop.permute.xlu0 %7911
      %7914 = vset.pattern.permute.xlu0 47
      %7915 = vperm.xlu0 %7914, %v1229
      %v7916 = vpop.permute.xlu0 %7915
      %7918 = vset.pattern.permute.xlu0 47
      %7919 = vperm.xlu0 %7918, %v1230
      %v7920 = vpop.permute.xlu0 %7919
      %7922 = vset.pattern.permute.xlu0 47
      %7923 = vperm.xlu0 %7922, %v1231
      %v7924 = vpop.permute.xlu0 %7923
      %7926 = vset.pattern.permute.xlu0 47
      %7927 = vperm.xlu0 %7926, %v1232
      %v7928 = vpop.permute.xlu0 %7927
      %vm7930 = vcmp.eq.f32.partialorder %v2419, %v7892
      %vm7931 = vcmp.eq.f32.partialorder %v2419, %v7896
      %vm7932 = vcmp.eq.f32.partialorder %v2419, %v7900
      %vm7933 = vcmp.eq.f32.partialorder %v2419, %v7904
      %vm7934 = vcmp.eq.f32.partialorder %v2419, %v7908
      %vm7935 = vcmp.eq.f32.partialorder %v2419, %v7912
      %vm7936 = vcmp.eq.f32.partialorder %v2419, %v7916
      %vm7937 = vcmp.eq.f32.partialorder %v2419, %v7920
      %vm7938 = vcmp.eq.f32.partialorder %v2419, %v7924
      %vm7939 = vcmp.eq.f32.partialorder %v2419, %v7928
      %7940 = vset.pattern.permute.xlu0 47
      %7941 = vperm.xlu0 %7940, %v1213
      %v7942 = vpop.permute.xlu0 %7941
      %7944 = vset.pattern.permute.xlu0 47
      %7945 = vperm.xlu0 %7944, %v1214
      %v7946 = vpop.permute.xlu0 %7945
      %7948 = vset.pattern.permute.xlu0 47
      %7949 = vperm.xlu0 %7948, %v1215
      %v7950 = vpop.permute.xlu0 %7949
      %7952 = vset.pattern.permute.xlu0 47
      %7953 = vperm.xlu0 %7952, %v1216
      %v7954 = vpop.permute.xlu0 %7953
      %7956 = vset.pattern.permute.xlu0 47
      %7957 = vperm.xlu0 %7956, %v1217
      %v7958 = vpop.permute.xlu0 %7957
      %7960 = vset.pattern.permute.xlu0 47
      %7961 = vperm.xlu0 %7960, %v1218
      %v7962 = vpop.permute.xlu0 %7961
      %7964 = vset.pattern.permute.xlu0 47
      %7965 = vperm.xlu0 %7964, %v1219
      %v7966 = vpop.permute.xlu0 %7965
      %7968 = vset.pattern.permute.xlu0 47
      %7969 = vperm.xlu0 %7968, %v1220
      %v7970 = vpop.permute.xlu0 %7969
      %7972 = vset.pattern.permute.xlu0 47
      %7973 = vperm.xlu0 %7972, %v1221
      %v7974 = vpop.permute.xlu0 %7973
      %7976 = vset.pattern.permute.xlu0 47
      %7977 = vperm.xlu0 %7976, %v1222
      %v7978 = vpop.permute.xlu0 %7977
      %v7980 = vsel %vm7930, %v7942, 0.0
      %v7981 = vsel %vm7931, %v7946, 0.0
      %v7982 = vsel %vm7932, %v7950, 0.0
      %v7983 = vsel %vm7933, %v7954, 0.0
      %v7984 = vsel %vm7934, %v7958, 0.0
      %v7985 = vsel %vm7935, %v7962, 0.0
      %v7986 = vsel %vm7936, %v7966, 0.0
      %v7987 = vsel %vm7937, %v7970, 0.0
      %v7988 = vsel %vm7938, %v7974, 0.0
      %v7989 = vsel %vm7939, %v7978, 0.0
      %7990 = vset.pattern.permute.xlu0 47
      %7991 = vperm.xlu0 %7990, %v1233
      %v7992 = vpop.permute.xlu0 %7991
      %7994 = vset.pattern.permute.xlu0 47
      %7995 = vperm.xlu0 %7994, %v1234
      %v7996 = vpop.permute.xlu0 %7995
      %7998 = vset.pattern.permute.xlu0 47
      %7999 = vperm.xlu0 %7998, %v1235
      %v8000 = vpop.permute.xlu0 %7999
      %8002 = vset.pattern.permute.xlu0 47
      %8003 = vperm.xlu0 %8002, %v1236
      %v8004 = vpop.permute.xlu0 %8003
      %8006 = vset.pattern.permute.xlu0 47
      %8007 = vperm.xlu0 %8006, %v1237
      %v8008 = vpop.permute.xlu0 %8007
      %8010 = vset.pattern.permute.xlu0 47
      %8011 = vperm.xlu0 %8010, %v1238
      %v8012 = vpop.permute.xlu0 %8011
      %8014 = vset.pattern.permute.xlu0 47
      %8015 = vperm.xlu0 %8014, %v1239
      %v8016 = vpop.permute.xlu0 %8015
      %8018 = vset.pattern.permute.xlu0 47
      %8019 = vperm.xlu0 %8018, %v1240
      %v8020 = vpop.permute.xlu0 %8019
      %8022 = vset.pattern.permute.xlu0 47
      %8023 = vperm.xlu0 %8022, %v1241
      %v8024 = vpop.permute.xlu0 %8023
      %8026 = vset.pattern.permute.xlu0 47
      %8027 = vperm.xlu0 %8026, %v1242
      %v8028 = vpop.permute.xlu0 %8027
      %v8030 = vsel %vm7880, %v7992, %v7980
      %v8031 = vsel %vm7881, %v7996, %v7981
      %v8032 = vsel %vm7882, %v8000, %v7982
      %v8033 = vsel %vm7883, %v8004, %v7983
      %v8034 = vsel %vm7884, %v8008, %v7984
      %v8035 = vsel %vm7885, %v8012, %v7985
      %v8036 = vsel %vm7886, %v8016, %v7986
      %v8037 = vsel %vm7887, %v8020, %v7987
      %v8038 = vsel %vm7888, %v8024, %v7988
      %v8039 = vsel %vm7889, %v8028, %v7989
      %v8040 = vmul.f32 %v7830, %v8030
      %v8041 = vmul.f32 %v7831, %v8031
      %v8042 = vmul.f32 %v7832, %v8032
      %v8043 = vmul.f32 %v7833, %v8033
      %v8044 = vmul.f32 %v7834, %v8034
      %v8045 = vmul.f32 %v7835, %v8035
      %v8046 = vmul.f32 %v7836, %v8036
      %v8047 = vmul.f32 %v7837, %v8037
      %v8048 = vmul.f32 %v7838, %v8038
      %v8049 = vmul.f32 %v7839, %v8039
      %v8050 = vadd.f32 %v6810, %v7220
      %v8051 = vadd.f32 %v6811, %v7221
      %v8052 = vadd.f32 %v6812, %v7222
      %v8053 = vadd.f32 %v6813, %v7223
      %v8054 = vadd.f32 %v6814, %v7224
      %v8055 = vadd.f32 %v6815, %v7225
      %v8056 = vadd.f32 %v6816, %v7226
      %v8057 = vadd.f32 %v6817, %v7227
      %v8058 = vadd.f32 %v6818, %v7228
      %v8059 = vadd.f32 %v6819, %v7229
      %v8060 = vadd.f32 %v7630, %v8040
      %v8061 = vadd.f32 %v7631, %v8041
      %v8062 = vadd.f32 %v7632, %v8042
      %v8063 = vadd.f32 %v7633, %v8043
      %v8064 = vadd.f32 %v7634, %v8044
      %v8065 = vadd.f32 %v7635, %v8045
      %v8066 = vadd.f32 %v7636, %v8046
      %v8067 = vadd.f32 %v7637, %v8047
      %v8068 = vadd.f32 %v7638, %v8048
      %v8069 = vadd.f32 %v7639, %v8049
      %v8070 = vadd.f32 %v8050, %v8060
      %v8071 = vadd.f32 %v8051, %v8061
      %v8072 = vadd.f32 %v8052, %v8062
      %v8073 = vadd.f32 %v8053, %v8063
      %v8074 = vadd.f32 %v8054, %v8064
      %v8075 = vadd.f32 %v8055, %v8065
      %v8076 = vadd.f32 %v8056, %v8066
      %v8077 = vadd.f32 %v8057, %v8067
      %v8078 = vadd.f32 %v8058, %v8068
      %v8079 = vadd.f32 %v8059, %v8069
      %8090 = vrot.lane.b32.xlu0 %v4730, 80
      %v8091 = vpop.permute.xlu0 %8090
      %8092 = vrot.lane.b32.xlu0 %v4731, 80
      %v8093 = vpop.permute.xlu0 %8092
      %8094 = vrot.lane.b32.xlu0 %v4732, 80
      %v8095 = vpop.permute.xlu0 %8094
      %8096 = vrot.lane.b32.xlu0 %v4733, 80
      %v8097 = vpop.permute.xlu0 %8096
      %8098 = vrot.lane.b32.xlu0 %v4734, 80
      %v8099 = vpop.permute.xlu0 %8098
      %8100 = vrot.lane.b32.xlu0 %v4735, 80
      %v8101 = vpop.permute.xlu0 %8100
      %8102 = vrot.lane.b32.xlu0 %v4736, 80
      %v8103 = vpop.permute.xlu0 %8102
      %8104 = vrot.lane.b32.xlu0 %v4737, 80
      %v8105 = vpop.permute.xlu0 %8104
      %8106 = vrot.lane.b32.xlu0 %v4738, 80
      %v8107 = vpop.permute.xlu0 %8106
      %8108 = vrot.lane.b32.xlu0 %v4739, 80
      %v8109 = vpop.permute.xlu0 %8108
      %8130 = vrot.lane.b32.xlu0 %v6400, 32
      %v8131 = vpop.permute.xlu0 %8130
      %8132 = vrot.lane.b32.xlu0 %v6401, 32
      %v8133 = vpop.permute.xlu0 %8132
      %8134 = vrot.lane.b32.xlu0 %v6402, 32
      %v8135 = vpop.permute.xlu0 %8134
      %8136 = vrot.lane.b32.xlu0 %v6403, 32
      %v8137 = vpop.permute.xlu0 %8136
      %8138 = vrot.lane.b32.xlu0 %v6404, 32
      %v8139 = vpop.permute.xlu0 %8138
      %8140 = vrot.lane.b32.xlu0 %v6405, 32
      %v8141 = vpop.permute.xlu0 %8140
      %8142 = vrot.lane.b32.xlu0 %v6406, 32
      %v8143 = vpop.permute.xlu0 %8142
      %8144 = vrot.lane.b32.xlu0 %v6407, 32
      %v8145 = vpop.permute.xlu0 %8144
      %8146 = vrot.lane.b32.xlu0 %v6408, 32
      %v8147 = vpop.permute.xlu0 %8146
      %8148 = vrot.lane.b32.xlu0 %v6409, 32
      %v8149 = vpop.permute.xlu0 %8148
      %8170 = vrot.lane.b32.xlu0 %v8070, 112
      %v8171 = vpop.permute.xlu0 %8170
      %8172 = vrot.lane.b32.xlu0 %v8071, 112
      %v8173 = vpop.permute.xlu0 %8172
      %8174 = vrot.lane.b32.xlu0 %v8072, 112
      %v8175 = vpop.permute.xlu0 %8174
      %8176 = vrot.lane.b32.xlu0 %v8073, 112
      %v8177 = vpop.permute.xlu0 %8176
      %8178 = vrot.lane.b32.xlu0 %v8074, 112
      %v8179 = vpop.permute.xlu0 %8178
      %8180 = vrot.lane.b32.xlu0 %v8075, 112
      %v8181 = vpop.permute.xlu0 %8180
      %8182 = vrot.lane.b32.xlu0 %v8076, 112
      %v8183 = vpop.permute.xlu0 %8182
      %8184 = vrot.lane.b32.xlu0 %v8077, 112
      %v8185 = vpop.permute.xlu0 %8184
      %8186 = vrot.lane.b32.xlu0 %v8078, 112
      %v8187 = vpop.permute.xlu0 %8186
      %8188 = vrot.lane.b32.xlu0 %v8079, 112
      %v8189 = vpop.permute.xlu0 %8188
      %vm8200 = vcmask 654336
      %v8201 = vsel %vm8200, %v3060, %v8091
      %v8202 = vsel %vm8200, %v3061, %v8093
      %v8203 = vsel %vm8200, %v3062, %v8095
      %v8204 = vsel %vm8200, %v3063, %v8097
      %v8205 = vsel %vm8200, %v3064, %v8099
      %v8206 = vsel %vm8200, %v3065, %v8101
      %v8207 = vsel %vm8200, %v3066, %v8103
      %v8208 = vsel %vm8200, %v3067, %v8105
      %v8209 = vsel %vm8200, %v3068, %v8107
      %v8210 = vsel %vm8200, %v3069, %v8109
      %v8211 = vsel %vm726, %v8091, %v8131
      %v8212 = vsel %vm726, %v8093, %v8133
      %v8213 = vsel %vm726, %v8095, %v8135
      %v8214 = vsel %vm726, %v8097, %v8137
      %v8215 = vsel %vm726, %v8099, %v8139
      %v8216 = vsel %vm726, %v8101, %v8141
      %v8217 = vsel %vm726, %v8103, %v8143
      %v8218 = vsel %vm726, %v8105, %v8145
      %v8219 = vsel %vm726, %v8107, %v8147
      %v8220 = vsel %vm726, %v8109, %v8149
      %vm8221 = vcmask 916480
      %v8222 = vsel %vm8221, %v8211, %v8171
      %v8223 = vsel %vm8221, %v8212, %v8173
      %v8224 = vsel %vm8221, %v8213, %v8175
      %v8225 = vsel %vm8221, %v8214, %v8177
      %v8226 = vsel %vm8221, %v8215, %v8179
      %v8227 = vsel %vm8221, %v8216, %v8181
      %v8228 = vsel %vm8221, %v8217, %v8183
      %v8229 = vsel %vm8221, %v8218, %v8185
      %v8230 = vsel %vm8221, %v8219, %v8187
      %v8231 = vsel %vm8221, %v8220, %v8189
      %v8232 = vld [vmem:[%s5] sm:$0xf]
      %v8233 = vlaneseq
      %v8234 = vshrl.u32 %v8233, 7
      %v8235 = vsub.s32 0, %v8234
      %v8236 = vrot.slane %v8232, %v8235
      %v8237 = vmul.f32 %v866, %v8236
      %v8238 = vmul.f32 %v871, %v8236
      %v8239 = vmul.f32 %v876, %v8236
      %v8240 = vmul.f32 %v881, %v8236
      %v8241 = vmul.f32 %v886, %v8236
      %v8242 = vmul.f32 %v891, %v8236
      %v8243 = vmul.f32 %v896, %v8236
      %v8244 = vmul.f32 %v901, %v8236
      %v8245 = vmul.f32 %v906, %v8236
      %v8246 = vmul.f32 %v911, %v8236
      %v8247 = vlaneseq
      %v8248 = vshrl.u32 %v8247, 7
      %v8249 = vsub.s32 1, %v8248
      %v8250 = vrot.slane %v8232, %v8249
      %v8251 = vmul.f32 %v866, %v8250
      %v8252 = vmul.f32 %v871, %v8250
      %v8253 = vmul.f32 %v876, %v8250
      %v8254 = vmul.f32 %v881, %v8250
      %v8255 = vmul.f32 %v886, %v8250
      %v8256 = vmul.f32 %v891, %v8250
      %v8257 = vmul.f32 %v896, %v8250
      %v8258 = vmul.f32 %v901, %v8250
      %v8259 = vmul.f32 %v906, %v8250
      %v8260 = vmul.f32 %v911, %v8250
      %v8261 = vlaneseq
      %v8262 = vshrl.u32 %v8261, 7
      %v8263 = vsub.s32 2, %v8262
      %v8264 = vrot.slane %v8232, %v8263
      %v8265 = vmul.f32 %v866, %v8264
      %v8266 = vmul.f32 %v871, %v8264
      %v8267 = vmul.f32 %v876, %v8264
      %v8268 = vmul.f32 %v881, %v8264
      %v8269 = vmul.f32 %v886, %v8264
      %v8270 = vmul.f32 %v891, %v8264
      %v8271 = vmul.f32 %v896, %v8264
      %v8272 = vmul.f32 %v901, %v8264
      %v8273 = vmul.f32 %v906, %v8264
      %v8274 = vmul.f32 %v911, %v8264
      %v8275 = vlaneseq
      %v8276 = vshrl.u32 %v8275, 7
      %v8277 = vsub.s32 3, %v8276
      %v8278 = vrot.slane %v8232, %v8277
      %v8279 = vmul.f32 %v866, %v8278
      %v8280 = vmul.f32 %v871, %v8278
      %v8281 = vmul.f32 %v876, %v8278
      %v8282 = vmul.f32 %v881, %v8278
      %v8283 = vmul.f32 %v886, %v8278
      %v8284 = vmul.f32 %v891, %v8278
      %v8285 = vmul.f32 %v896, %v8278
      %v8286 = vmul.f32 %v901, %v8278
      %v8287 = vmul.f32 %v906, %v8278
      %v8288 = vmul.f32 %v911, %v8278
      %v8289 = vsel %vm737, %v8171, 0
      %v8291 = vsel %vm737, %v8173, 0
      %v8293 = vsel %vm737, %v8175, 0
      %v8295 = vsel %vm737, %v8177, 0
      %v8297 = vsel %vm737, %v8179, 0
      %v8299 = vsel %vm737, %v8181, 0
      %v8301 = vsel %vm737, %v8183, 0
      %v8303 = vsel %vm737, %v8185, 0
      %v8305 = vsel %vm737, %v8187, 0
      %v8307 = vsel %vm737, %v8189, 0
      %8309 = vmatprep.subr.mxu0 0.0
      %8310 = vmatpush1.msra.mxu0 %v8256
      %8311 = vmatprep.subr.mxu0 0.0
      %8312 = vmatpush1.msra.mxu0 %v8255
      %8313 = vmatprep.subr.mxu0 0.0
      %8314 = vmatpush1.msra.mxu0 %v8254
      %8315 = vmatprep.subr.mxu0 0.0
      %8316 = vmatpush1.msra.mxu0 %v8253
      %8317 = vmatprep.subr.mxu0 0.0
      %8318 = vmatpush1.msra.mxu0 %v8252
      %8319 = vmatprep.subr.mxu0 0.0
      %8320 = vmatpush1.msra.mxu0 %v8251
      %8321 = vmatprep.subr.mxu0 0.0
      %8322 = vmatpush1.msra.mxu0 %v8246
      %8323 = vmatprep.subr.mxu0 0.0
      %8324 = vmatpush1.msra.mxu0 %v8245
      %8325 = vmatprep.subr.mxu0 0.0
      %8326 = vmatpush1.msra.mxu0 %v8244
      %8327 = vmatprep.subr.mxu0 0.0
      %8328 = vmatpush1.msra.mxu0 %v8243
      %8329 = vmatprep.subr.mxu0 0.0
      %8330 = vmatpush1.msra.mxu0 %v8242
      %8331 = vmatprep.subr.mxu0 0.0
      %8332 = vmatpush1.msra.mxu0 %v8241
      %8333 = vmatprep.subr.mxu0 0.0
      %8334 = vmatpush1.msra.mxu0 %v8240
      %8335 = vmatprep.subr.mxu0 0.0
      %8336 = vmatpush1.msra.mxu0 %v8239
      %8337 = vmatprep.subr.mxu0 0.0
      %8338 = vmatpush1.msra.mxu0 %v8238
      %8339 = vmatprep.subr.mxu0 0.0
      %8340 = vmatpush1.msra.mxu0 %v8237
      %8341 = vmatprep.subr.mxu0 0.0
      %8342 = vmatpush2.msra.mxu0 %v8280
      %8343 = vmatprep.subr.mxu0 0.0
      %8344 = vmatpush2.msra.mxu0 %v8279
      %8345 = vmatprep.subr.mxu0 0.0
      %8346 = vmatpush2.msra.mxu0 %v8274
      %8347 = vmatprep.subr.mxu0 0.0
      %8348 = vmatpush2.msra.mxu0 %v8273
      %8349 = vmatprep.subr.mxu0 0.0
      %8350 = vmatpush2.msra.mxu0 %v8272
      %8351 = vmatprep.subr.mxu0 0.0
      %8352 = vmatpush2.msra.mxu0 %v8271
      %8353 = vmatprep.subr.mxu0 0.0
      %8354 = vmatpush2.msra.mxu0 %v8270
      %8355 = vmatprep.subr.mxu0 0.0
      %8356 = vmatpush2.msra.mxu0 %v8269
      %8357 = vmatprep.subr.mxu0 0.0
      %8358 = vmatpush2.msra.mxu0 %v8268
      %8359 = vmatprep.subr.mxu0 0.0
      %8360 = vmatpush2.msra.mxu0 %v8267
      %8361 = vmatprep.subr.mxu0 0.0
      %8362 = vmatpush2.msra.mxu0 %v8266
      %8363 = vmatprep.subr.mxu0 0.0
      %8364 = vmatpush2.msra.mxu0 %v8265
      %8365 = vmatprep.subr.mxu0 0.0
      %8366 = vmatpush2.msra.mxu0 %v8260
      %8367 = vmatprep.subr.mxu0 0.0
      %8368 = vmatpush2.msra.mxu0 %v8259
      %8369 = vmatprep.subr.mxu0 0.0
      %8370 = vmatpush2.msra.mxu0 %v8258
      %8371 = vmatprep.subr.mxu0 0.0
      %8372 = vmatpush2.msra.mxu0 %v8257
      %8373 = vmatprep.mubr.f32.mxu0 %v8222
      %8374 = vmatmul.mubr.f32.gmra.mxu0 %v8201
      %v8375 = vpop.f32.mrf.mxu0
      %v8376 = vadd.f32 0.0, %v8375
      %v8377 = vpop.f32.mrf.mxu0
      %8378 = vmatprep.mubr.f32.mxu0 %v8223
      %8379 = vmatmul.mubr.f32.gmra.mxu0 %v8202
      %v8380 = vpop.f32.mrf.mxu0
      %v8381 = vadd.f32 0.0, %v8380
      %v8382 = vpop.f32.mrf.mxu0
      %8383 = vmatprep.mubr.f32.mxu0 %v8224
      %8384 = vmatmul.mubr.f32.gmra.mxu0 %v8203
      %v8385 = vpop.f32.mrf.mxu0
      %v8386 = vadd.f32 0.0, %v8385
      %v8387 = vpop.f32.mrf.mxu0
      %8388 = vmatprep.mubr.f32.mxu0 %v8225
      %8389 = vmatmul.mubr.f32.gmra.mxu0 %v8204
      %v8390 = vpop.f32.mrf.mxu0
      %v8391 = vadd.f32 0.0, %v8390
      %v8392 = vpop.f32.mrf.mxu0
      %8393 = vmatprep.mubr.f32.mxu0 %v8226
      %8394 = vmatmul.mubr.f32.gmra.mxu0 %v8205
      %v8395 = vpop.f32.mrf.mxu0
      %v8396 = vadd.f32 0.0, %v8395
      %v8397 = vpop.f32.mrf.mxu0
      %8398 = vmatprep.mubr.f32.mxu0 %v8227
      %8399 = vmatmul.mubr.f32.gmra.mxu0 %v8206
      %v8400 = vpop.f32.mrf.mxu0
      %v8401 = vadd.f32 0.0, %v8400
      %v8402 = vpop.f32.mrf.mxu0
      %8403 = vmatprep.mubr.f32.mxu0 %v8228
      %8404 = vmatmul.mubr.f32.gmra.mxu0 %v8207
      %v8405 = vpop.f32.mrf.mxu0
      %v8406 = vadd.f32 0.0, %v8405
      %v8407 = vpop.f32.mrf.mxu0
      %8408 = vmatprep.mubr.f32.mxu0 %v8229
      %8409 = vmatmul.mubr.f32.gmra.mxu0 %v8208
      %v8410 = vpop.f32.mrf.mxu0
      %v8411 = vadd.f32 0.0, %v8410
      %v8412 = vpop.f32.mrf.mxu0
      %8413 = vmatprep.mubr.f32.mxu0 %v8230
      %8414 = vmatmul.mubr.f32.gmra.mxu0 %v8209
      %v8415 = vpop.f32.mrf.mxu0
      %v8416 = vadd.f32 0.0, %v8415
      %v8417 = vpop.f32.mrf.mxu0
      %8418 = vmatprep.mubr.f32.mxu0 %v8231
      %8419 = vmatmul.mubr.f32.gmra.mxu0 %v8210
      %v8420 = vpop.f32.mrf.mxu0
      %v8421 = vadd.f32 0.0, %v8420
      %v8422 = vpop.f32.mrf.mxu0
      %8423 = vdwg.mxu0
      %8424 = vmatprep.subr.mxu0 0.0
      %8425 = vmatpush1.msra.mxu0 0.0
      %8426 = vmatprep.subr.mxu0 0.0
      %8427 = vmatpush1.msra.mxu0 0.0
      %8428 = vmatprep.subr.mxu0 0.0
      %8429 = vmatpush1.msra.mxu0 0.0
      %8430 = vmatprep.subr.mxu0 0.0
      %8431 = vmatpush1.msra.mxu0 0.0
      %8432 = vmatprep.subr.mxu0 0.0
      %8433 = vmatpush1.msra.mxu0 0.0
      %8434 = vmatprep.subr.mxu0 0.0
      %8435 = vmatpush1.msra.mxu0 0.0
      %8436 = vmatprep.subr.mxu0 0.0
      %8437 = vmatpush1.msra.mxu0 0.0
      %8438 = vmatprep.subr.mxu0 0.0
      %8439 = vmatpush1.msra.mxu0 0.0
      %8440 = vmatprep.subr.mxu0 0.0
      %8441 = vmatpush1.msra.mxu0 %v8288
      %8442 = vmatprep.subr.mxu0 0.0
      %8443 = vmatpush1.msra.mxu0 %v8287
      %8444 = vmatprep.subr.mxu0 0.0
      %8445 = vmatpush1.msra.mxu0 %v8286
      %8446 = vmatprep.subr.mxu0 0.0
      %8447 = vmatpush1.msra.mxu0 %v8285
      %8448 = vmatprep.subr.mxu0 0.0
      %8449 = vmatpush1.msra.mxu0 %v8284
      %8450 = vmatprep.subr.mxu0 0.0
      %8451 = vmatpush1.msra.mxu0 %v8283
      %8452 = vmatprep.subr.mxu0 0.0
      %8453 = vmatpush1.msra.mxu0 %v8282
      %8454 = vmatprep.subr.mxu0 0.0
      %8455 = vmatpush1.msra.mxu0 %v8281
      %8456 = vmatprep.subr.mxu0 0.0
      %8457 = vmatpush2.msra.mxu0 0.0
      %8458 = vmatprep.subr.mxu0 0.0
      %8459 = vmatpush2.msra.mxu0 0.0
      %8460 = vmatprep.subr.mxu0 0.0
      %8461 = vmatpush2.msra.mxu0 0.0
      %8462 = vmatprep.subr.mxu0 0.0
      %8463 = vmatpush2.msra.mxu0 0.0
      %8464 = vmatprep.subr.mxu0 0.0
      %8465 = vmatpush2.msra.mxu0 0.0
      %8466 = vmatprep.subr.mxu0 0.0
      %8467 = vmatpush2.msra.mxu0 0.0
      %8468 = vmatprep.subr.mxu0 0.0
      %8469 = vmatpush2.msra.mxu0 0.0
      %8470 = vmatprep.subr.mxu0 0.0
      %8471 = vmatpush2.msra.mxu0 0.0
      %8472 = vmatprep.subr.mxu0 0.0
      %8473 = vmatpush2.msra.mxu0 0.0
      %8474 = vmatprep.subr.mxu0 0.0
      %8475 = vmatpush2.msra.mxu0 0.0
      %8476 = vmatprep.subr.mxu0 0.0
      %8477 = vmatpush2.msra.mxu0 0.0
      %8478 = vmatprep.subr.mxu0 0.0
      %8479 = vmatpush2.msra.mxu0 0.0
      %8480 = vmatprep.subr.mxu0 0.0
      %8481 = vmatpush2.msra.mxu0 0.0
      %8482 = vmatprep.subr.mxu0 0.0
      %8483 = vmatpush2.msra.mxu0 0.0
      %8484 = vmatprep.subr.mxu0 0.0
      %8485 = vmatpush2.msra.mxu0 0.0
      %8486 = vmatprep.subr.mxu0 0.0
      %8487 = vmatpush2.msra.mxu0 0.0
      %8488 = vmatprep.mubr.f32.mxu0 0.0
      %8489 = vmatmul.mubr.f32.gmra.mxu0 %v8289
      %v8490 = vpop.f32.mrf.mxu0
      %v8491 = vadd.f32 %v8376, %v8490
      %v8492 = vpop.f32.mrf.mxu0
      %8493 = vmatprep.mubr.f32.mxu0 0.0
      %8494 = vmatmul.mubr.f32.gmra.mxu0 %v8291
      %v8495 = vpop.f32.mrf.mxu0
      %v8496 = vadd.f32 %v8381, %v8495
      %v8497 = vpop.f32.mrf.mxu0
      %8498 = vmatprep.mubr.f32.mxu0 0.0
      %8499 = vmatmul.mubr.f32.gmra.mxu0 %v8293
      %v8500 = vpop.f32.mrf.mxu0
      %v8501 = vadd.f32 %v8386, %v8500
      %v8502 = vpop.f32.mrf.mxu0
      %8503 = vmatprep.mubr.f32.mxu0 0.0
      %8504 = vmatmul.mubr.f32.gmra.mxu0 %v8295
      %v8505 = vpop.f32.mrf.mxu0
      %v8506 = vadd.f32 %v8391, %v8505
      %v8507 = vpop.f32.mrf.mxu0
      %8508 = vmatprep.mubr.f32.mxu0 0.0
      %8509 = vmatmul.mubr.f32.gmra.mxu0 %v8297
      %v8510 = vpop.f32.mrf.mxu0
      %v8511 = vadd.f32 %v8396, %v8510
      %v8512 = vpop.f32.mrf.mxu0
      %8513 = vmatprep.mubr.f32.mxu0 0.0
      %8514 = vmatmul.mubr.f32.gmra.mxu0 %v8299
      %v8515 = vpop.f32.mrf.mxu0
      %v8516 = vadd.f32 %v8401, %v8515
      %v8517 = vpop.f32.mrf.mxu0
      %8518 = vmatprep.mubr.f32.mxu0 0.0
      %8519 = vmatmul.mubr.f32.gmra.mxu0 %v8301
      %v8520 = vpop.f32.mrf.mxu0
      %v8521 = vadd.f32 %v8406, %v8520
      %v8522 = vpop.f32.mrf.mxu0
      %8523 = vmatprep.mubr.f32.mxu0 0.0
      %8524 = vmatmul.mubr.f32.gmra.mxu0 %v8303
      %v8525 = vpop.f32.mrf.mxu0
      %v8526 = vadd.f32 %v8411, %v8525
      %v8527 = vpop.f32.mrf.mxu0
      %8528 = vmatprep.mubr.f32.mxu0 0.0
      %8529 = vmatmul.mubr.f32.gmra.mxu0 %v8305
      %v8530 = vpop.f32.mrf.mxu0
      %v8531 = vadd.f32 %v8416, %v8530
      %v8532 = vpop.f32.mrf.mxu0
      %8533 = vmatprep.mubr.f32.mxu0 0.0
      %8534 = vmatmul.mubr.f32.gmra.mxu0 %v8307
      %v8535 = vpop.f32.mrf.mxu0
      %v8536 = vadd.f32 %v8421, %v8535
      %v8537 = vpop.f32.mrf.mxu0
      %8538 = vdwg.mxu0
      %v8539 = vld [vmem:[%s8] sm:$0xff]
      %v8540 = vld [vmem:[%s8 + $0x8] sm:$0xff]
      %v8541 = vld [vmem:[%s8 + $0x10] sm:$0xff]
      %v8542 = vld [vmem:[%s8 + $0x18] sm:$0xff]
      %v8543 = vld [vmem:[%s9] sm:$0x1]
      %v8545 = vlaneseq
      %v8546 = vshrl.u32 %v8545, 7
      %v8547 = vsub.s32 0, %v8546
      %v8548 = vrot.slane %v8543, %v8547
      %v8551 = vsel %vm726, %v8491, 0
      %v8554 = vsel %vm726, %v8496, 0
      %v8557 = vsel %vm726, %v8501, 0
      %v8560 = vsel %vm726, %v8506, 0
      %v8563 = vsel %vm726, %v8511, 0
      %v8566 = vsel %vm726, %v8516, 0
      %v8569 = vsel %vm726, %v8521, 0
      %v8572 = vsel %vm726, %v8526, 0
      %v8575 = vsel %vm726, %v8531, 0
      %v8578 = vsel %vm726, %v8536, 0
      %8580 = vmatprep.subr.mxu0 0.0
      %8581 = vmatpush1.msra.mxu0 0.0
      %8582 = vmatprep.subr.mxu0 0.0
      %8583 = vmatpush1.msra.mxu0 0.0
      %8584 = vmatprep.subr.mxu0 0.0
      %8585 = vmatpush1.msra.mxu0 0.0
      %8586 = vmatprep.subr.mxu0 0.0
      %8587 = vmatpush1.msra.mxu0 0.0
      %8588 = vmatprep.subr.mxu0 0.0
      %8589 = vmatpush1.msra.mxu0 0.0
      %8590 = vmatprep.subr.mxu0 0.0
      %8591 = vmatpush1.msra.mxu0 0.0
      %8592 = vmatprep.subr.mxu0 0.0
      %8593 = vmatpush1.msra.mxu0 0.0
      %8594 = vmatprep.subr.mxu0 0.0
      %8595 = vmatpush1.msra.mxu0 0.0
      %8596 = vmatprep.subr.mxu0 0.0
      %8597 = vmatpush1.msra.mxu0 0.0
      %8598 = vmatprep.subr.mxu0 0.0
      %8599 = vmatpush1.msra.mxu0 0.0
      %8600 = vmatprep.subr.mxu0 0.0
      %8601 = vmatpush1.msra.mxu0 0.0
      %8602 = vmatprep.subr.mxu0 0.0
      %8603 = vmatpush1.msra.mxu0 0.0
      %8604 = vmatprep.subr.mxu0 0.0
      %8605 = vmatpush1.msra.mxu0 %v8542
      %8606 = vmatprep.subr.mxu0 0.0
      %8607 = vmatpush1.msra.mxu0 %v8541
      %8608 = vmatprep.subr.mxu0 0.0
      %8609 = vmatpush1.msra.mxu0 %v8540
      %8610 = vmatprep.subr.mxu0 0.0
      %8611 = vmatpush1.msra.mxu0 %v8539
      %8612 = vmatprep.subr.mxu0 0.0
      %8613 = vmatpush2.msra.mxu0 0.0
      %8614 = vmatprep.subr.mxu0 0.0
      %8615 = vmatpush2.msra.mxu0 0.0
      %8616 = vmatprep.subr.mxu0 0.0
      %8617 = vmatpush2.msra.mxu0 0.0
      %8618 = vmatprep.subr.mxu0 0.0
      %8619 = vmatpush2.msra.mxu0 0.0
      %8620 = vmatprep.subr.mxu0 0.0
      %8621 = vmatpush2.msra.mxu0 0.0
      %8622 = vmatprep.subr.mxu0 0.0
      %8623 = vmatpush2.msra.mxu0 0.0
      %8624 = vmatprep.subr.mxu0 0.0
      %8625 = vmatpush2.msra.mxu0 0.0
      %8626 = vmatprep.subr.mxu0 0.0
      %8627 = vmatpush2.msra.mxu0 0.0
      %8628 = vmatprep.subr.mxu0 0.0
      %8629 = vmatpush2.msra.mxu0 0.0
      %8630 = vmatprep.subr.mxu0 0.0
      %8631 = vmatpush2.msra.mxu0 0.0
      %8632 = vmatprep.subr.mxu0 0.0
      %8633 = vmatpush2.msra.mxu0 0.0
      %8634 = vmatprep.subr.mxu0 0.0
      %8635 = vmatpush2.msra.mxu0 0.0
      %8636 = vmatprep.subr.mxu0 0.0
      %8637 = vmatpush2.msra.mxu0 0.0
      %8638 = vmatprep.subr.mxu0 0.0
      %8639 = vmatpush2.msra.mxu0 0.0
      %8640 = vmatprep.subr.mxu0 0.0
      %8641 = vmatpush2.msra.mxu0 0.0
      %8642 = vmatprep.subr.mxu0 0.0
      %8643 = vmatpush2.msra.mxu0 0.0
      %8644 = vmatprep.mubr.f32.mxu0 0.0
      %8645 = vmatmul.mubr.f32.gmra.mxu0 %v8551
      %v8646 = vpop.f32.mrf.mxu0
      %v8647 = vadd.f32 %v8548, %v8646
      %v8648 = vpop.f32.mrf.mxu0
      %8649 = vmatprep.mubr.f32.mxu0 0.0
      %8650 = vmatmul.mubr.f32.gmra.mxu0 %v8554
      %v8651 = vpop.f32.mrf.mxu0
      %v8652 = vadd.f32 %v8548, %v8651
      %v8653 = vpop.f32.mrf.mxu0
      %8654 = vmatprep.mubr.f32.mxu0 0.0
      %8655 = vmatmul.mubr.f32.gmra.mxu0 %v8557
      %v8656 = vpop.f32.mrf.mxu0
      %v8657 = vadd.f32 %v8548, %v8656
      %v8658 = vpop.f32.mrf.mxu0
      %8659 = vmatprep.mubr.f32.mxu0 0.0
      %8660 = vmatmul.mubr.f32.gmra.mxu0 %v8560
      %v8661 = vpop.f32.mrf.mxu0
      %v8662 = vadd.f32 %v8548, %v8661
      %v8663 = vpop.f32.mrf.mxu0
      %8664 = vmatprep.mubr.f32.mxu0 0.0
      %8665 = vmatmul.mubr.f32.gmra.mxu0 %v8563
      %v8666 = vpop.f32.mrf.mxu0
      %v8667 = vadd.f32 %v8548, %v8666
      %v8668 = vpop.f32.mrf.mxu0
      %8669 = vmatprep.mubr.f32.mxu0 0.0
      %8670 = vmatmul.mubr.f32.gmra.mxu0 %v8566
      %v8671 = vpop.f32.mrf.mxu0
      %v8672 = vadd.f32 %v8548, %v8671
      %v8673 = vpop.f32.mrf.mxu0
      %8674 = vmatprep.mubr.f32.mxu0 0.0
      %8675 = vmatmul.mubr.f32.gmra.mxu0 %v8569
      %v8676 = vpop.f32.mrf.mxu0
      %v8677 = vadd.f32 %v8548, %v8676
      %v8678 = vpop.f32.mrf.mxu0
      %8679 = vmatprep.mubr.f32.mxu0 0.0
      %8680 = vmatmul.mubr.f32.gmra.mxu0 %v8572
      %v8681 = vpop.f32.mrf.mxu0
      %v8682 = vadd.f32 %v8548, %v8681
      %v8683 = vpop.f32.mrf.mxu0
      %8684 = vmatprep.mubr.f32.mxu0 0.0
      %8685 = vmatmul.mubr.f32.gmra.mxu0 %v8575
      %v8686 = vpop.f32.mrf.mxu0
      %v8687 = vadd.f32 %v8548, %v8686
      %v8688 = vpop.f32.mrf.mxu0
      %8689 = vmatprep.mubr.f32.mxu0 0.0
      %8690 = vmatmul.mubr.f32.gmra.mxu0 %v8578
      %v8691 = vpop.f32.mrf.mxu0
      %v8692 = vadd.f32 %v8548, %v8691
      %v8693 = vpop.f32.mrf.mxu0
      %8694 = vdwg.mxu0
      %v8695 = vadd.f32 %v616, %v8647
      %v8696 = vadd.f32 %v617, %v8652
      %v8697 = vadd.f32 %v618, %v8657
      %v8698 = vadd.f32 %v619, %v8662
      %v8699 = vadd.f32 %v620, %v8667
      %v8700 = vadd.f32 %v621, %v8672
      %v8701 = vadd.f32 %v622, %v8677
      %v8702 = vadd.f32 %v623, %v8682
      %v8703 = vadd.f32 %v624, %v8687
      %v8704 = vadd.f32 %v625, %v8692
      %v8705 = vsel %vm726, %v8695, 0.0
      %8706 = vadd.xlane.f32.xlu0 %v8705
      %v8707 = vpop.xlane.xlu0 %8706
      %v8708 = vsel %vm726, %v8696, 0.0
      %8709 = vadd.xlane.f32.xlu0 %v8708
      %v8710 = vpop.xlane.xlu0 %8709
      %v8711 = vsel %vm726, %v8697, 0.0
      %8712 = vadd.xlane.f32.xlu0 %v8711
      %v8713 = vpop.xlane.xlu0 %8712
      %v8714 = vsel %vm726, %v8698, 0.0
      %8715 = vadd.xlane.f32.xlu0 %v8714
      %v8716 = vpop.xlane.xlu0 %8715
      %v8717 = vsel %vm726, %v8699, 0.0
      %8718 = vadd.xlane.f32.xlu0 %v8717
      %v8719 = vpop.xlane.xlu0 %8718
      %v8720 = vsel %vm726, %v8700, 0.0
      %8721 = vadd.xlane.f32.xlu0 %v8720
      %v8722 = vpop.xlane.xlu0 %8721
      %v8723 = vsel %vm726, %v8701, 0.0
      %8724 = vadd.xlane.f32.xlu0 %v8723
      %v8725 = vpop.xlane.xlu0 %8724
      %v8726 = vsel %vm726, %v8702, 0.0
      %8727 = vadd.xlane.f32.xlu0 %v8726
      %v8728 = vpop.xlane.xlu0 %8727
      %v8729 = vsel %vm726, %v8703, 0.0
      %8730 = vadd.xlane.f32.xlu0 %v8729
      %v8731 = vpop.xlane.xlu0 %8730
      %v8732 = vsel %vm726, %v8704, 0.0
      %8733 = vadd.xlane.f32.xlu0 %v8732
      %v8734 = vpop.xlane.xlu0 %8733
      %v8735 = vrcp.pop 32.0
      %v8736 = vmul.f32 %v8707, %v8735
      %v8737 = vmul.f32 %v8710, %v8735
      %v8738 = vmul.f32 %v8713, %v8735
      %v8739 = vmul.f32 %v8716, %v8735
      %v8740 = vmul.f32 %v8719, %v8735
      %v8741 = vmul.f32 %v8722, %v8735
      %v8742 = vmul.f32 %v8725, %v8735
      %v8743 = vmul.f32 %v8728, %v8735
      %v8744 = vmul.f32 %v8731, %v8735
      %v8745 = vmul.f32 %v8734, %v8735
      %v8746 = vsub.f32 %v8695, %v8736
      %v8747 = vsub.f32 %v8696, %v8737
      %v8748 = vsub.f32 %v8697, %v8738
      %v8749 = vsub.f32 %v8698, %v8739
      %v8750 = vsub.f32 %v8699, %v8740
      %v8751 = vsub.f32 %v8700, %v8741
      %v8752 = vsub.f32 %v8701, %v8742
      %v8753 = vsub.f32 %v8702, %v8743
      %v8754 = vsub.f32 %v8703, %v8744
      %v8755 = vsub.f32 %v8704, %v8745
      %v8756 = vmul.f32 %v8746, %v8746
      %v8757 = vmul.f32 %v8747, %v8747
      %v8758 = vmul.f32 %v8748, %v8748
      %v8759 = vmul.f32 %v8749, %v8749
      %v8760 = vmul.f32 %v8750, %v8750
      %v8761 = vmul.f32 %v8751, %v8751
      %v8762 = vmul.f32 %v8752, %v8752
      %v8763 = vmul.f32 %v8753, %v8753
      %v8764 = vmul.f32 %v8754, %v8754
      %v8765 = vmul.f32 %v8755, %v8755
      %v8766 = vsel %vm726, %v8756, 0.0
      %8767 = vadd.xlane.f32.xlu0 %v8766
      %v8768 = vpop.xlane.xlu0 %8767
      %v8769 = vsel %vm726, %v8757, 0.0
      %8770 = vadd.xlane.f32.xlu0 %v8769
      %v8771 = vpop.xlane.xlu0 %8770
      %v8772 = vsel %vm726, %v8758, 0.0
      %8773 = vadd.xlane.f32.xlu0 %v8772
      %v8774 = vpop.xlane.xlu0 %8773
      %v8775 = vsel %vm726, %v8759, 0.0
      %8776 = vadd.xlane.f32.xlu0 %v8775
      %v8777 = vpop.xlane.xlu0 %8776
      %v8778 = vsel %vm726, %v8760, 0.0
      %8779 = vadd.xlane.f32.xlu0 %v8778
      %v8780 = vpop.xlane.xlu0 %8779
      %v8781 = vsel %vm726, %v8761, 0.0
      %8782 = vadd.xlane.f32.xlu0 %v8781
      %v8783 = vpop.xlane.xlu0 %8782
      %v8784 = vsel %vm726, %v8762, 0.0
      %8785 = vadd.xlane.f32.xlu0 %v8784
      %v8786 = vpop.xlane.xlu0 %8785
      %v8787 = vsel %vm726, %v8763, 0.0
      %8788 = vadd.xlane.f32.xlu0 %v8787
      %v8789 = vpop.xlane.xlu0 %8788
      %v8790 = vsel %vm726, %v8764, 0.0
      %8791 = vadd.xlane.f32.xlu0 %v8790
      %v8792 = vpop.xlane.xlu0 %8791
      %v8793 = vsel %vm726, %v8765, 0.0
      %8794 = vadd.xlane.f32.xlu0 %v8793
      %v8795 = vpop.xlane.xlu0 %8794
      %v8796 = vmul.f32 %v8768, %v8735
      %v8797 = vmul.f32 %v8771, %v8735
      %v8798 = vmul.f32 %v8774, %v8735
      %v8799 = vmul.f32 %v8777, %v8735
      %v8800 = vmul.f32 %v8780, %v8735
      %v8801 = vmul.f32 %v8783, %v8735
      %v8802 = vmul.f32 %v8786, %v8735
      %v8803 = vmul.f32 %v8789, %v8735
      %v8804 = vmul.f32 %v8792, %v8735
      %v8805 = vmul.f32 %v8795, %v8735
      %v8806 = vadd.f32 %v8796, 1e-05
      %v8807 = vadd.f32 %v8797, 1e-05
      %v8808 = vadd.f32 %v8798, 1e-05
      %v8809 = vadd.f32 %v8799, 1e-05
      %v8810 = vadd.f32 %v8800, 1e-05
      %v8811 = vadd.f32 %v8801, 1e-05
      %v8812 = vadd.f32 %v8802, 1e-05
      %v8813 = vadd.f32 %v8803, 1e-05
      %v8814 = vadd.f32 %v8804, 1e-05
      %v8815 = vadd.f32 %v8805, 1e-05
      %v8816 = vrsqrt.pop %v8806
      %v8817 = vrsqrt.pop %v8807
      %v8818 = vrsqrt.pop %v8808
      %v8819 = vrsqrt.pop %v8809
      %v8820 = vrsqrt.pop %v8810
      %v8821 = vrsqrt.pop %v8811
      %v8822 = vrsqrt.pop %v8812
      %v8823 = vrsqrt.pop %v8813
      %v8824 = vrsqrt.pop %v8814
      %v8825 = vrsqrt.pop %v8815
      %v8826 = vmul.f32 %v8746, %v8816
      %v8827 = vmul.f32 %v8747, %v8817
      %v8828 = vmul.f32 %v8748, %v8818
      %v8829 = vmul.f32 %v8749, %v8819
      %v8830 = vmul.f32 %v8750, %v8820
      %v8831 = vmul.f32 %v8751, %v8821
      %v8832 = vmul.f32 %v8752, %v8822
      %v8833 = vmul.f32 %v8753, %v8823
      %v8834 = vmul.f32 %v8754, %v8824
      %v8835 = vmul.f32 %v8755, %v8825
      %v8836 = vld [vmem:[%s10] sm:$0x1]
      %v8838 = vlaneseq
      %v8839 = vshrl.u32 %v8838, 7
      %v8840 = vsub.s32 0, %v8839
      %v8841 = vrot.slane %v8836, %v8840
      %v8843 = vmul.f32 %v8826, %v8841
      %v8844 = vmul.f32 %v8827, %v8841
      %v8845 = vmul.f32 %v8828, %v8841
      %v8846 = vmul.f32 %v8829, %v8841
      %v8847 = vmul.f32 %v8830, %v8841
      %v8848 = vmul.f32 %v8831, %v8841
      %v8849 = vmul.f32 %v8832, %v8841
      %v8850 = vmul.f32 %v8833, %v8841
      %v8851 = vmul.f32 %v8834, %v8841
      %v8852 = vmul.f32 %v8835, %v8841
      %v8853 = vld [vmem:[%s11] sm:$0x1]
      %v8855 = vlaneseq
      %v8856 = vshrl.u32 %v8855, 7
      %v8857 = vsub.s32 0, %v8856
      %v8858 = vrot.slane %v8853, %v8857
      %v8860 = vadd.f32 %v8843, %v8858
      %v8861 = vadd.f32 %v8844, %v8858
      %v8862 = vadd.f32 %v8845, %v8858
      %v8863 = vadd.f32 %v8846, %v8858
      %v8864 = vadd.f32 %v8847, %v8858
      %v8865 = vadd.f32 %v8848, %v8858
      %v8866 = vadd.f32 %v8849, %v8858
      %v8867 = vadd.f32 %v8850, %v8858
      %v8868 = vadd.f32 %v8851, %v8858
      %v8869 = vadd.f32 %v8852, %v8858
      %v8870 = vld [vmem:[%s12] sm:$0xff]
      %v8871 = vld [vmem:[%s12 + $0x8] sm:$0xff]
      %v8872 = vld [vmem:[%s12 + $0x10] sm:$0xff]
      %v8873 = vld [vmem:[%s12 + $0x18] sm:$0xff]
      %v8874 = vld [vmem:[%s13] sm:$0x1]
      %v8876 = vlaneseq
      %v8877 = vshrl.u32 %v8876, 7
      %v8878 = vsub.s32 0, %v8877
      %v8879 = vrot.slane %v8874, %v8878
      %v8882 = vsel %vm726, %v8860, 0
      %v8885 = vsel %vm726, %v8861, 0
      %v8888 = vsel %vm726, %v8862, 0
      %v8891 = vsel %vm726, %v8863, 0
      %v8894 = vsel %vm726, %v8864, 0
      %v8897 = vsel %vm726, %v8865, 0
      %v8900 = vsel %vm726, %v8866, 0
      %v8903 = vsel %vm726, %v8867, 0
      %v8906 = vsel %vm726, %v8868, 0
      %v8909 = vsel %vm726, %v8869, 0
      %8911 = vmatprep.subr.mxu0 0.0
      %8912 = vmatpush1.msra.mxu0 0.0
      %8913 = vmatprep.subr.mxu0 0.0
      %8914 = vmatpush1.msra.mxu0 0.0
      %8915 = vmatprep.subr.mxu0 0.0
      %8916 = vmatpush1.msra.mxu0 0.0
      %8917 = vmatprep.subr.mxu0 0.0
      %8918 = vmatpush1.msra.mxu0 0.0
      %8919 = vmatprep.subr.mxu0 0.0
      %8920 = vmatpush1.msra.mxu0 0.0
      %8921 = vmatprep.subr.mxu0 0.0
      %8922 = vmatpush1.msra.mxu0 0.0
      %8923 = vmatprep.subr.mxu0 0.0
      %8924 = vmatpush1.msra.mxu0 0.0
      %8925 = vmatprep.subr.mxu0 0.0
      %8926 = vmatpush1.msra.mxu0 0.0
      %8927 = vmatprep.subr.mxu0 0.0
      %8928 = vmatpush1.msra.mxu0 0.0
      %8929 = vmatprep.subr.mxu0 0.0
      %8930 = vmatpush1.msra.mxu0 0.0
      %8931 = vmatprep.subr.mxu0 0.0
      %8932 = vmatpush1.msra.mxu0 0.0
      %8933 = vmatprep.subr.mxu0 0.0
      %8934 = vmatpush1.msra.mxu0 0.0
      %8935 = vmatprep.subr.mxu0 0.0
      %8936 = vmatpush1.msra.mxu0 %v8873
      %8937 = vmatprep.subr.mxu0 0.0
      %8938 = vmatpush1.msra.mxu0 %v8872
      %8939 = vmatprep.subr.mxu0 0.0
      %8940 = vmatpush1.msra.mxu0 %v8871
      %8941 = vmatprep.subr.mxu0 0.0
      %8942 = vmatpush1.msra.mxu0 %v8870
      %8943 = vmatprep.subr.mxu0 0.0
      %8944 = vmatpush2.msra.mxu0 0.0
      %8945 = vmatprep.subr.mxu0 0.0
      %8946 = vmatpush2.msra.mxu0 0.0
      %8947 = vmatprep.subr.mxu0 0.0
      %8948 = vmatpush2.msra.mxu0 0.0
      %8949 = vmatprep.subr.mxu0 0.0
      %8950 = vmatpush2.msra.mxu0 0.0
      %8951 = vmatprep.subr.mxu0 0.0
      %8952 = vmatpush2.msra.mxu0 0.0
      %8953 = vmatprep.subr.mxu0 0.0
      %8954 = vmatpush2.msra.mxu0 0.0
      %8955 = vmatprep.subr.mxu0 0.0
      %8956 = vmatpush2.msra.mxu0 0.0
      %8957 = vmatprep.subr.mxu0 0.0
      %8958 = vmatpush2.msra.mxu0 0.0
      %8959 = vmatprep.subr.mxu0 0.0
      %8960 = vmatpush2.msra.mxu0 0.0
      %8961 = vmatprep.subr.mxu0 0.0
      %8962 = vmatpush2.msra.mxu0 0.0
      %8963 = vmatprep.subr.mxu0 0.0
      %8964 = vmatpush2.msra.mxu0 0.0
      %8965 = vmatprep.subr.mxu0 0.0
      %8966 = vmatpush2.msra.mxu0 0.0
      %8967 = vmatprep.subr.mxu0 0.0
      %8968 = vmatpush2.msra.mxu0 0.0
      %8969 = vmatprep.subr.mxu0 0.0
      %8970 = vmatpush2.msra.mxu0 0.0
      %8971 = vmatprep.subr.mxu0 0.0
      %8972 = vmatpush2.msra.mxu0 0.0
      %8973 = vmatprep.subr.mxu0 0.0
      %8974 = vmatpush2.msra.mxu0 0.0
      %8975 = vmatprep.mubr.f32.mxu0 0.0
      %8976 = vmatmul.mubr.f32.gmra.mxu0 %v8882
      %v8977 = vpop.f32.mrf.mxu0
      %v8978 = vadd.f32 %v8879, %v8977
      %v8979 = vpop.f32.mrf.mxu0
      %8980 = vmatprep.mubr.f32.mxu0 0.0
      %8981 = vmatmul.mubr.f32.gmra.mxu0 %v8885
      %v8982 = vpop.f32.mrf.mxu0
      %v8983 = vadd.f32 %v8879, %v8982
      %v8984 = vpop.f32.mrf.mxu0
      %8985 = vmatprep.mubr.f32.mxu0 0.0
      %8986 = vmatmul.mubr.f32.gmra.mxu0 %v8888
      %v8987 = vpop.f32.mrf.mxu0
      %v8988 = vadd.f32 %v8879, %v8987
      %v8989 = vpop.f32.mrf.mxu0
      %8990 = vmatprep.mubr.f32.mxu0 0.0
      %8991 = vmatmul.mubr.f32.gmra.mxu0 %v8891
      %v8992 = vpop.f32.mrf.mxu0
      %v8993 = vadd.f32 %v8879, %v8992
      %v8994 = vpop.f32.mrf.mxu0
      %8995 = vmatprep.mubr.f32.mxu0 0.0
      %8996 = vmatmul.mubr.f32.gmra.mxu0 %v8894
      %v8997 = vpop.f32.mrf.mxu0
      %v8998 = vadd.f32 %v8879, %v8997
      %v8999 = vpop.f32.mrf.mxu0
      %9000 = vmatprep.mubr.f32.mxu0 0.0
      %9001 = vmatmul.mubr.f32.gmra.mxu0 %v8897
      %v9002 = vpop.f32.mrf.mxu0
      %v9003 = vadd.f32 %v8879, %v9002
      %v9004 = vpop.f32.mrf.mxu0
      %9005 = vmatprep.mubr.f32.mxu0 0.0
      %9006 = vmatmul.mubr.f32.gmra.mxu0 %v8900
      %v9007 = vpop.f32.mrf.mxu0
      %v9008 = vadd.f32 %v8879, %v9007
      %v9009 = vpop.f32.mrf.mxu0
      %9010 = vmatprep.mubr.f32.mxu0 0.0
      %9011 = vmatmul.mubr.f32.gmra.mxu0 %v8903
      %v9012 = vpop.f32.mrf.mxu0
      %v9013 = vadd.f32 %v8879, %v9012
      %v9014 = vpop.f32.mrf.mxu0
      %9015 = vmatprep.mubr.f32.mxu0 0.0
      %9016 = vmatmul.mubr.f32.gmra.mxu0 %v8906
      %v9017 = vpop.f32.mrf.mxu0
      %v9018 = vadd.f32 %v8879, %v9017
      %v9019 = vpop.f32.mrf.mxu0
      %9020 = vmatprep.mubr.f32.mxu0 0.0
      %9021 = vmatmul.mubr.f32.gmra.mxu0 %v8909
      %v9022 = vpop.f32.mrf.mxu0
      %v9023 = vadd.f32 %v8879, %v9022
      %v9024 = vpop.f32.mrf.mxu0
      %9025 = vdwg.mxu0
      %v9026 = vmax.f32 %v8978, 0.0
      %v9027 = vmax.f32 %v8983, 0.0
      %v9028 = vmax.f32 %v8988, 0.0
      %v9029 = vmax.f32 %v8993, 0.0
      %v9030 = vmax.f32 %v8998, 0.0
      %v9031 = vmax.f32 %v9003, 0.0
      %v9032 = vmax.f32 %v9008, 0.0
      %v9033 = vmax.f32 %v9013, 0.0
      %v9034 = vmax.f32 %v9018, 0.0
      %v9035 = vmax.f32 %v9023, 0.0
      %v9036 = vld [vmem:[%s14] sm:$0xff]
      %v9037 = vld [vmem:[%s14 + $0x8] sm:$0xff]
      %v9038 = vld [vmem:[%s14 + $0x10] sm:$0xff]
      %v9039 = vld [vmem:[%s14 + $0x18] sm:$0xff]
      %v9040 = vld [vmem:[%s14 + $0x20] sm:$0xff]
      %v9041 = vld [vmem:[%s14 + $0x28] sm:$0xff]
      %v9042 = vld [vmem:[%s14 + $0x30] sm:$0xff]
      %v9043 = vld [vmem:[%s14 + $0x38] sm:$0xff]
      %v9045 = vsel %vm737, %v9026, 0
      %v9048 = vsel %vm737, %v9027, 0
      %v9051 = vsel %vm737, %v9028, 0
      %v9054 = vsel %vm737, %v9029, 0
      %v9057 = vsel %vm737, %v9030, 0
      %v9060 = vsel %vm737, %v9031, 0
      %v9063 = vsel %vm737, %v9032, 0
      %v9066 = vsel %vm737, %v9033, 0
      %v9069 = vsel %vm737, %v9034, 0
      %v9072 = vsel %vm737, %v9035, 0
      %9074 = vmatprep.subr.mxu0 0.0
      %9075 = vmatpush1.msra.mxu0 0.0
      %9076 = vmatprep.subr.mxu0 0.0
      %9077 = vmatpush1.msra.mxu0 0.0
      %9078 = vmatprep.subr.mxu0 0.0
      %9079 = vmatpush1.msra.mxu0 0.0
      %9080 = vmatprep.subr.mxu0 0.0
      %9081 = vmatpush1.msra.mxu0 0.0
      %9082 = vmatprep.subr.mxu0 0.0
      %9083 = vmatpush1.msra.mxu0 0.0
      %9084 = vmatprep.subr.mxu0 0.0
      %9085 = vmatpush1.msra.mxu0 0.0
      %9086 = vmatprep.subr.mxu0 0.0
      %9087 = vmatpush1.msra.mxu0 0.0
      %9088 = vmatprep.subr.mxu0 0.0
      %9089 = vmatpush1.msra.mxu0 0.0
      %9090 = vmatprep.subr.mxu0 0.0
      %9091 = vmatpush1.msra.mxu0 %v9043
      %9092 = vmatprep.subr.mxu0 0.0
      %9093 = vmatpush1.msra.mxu0 %v9042
      %9094 = vmatprep.subr.mxu0 0.0
      %9095 = vmatpush1.msra.mxu0 %v9041
      %9096 = vmatprep.subr.mxu0 0.0
      %9097 = vmatpush1.msra.mxu0 %v9040
      %9098 = vmatprep.subr.mxu0 0.0
      %9099 = vmatpush1.msra.mxu0 %v9039
      %9100 = vmatprep.subr.mxu0 0.0
      %9101 = vmatpush1.msra.mxu0 %v9038
      %9102 = vmatprep.subr.mxu0 0.0
      %9103 = vmatpush1.msra.mxu0 %v9037
      %9104 = vmatprep.subr.mxu0 0.0
      %9105 = vmatpush1.msra.mxu0 %v9036
      %9106 = vmatprep.subr.mxu0 0.0
      %9107 = vmatpush2.msra.mxu0 0.0
      %9108 = vmatprep.subr.mxu0 0.0
      %9109 = vmatpush2.msra.mxu0 0.0
      %9110 = vmatprep.subr.mxu0 0.0
      %9111 = vmatpush2.msra.mxu0 0.0
      %9112 = vmatprep.subr.mxu0 0.0
      %9113 = vmatpush2.msra.mxu0 0.0
      %9114 = vmatprep.subr.mxu0 0.0
      %9115 = vmatpush2.msra.mxu0 0.0
      %9116 = vmatprep.subr.mxu0 0.0
      %9117 = vmatpush2.msra.mxu0 0.0
      %9118 = vmatprep.subr.mxu0 0.0
      %9119 = vmatpush2.msra.mxu0 0.0
      %9120 = vmatprep.subr.mxu0 0.0
      %9121 = vmatpush2.msra.mxu0 0.0
      %9122 = vmatprep.subr.mxu0 0.0
      %9123 = vmatpush2.msra.mxu0 0.0
      %9124 = vmatprep.subr.mxu0 0.0
      %9125 = vmatpush2.msra.mxu0 0.0
      %9126 = vmatprep.subr.mxu0 0.0
      %9127 = vmatpush2.msra.mxu0 0.0
      %9128 = vmatprep.subr.mxu0 0.0
      %9129 = vmatpush2.msra.mxu0 0.0
      %9130 = vmatprep.subr.mxu0 0.0
      %9131 = vmatpush2.msra.mxu0 0.0
      %9132 = vmatprep.subr.mxu0 0.0
      %9133 = vmatpush2.msra.mxu0 0.0
      %9134 = vmatprep.subr.mxu0 0.0
      %9135 = vmatpush2.msra.mxu0 0.0
      %9136 = vmatprep.subr.mxu0 0.0
      %9137 = vmatpush2.msra.mxu0 0.0
      %9138 = vmatprep.mubr.f32.mxu0 0.0
      %9139 = vmatmul.mubr.f32.gmra.mxu0 %v9045
      %v9140 = vpop.f32.mrf.mxu0
      %v9141 = vadd.f32 0.0, %v9140
      %v9142 = vpop.f32.mrf.mxu0
      %9143 = vmatprep.mubr.f32.mxu0 0.0
      %9144 = vmatmul.mubr.f32.gmra.mxu0 %v9048
      %v9145 = vpop.f32.mrf.mxu0
      %v9146 = vadd.f32 0.0, %v9145
      %v9147 = vpop.f32.mrf.mxu0
      %9148 = vmatprep.mubr.f32.mxu0 0.0
      %9149 = vmatmul.mubr.f32.gmra.mxu0 %v9051
      %v9150 = vpop.f32.mrf.mxu0
      %v9151 = vadd.f32 0.0, %v9150
      %v9152 = vpop.f32.mrf.mxu0
      %9153 = vmatprep.mubr.f32.mxu0 0.0
      %9154 = vmatmul.mubr.f32.gmra.mxu0 %v9054
      %v9155 = vpop.f32.mrf.mxu0
      %v9156 = vadd.f32 0.0, %v9155
      %v9157 = vpop.f32.mrf.mxu0
      %9158 = vmatprep.mubr.f32.mxu0 0.0
      %9159 = vmatmul.mubr.f32.gmra.mxu0 %v9057
      %v9160 = vpop.f32.mrf.mxu0
      %v9161 = vadd.f32 0.0, %v9160
      %v9162 = vpop.f32.mrf.mxu0
      %9163 = vmatprep.mubr.f32.mxu0 0.0
      %9164 = vmatmul.mubr.f32.gmra.mxu0 %v9060
      %v9165 = vpop.f32.mrf.mxu0
      %v9166 = vadd.f32 0.0, %v9165
      %v9167 = vpop.f32.mrf.mxu0
      %9168 = vmatprep.mubr.f32.mxu0 0.0
      %9169 = vmatmul.mubr.f32.gmra.mxu0 %v9063
      %v9170 = vpop.f32.mrf.mxu0
      %v9171 = vadd.f32 0.0, %v9170
      %v9172 = vpop.f32.mrf.mxu0
      %9173 = vmatprep.mubr.f32.mxu0 0.0
      %9174 = vmatmul.mubr.f32.gmra.mxu0 %v9066
      %v9175 = vpop.f32.mrf.mxu0
      %v9176 = vadd.f32 0.0, %v9175
      %v9177 = vpop.f32.mrf.mxu0
      %9178 = vmatprep.mubr.f32.mxu0 0.0
      %9179 = vmatmul.mubr.f32.gmra.mxu0 %v9069
      %v9180 = vpop.f32.mrf.mxu0
      %v9181 = vadd.f32 0.0, %v9180
      %v9182 = vpop.f32.mrf.mxu0
      %9183 = vmatprep.mubr.f32.mxu0 0.0
      %9184 = vmatmul.mubr.f32.gmra.mxu0 %v9072
      %v9185 = vpop.f32.mrf.mxu0
      %v9186 = vadd.f32 0.0, %v9185
      %v9187 = vpop.f32.mrf.mxu0
      %9188 = vdwg.mxu0
      %v9189 = vadd.f32 %v8860, %v9141
      %v9190 = vadd.f32 %v8861, %v9146
      %v9191 = vadd.f32 %v8862, %v9151
      %v9192 = vadd.f32 %v8863, %v9156
      %v9193 = vadd.f32 %v8864, %v9161
      %v9194 = vadd.f32 %v8865, %v9166
      %v9195 = vadd.f32 %v8866, %v9171
      %v9196 = vadd.f32 %v8867, %v9176
      %v9197 = vadd.f32 %v8868, %v9181
      %v9198 = vadd.f32 %v8869, %v9186
      %v9199 = vld [vmem:[%s15] sm:$0x1]
      %v9201 = vlaneseq
      %v9202 = vshrl.u32 %v9201, 7
      %v9203 = vsub.s32 0, %v9202
      %v9204 = vrot.slane %v9199, %v9203
      %v9206 = vadd.f32 %v9189, %v9204
      %v9207 = vadd.f32 %v9190, %v9204
      %v9208 = vadd.f32 %v9191, %v9204
      %v9209 = vadd.f32 %v9192, %v9204
      %v9210 = vadd.f32 %v9193, %v9204
      %v9211 = vadd.f32 %v9194, %v9204
      %v9212 = vadd.f32 %v9195, %v9204
      %v9213 = vadd.f32 %v9196, %v9204
      %v9214 = vadd.f32 %v9197, %v9204
      %v9215 = vadd.f32 %v9198, %v9204
      %v9216 = vsel %vm726, %v9206, 0.0
      %9217 = vadd.xlane.f32.xlu0 %v9216
      %v9218 = vpop.xlane.xlu0 %9217
      %v9219 = vsel %vm726, %v9207, 0.0
      %9220 = vadd.xlane.f32.xlu0 %v9219
      %v9221 = vpop.xlane.xlu0 %9220
      %v9222 = vsel %vm726, %v9208, 0.0
      %9223 = vadd.xlane.f32.xlu0 %v9222
      %v9224 = vpop.xlane.xlu0 %9223
      %v9225 = vsel %vm726, %v9209, 0.0
      %9226 = vadd.xlane.f32.xlu0 %v9225
      %v9227 = vpop.xlane.xlu0 %9226
      %v9228 = vsel %vm726, %v9210, 0.0
      %9229 = vadd.xlane.f32.xlu0 %v9228
      %v9230 = vpop.xlane.xlu0 %9229
      %v9231 = vsel %vm726, %v9211, 0.0
      %9232 = vadd.xlane.f32.xlu0 %v9231
      %v9233 = vpop.xlane.xlu0 %9232
      %v9234 = vsel %vm726, %v9212, 0.0
      %9235 = vadd.xlane.f32.xlu0 %v9234
      %v9236 = vpop.xlane.xlu0 %9235
      %v9237 = vsel %vm726, %v9213, 0.0
      %9238 = vadd.xlane.f32.xlu0 %v9237
      %v9239 = vpop.xlane.xlu0 %9238
      %v9240 = vsel %vm726, %v9214, 0.0
      %9241 = vadd.xlane.f32.xlu0 %v9240
      %v9242 = vpop.xlane.xlu0 %9241
      %v9243 = vsel %vm726, %v9215, 0.0
      %9244 = vadd.xlane.f32.xlu0 %v9243
      %v9245 = vpop.xlane.xlu0 %9244
      %v9246 = vmul.f32 %v9218, %v8735
      %v9247 = vmul.f32 %v9221, %v8735
      %v9248 = vmul.f32 %v9224, %v8735
      %v9249 = vmul.f32 %v9227, %v8735
      %v9250 = vmul.f32 %v9230, %v8735
      %v9251 = vmul.f32 %v9233, %v8735
      %v9252 = vmul.f32 %v9236, %v8735
      %v9253 = vmul.f32 %v9239, %v8735
      %v9254 = vmul.f32 %v9242, %v8735
      %v9255 = vmul.f32 %v9245, %v8735
      %v9256 = vsub.f32 %v9206, %v9246
      %v9257 = vsub.f32 %v9207, %v9247
      %v9258 = vsub.f32 %v9208, %v9248
      %v9259 = vsub.f32 %v9209, %v9249
      %v9260 = vsub.f32 %v9210, %v9250
      %v9261 = vsub.f32 %v9211, %v9251
      %v9262 = vsub.f32 %v9212, %v9252
      %v9263 = vsub.f32 %v9213, %v9253
      %v9264 = vsub.f32 %v9214, %v9254
      %v9265 = vsub.f32 %v9215, %v9255
      %v9266 = vmul.f32 %v9256, %v9256
      %v9267 = vmul.f32 %v9257, %v9257
      %v9268 = vmul.f32 %v9258, %v9258
      %v9269 = vmul.f32 %v9259, %v9259
      %v9270 = vmul.f32 %v9260, %v9260
      %v9271 = vmul.f32 %v9261, %v9261
      %v9272 = vmul.f32 %v9262, %v9262
      %v9273 = vmul.f32 %v9263, %v9263
      %v9274 = vmul.f32 %v9264, %v9264
      %v9275 = vmul.f32 %v9265, %v9265
      %v9276 = vsel %vm726, %v9266, 0.0
      %9277 = vadd.xlane.f32.xlu0 %v9276
      %v9278 = vpop.xlane.xlu0 %9277
      %v9279 = vsel %vm726, %v9267, 0.0
      %9280 = vadd.xlane.f32.xlu0 %v9279
      %v9281 = vpop.xlane.xlu0 %9280
      %v9282 = vsel %vm726, %v9268, 0.0
      %9283 = vadd.xlane.f32.xlu0 %v9282
      %v9284 = vpop.xlane.xlu0 %9283
      %v9285 = vsel %vm726, %v9269, 0.0
      %9286 = vadd.xlane.f32.xlu0 %v9285
      %v9287 = vpop.xlane.xlu0 %9286
      %v9288 = vsel %vm726, %v9270, 0.0
      %9289 = vadd.xlane.f32.xlu0 %v9288
      %v9290 = vpop.xlane.xlu0 %9289
      %v9291 = vsel %vm726, %v9271, 0.0
      %9292 = vadd.xlane.f32.xlu0 %v9291
      %v9293 = vpop.xlane.xlu0 %9292
      %v9294 = vsel %vm726, %v9272, 0.0
      %9295 = vadd.xlane.f32.xlu0 %v9294
      %v9296 = vpop.xlane.xlu0 %9295
      %v9297 = vsel %vm726, %v9273, 0.0
      %9298 = vadd.xlane.f32.xlu0 %v9297
      %v9299 = vpop.xlane.xlu0 %9298
      %v9300 = vsel %vm726, %v9274, 0.0
      %9301 = vadd.xlane.f32.xlu0 %v9300
      %v9302 = vpop.xlane.xlu0 %9301
      %v9303 = vsel %vm726, %v9275, 0.0
      %9304 = vadd.xlane.f32.xlu0 %v9303
      %v9305 = vpop.xlane.xlu0 %9304
      %v9306 = vmul.f32 %v9278, %v8735
      %v9307 = vmul.f32 %v9281, %v8735
      %v9308 = vmul.f32 %v9284, %v8735
      %v9309 = vmul.f32 %v9287, %v8735
      %v9310 = vmul.f32 %v9290, %v8735
      %v9311 = vmul.f32 %v9293, %v8735
      %v9312 = vmul.f32 %v9296, %v8735
      %v9313 = vmul.f32 %v9299, %v8735
      %v9314 = vmul.f32 %v9302, %v8735
      %v9315 = vmul.f32 %v9305, %v8735
      %v9316 = vadd.f32 %v9306, 1e-05
      %v9317 = vadd.f32 %v9307, 1e-05
      %v9318 = vadd.f32 %v9308, 1e-05
      %v9319 = vadd.f32 %v9309, 1e-05
      %v9320 = vadd.f32 %v9310, 1e-05
      %v9321 = vadd.f32 %v9311, 1e-05
      %v9322 = vadd.f32 %v9312, 1e-05
      %v9323 = vadd.f32 %v9313, 1e-05
      %v9324 = vadd.f32 %v9314, 1e-05
      %v9325 = vadd.f32 %v9315, 1e-05
      %v9326 = vrsqrt.pop %v9316
      %v9327 = vrsqrt.pop %v9317
      %v9328 = vrsqrt.pop %v9318
      %v9329 = vrsqrt.pop %v9319
      %v9330 = vrsqrt.pop %v9320
      %v9331 = vrsqrt.pop %v9321
      %v9332 = vrsqrt.pop %v9322
      %v9333 = vrsqrt.pop %v9323
      %v9334 = vrsqrt.pop %v9324
      %v9335 = vrsqrt.pop %v9325
      %v9336 = vmul.f32 %v9256, %v9326
      %v9337 = vmul.f32 %v9257, %v9327
      %v9338 = vmul.f32 %v9258, %v9328
      %v9339 = vmul.f32 %v9259, %v9329
      %v9340 = vmul.f32 %v9260, %v9330
      %v9341 = vmul.f32 %v9261, %v9331
      %v9342 = vmul.f32 %v9262, %v9332
      %v9343 = vmul.f32 %v9263, %v9333
      %v9344 = vmul.f32 %v9264, %v9334
      %v9345 = vmul.f32 %v9265, %v9335
      %v9346 = vld [vmem:[%s16] sm:$0x1]
      %v9348 = vlaneseq
      %v9349 = vshrl.u32 %v9348, 7
      %v9350 = vsub.s32 0, %v9349
      %v9351 = vrot.slane %v9346, %v9350
      %v9353 = vmul.f32 %v9336, %v9351
      %v9354 = vmul.f32 %v9337, %v9351
      %v9355 = vmul.f32 %v9338, %v9351
      %v9356 = vmul.f32 %v9339, %v9351
      %v9357 = vmul.f32 %v9340, %v9351
      %v9358 = vmul.f32 %v9341, %v9351
      %v9359 = vmul.f32 %v9342, %v9351
      %v9360 = vmul.f32 %v9343, %v9351
      %v9361 = vmul.f32 %v9344, %v9351
      %v9362 = vmul.f32 %v9345, %v9351
      %v9363 = vld [vmem:[%s17] sm:$0x1]
      %v9365 = vlaneseq
      %v9366 = vshrl.u32 %v9365, 7
      %v9367 = vsub.s32 0, %v9366
      %v9368 = vrot.slane %v9363, %v9367
      %v9370 = vadd.f32 %v9353, %v9368
      %v9371 = vadd.f32 %v9354, %v9368
      %v9372 = vadd.f32 %v9355, %v9368
      %v9373 = vadd.f32 %v9356, %v9368
      %v9374 = vadd.f32 %v9357, %v9368
      %v9375 = vadd.f32 %v9358, %v9368
      %v9376 = vadd.f32 %v9359, %v9368
      %v9377 = vadd.f32 %v9360, %v9368
      %v9378 = vadd.f32 %v9361, %v9368
      %v9379 = vadd.f32 %v9362, %v9368
      %9380 = vst.msk [vmem:[%s615] sm:$0xff] %vm726, %v9370
      %9381 = vst.msk [vmem:[%s615 + $0x8] sm:$0xff] %vm726, %v9371
      %9382 = vst.msk [vmem:[%s615 + $0x10] sm:$0xff] %vm726, %v9372
      %9383 = vst.msk [vmem:[%s615 + $0x18] sm:$0xff] %vm726, %v9373
      %9384 = vst.msk [vmem:[%s615 + $0x20] sm:$0xff] %vm726, %v9374
      %9385 = vst.msk [vmem:[%s615 + $0x28] sm:$0xff] %vm726, %v9375
      %9386 = vst.msk [vmem:[%s615 + $0x30] sm:$0xff] %vm726, %v9376
      %9387 = vst.msk [vmem:[%s615 + $0x38] sm:$0xff] %vm726, %v9377
      %9388 = vst.msk [vmem:[%s615 + $0x40] sm:$0xff] %vm726, %v9378
      %9389 = vst.msk [vmem:[%s615 + $0x48] sm:$0xff] %vm726, %v9379
      %p9390 = scmp.lt.s32.totalorder %s29, 1
      %s9391 = scalar_select %p9390, %s29, 1
      %s9392 = smul.addr %s9391, 10
      %s9393 = smul.addr %s9392, 8
      %s9394 = scalar_lea.vmem %s18, %s9393
      // Predicated region
      $region93: #{tpu_custom_call.1} parent=91 // pred_check
        %p9395 = pneg %p440
      $region94: #{tpu_custom_call.1} parent=91 // pred_check_branch
        %9397 = sbr.rel (%p9395) target = $region96
      $region95: #{tpu_custom_call.1} parent=91 // pred_region
        _
      $region96: #{tpu_custom_call.1} parent=91 // pred_fallthru
        _
    $region92: #{tpu_custom_call.1} parent=5 // pred_fallthru
      _
    %p9398 = scmp.le.s32.totalorder 2, %s24
    // Predicated region
    $region97: #{tpu_custom_call.1} parent=5 // pred_check
      %p9399 = pneg %p9398
    $region98: #{tpu_custom_call.1} parent=5 // pred_check_branch
      %9401 = sbr.rel (%p9399) target = $region100
    $region99: #{tpu_custom_call.1} parent=5 // pred_region
      %s9402 = ssub.s32 %s24, 2
      // Predicated region
      $region101: #{tpu_custom_call.1} parent=99 // pred_check
        %p9403 = pneg %p446
      $region102: #{tpu_custom_call.1} parent=99 // pred_check_branch
        %9405 = sbr.rel (%p9403) target = $region104
      $region103: #{tpu_custom_call.1} parent=99 // pred_region
        %p9406 = scmp.lt.s32.totalorder %s30, 1
        %s9407 = scalar_select %p9406, %s30, 1
        %s9408 = smul.addr %s9407, 10
        %s9409 = smul.addr %s9408, 8
        %s9410 = scalar_lea.vmem %s18, %s9409
      $region104: #{tpu_custom_call.1} parent=99 // pred_fallthru
        _
    $region100: #{tpu_custom_call.1} parent=5 // pred_fallthru
      _
  $region6: #{tpu_custom_call.1} parent=0 // loop_footer
    %s28 = sadd.s32 1, %s24
  $region7: #{tpu_custom_call.1} parent=0 // loop_footer_branch
    %23 = sbr.rel target = $region3
  $region8: #{tpu_custom_call.1} parent=0 // loop_exit
    _

</llo_original>
